<compile_context>
chip_gen: v7x
topology: tpu7x:2x2x1
jax: 0.10.0
libtpu: 0.0.40
codegen_flags: <defaults>
</compile_context>

<pallas_src>
import functools

import jax
import jax.numpy as jnp
from jax.experimental import pallas as pl
from jax.experimental.pallas import tpu as pltpu

EPS = 1e-5
_NBRANCH = 4      # dilations 1..4
_KTAPS = 9        # 3x3 kernel


# ----------------------------------------------------------------------------
# Fused kernel: one DilationBlock (4 dilated conv branches) + outer BN + ReLU
# for one batch element.  Layout: channels on sublanes, flattened padded
# spatial plane (L = Hp*Wp, multiple of 128) on lanes.
# ----------------------------------------------------------------------------
def _fused_dilation_block_kernel(x_ref, w_ref, c1_ref, a2_ref, c2_ref, m_ref,
                                 o_ref, *, wp):
    _, cin, L = x_ref.shape            # x block: (1, Cin, L)
    n_taps, cb, _ = w_ref.shape        # w block: (4*9, Cb, Cin), BN1 scale folded
    n_branch = n_taps // _KTAPS

    x = x_ref[0]                       # (Cin, L)  padded-flat activation
    mask = m_ref[...]                  # (1, L)    1.0 on the interior, 0.0 on pad

    def shifted(off):
        # y[:, i] = x[:, i + off] for every interior output position.
        # (The circular wrap only ever lands on the padding ring, which is
        #  masked to zero below, so correctness is unaffected.)
        s = off % L
        if s == 0:
            return x
        return jnp.concatenate([x[:, s:], x[:, :s]], axis=1)

    for b in range(n_branch):
        d = b + 1                                         # dilation of branch b
        acc = jnp.zeros((cb, cin, L), jnp.float32)
        for ky in range(3):
            for kx in range(3):
                off = (ky - 1) * d * wp + (kx - 1) * d    # static flat offset
                xs = shifted(off)                         # (Cin, L)
                wt = w_ref[b * _KTAPS + ky * 3 + kx]      # (Cb, Cin)
                # one VPU broadcast-FMA per tap (no per-Cin scalar broadcasts)
                acc = acc + wt[:, :, None] * xs[None, :, :]
        z = jnp.sum(acc, axis=1)                          # contract Cin -> (Cb, L)

        lo, hi = b * cb, (b + 1) * cb
        y = jnp.maximum(z + c1_ref[lo:hi], 0.0)           # conv bias + BN1 (folded) + ReLU
        y = jnp.maximum(y * a2_ref[lo:hi] + c2_ref[lo:hi], 0.0)   # outer BN + ReLU
        # zero the padding ring so the next dilated block can consume this
        # activation directly (its 'same' zero-padding is already in place).
        o_ref[0, lo:hi, :] = y * mask


def _dilation_block_call(xf, w_taps, c1, a2, c2, *, mask, wp):
    """xf: (N, Cin, L) padded-flat f32.  Returns (N, 4*Cb, L) padded-flat f32."""
    N, cin, L = xf.shape
    n_taps, cb, cin_w = w_taps.shape
    assert cin_w == cin
    ctot = (n_taps // _KTAPS) * cb

    kernel = functools.partial(_fused_dilation_block_kernel, wp=wp)
    return pl.pallas_call(
        kernel,
        out_shape=jax.ShapeDtypeStruct((N, ctot, L), jnp.float32),
        grid=(N,),
        in_specs=[
            pl.BlockSpec((1, cin, L), lambda n: (n, 0, 0)),
            pl.BlockSpec((n_taps, cb, cin), lambda n: (0, 0, 0)),
            pl.BlockSpec((ctot, 1), lambda n: (0, 0)),
            pl.BlockSpec((ctot, 1), lambda n: (0, 0)),
            pl.BlockSpec((ctot, 1), lambda n: (0, 0)),
            pl.BlockSpec((1, L), lambda n: (0, 0)),
        ],
        out_specs=pl.BlockSpec((1, ctot, L), lambda n: (n, 0, 0)),
        compiler_params=pltpu.CompilerParams(
            dimension_semantics=("parallel",)),
    )(xf, w_taps, c1, a2, c2, mask)


# ----------------------------------------------------------------------------
# Host-side parameter folding.
# ----------------------------------------------------------------------------
def fold_block_params(branches, outer_bn):
    """Fold per-branch conv bias + BN1 and the outer BN into kernel operands."""
    w_rows, c1 = [], []
    for br in branches:
        a1 = br["gamma"] / jnp.sqrt(br["var"] + EPS)            # (Cb,)
        wf = br["w"] * a1[:, None, None, None]                  # OIHW, BN scale folded
        # tap-major layout (ky, kx, Cout, Cin) -> (9, Cb, Cin)
        w_rows.append(jnp.transpose(wf, (2, 3, 0, 1)).reshape(_KTAPS, *wf.shape[:2]))
        c1.append(br["beta"] + (br["b"] - br["mean"]) * a1)
    g2, b2, m2, v2 = outer_bn
    a2 = g2 / jnp.sqrt(v2 + EPS)
    c2 = b2 - m2 * a2
    return (jnp.concatenate(w_rows, axis=0).astype(jnp.float32),      # (36, Cb, Cin)
            jnp.concatenate(c1).reshape(-1, 1).astype(jnp.float32),   # (Ctot, 1)
            a2.reshape(-1, 1).astype(jnp.float32),                    # (Ctot, 1)
            c2.reshape(-1, 1).astype(jnp.float32))                    # (Ctot, 1)


def init_raw_params(key, in_ch, out_ch):
    """PyTorch-shaped parameters (Conv OIHW + fresh eval-mode BatchNorm)."""
    half = out_ch // 2          # channels of each DilationBlock output
    cb = half // _NBRANCH       # channels per dilation branch

    def conv_bn(k, cin, cout):
        kw, kb = jax.random.split(k)
        return {
            "w": 0.1 * jax.random.normal(kw, (cout, cin, 3, 3), jnp.float32),
            "b": 0.1 * jax.random.normal(kb, (cout,), jnp.float32),
            "gamma": jnp.ones((cout,), jnp.float32),
            "beta": jnp.zeros((cout,), jnp.float32),
            "mean": jnp.zeros((cout,), jnp.float32),
            "var": jnp.ones((cout,), jnp.float32),
        }

    def fresh_bn(c):
        return (jnp.ones((c,), jnp.float32), jnp.zeros((c,), jnp.float32),
                jnp.zeros((c,), jnp.float32), jnp.ones((c,), jnp.float32))

    keys = jax.random.split(key, 2 * _NBRANCH)
    return {
        "block1": [conv_bn(keys[i], in_ch, cb) for i in range(_NBRANCH)],
        "block2": [conv_bn(keys[_NBRANCH + i], half, cb) for i in range(_NBRANCH)],
        "bn1": fresh_bn(half),
        "bn2": fresh_bn(half),
    }


# ----------------------------------------------------------------------------
# Forward pass: 2 fused pallas_calls, NCHW in / NCHW out, pad once.
# ----------------------------------------------------------------------------
def dil2plus_in_conv(x_nchw, folded, *, max_dil=_NBRANCH):
    N, Cin, H, W = x_nchw.shape
    p = max_dil
    Hp = H + 2 * p
    Wp = W + 2 * p
    while (Hp * Wp) % 128 != 0:       # right-pad W so the flat plane is lane-dense
        Wp += 1
    L = Hp * Wp

    xpad = jnp.pad(x_nchw.astype(jnp.float32),
                   ((0, 0), (0, 0), (p, p), (p, Wp - W - p)))
    xf = xpad.reshape(N, Cin, L)

    row = jnp.arange(Hp)[:, None]
    col = jnp.arange(Wp)[None, :]
    interior = ((row >= p) & (row < p + H) & (col >= p) & (col < p + W))
    mask = interior.astype(jnp.float32).reshape(1, L)

    x1f = _dilation_block_call(xf, *folded["block1"], mask=mask, wp=Wp)
    x2f = _dilation_block_call(x1f, *folded["block2"], mask=mask, wp=Wp)

    outf = jnp.concatenate([x1f, x2f], axis=1)                # (N, out_ch, L)
    return outf.reshape(N, -1, Hp, Wp)[:, :, p:p + H, p:p + W]  # crop to NCHW


# ----------------------------------------------------------------------------
# Pure-JAX reference (lax.conv_general_dilated) for a real correctness check.
# ----------------------------------------------------------------------------
def _bn_eval(y, gamma, beta, mean, var):
    inv = gamma / jnp.sqrt(var + EPS)
    return (y - mean[None, :, None, None]) * inv[None, :, None, None] \
        + beta[None, :, None, None]


def _ref_dilation_block(x, branches):
    outs = []
    for d, br in zip(range(1, _NBRANCH + 1), branches):
        y = jax.lax.conv_general_dilated(
            x, br["w"], window_strides=(1, 1), padding=[(d, d), (d, d)],
            rhs_dilation=(d, d), dimension_numbers=("NCHW", "OIHW", "NCHW"))
        y = y + br["b"][None, :, None, None]
        y = _bn_eval(y, br["gamma"], br["beta"], br["mean"], br["var"])
        outs.append(jnp.maximum(y, 0.0))
    return jnp.concatenate(outs, axis=1)


def ref_forward(x, raw):
    h1 = _ref_dilation_block(x, raw["block1"])
    x1 = jnp.maximum(_bn_eval(h1, *raw["bn1"]), 0.0)
    h2 = _ref_dilation_block(x1, raw["block2"])
    x2 = jnp.maximum(_bn_eval(h2, *raw["bn2"]), 0.0)
    return jnp.concatenate([x1, x2], axis=1)


if __name__ == "__main__":
    in_ch, out_ch = 4, 16
    N, H, W = 2, 16, 16

    key = jax.random.PRNGKey(0)
    k_params, k_x = jax.random.split(key)
    raw = init_raw_params(k_params, in_ch, out_ch)
    x = jax.random.normal(k_x, (N, in_ch, H, W), jnp.float32)   # NCHW, like PyTorch

    folded = {
        "block1": fold_block_params(raw["block1"], raw["bn1"]),
        "block2": fold_block_params(raw["block2"], raw["bn2"]),
    }

    fwd = jax.jit(lambda xx: dil2plus_in_conv(xx, folded))
    y = fwd(x)
    jax.block_until_ready(y)

    y_ref = jax.jit(lambda xx: ref_forward(xx, raw))(x)
    max_err = float(jnp.max(jnp.abs(y - y_ref)))

    assert y.shape == (N, out_ch, H, W), y.shape
    assert y.dtype == jnp.float32
    assert bool(jnp.all(y >= 0.0))           # final ReLU => non-negative
    assert max_err < 1e-3, f"mismatch vs conv reference: {max_err}"
    print("KERNEL_OK")
</pallas_src>

<mosaic_0001>
module attributes {stable_mosaic.version = 11 : i64} {
  func.func @_fused_dilation_block_kernel(%arg0: i32, %arg1: memref<1x8x768xf32, #tpu.memory_space<vmem>>, %arg2: memref<36x2x8xf32, #tpu.memory_space<vmem>>, %arg3: memref<8x1xf32, #tpu.memory_space<vmem>>, %arg4: memref<8x1xf32, #tpu.memory_space<vmem>>, %arg5: memref<8x1xf32, #tpu.memory_space<vmem>>, %arg6: memref<1x768xf32, #tpu.memory_space<vmem>>, %arg7: memref<1x8x768xf32, #tpu.memory_space<vmem>>) attributes {dimension_semantics = [#tpu.dimension_semantics<parallel>], iteration_bounds = array<i64: 2>, scalar_prefetch = 0 : i64, scratch_operands = 0 : i64, tpu.core_type = #tpu.core_type<tc>, window_params = [{transform_indices = @transform_0, window_bounds = array<i64: 1, 8, 768>}, {pipeline_mode = #tpu.pipeline_mode<synchronous>, transform_indices = @transform_1, window_bounds = array<i64: 36, 2, 8>}, {pipeline_mode = #tpu.pipeline_mode<synchronous>, transform_indices = @transform_2, window_bounds = array<i64: 8, 1>}, {pipeline_mode = #tpu.pipeline_mode<synchronous>, transform_indices = @transform_3, window_bounds = array<i64: 8, 1>}, {pipeline_mode = #tpu.pipeline_mode<synchronous>, transform_indices = @transform_4, window_bounds = array<i64: 8, 1>}, {pipeline_mode = #tpu.pipeline_mode<synchronous>, transform_indices = @transform_5, window_bounds = array<i64: 1, 768>}, {transform_indices = @transform_6, window_bounds = array<i64: 1, 8, 768>}]} {
    %c0 = arith.constant 0 : index
    %c0_0 = arith.constant 0 : index
    %c0_1 = arith.constant 0 : index
    %0 = vector.load %arg1[%c0, %c0_0, %c0_1] : memref<1x8x768xf32, #tpu.memory_space<vmem>>, vector<1x8x768xf32>
    %1 = vector.shape_cast %0 : vector<1x8x768xf32> to vector<8x768xf32>
    %c0_2 = arith.constant 0 : index
    %c0_3 = arith.constant 0 : index
    %2 = vector.load %arg6[%c0_2, %c0_3] : memref<1x768xf32, #tpu.memory_space<vmem>>, vector<1x768xf32>
    %cst = arith.constant 0.000000e+00 : f32
    %3 = vector.broadcast %cst : f32 to vector<2x8x768xf32>
    %4 = vector.extract_strided_slice %1 {offsets = [0, 735], sizes = [8, 33], strides = [1, 1]} : vector<8x768xf32> to vector<8x33xf32>
    %5 = vector.extract_strided_slice %1 {offsets = [0, 0], sizes = [8, 735], strides = [1, 1]} : vector<8x768xf32> to vector<8x735xf32>
    %6 = tpu.concatenate %4, %5 in 1 : vector<8x33xf32>, vector<8x735xf32> -> vector<8x768xf32>
    %c0_4 = arith.constant 0 : index
    %c0_5 = arith.constant 0 : index
    %c0_6 = arith.constant 0 : index
    %7 = vector.load %arg2[%c0_4, %c0_5, %c0_6] : memref<36x2x8xf32, #tpu.memory_space<vmem>>, vector<1x2x8xf32>
    %8 = vector.shape_cast %7 : vector<1x2x8xf32> to vector<2x8xf32>
    %9 = vector.shape_cast %8 : vector<2x8xf32> to vector<2x8x1xf32>
    %10 = vector.shape_cast %6 : vector<8x768xf32> to vector<1x8x768xf32>
    %11 = vector.broadcast %9 : vector<2x8x1xf32> to vector<2x8x768xf32>
    %12 = vector.broadcast %10 : vector<1x8x768xf32> to vector<2x8x768xf32>
    %13 = arith.mulf %11, %12 : vector<2x8x768xf32>
    %14 = arith.addf %3, %13 : vector<2x8x768xf32>
    %15 = vector.extract_strided_slice %1 {offsets = [0, 736], sizes = [8, 32], strides = [1, 1]} : vector<8x768xf32> to vector<8x32xf32>
    %16 = vector.extract_strided_slice %1 {offsets = [0, 0], sizes = [8, 736], strides = [1, 1]} : vector<8x768xf32> to vector<8x736xf32>
    %17 = tpu.concatenate %15, %16 in 1 : vector<8x32xf32>, vector<8x736xf32> -> vector<8x768xf32>
    %c1 = arith.constant 1 : index
    %c0_7 = arith.constant 0 : index
    %c0_8 = arith.constant 0 : index
    %18 = vector.load %arg2[%c1, %c0_7, %c0_8] : memref<36x2x8xf32, #tpu.memory_space<vmem>>, vector<1x2x8xf32>
    %19 = vector.shape_cast %18 : vector<1x2x8xf32> to vector<2x8xf32>
    %20 = vector.shape_cast %19 : vector<2x8xf32> to vector<2x8x1xf32>
    %21 = vector.shape_cast %17 : vector<8x768xf32> to vector<1x8x768xf32>
    %22 = vector.broadcast %20 : vector<2x8x1xf32> to vector<2x8x768xf32>
    %23 = vector.broadcast %21 : vector<1x8x768xf32> to vector<2x8x768xf32>
    %24 = arith.mulf %22, %23 : vector<2x8x768xf32>
    %25 = arith.addf %14, %24 : vector<2x8x768xf32>
    %26 = vector.extract_strided_slice %1 {offsets = [0, 737], sizes = [8, 31], strides = [1, 1]} : vector<8x768xf32> to vector<8x31xf32>
    %27 = vector.extract_strided_slice %1 {offsets = [0, 0], sizes = [8, 737], strides = [1, 1]} : vector<8x768xf32> to vector<8x737xf32>
    %28 = tpu.concatenate %26, %27 in 1 : vector<8x31xf32>, vector<8x737xf32> -> vector<8x768xf32>
    %c2 = arith.constant 2 : index
    %c0_9 = arith.constant 0 : index
    %c0_10 = arith.constant 0 : index
    %29 = vector.load %arg2[%c2, %c0_9, %c0_10] : memref<36x2x8xf32, #tpu.memory_space<vmem>>, vector<1x2x8xf32>
    %30 = vector.shape_cast %29 : vector<1x2x8xf32> to vector<2x8xf32>
    %31 = vector.shape_cast %30 : vector<2x8xf32> to vector<2x8x1xf32>
    %32 = vector.shape_cast %28 : vector<8x768xf32> to vector<1x8x768xf32>
    %33 = vector.broadcast %31 : vector<2x8x1xf32> to vector<2x8x768xf32>
    %34 = vector.broadcast %32 : vector<1x8x768xf32> to vector<2x8x768xf32>
    %35 = arith.mulf %33, %34 : vector<2x8x768xf32>
    %36 = arith.addf %25, %35 : vector<2x8x768xf32>
    %37 = vector.extract_strided_slice %1 {offsets = [0, 767], sizes = [8, 1], strides = [1, 1]} : vector<8x768xf32> to vector<8x1xf32>
    %38 = vector.extract_strided_slice %1 {offsets = [0, 0], sizes = [8, 767], strides = [1, 1]} : vector<8x768xf32> to vector<8x767xf32>
    %39 = tpu.concatenate %37, %38 in 1 : vector<8x1xf32>, vector<8x767xf32> -> vector<8x768xf32>
    %c3 = arith.constant 3 : index
    %c0_11 = arith.constant 0 : index
    %c0_12 = arith.constant 0 : index
    %40 = vector.load %arg2[%c3, %c0_11, %c0_12] : memref<36x2x8xf32, #tpu.memory_space<vmem>>, vector<1x2x8xf32>
    %41 = vector.shape_cast %40 : vector<1x2x8xf32> to vector<2x8xf32>
    %42 = vector.shape_cast %41 : vector<2x8xf32> to vector<2x8x1xf32>
    %43 = vector.shape_cast %39 : vector<8x768xf32> to vector<1x8x768xf32>
    %44 = vector.broadcast %42 : vector<2x8x1xf32> to vector<2x8x768xf32>
    %45 = vector.broadcast %43 : vector<1x8x768xf32> to vector<2x8x768xf32>
    %46 = arith.mulf %44, %45 : vector<2x8x768xf32>
    %47 = arith.addf %36, %46 : vector<2x8x768xf32>
    %c4 = arith.constant 4 : index
    %c0_13 = arith.constant 0 : index
    %c0_14 = arith.constant 0 : index
    %48 = vector.load %arg2[%c4, %c0_13, %c0_14] : memref<36x2x8xf32, #tpu.memory_space<vmem>>, vector<1x2x8xf32>
    %49 = vector.shape_cast %48 : vector<1x2x8xf32> to vector<2x8xf32>
    %50 = vector.shape_cast %49 : vector<2x8xf32> to vector<2x8x1xf32>
    %51 = vector.shape_cast %1 : vector<8x768xf32> to vector<1x8x768xf32>
    %52 = vector.broadcast %50 : vector<2x8x1xf32> to vector<2x8x768xf32>
    %53 = vector.broadcast %51 : vector<1x8x768xf32> to vector<2x8x768xf32>
    %54 = arith.mulf %52, %53 : vector<2x8x768xf32>
    %55 = arith.addf %47, %54 : vector<2x8x768xf32>
    %56 = vector.extract_strided_slice %1 {offsets = [0, 1], sizes = [8, 767], strides = [1, 1]} : vector<8x768xf32> to vector<8x767xf32>
    %57 = vector.extract_strided_slice %1 {offsets = [0, 0], sizes = [8, 1], strides = [1, 1]} : vector<8x768xf32> to vector<8x1xf32>
    %58 = tpu.concatenate %56, %57 in 1 : vector<8x767xf32>, vector<8x1xf32> -> vector<8x768xf32>
    %c5 = arith.constant 5 : index
    %c0_15 = arith.constant 0 : index
    %c0_16 = arith.constant 0 : index
    %59 = vector.load %arg2[%c5, %c0_15, %c0_16] : memref<36x2x8xf32, #tpu.memory_space<vmem>>, vector<1x2x8xf32>
    %60 = vector.shape_cast %59 : vector<1x2x8xf32> to vector<2x8xf32>
    %61 = vector.shape_cast %60 : vector<2x8xf32> to vector<2x8x1xf32>
    %62 = vector.shape_cast %58 : vector<8x768xf32> to vector<1x8x768xf32>
    %63 = vector.broadcast %61 : vector<2x8x1xf32> to vector<2x8x768xf32>
    %64 = vector.broadcast %62 : vector<1x8x768xf32> to vector<2x8x768xf32>
    %65 = arith.mulf %63, %64 : vector<2x8x768xf32>
    %66 = arith.addf %55, %65 : vector<2x8x768xf32>
    %67 = vector.extract_strided_slice %1 {offsets = [0, 31], sizes = [8, 737], strides = [1, 1]} : vector<8x768xf32> to vector<8x737xf32>
    %68 = vector.extract_strided_slice %1 {offsets = [0, 0], sizes = [8, 31], strides = [1, 1]} : vector<8x768xf32> to vector<8x31xf32>
    %69 = tpu.concatenate %67, %68 in 1 : vector<8x737xf32>, vector<8x31xf32> -> vector<8x768xf32>
    %c6 = arith.constant 6 : index
    %c0_17 = arith.constant 0 : index
    %c0_18 = arith.constant 0 : index
    %70 = vector.load %arg2[%c6, %c0_17, %c0_18] : memref<36x2x8xf32, #tpu.memory_space<vmem>>, vector<1x2x8xf32>
    %71 = vector.shape_cast %70 : vector<1x2x8xf32> to vector<2x8xf32>
    %72 = vector.shape_cast %71 : vector<2x8xf32> to vector<2x8x1xf32>
    %73 = vector.shape_cast %69 : vector<8x768xf32> to vector<1x8x768xf32>
    %74 = vector.broadcast %72 : vector<2x8x1xf32> to vector<2x8x768xf32>
    %75 = vector.broadcast %73 : vector<1x8x768xf32> to vector<2x8x768xf32>
    %76 = arith.mulf %74, %75 : vector<2x8x768xf32>
    %77 = arith.addf %66, %76 : vector<2x8x768xf32>
    %78 = vector.extract_strided_slice %1 {offsets = [0, 32], sizes = [8, 736], strides = [1, 1]} : vector<8x768xf32> to vector<8x736xf32>
    %79 = vector.extract_strided_slice %1 {offsets = [0, 0], sizes = [8, 32], strides = [1, 1]} : vector<8x768xf32> to vector<8x32xf32>
    %80 = tpu.concatenate %78, %79 in 1 : vector<8x736xf32>, vector<8x32xf32> -> vector<8x768xf32>
    %c7 = arith.constant 7 : index
    %c0_19 = arith.constant 0 : index
    %c0_20 = arith.constant 0 : index
    %81 = vector.load %arg2[%c7, %c0_19, %c0_20] : memref<36x2x8xf32, #tpu.memory_space<vmem>>, vector<1x2x8xf32>
    %82 = vector.shape_cast %81 : vector<1x2x8xf32> to vector<2x8xf32>
    %83 = vector.shape_cast %82 : vector<2x8xf32> to vector<2x8x1xf32>
    %84 = vector.shape_cast %80 : vector<8x768xf32> to vector<1x8x768xf32>
    %85 = vector.broadcast %83 : vector<2x8x1xf32> to vector<2x8x768xf32>
    %86 = vector.broadcast %84 : vector<1x8x768xf32> to vector<2x8x768xf32>
    %87 = arith.mulf %85, %86 : vector<2x8x768xf32>
    %88 = arith.addf %77, %87 : vector<2x8x768xf32>
    %89 = vector.extract_strided_slice %1 {offsets = [0, 33], sizes = [8, 735], strides = [1, 1]} : vector<8x768xf32> to vector<8x735xf32>
    %90 = vector.extract_strided_slice %1 {offsets = [0, 0], sizes = [8, 33], strides = [1, 1]} : vector<8x768xf32> to vector<8x33xf32>
    %91 = tpu.concatenate %89, %90 in 1 : vector<8x735xf32>, vector<8x33xf32> -> vector<8x768xf32>
    %c8 = arith.constant 8 : index
    %c0_21 = arith.constant 0 : index
    %c0_22 = arith.constant 0 : index
    %92 = vector.load %arg2[%c8, %c0_21, %c0_22] : memref<36x2x8xf32, #tpu.memory_space<vmem>>, vector<1x2x8xf32>
    %93 = vector.shape_cast %92 : vector<1x2x8xf32> to vector<2x8xf32>
    %94 = vector.shape_cast %93 : vector<2x8xf32> to vector<2x8x1xf32>
    %95 = vector.shape_cast %91 : vector<8x768xf32> to vector<1x8x768xf32>
    %96 = vector.broadcast %94 : vector<2x8x1xf32> to vector<2x8x768xf32>
    %97 = vector.broadcast %95 : vector<1x8x768xf32> to vector<2x8x768xf32>
    %98 = arith.mulf %96, %97 : vector<2x8x768xf32>
    %99 = arith.addf %88, %98 : vector<2x8x768xf32>
    %cst_23 = arith.constant dense<0.000000e+00> : vector<2x768xf32>
    %100 = vector.multi_reduction <add>, %99, %cst_23 [1] : vector<2x8x768xf32> to vector<2x768xf32>
    %c0_24 = arith.constant 0 : index
    %c0_25 = arith.constant 0 : index
    %101 = vector.load %arg3[%c0_24, %c0_25] : memref<8x1xf32, #tpu.memory_space<vmem>>, vector<2x1xf32>
    %102 = vector.broadcast %101 : vector<2x1xf32> to vector<2x768xf32>
    %103 = arith.addf %100, %102 : vector<2x768xf32>
    %cst_26 = arith.constant 0.000000e+00 : f32
    %104 = vector.broadcast %cst_26 : f32 to vector<2x768xf32>
    %105 = arith.maximumf %103, %104 : vector<2x768xf32>
    %c0_27 = arith.constant 0 : index
    %c0_28 = arith.constant 0 : index
    %106 = vector.load %arg4[%c0_27, %c0_28] : memref<8x1xf32, #tpu.memory_space<vmem>>, vector<2x1xf32>
    %107 = vector.broadcast %106 : vector<2x1xf32> to vector<2x768xf32>
    %108 = arith.mulf %105, %107 : vector<2x768xf32>
    %c0_29 = arith.constant 0 : index
    %c0_30 = arith.constant 0 : index
    %109 = vector.load %arg5[%c0_29, %c0_30] : memref<8x1xf32, #tpu.memory_space<vmem>>, vector<2x1xf32>
    %110 = vector.broadcast %109 : vector<2x1xf32> to vector<2x768xf32>
    %111 = arith.addf %108, %110 : vector<2x768xf32>
    %cst_31 = arith.constant 0.000000e+00 : f32
    %112 = vector.broadcast %cst_31 : f32 to vector<2x768xf32>
    %113 = arith.maximumf %111, %112 : vector<2x768xf32>
    %114 = vector.broadcast %2 : vector<1x768xf32> to vector<2x768xf32>
    %115 = arith.mulf %113, %114 : vector<2x768xf32>
    %c0_32 = arith.constant 0 : index
    %c0_33 = arith.constant 0 : index
    %c0_34 = arith.constant 0 : index
    %116 = vector.load %arg7[%c0_32, %c0_33, %c0_34] : memref<1x8x768xf32, #tpu.memory_space<vmem>>, vector<1x2x768xf32>
    %117 = vector.shape_cast %116 : vector<1x2x768xf32> to vector<2x768xf32>
    %118 = vector.shape_cast %115 : vector<2x768xf32> to vector<1x2x768xf32>
    tpu.vector_store %arg7[%c0_32, %c0_33, %c0_34], %118 {strides = array<i32>} : memref<1x8x768xf32, #tpu.memory_space<vmem>>, vector<1x2x768xf32>,
    %cst_35 = arith.constant 0.000000e+00 : f32
    %119 = vector.broadcast %cst_35 : f32 to vector<2x8x768xf32>
    %120 = vector.extract_strided_slice %1 {offsets = [0, 702], sizes = [8, 66], strides = [1, 1]} : vector<8x768xf32> to vector<8x66xf32>
    %121 = vector.extract_strided_slice %1 {offsets = [0, 0], sizes = [8, 702], strides = [1, 1]} : vector<8x768xf32> to vector<8x702xf32>
    %122 = tpu.concatenate %120, %121 in 1 : vector<8x66xf32>, vector<8x702xf32> -> vector<8x768xf32>
    %c9 = arith.constant 9 : index
    %c0_36 = arith.constant 0 : index
    %c0_37 = arith.constant 0 : index
    %123 = vector.load %arg2[%c9, %c0_36, %c0_37] : memref<36x2x8xf32, #tpu.memory_space<vmem>>, vector<1x2x8xf32>
    %124 = vector.shape_cast %123 : vector<1x2x8xf32> to vector<2x8xf32>
    %125 = vector.shape_cast %124 : vector<2x8xf32> to vector<2x8x1xf32>
    %126 = vector.shape_cast %122 : vector<8x768xf32> to vector<1x8x768xf32>
    %127 = vector.broadcast %125 : vector<2x8x1xf32> to vector<2x8x768xf32>
    %128 = vector.broadcast %126 : vector<1x8x768xf32> to vector<2x8x768xf32>
    %129 = arith.mulf %127, %128 : vector<2x8x768xf32>
    %130 = arith.addf %119, %129 : vector<2x8x768xf32>
    %131 = vector.extract_strided_slice %1 {offsets = [0, 704], sizes = [8, 64], strides = [1, 1]} : vector<8x768xf32> to vector<8x64xf32>
    %132 = vector.extract_strided_slice %1 {offsets = [0, 0], sizes = [8, 704], strides = [1, 1]} : vector<8x768xf32> to vector<8x704xf32>
    %133 = tpu.concatenate %131, %132 in 1 : vector<8x64xf32>, vector<8x704xf32> -> vector<8x768xf32>
    %c10 = arith.constant 10 : index
    %c0_38 = arith.constant 0 : index
    %c0_39 = arith.constant 0 : index
    %134 = vector.load %arg2[%c10, %c0_38, %c0_39] : memref<36x2x8xf32, #tpu.memory_space<vmem>>, vector<1x2x8xf32>
    %135 = vector.shape_cast %134 : vector<1x2x8xf32> to vector<2x8xf32>
    %136 = vector.shape_cast %135 : vector<2x8xf32> to vector<2x8x1xf32>
    %137 = vector.shape_cast %133 : vector<8x768xf32> to vector<1x8x768xf32>
    %138 = vector.broadcast %136 : vector<2x8x1xf32> to vector<2x8x768xf32>
    %139 = vector.broadcast %137 : vector<1x8x768xf32> to vector<2x8x768xf32>
    %140 = arith.mulf %138, %139 : vector<2x8x768xf32>
    %141 = arith.addf %130, %140 : vector<2x8x768xf32>
    %142 = vector.extract_strided_slice %1 {offsets = [0, 706], sizes = [8, 62], strides = [1, 1]} : vector<8x768xf32> to vector<8x62xf32>
    %143 = vector.extract_strided_slice %1 {offsets = [0, 0], sizes = [8, 706], strides = [1, 1]} : vector<8x768xf32> to vector<8x706xf32>
    %144 = tpu.concatenate %142, %143 in 1 : vector<8x62xf32>, vector<8x706xf32> -> vector<8x768xf32>
    %c11 = arith.constant 11 : index
    %c0_40 = arith.constant 0 : index
    %c0_41 = arith.constant 0 : index
    %145 = vector.load %arg2[%c11, %c0_40, %c0_41] : memref<36x2x8xf32, #tpu.memory_space<vmem>>, vector<1x2x8xf32>
    %146 = vector.shape_cast %145 : vector<1x2x8xf32> to vector<2x8xf32>
    %147 = vector.shape_cast %146 : vector<2x8xf32> to vector<2x8x1xf32>
    %148 = vector.shape_cast %144 : vector<8x768xf32> to vector<1x8x768xf32>
    %149 = vector.broadcast %147 : vector<2x8x1xf32> to vector<2x8x768xf32>
    %150 = vector.broadcast %148 : vector<1x8x768xf32> to vector<2x8x768xf32>
    %151 = arith.mulf %149, %150 : vector<2x8x768xf32>
    %152 = arith.addf %141, %151 : vector<2x8x768xf32>
    %153 = vector.extract_strided_slice %1 {offsets = [0, 766], sizes = [8, 2], strides = [1, 1]} : vector<8x768xf32> to vector<8x2xf32>
    %154 = vector.extract_strided_slice %1 {offsets = [0, 0], sizes = [8, 766], strides = [1, 1]} : vector<8x768xf32> to vector<8x766xf32>
    %155 = tpu.concatenate %153, %154 in 1 : vector<8x2xf32>, vector<8x766xf32> -> vector<8x768xf32>
    %c12 = arith.constant 12 : index
    %c0_42 = arith.constant 0 : index
    %c0_43 = arith.constant 0 : index
    %156 = vector.load %arg2[%c12, %c0_42, %c0_43] : memref<36x2x8xf32, #tpu.memory_space<vmem>>, vector<1x2x8xf32>
    %157 = vector.shape_cast %156 : vector<1x2x8xf32> to vector<2x8xf32>
    %158 = vector.shape_cast %157 : vector<2x8xf32> to vector<2x8x1xf32>
    %159 = vector.shape_cast %155 : vector<8x768xf32> to vector<1x8x768xf32>
    %160 = vector.broadcast %158 : vector<2x8x1xf32> to vector<2x8x768xf32>
    %161 = vector.broadcast %159 : vector<1x8x768xf32> to vector<2x8x768xf32>
    %162 = arith.mulf %160, %161 : vector<2x8x768xf32>
    %163 = arith.addf %152, %162 : vector<2x8x768xf32>
    %c13 = arith.constant 13 : index
    %c0_44 = arith.constant 0 : index
    %c0_45 = arith.constant 0 : index
    %164 = vector.load %arg2[%c13, %c0_44, %c0_45] : memref<36x2x8xf32, #tpu.memory_space<vmem>>, vector<1x2x8xf32>
    %165 = vector.shape_cast %164 : vector<1x2x8xf32> to vector<2x8xf32>
    %166 = vector.shape_cast %165 : vector<2x8xf32> to vector<2x8x1xf32>
    %167 = vector.shape_cast %1 : vector<8x768xf32> to vector<1x8x768xf32>
    %168 = vector.broadcast %166 : vector<2x8x1xf32> to vector<2x8x768xf32>
    %169 = vector.broadcast %167 : vector<1x8x768xf32> to vector<2x8x768xf32>
    %170 = arith.mulf %168, %169 : vector<2x8x768xf32>
    %171 = arith.addf %163, %170 : vector<2x8x768xf32>
    %172 = vector.extract_strided_slice %1 {offsets = [0, 2], sizes = [8, 766], strides = [1, 1]} : vector<8x768xf32> to vector<8x766xf32>
    %173 = vector.extract_strided_slice %1 {offsets = [0, 0], sizes = [8, 2], strides = [1, 1]} : vector<8x768xf32> to vector<8x2xf32>
    %174 = tpu.concatenate %172, %173 in 1 : vector<8x766xf32>, vector<8x2xf32> -> vector<8x768xf32>
    %c14 = arith.constant 14 : index
    %c0_46 = arith.constant 0 : index
    %c0_47 = arith.constant 0 : index
    %175 = vector.load %arg2[%c14, %c0_46, %c0_47] : memref<36x2x8xf32, #tpu.memory_space<vmem>>, vector<1x2x8xf32>
    %176 = vector.shape_cast %175 : vector<1x2x8xf32> to vector<2x8xf32>
    %177 = vector.shape_cast %176 : vector<2x8xf32> to vector<2x8x1xf32>
    %178 = vector.shape_cast %174 : vector<8x768xf32> to vector<1x8x768xf32>
    %179 = vector.broadcast %177 : vector<2x8x1xf32> to vector<2x8x768xf32>
    %180 = vector.broadcast %178 : vector<1x8x768xf32> to vector<2x8x768xf32>
    %181 = arith.mulf %179, %180 : vector<2x8x768xf32>
    %182 = arith.addf %171, %181 : vector<2x8x768xf32>
    %183 = vector.extract_strided_slice %1 {offsets = [0, 62], sizes = [8, 706], strides = [1, 1]} : vector<8x768xf32> to vector<8x706xf32>
    %184 = vector.extract_strided_slice %1 {offsets = [0, 0], sizes = [8, 62], strides = [1, 1]} : vector<8x768xf32> to vector<8x62xf32>
    %185 = tpu.concatenate %183, %184 in 1 : vector<8x706xf32>, vector<8x62xf32> -> vector<8x768xf32>
    %c15 = arith.constant 15 : index
    %c0_48 = arith.constant 0 : index
    %c0_49 = arith.constant 0 : index
    %186 = vector.load %arg2[%c15, %c0_48, %c0_49] : memref<36x2x8xf32, #tpu.memory_space<vmem>>, vector<1x2x8xf32>
    %187 = vector.shape_cast %186 : vector<1x2x8xf32> to vector<2x8xf32>
    %188 = vector.shape_cast %187 : vector<2x8xf32> to vector<2x8x1xf32>
    %189 = vector.shape_cast %185 : vector<8x768xf32> to vector<1x8x768xf32>
    %190 = vector.broadcast %188 : vector<2x8x1xf32> to vector<2x8x768xf32>
    %191 = vector.broadcast %189 : vector<1x8x768xf32> to vector<2x8x768xf32>
    %192 = arith.mulf %190, %191 : vector<2x8x768xf32>
    %193 = arith.addf %182, %192 : vector<2x8x768xf32>
    %194 = vector.extract_strided_slice %1 {offsets = [0, 64], sizes = [8, 704], strides = [1, 1]} : vector<8x768xf32> to vector<8x704xf32>
    %195 = vector.extract_strided_slice %1 {offsets = [0, 0], sizes = [8, 64], strides = [1, 1]} : vector<8x768xf32> to vector<8x64xf32>
    %196 = tpu.concatenate %194, %195 in 1 : vector<8x704xf32>, vector<8x64xf32> -> vector<8x768xf32>
    %c16 = arith.constant 16 : index
    %c0_50 = arith.constant 0 : index
    %c0_51 = arith.constant 0 : index
    %197 = vector.load %arg2[%c16, %c0_50, %c0_51] : memref<36x2x8xf32, #tpu.memory_space<vmem>>, vector<1x2x8xf32>
    %198 = vector.shape_cast %197 : vector<1x2x8xf32> to vector<2x8xf32>
    %199 = vector.shape_cast %198 : vector<2x8xf32> to vector<2x8x1xf32>
    %200 = vector.shape_cast %196 : vector<8x768xf32> to vector<1x8x768xf32>
    %201 = vector.broadcast %199 : vector<2x8x1xf32> to vector<2x8x768xf32>
    %202 = vector.broadcast %200 : vector<1x8x768xf32> to vector<2x8x768xf32>
    %203 = arith.mulf %201, %202 : vector<2x8x768xf32>
    %204 = arith.addf %193, %203 : vector<2x8x768xf32>
    %205 = vector.extract_strided_slice %1 {offsets = [0, 66], sizes = [8, 702], strides = [1, 1]} : vector<8x768xf32> to vector<8x702xf32>
    %206 = vector.extract_strided_slice %1 {offsets = [0, 0], sizes = [8, 66], strides = [1, 1]} : vector<8x768xf32> to vector<8x66xf32>
    %207 = tpu.concatenate %205, %206 in 1 : vector<8x702xf32>, vector<8x66xf32> -> vector<8x768xf32>
    %c17 = arith.constant 17 : index
    %c0_52 = arith.constant 0 : index
    %c0_53 = arith.constant 0 : index
    %208 = vector.load %arg2[%c17, %c0_52, %c0_53] : memref<36x2x8xf32, #tpu.memory_space<vmem>>, vector<1x2x8xf32>
    %209 = vector.shape_cast %208 : vector<1x2x8xf32> to vector<2x8xf32>
    %210 = vector.shape_cast %209 : vector<2x8xf32> to vector<2x8x1xf32>
    %211 = vector.shape_cast %207 : vector<8x768xf32> to vector<1x8x768xf32>
    %212 = vector.broadcast %210 : vector<2x8x1xf32> to vector<2x8x768xf32>
    %213 = vector.broadcast %211 : vector<1x8x768xf32> to vector<2x8x768xf32>
    %214 = arith.mulf %212, %213 : vector<2x8x768xf32>
    %215 = arith.addf %204, %214 : vector<2x8x768xf32>
    %cst_54 = arith.constant dense<0.000000e+00> : vector<2x768xf32>
    %216 = vector.multi_reduction <add>, %215, %cst_54 [1] : vector<2x8x768xf32> to vector<2x768xf32>
    %c2_55 = arith.constant 2 : index
    %c0_56 = arith.constant 0 : index
    %217 = vector.load %arg3[%c2_55, %c0_56] : memref<8x1xf32, #tpu.memory_space<vmem>>, vector<2x1xf32>
    %218 = vector.broadcast %217 : vector<2x1xf32> to vector<2x768xf32>
    %219 = arith.addf %216, %218 : vector<2x768xf32>
    %cst_57 = arith.constant 0.000000e+00 : f32
    %220 = vector.broadcast %cst_57 : f32 to vector<2x768xf32>
    %221 = arith.maximumf %219, %220 : vector<2x768xf32>
    %c2_58 = arith.constant 2 : index
    %c0_59 = arith.constant 0 : index
    %222 = vector.load %arg4[%c2_58, %c0_59] : memref<8x1xf32, #tpu.memory_space<vmem>>, vector<2x1xf32>
    %223 = vector.broadcast %222 : vector<2x1xf32> to vector<2x768xf32>
    %224 = arith.mulf %221, %223 : vector<2x768xf32>
    %c2_60 = arith.constant 2 : index
    %c0_61 = arith.constant 0 : index
    %225 = vector.load %arg5[%c2_60, %c0_61] : memref<8x1xf32, #tpu.memory_space<vmem>>, vector<2x1xf32>
    %226 = vector.broadcast %225 : vector<2x1xf32> to vector<2x768xf32>
    %227 = arith.addf %224, %226 : vector<2x768xf32>
    %cst_62 = arith.constant 0.000000e+00 : f32
    %228 = vector.broadcast %cst_62 : f32 to vector<2x768xf32>
    %229 = arith.maximumf %227, %228 : vector<2x768xf32>
    %230 = vector.broadcast %2 : vector<1x768xf32> to vector<2x768xf32>
    %231 = arith.mulf %229, %230 : vector<2x768xf32>
    %c0_63 = arith.constant 0 : index
    %c2_64 = arith.constant 2 : index
    %c0_65 = arith.constant 0 : index
    %232 = vector.load %arg7[%c0_63, %c2_64, %c0_65] : memref<1x8x768xf32, #tpu.memory_space<vmem>>, vector<1x2x768xf32>
    %233 = vector.shape_cast %232 : vector<1x2x768xf32> to vector<2x768xf32>
    %234 = vector.shape_cast %231 : vector<2x768xf32> to vector<1x2x768xf32>
    tpu.vector_store %arg7[%c0_63, %c2_64, %c0_65], %234 {strides = array<i32>} : memref<1x8x768xf32, #tpu.memory_space<vmem>>, vector<1x2x768xf32>,
    %cst_66 = arith.constant 0.000000e+00 : f32
    %235 = vector.broadcast %cst_66 : f32 to vector<2x8x768xf32>
    %236 = vector.extract_strided_slice %1 {offsets = [0, 669], sizes = [8, 99], strides = [1, 1]} : vector<8x768xf32> to vector<8x99xf32>
    %237 = vector.extract_strided_slice %1 {offsets = [0, 0], sizes = [8, 669], strides = [1, 1]} : vector<8x768xf32> to vector<8x669xf32>
    %238 = tpu.concatenate %236, %237 in 1 : vector<8x99xf32>, vector<8x669xf32> -> vector<8x768xf32>
    %c18 = arith.constant 18 : index
    %c0_67 = arith.constant 0 : index
    %c0_68 = arith.constant 0 : index
    %239 = vector.load %arg2[%c18, %c0_67, %c0_68] : memref<36x2x8xf32, #tpu.memory_space<vmem>>, vector<1x2x8xf32>
    %240 = vector.shape_cast %239 : vector<1x2x8xf32> to vector<2x8xf32>
    %241 = vector.shape_cast %240 : vector<2x8xf32> to vector<2x8x1xf32>
    %242 = vector.shape_cast %238 : vector<8x768xf32> to vector<1x8x768xf32>
    %243 = vector.broadcast %241 : vector<2x8x1xf32> to vector<2x8x768xf32>
    %244 = vector.broadcast %242 : vector<1x8x768xf32> to vector<2x8x768xf32>
    %245 = arith.mulf %243, %244 : vector<2x8x768xf32>
    %246 = arith.addf %235, %245 : vector<2x8x768xf32>
    %247 = vector.extract_strided_slice %1 {offsets = [0, 672], sizes = [8, 96], strides = [1, 1]} : vector<8x768xf32> to vector<8x96xf32>
    %248 = vector.extract_strided_slice %1 {offsets = [0, 0], sizes = [8, 672], strides = [1, 1]} : vector<8x768xf32> to vector<8x672xf32>
    %249 = tpu.concatenate %247, %248 in 1 : vector<8x96xf32>, vector<8x672xf32> -> vector<8x768xf32>
    %c19 = arith.constant 19 : index
    %c0_69 = arith.constant 0 : index
    %c0_70 = arith.constant 0 : index
    %250 = vector.load %arg2[%c19, %c0_69, %c0_70] : memref<36x2x8xf32, #tpu.memory_space<vmem>>, vector<1x2x8xf32>
    %251 = vector.shape_cast %250 : vector<1x2x8xf32> to vector<2x8xf32>
    %252 = vector.shape_cast %251 : vector<2x8xf32> to vector<2x8x1xf32>
    %253 = vector.shape_cast %249 : vector<8x768xf32> to vector<1x8x768xf32>
    %254 = vector.broadcast %252 : vector<2x8x1xf32> to vector<2x8x768xf32>
    %255 = vector.broadcast %253 : vector<1x8x768xf32> to vector<2x8x768xf32>
    %256 = arith.mulf %254, %255 : vector<2x8x768xf32>
    %257 = arith.addf %246, %256 : vector<2x8x768xf32>
    %258 = vector.extract_strided_slice %1 {offsets = [0, 675], sizes = [8, 93], strides = [1, 1]} : vector<8x768xf32> to vector<8x93xf32>
    %259 = vector.extract_strided_slice %1 {offsets = [0, 0], sizes = [8, 675], strides = [1, 1]} : vector<8x768xf32> to vector<8x675xf32>
    %260 = tpu.concatenate %258, %259 in 1 : vector<8x93xf32>, vector<8x675xf32> -> vector<8x768xf32>
    %c20 = arith.constant 20 : index
    %c0_71 = arith.constant 0 : index
    %c0_72 = arith.constant 0 : index
    %261 = vector.load %arg2[%c20, %c0_71, %c0_72] : memref<36x2x8xf32, #tpu.memory_space<vmem>>, vector<1x2x8xf32>
    %262 = vector.shape_cast %261 : vector<1x2x8xf32> to vector<2x8xf32>
    %263 = vector.shape_cast %262 : vector<2x8xf32> to vector<2x8x1xf32>
    %264 = vector.shape_cast %260 : vector<8x768xf32> to vector<1x8x768xf32>
    %265 = vector.broadcast %263 : vector<2x8x1xf32> to vector<2x8x768xf32>
    %266 = vector.broadcast %264 : vector<1x8x768xf32> to vector<2x8x768xf32>
    %267 = arith.mulf %265, %266 : vector<2x8x768xf32>
    %268 = arith.addf %257, %267 : vector<2x8x768xf32>
    %269 = vector.extract_strided_slice %1 {offsets = [0, 765], sizes = [8, 3], strides = [1, 1]} : vector<8x768xf32> to vector<8x3xf32>
    %270 = vector.extract_strided_slice %1 {offsets = [0, 0], sizes = [8, 765], strides = [1, 1]} : vector<8x768xf32> to vector<8x765xf32>
    %271 = tpu.concatenate %269, %270 in 1 : vector<8x3xf32>, vector<8x765xf32> -> vector<8x768xf32>
    %c21 = arith.constant 21 : index
    %c0_73 = arith.constant 0 : index
    %c0_74 = arith.constant 0 : index
    %272 = vector.load %arg2[%c21, %c0_73, %c0_74] : memref<36x2x8xf32, #tpu.memory_space<vmem>>, vector<1x2x8xf32>
    %273 = vector.shape_cast %272 : vector<1x2x8xf32> to vector<2x8xf32>
    %274 = vector.shape_cast %273 : vector<2x8xf32> to vector<2x8x1xf32>
    %275 = vector.shape_cast %271 : vector<8x768xf32> to vector<1x8x768xf32>
    %276 = vector.broadcast %274 : vector<2x8x1xf32> to vector<2x8x768xf32>
    %277 = vector.broadcast %275 : vector<1x8x768xf32> to vector<2x8x768xf32>
    %278 = arith.mulf %276, %277 : vector<2x8x768xf32>
    %279 = arith.addf %268, %278 : vector<2x8x768xf32>
    %c22 = arith.constant 22 : index
    %c0_75 = arith.constant 0 : index
    %c0_76 = arith.constant 0 : index
    %280 = vector.load %arg2[%c22, %c0_75, %c0_76] : memref<36x2x8xf32, #tpu.memory_space<vmem>>, vector<1x2x8xf32>
    %281 = vector.shape_cast %280 : vector<1x2x8xf32> to vector<2x8xf32>
    %282 = vector.shape_cast %281 : vector<2x8xf32> to vector<2x8x1xf32>
    %283 = vector.shape_cast %1 : vector<8x768xf32> to vector<1x8x768xf32>
    %284 = vector.broadcast %282 : vector<2x8x1xf32> to vector<2x8x768xf32>
    %285 = vector.broadcast %283 : vector<1x8x768xf32> to vector<2x8x768xf32>
    %286 = arith.mulf %284, %285 : vector<2x8x768xf32>
    %287 = arith.addf %279, %286 : vector<2x8x768xf32>
    %288 = vector.extract_strided_slice %1 {offsets = [0, 3], sizes = [8, 765], strides = [1, 1]} : vector<8x768xf32> to vector<8x765xf32>
    %289 = vector.extract_strided_slice %1 {offsets = [0, 0], sizes = [8, 3], strides = [1, 1]} : vector<8x768xf32> to vector<8x3xf32>
    %290 = tpu.concatenate %288, %289 in 1 : vector<8x765xf32>, vector<8x3xf32> -> vector<8x768xf32>
    %c23 = arith.constant 23 : index
    %c0_77 = arith.constant 0 : index
    %c0_78 = arith.constant 0 : index
    %291 = vector.load %arg2[%c23, %c0_77, %c0_78] : memref<36x2x8xf32, #tpu.memory_space<vmem>>, vector<1x2x8xf32>
    %292 = vector.shape_cast %291 : vector<1x2x8xf32> to vector<2x8xf32>
    %293 = vector.shape_cast %292 : vector<2x8xf32> to vector<2x8x1xf32>
    %294 = vector.shape_cast %290 : vector<8x768xf32> to vector<1x8x768xf32>
    %295 = vector.broadcast %293 : vector<2x8x1xf32> to vector<2x8x768xf32>
    %296 = vector.broadcast %294 : vector<1x8x768xf32> to vector<2x8x768xf32>
    %297 = arith.mulf %295, %296 : vector<2x8x768xf32>
    %298 = arith.addf %287, %297 : vector<2x8x768xf32>
    %299 = vector.extract_strided_slice %1 {offsets = [0, 93], sizes = [8, 675], strides = [1, 1]} : vector<8x768xf32> to vector<8x675xf32>
    %300 = vector.extract_strided_slice %1 {offsets = [0, 0], sizes = [8, 93], strides = [1, 1]} : vector<8x768xf32> to vector<8x93xf32>
    %301 = tpu.concatenate %299, %300 in 1 : vector<8x675xf32>, vector<8x93xf32> -> vector<8x768xf32>
    %c24 = arith.constant 24 : index
    %c0_79 = arith.constant 0 : index
    %c0_80 = arith.constant 0 : index
    %302 = vector.load %arg2[%c24, %c0_79, %c0_80] : memref<36x2x8xf32, #tpu.memory_space<vmem>>, vector<1x2x8xf32>
    %303 = vector.shape_cast %302 : vector<1x2x8xf32> to vector<2x8xf32>
    %304 = vector.shape_cast %303 : vector<2x8xf32> to vector<2x8x1xf32>
    %305 = vector.shape_cast %301 : vector<8x768xf32> to vector<1x8x768xf32>
    %306 = vector.broadcast %304 : vector<2x8x1xf32> to vector<2x8x768xf32>
    %307 = vector.broadcast %305 : vector<1x8x768xf32> to vector<2x8x768xf32>
    %308 = arith.mulf %306, %307 : vector<2x8x768xf32>
    %309 = arith.addf %298, %308 : vector<2x8x768xf32>
    %310 = vector.extract_strided_slice %1 {offsets = [0, 96], sizes = [8, 672], strides = [1, 1]} : vector<8x768xf32> to vector<8x672xf32>
    %311 = vector.extract_strided_slice %1 {offsets = [0, 0], sizes = [8, 96], strides = [1, 1]} : vector<8x768xf32> to vector<8x96xf32>
    %312 = tpu.concatenate %310, %311 in 1 : vector<8x672xf32>, vector<8x96xf32> -> vector<8x768xf32>
    %c25 = arith.constant 25 : index
    %c0_81 = arith.constant 0 : index
    %c0_82 = arith.constant 0 : index
    %313 = vector.load %arg2[%c25, %c0_81, %c0_82] : memref<36x2x8xf32, #tpu.memory_space<vmem>>, vector<1x2x8xf32>
    %314 = vector.shape_cast %313 : vector<1x2x8xf32> to vector<2x8xf32>
    %315 = vector.shape_cast %314 : vector<2x8xf32> to vector<2x8x1xf32>
    %316 = vector.shape_cast %312 : vector<8x768xf32> to vector<1x8x768xf32>
    %317 = vector.broadcast %315 : vector<2x8x1xf32> to vector<2x8x768xf32>
    %318 = vector.broadcast %316 : vector<1x8x768xf32> to vector<2x8x768xf32>
    %319 = arith.mulf %317, %318 : vector<2x8x768xf32>
    %320 = arith.addf %309, %319 : vector<2x8x768xf32>
    %321 = vector.extract_strided_slice %1 {offsets = [0, 99], sizes = [8, 669], strides = [1, 1]} : vector<8x768xf32> to vector<8x669xf32>
    %322 = vector.extract_strided_slice %1 {offsets = [0, 0], sizes = [8, 99], strides = [1, 1]} : vector<8x768xf32> to vector<8x99xf32>
    %323 = tpu.concatenate %321, %322 in 1 : vector<8x669xf32>, vector<8x99xf32> -> vector<8x768xf32>
    %c26 = arith.constant 26 : index
    %c0_83 = arith.constant 0 : index
    %c0_84 = arith.constant 0 : index
    %324 = vector.load %arg2[%c26, %c0_83, %c0_84] : memref<36x2x8xf32, #tpu.memory_space<vmem>>, vector<1x2x8xf32>
    %325 = vector.shape_cast %324 : vector<1x2x8xf32> to vector<2x8xf32>
    %326 = vector.shape_cast %325 : vector<2x8xf32> to vector<2x8x1xf32>
    %327 = vector.shape_cast %323 : vector<8x768xf32> to vector<1x8x768xf32>
    %328 = vector.broadcast %326 : vector<2x8x1xf32> to vector<2x8x768xf32>
    %329 = vector.broadcast %327 : vector<1x8x768xf32> to vector<2x8x768xf32>
    %330 = arith.mulf %328, %329 : vector<2x8x768xf32>
    %331 = arith.addf %320, %330 : vector<2x8x768xf32>
    %cst_85 = arith.constant dense<0.000000e+00> : vector<2x768xf32>
    %332 = vector.multi_reduction <add>, %331, %cst_85 [1] : vector<2x8x768xf32> to vector<2x768xf32>
    %c4_86 = arith.constant 4 : index
    %c0_87 = arith.constant 0 : index
    %333 = vector.load %arg3[%c4_86, %c0_87] : memref<8x1xf32, #tpu.memory_space<vmem>>, vector<2x1xf32>
    %334 = vector.broadcast %333 : vector<2x1xf32> to vector<2x768xf32>
    %335 = arith.addf %332, %334 : vector<2x768xf32>
    %cst_88 = arith.constant 0.000000e+00 : f32
    %336 = vector.broadcast %cst_88 : f32 to vector<2x768xf32>
    %337 = arith.maximumf %335, %336 : vector<2x768xf32>
    %c4_89 = arith.constant 4 : index
    %c0_90 = arith.constant 0 : index
    %338 = vector.load %arg4[%c4_89, %c0_90] : memref<8x1xf32, #tpu.memory_space<vmem>>, vector<2x1xf32>
    %339 = vector.broadcast %338 : vector<2x1xf32> to vector<2x768xf32>
    %340 = arith.mulf %337, %339 : vector<2x768xf32>
    %c4_91 = arith.constant 4 : index
    %c0_92 = arith.constant 0 : index
    %341 = vector.load %arg5[%c4_91, %c0_92] : memref<8x1xf32, #tpu.memory_space<vmem>>, vector<2x1xf32>
    %342 = vector.broadcast %341 : vector<2x1xf32> to vector<2x768xf32>
    %343 = arith.addf %340, %342 : vector<2x768xf32>
    %cst_93 = arith.constant 0.000000e+00 : f32
    %344 = vector.broadcast %cst_93 : f32 to vector<2x768xf32>
    %345 = arith.maximumf %343, %344 : vector<2x768xf32>
    %346 = vector.broadcast %2 : vector<1x768xf32> to vector<2x768xf32>
    %347 = arith.mulf %345, %346 : vector<2x768xf32>
    %c0_94 = arith.constant 0 : index
    %c4_95 = arith.constant 4 : index
    %c0_96 = arith.constant 0 : index
    %348 = vector.load %arg7[%c0_94, %c4_95, %c0_96] : memref<1x8x768xf32, #tpu.memory_space<vmem>>, vector<1x2x768xf32>
    %349 = vector.shape_cast %348 : vector<1x2x768xf32> to vector<2x768xf32>
    %350 = vector.shape_cast %347 : vector<2x768xf32> to vector<1x2x768xf32>
    tpu.vector_store %arg7[%c0_94, %c4_95, %c0_96], %350 {strides = array<i32>} : memref<1x8x768xf32, #tpu.memory_space<vmem>>, vector<1x2x768xf32>,
    %cst_97 = arith.constant 0.000000e+00 : f32
    %351 = vector.broadcast %cst_97 : f32 to vector<2x8x768xf32>
    %352 = vector.extract_strided_slice %1 {offsets = [0, 636], sizes = [8, 132], strides = [1, 1]} : vector<8x768xf32> to vector<8x132xf32>
    %353 = vector.extract_strided_slice %1 {offsets = [0, 0], sizes = [8, 636], strides = [1, 1]} : vector<8x768xf32> to vector<8x636xf32>
    %354 = tpu.concatenate %352, %353 in 1 : vector<8x132xf32>, vector<8x636xf32> -> vector<8x768xf32>
    %c27 = arith.constant 27 : index
    %c0_98 = arith.constant 0 : index
    %c0_99 = arith.constant 0 : index
    %355 = vector.load %arg2[%c27, %c0_98, %c0_99] : memref<36x2x8xf32, #tpu.memory_space<vmem>>, vector<1x2x8xf32>
    %356 = vector.shape_cast %355 : vector<1x2x8xf32> to vector<2x8xf32>
    %357 = vector.shape_cast %356 : vector<2x8xf32> to vector<2x8x1xf32>
    %358 = vector.shape_cast %354 : vector<8x768xf32> to vector<1x8x768xf32>
    %359 = vector.broadcast %357 : vector<2x8x1xf32> to vector<2x8x768xf32>
    %360 = vector.broadcast %358 : vector<1x8x768xf32> to vector<2x8x768xf32>
    %361 = arith.mulf %359, %360 : vector<2x8x768xf32>
    %362 = arith.addf %351, %361 : vector<2x8x768xf32>
    %363 = vector.extract_strided_slice %1 {offsets = [0, 640], sizes = [8, 128], strides = [1, 1]} : vector<8x768xf32> to vector<8x128xf32>
    %364 = vector.extract_strided_slice %1 {offsets = [0, 0], sizes = [8, 640], strides = [1, 1]} : vector<8x768xf32> to vector<8x640xf32>
    %365 = tpu.concatenate %363, %364 in 1 : vector<8x128xf32>, vector<8x640xf32> -> vector<8x768xf32>
    %c28 = arith.constant 28 : index
    %c0_100 = arith.constant 0 : index
    %c0_101 = arith.constant 0 : index
    %366 = vector.load %arg2[%c28, %c0_100, %c0_101] : memref<36x2x8xf32, #tpu.memory_space<vmem>>, vector<1x2x8xf32>
    %367 = vector.shape_cast %366 : vector<1x2x8xf32> to vector<2x8xf32>
    %368 = vector.shape_cast %367 : vector<2x8xf32> to vector<2x8x1xf32>
    %369 = vector.shape_cast %365 : vector<8x768xf32> to vector<1x8x768xf32>
    %370 = vector.broadcast %368 : vector<2x8x1xf32> to vector<2x8x768xf32>
    %371 = vector.broadcast %369 : vector<1x8x768xf32> to vector<2x8x768xf32>
    %372 = arith.mulf %370, %371 : vector<2x8x768xf32>
    %373 = arith.addf %362, %372 : vector<2x8x768xf32>
    %374 = vector.extract_strided_slice %1 {offsets = [0, 644], sizes = [8, 124], strides = [1, 1]} : vector<8x768xf32> to vector<8x124xf32>
    %375 = vector.extract_strided_slice %1 {offsets = [0, 0], sizes = [8, 644], strides = [1, 1]} : vector<8x768xf32> to vector<8x644xf32>
    %376 = tpu.concatenate %374, %375 in 1 : vector<8x124xf32>, vector<8x644xf32> -> vector<8x768xf32>
    %c29 = arith.constant 29 : index
    %c0_102 = arith.constant 0 : index
    %c0_103 = arith.constant 0 : index
    %377 = vector.load %arg2[%c29, %c0_102, %c0_103] : memref<36x2x8xf32, #tpu.memory_space<vmem>>, vector<1x2x8xf32>
    %378 = vector.shape_cast %377 : vector<1x2x8xf32> to vector<2x8xf32>
    %379 = vector.shape_cast %378 : vector<2x8xf32> to vector<2x8x1xf32>
    %380 = vector.shape_cast %376 : vector<8x768xf32> to vector<1x8x768xf32>
    %381 = vector.broadcast %379 : vector<2x8x1xf32> to vector<2x8x768xf32>
    %382 = vector.broadcast %380 : vector<1x8x768xf32> to vector<2x8x768xf32>
    %383 = arith.mulf %381, %382 : vector<2x8x768xf32>
    %384 = arith.addf %373, %383 : vector<2x8x768xf32>
    %385 = vector.extract_strided_slice %1 {offsets = [0, 764], sizes = [8, 4], strides = [1, 1]} : vector<8x768xf32> to vector<8x4xf32>
    %386 = vector.extract_strided_slice %1 {offsets = [0, 0], sizes = [8, 764], strides = [1, 1]} : vector<8x768xf32> to vector<8x764xf32>
    %387 = tpu.concatenate %385, %386 in 1 : vector<8x4xf32>, vector<8x764xf32> -> vector<8x768xf32>
    %c30 = arith.constant 30 : index
    %c0_104 = arith.constant 0 : index
    %c0_105 = arith.constant 0 : index
    %388 = vector.load %arg2[%c30, %c0_104, %c0_105] : memref<36x2x8xf32, #tpu.memory_space<vmem>>, vector<1x2x8xf32>
    %389 = vector.shape_cast %388 : vector<1x2x8xf32> to vector<2x8xf32>
    %390 = vector.shape_cast %389 : vector<2x8xf32> to vector<2x8x1xf32>
    %391 = vector.shape_cast %387 : vector<8x768xf32> to vector<1x8x768xf32>
    %392 = vector.broadcast %390 : vector<2x8x1xf32> to vector<2x8x768xf32>
    %393 = vector.broadcast %391 : vector<1x8x768xf32> to vector<2x8x768xf32>
    %394 = arith.mulf %392, %393 : vector<2x8x768xf32>
    %395 = arith.addf %384, %394 : vector<2x8x768xf32>
    %c31 = arith.constant 31 : index
    %c0_106 = arith.constant 0 : index
    %c0_107 = arith.constant 0 : index
    %396 = vector.load %arg2[%c31, %c0_106, %c0_107] : memref<36x2x8xf32, #tpu.memory_space<vmem>>, vector<1x2x8xf32>
    %397 = vector.shape_cast %396 : vector<1x2x8xf32> to vector<2x8xf32>
    %398 = vector.shape_cast %397 : vector<2x8xf32> to vector<2x8x1xf32>
    %399 = vector.shape_cast %1 : vector<8x768xf32> to vector<1x8x768xf32>
    %400 = vector.broadcast %398 : vector<2x8x1xf32> to vector<2x8x768xf32>
    %401 = vector.broadcast %399 : vector<1x8x768xf32> to vector<2x8x768xf32>
    %402 = arith.mulf %400, %401 : vector<2x8x768xf32>
    %403 = arith.addf %395, %402 : vector<2x8x768xf32>
    %404 = vector.extract_strided_slice %1 {offsets = [0, 4], sizes = [8, 764], strides = [1, 1]} : vector<8x768xf32> to vector<8x764xf32>
    %405 = vector.extract_strided_slice %1 {offsets = [0, 0], sizes = [8, 4], strides = [1, 1]} : vector<8x768xf32> to vector<8x4xf32>
    %406 = tpu.concatenate %404, %405 in 1 : vector<8x764xf32>, vector<8x4xf32> -> vector<8x768xf32>
    %c32 = arith.constant 32 : index
    %c0_108 = arith.constant 0 : index
    %c0_109 = arith.constant 0 : index
    %407 = vector.load %arg2[%c32, %c0_108, %c0_109] : memref<36x2x8xf32, #tpu.memory_space<vmem>>, vector<1x2x8xf32>
    %408 = vector.shape_cast %407 : vector<1x2x8xf32> to vector<2x8xf32>
    %409 = vector.shape_cast %408 : vector<2x8xf32> to vector<2x8x1xf32>
    %410 = vector.shape_cast %406 : vector<8x768xf32> to vector<1x8x768xf32>
    %411 = vector.broadcast %409 : vector<2x8x1xf32> to vector<2x8x768xf32>
    %412 = vector.broadcast %410 : vector<1x8x768xf32> to vector<2x8x768xf32>
    %413 = arith.mulf %411, %412 : vector<2x8x768xf32>
    %414 = arith.addf %403, %413 : vector<2x8x768xf32>
    %415 = vector.extract_strided_slice %1 {offsets = [0, 124], sizes = [8, 644], strides = [1, 1]} : vector<8x768xf32> to vector<8x644xf32>
    %416 = vector.extract_strided_slice %1 {offsets = [0, 0], sizes = [8, 124], strides = [1, 1]} : vector<8x768xf32> to vector<8x124xf32>
    %417 = tpu.concatenate %415, %416 in 1 : vector<8x644xf32>, vector<8x124xf32> -> vector<8x768xf32>
    %c33 = arith.constant 33 : index
    %c0_110 = arith.constant 0 : index
    %c0_111 = arith.constant 0 : index
    %418 = vector.load %arg2[%c33, %c0_110, %c0_111] : memref<36x2x8xf32, #tpu.memory_space<vmem>>, vector<1x2x8xf32>
    %419 = vector.shape_cast %418 : vector<1x2x8xf32> to vector<2x8xf32>
    %420 = vector.shape_cast %419 : vector<2x8xf32> to vector<2x8x1xf32>
    %421 = vector.shape_cast %417 : vector<8x768xf32> to vector<1x8x768xf32>
    %422 = vector.broadcast %420 : vector<2x8x1xf32> to vector<2x8x768xf32>
    %423 = vector.broadcast %421 : vector<1x8x768xf32> to vector<2x8x768xf32>
    %424 = arith.mulf %422, %423 : vector<2x8x768xf32>
    %425 = arith.addf %414, %424 : vector<2x8x768xf32>
    %426 = vector.extract_strided_slice %1 {offsets = [0, 128], sizes = [8, 640], strides = [1, 1]} : vector<8x768xf32> to vector<8x640xf32>
    %427 = vector.extract_strided_slice %1 {offsets = [0, 0], sizes = [8, 128], strides = [1, 1]} : vector<8x768xf32> to vector<8x128xf32>
    %428 = tpu.concatenate %426, %427 in 1 : vector<8x640xf32>, vector<8x128xf32> -> vector<8x768xf32>
    %c34 = arith.constant 34 : index
    %c0_112 = arith.constant 0 : index
    %c0_113 = arith.constant 0 : index
    %429 = vector.load %arg2[%c34, %c0_112, %c0_113] : memref<36x2x8xf32, #tpu.memory_space<vmem>>, vector<1x2x8xf32>
    %430 = vector.shape_cast %429 : vector<1x2x8xf32> to vector<2x8xf32>
    %431 = vector.shape_cast %430 : vector<2x8xf32> to vector<2x8x1xf32>
    %432 = vector.shape_cast %428 : vector<8x768xf32> to vector<1x8x768xf32>
    %433 = vector.broadcast %431 : vector<2x8x1xf32> to vector<2x8x768xf32>
    %434 = vector.broadcast %432 : vector<1x8x768xf32> to vector<2x8x768xf32>
    %435 = arith.mulf %433, %434 : vector<2x8x768xf32>
    %436 = arith.addf %425, %435 : vector<2x8x768xf32>
    %437 = vector.extract_strided_slice %1 {offsets = [0, 132], sizes = [8, 636], strides = [1, 1]} : vector<8x768xf32> to vector<8x636xf32>
    %438 = vector.extract_strided_slice %1 {offsets = [0, 0], sizes = [8, 132], strides = [1, 1]} : vector<8x768xf32> to vector<8x132xf32>
    %439 = tpu.concatenate %437, %438 in 1 : vector<8x636xf32>, vector<8x132xf32> -> vector<8x768xf32>
    %c35 = arith.constant 35 : index
    %c0_114 = arith.constant 0 : index
    %c0_115 = arith.constant 0 : index
    %440 = vector.load %arg2[%c35, %c0_114, %c0_115] : memref<36x2x8xf32, #tpu.memory_space<vmem>>, vector<1x2x8xf32>
    %441 = vector.shape_cast %440 : vector<1x2x8xf32> to vector<2x8xf32>
    %442 = vector.shape_cast %441 : vector<2x8xf32> to vector<2x8x1xf32>
    %443 = vector.shape_cast %439 : vector<8x768xf32> to vector<1x8x768xf32>
    %444 = vector.broadcast %442 : vector<2x8x1xf32> to vector<2x8x768xf32>
    %445 = vector.broadcast %443 : vector<1x8x768xf32> to vector<2x8x768xf32>
    %446 = arith.mulf %444, %445 : vector<2x8x768xf32>
    %447 = arith.addf %436, %446 : vector<2x8x768xf32>
    %cst_116 = arith.constant dense<0.000000e+00> : vector<2x768xf32>
    %448 = vector.multi_reduction <add>, %447, %cst_116 [1] : vector<2x8x768xf32> to vector<2x768xf32>
    %c6_117 = arith.constant 6 : index
    %c0_118 = arith.constant 0 : index
    %449 = vector.load %arg3[%c6_117, %c0_118] : memref<8x1xf32, #tpu.memory_space<vmem>>, vector<2x1xf32>
    %450 = vector.broadcast %449 : vector<2x1xf32> to vector<2x768xf32>
    %451 = arith.addf %448, %450 : vector<2x768xf32>
    %cst_119 = arith.constant 0.000000e+00 : f32
    %452 = vector.broadcast %cst_119 : f32 to vector<2x768xf32>
    %453 = arith.maximumf %451, %452 : vector<2x768xf32>
    %c6_120 = arith.constant 6 : index
    %c0_121 = arith.constant 0 : index
    %454 = vector.load %arg4[%c6_120, %c0_121] : memref<8x1xf32, #tpu.memory_space<vmem>>, vector<2x1xf32>
    %455 = vector.broadcast %454 : vector<2x1xf32> to vector<2x768xf32>
    %456 = arith.mulf %453, %455 : vector<2x768xf32>
    %c6_122 = arith.constant 6 : index
    %c0_123 = arith.constant 0 : index
    %457 = vector.load %arg5[%c6_122, %c0_123] : memref<8x1xf32, #tpu.memory_space<vmem>>, vector<2x1xf32>
    %458 = vector.broadcast %457 : vector<2x1xf32> to vector<2x768xf32>
    %459 = arith.addf %456, %458 : vector<2x768xf32>
    %cst_124 = arith.constant 0.000000e+00 : f32
    %460 = vector.broadcast %cst_124 : f32 to vector<2x768xf32>
    %461 = arith.maximumf %459, %460 : vector<2x768xf32>
    %462 = vector.broadcast %2 : vector<1x768xf32> to vector<2x768xf32>
    %463 = arith.mulf %461, %462 : vector<2x768xf32>
    %c0_125 = arith.constant 0 : index
    %c6_126 = arith.constant 6 : index
    %c0_127 = arith.constant 0 : index
    %464 = vector.load %arg7[%c0_125, %c6_126, %c0_127] : memref<1x8x768xf32, #tpu.memory_space<vmem>>, vector<1x2x768xf32>
    %465 = vector.shape_cast %464 : vector<1x2x768xf32> to vector<2x768xf32>
    %466 = vector.shape_cast %463 : vector<2x768xf32> to vector<1x2x768xf32>
    tpu.vector_store %arg7[%c0_125, %c6_126, %c0_127], %466 {strides = array<i32>} : memref<1x8x768xf32, #tpu.memory_space<vmem>>, vector<1x2x768xf32>,
    return
  }
  func.func @transform_0(%arg0: i32) -> (i32, i32, i32) {
    %c0_i32 = arith.constant 0 : i32
    %c0_i32_0 = arith.constant 0 : i32
    %c0_i32_1 = arith.constant 0 : i32
    return %arg0, %c0_i32, %c0_i32_0 : i32, i32, i32
  }
  func.func @transform_1(%arg0: i32) -> (i32, i32, i32) {
    %c0_i32 = arith.constant 0 : i32
    %c0_i32_0 = arith.constant 0 : i32
    %c0_i32_1 = arith.constant 0 : i32
    %c0_i32_2 = arith.constant 0 : i32
    return %c0_i32, %c0_i32_0, %c0_i32_1 : i32, i32, i32
  }
  func.func @transform_2(%arg0: i32) -> (i32, i32) {
    %c0_i32 = arith.constant 0 : i32
    %c0_i32_0 = arith.constant 0 : i32
    %c0_i32_1 = arith.constant 0 : i32
    return %c0_i32, %c0_i32_0 : i32, i32
  }
  func.func @transform_3(%arg0: i32) -> (i32, i32) {
    %c0_i32 = arith.constant 0 : i32
    %c0_i32_0 = arith.constant 0 : i32
    %c0_i32_1 = arith.constant 0 : i32
    return %c0_i32, %c0_i32_0 : i32, i32
  }
  func.func @transform_4(%arg0: i32) -> (i32, i32) {
    %c0_i32 = arith.constant 0 : i32
    %c0_i32_0 = arith.constant 0 : i32
    %c0_i32_1 = arith.constant 0 : i32
    return %c0_i32, %c0_i32_0 : i32, i32
  }
  func.func @transform_5(%arg0: i32) -> (i32, i32) {
    %c0_i32 = arith.constant 0 : i32
    %c0_i32_0 = arith.constant 0 : i32
    %c0_i32_1 = arith.constant 0 : i32
    return %c0_i32, %c0_i32_0 : i32, i32
  }
  func.func @transform_6(%arg0: i32) -> (i32, i32, i32) {
    %c0_i32 = arith.constant 0 : i32
    %c0_i32_0 = arith.constant 0 : i32
    %c0_i32_1 = arith.constant 0 : i32
    return %arg0, %c0_i32, %c0_i32_0 : i32, i32, i32
  }
}

module attributes {stable_mosaic.version = 11 : i64} {
  func.func @_fused_dilation_block_kernel(%arg0: i32, %arg1: memref<1x4x768xf32, #tpu.memory_space<vmem>>, %arg2: memref<36x2x4xf32, #tpu.memory_space<vmem>>, %arg3: memref<8x1xf32, #tpu.memory_space<vmem>>, %arg4: memref<8x1xf32, #tpu.memory_space<vmem>>, %arg5: memref<8x1xf32, #tpu.memory_space<vmem>>, %arg6: memref<1x768xf32, #tpu.memory_space<vmem>>, %arg7: memref<1x8x768xf32, #tpu.memory_space<vmem>>) attributes {dimension_semantics = [#tpu.dimension_semantics<parallel>], iteration_bounds = array<i64: 2>, scalar_prefetch = 0 : i64, scratch_operands = 0 : i64, tpu.core_type = #tpu.core_type<tc>, window_params = [{transform_indices = @transform_0, window_bounds = array<i64: 1, 4, 768>}, {pipeline_mode = #tpu.pipeline_mode<synchronous>, transform_indices = @transform_1, window_bounds = array<i64: 36, 2, 4>}, {pipeline_mode = #tpu.pipeline_mode<synchronous>, transform_indices = @transform_2, window_bounds = array<i64: 8, 1>}, {pipeline_mode = #tpu.pipeline_mode<synchronous>, transform_indices = @transform_3, window_bounds = array<i64: 8, 1>}, {pipeline_mode = #tpu.pipeline_mode<synchronous>, transform_indices = @transform_4, window_bounds = array<i64: 8, 1>}, {pipeline_mode = #tpu.pipeline_mode<synchronous>, transform_indices = @transform_5, window_bounds = array<i64: 1, 768>}, {transform_indices = @transform_6, window_bounds = array<i64: 1, 8, 768>}]} {
    %c0 = arith.constant 0 : index
    %c0_0 = arith.constant 0 : index
    %c0_1 = arith.constant 0 : index
    %0 = vector.load %arg1[%c0, %c0_0, %c0_1] : memref<1x4x768xf32, #tpu.memory_space<vmem>>, vector<1x4x768xf32>
    %1 = vector.shape_cast %0 : vector<1x4x768xf32> to vector<4x768xf32>
    %c0_2 = arith.constant 0 : index
    %c0_3 = arith.constant 0 : index
    %2 = vector.load %arg6[%c0_2, %c0_3] : memref<1x768xf32, #tpu.memory_space<vmem>>, vector<1x768xf32>
    %cst = arith.constant 0.000000e+00 : f32
    %3 = vector.broadcast %cst : f32 to vector<2x4x768xf32>
    %4 = vector.extract_strided_slice %1 {offsets = [0, 735], sizes = [4, 33], strides = [1, 1]} : vector<4x768xf32> to vector<4x33xf32>
    %5 = vector.extract_strided_slice %1 {offsets = [0, 0], sizes = [4, 735], strides = [1, 1]} : vector<4x768xf32> to vector<4x735xf32>
    %6 = tpu.concatenate %4, %5 in 1 : vector<4x33xf32>, vector<4x735xf32> -> vector<4x768xf32>
    %c0_4 = arith.constant 0 : index
    %c0_5 = arith.constant 0 : index
    %c0_6 = arith.constant 0 : index
    %7 = vector.load %arg2[%c0_4, %c0_5, %c0_6] : memref<36x2x4xf32, #tpu.memory_space<vmem>>, vector<1x2x4xf32>
    %8 = vector.shape_cast %7 : vector<1x2x4xf32> to vector<2x4xf32>
    %9 = vector.shape_cast %8 : vector<2x4xf32> to vector<2x4x1xf32>
    %10 = vector.shape_cast %6 : vector<4x768xf32> to vector<1x4x768xf32>
    %11 = vector.broadcast %9 : vector<2x4x1xf32> to vector<2x4x768xf32>
    %12 = vector.broadcast %10 : vector<1x4x768xf32> to vector<2x4x768xf32>
    %13 = arith.mulf %11, %12 : vector<2x4x768xf32>
    %14 = arith.addf %3, %13 : vector<2x4x768xf32>
    %15 = vector.extract_strided_slice %1 {offsets = [0, 736], sizes = [4, 32], strides = [1, 1]} : vector<4x768xf32> to vector<4x32xf32>
    %16 = vector.extract_strided_slice %1 {offsets = [0, 0], sizes = [4, 736], strides = [1, 1]} : vector<4x768xf32> to vector<4x736xf32>
    %17 = tpu.concatenate %15, %16 in 1 : vector<4x32xf32>, vector<4x736xf32> -> vector<4x768xf32>
    %c1 = arith.constant 1 : index
    %c0_7 = arith.constant 0 : index
    %c0_8 = arith.constant 0 : index
    %18 = vector.load %arg2[%c1, %c0_7, %c0_8] : memref<36x2x4xf32, #tpu.memory_space<vmem>>, vector<1x2x4xf32>
    %19 = vector.shape_cast %18 : vector<1x2x4xf32> to vector<2x4xf32>
    %20 = vector.shape_cast %19 : vector<2x4xf32> to vector<2x4x1xf32>
    %21 = vector.shape_cast %17 : vector<4x768xf32> to vector<1x4x768xf32>
    %22 = vector.broadcast %20 : vector<2x4x1xf32> to vector<2x4x768xf32>
    %23 = vector.broadcast %21 : vector<1x4x768xf32> to vector<2x4x768xf32>
    %24 = arith.mulf %22, %23 : vector<2x4x768xf32>
    %25 = arith.addf %14, %24 : vector<2x4x768xf32>
    %26 = vector.extract_strided_slice %1 {offsets = [0, 737], sizes = [4, 31], strides = [1, 1]} : vector<4x768xf32> to vector<4x31xf32>
    %27 = vector.extract_strided_slice %1 {offsets = [0, 0], sizes = [4, 737], strides = [1, 1]} : vector<4x768xf32> to vector<4x737xf32>
    %28 = tpu.concatenate %26, %27 in 1 : vector<4x31xf32>, vector<4x737xf32> -> vector<4x768xf32>
    %c2 = arith.constant 2 : index
    %c0_9 = arith.constant 0 : index
    %c0_10 = arith.constant 0 : index
    %29 = vector.load %arg2[%c2, %c0_9, %c0_10] : memref<36x2x4xf32, #tpu.memory_space<vmem>>, vector<1x2x4xf32>
    %30 = vector.shape_cast %29 : vector<1x2x4xf32> to vector<2x4xf32>
    %31 = vector.shape_cast %30 : vector<2x4xf32> to vector<2x4x1xf32>
    %32 = vector.shape_cast %28 : vector<4x768xf32> to vector<1x4x768xf32>
    %33 = vector.broadcast %31 : vector<2x4x1xf32> to vector<2x4x768xf32>
    %34 = vector.broadcast %32 : vector<1x4x768xf32> to vector<2x4x768xf32>
    %35 = arith.mulf %33, %34 : vector<2x4x768xf32>
    %36 = arith.addf %25, %35 : vector<2x4x768xf32>
    %37 = vector.extract_strided_slice %1 {offsets = [0, 767], sizes = [4, 1], strides = [1, 1]} : vector<4x768xf32> to vector<4x1xf32>
    %38 = vector.extract_strided_slice %1 {offsets = [0, 0], sizes = [4, 767], strides = [1, 1]} : vector<4x768xf32> to vector<4x767xf32>
    %39 = tpu.concatenate %37, %38 in 1 : vector<4x1xf32>, vector<4x767xf32> -> vector<4x768xf32>
    %c3 = arith.constant 3 : index
    %c0_11 = arith.constant 0 : index
    %c0_12 = arith.constant 0 : index
    %40 = vector.load %arg2[%c3, %c0_11, %c0_12] : memref<36x2x4xf32, #tpu.memory_space<vmem>>, vector<1x2x4xf32>
    %41 = vector.shape_cast %40 : vector<1x2x4xf32> to vector<2x4xf32>
    %42 = vector.shape_cast %41 : vector<2x4xf32> to vector<2x4x1xf32>
    %43 = vector.shape_cast %39 : vector<4x768xf32> to vector<1x4x768xf32>
    %44 = vector.broadcast %42 : vector<2x4x1xf32> to vector<2x4x768xf32>
    %45 = vector.broadcast %43 : vector<1x4x768xf32> to vector<2x4x768xf32>
    %46 = arith.mulf %44, %45 : vector<2x4x768xf32>
    %47 = arith.addf %36, %46 : vector<2x4x768xf32>
    %c4 = arith.constant 4 : index
    %c0_13 = arith.constant 0 : index
    %c0_14 = arith.constant 0 : index
    %48 = vector.load %arg2[%c4, %c0_13, %c0_14] : memref<36x2x4xf32, #tpu.memory_space<vmem>>, vector<1x2x4xf32>
    %49 = vector.shape_cast %48 : vector<1x2x4xf32> to vector<2x4xf32>
    %50 = vector.shape_cast %49 : vector<2x4xf32> to vector<2x4x1xf32>
    %51 = vector.shape_cast %1 : vector<4x768xf32> to vector<1x4x768xf32>
    %52 = vector.broadcast %50 : vector<2x4x1xf32> to vector<2x4x768xf32>
    %53 = vector.broadcast %51 : vector<1x4x768xf32> to vector<2x4x768xf32>
    %54 = arith.mulf %52, %53 : vector<2x4x768xf32>
    %55 = arith.addf %47, %54 : vector<2x4x768xf32>
    %56 = vector.extract_strided_slice %1 {offsets = [0, 1], sizes = [4, 767], strides = [1, 1]} : vector<4x768xf32> to vector<4x767xf32>
    %57 = vector.extract_strided_slice %1 {offsets = [0, 0], sizes = [4, 1], strides = [1, 1]} : vector<4x768xf32> to vector<4x1xf32>
    %58 = tpu.concatenate %56, %57 in 1 : vector<4x767xf32>, vector<4x1xf32> -> vector<4x768xf32>
    %c5 = arith.constant 5 : index
    %c0_15 = arith.constant 0 : index
    %c0_16 = arith.constant 0 : index
    %59 = vector.load %arg2[%c5, %c0_15, %c0_16] : memref<36x2x4xf32, #tpu.memory_space<vmem>>, vector<1x2x4xf32>
    %60 = vector.shape_cast %59 : vector<1x2x4xf32> to vector<2x4xf32>
    %61 = vector.shape_cast %60 : vector<2x4xf32> to vector<2x4x1xf32>
    %62 = vector.shape_cast %58 : vector<4x768xf32> to vector<1x4x768xf32>
    %63 = vector.broadcast %61 : vector<2x4x1xf32> to vector<2x4x768xf32>
    %64 = vector.broadcast %62 : vector<1x4x768xf32> to vector<2x4x768xf32>
    %65 = arith.mulf %63, %64 : vector<2x4x768xf32>
    %66 = arith.addf %55, %65 : vector<2x4x768xf32>
    %67 = vector.extract_strided_slice %1 {offsets = [0, 31], sizes = [4, 737], strides = [1, 1]} : vector<4x768xf32> to vector<4x737xf32>
    %68 = vector.extract_strided_slice %1 {offsets = [0, 0], sizes = [4, 31], strides = [1, 1]} : vector<4x768xf32> to vector<4x31xf32>
    %69 = tpu.concatenate %67, %68 in 1 : vector<4x737xf32>, vector<4x31xf32> -> vector<4x768xf32>
    %c6 = arith.constant 6 : index
    %c0_17 = arith.constant 0 : index
    %c0_18 = arith.constant 0 : index
    %70 = vector.load %arg2[%c6, %c0_17, %c0_18] : memref<36x2x4xf32, #tpu.memory_space<vmem>>, vector<1x2x4xf32>
    %71 = vector.shape_cast %70 : vector<1x2x4xf32> to vector<2x4xf32>
    %72 = vector.shape_cast %71 : vector<2x4xf32> to vector<2x4x1xf32>
    %73 = vector.shape_cast %69 : vector<4x768xf32> to vector<1x4x768xf32>
    %74 = vector.broadcast %72 : vector<2x4x1xf32> to vector<2x4x768xf32>
    %75 = vector.broadcast %73 : vector<1x4x768xf32> to vector<2x4x768xf32>
    %76 = arith.mulf %74, %75 : vector<2x4x768xf32>
    %77 = arith.addf %66, %76 : vector<2x4x768xf32>
    %78 = vector.extract_strided_slice %1 {offsets = [0, 32], sizes = [4, 736], strides = [1, 1]} : vector<4x768xf32> to vector<4x736xf32>
    %79 = vector.extract_strided_slice %1 {offsets = [0, 0], sizes = [4, 32], strides = [1, 1]} : vector<4x768xf32> to vector<4x32xf32>
    %80 = tpu.concatenate %78, %79 in 1 : vector<4x736xf32>, vector<4x32xf32> -> vector<4x768xf32>
    %c7 = arith.constant 7 : index
    %c0_19 = arith.constant 0 : index
    %c0_20 = arith.constant 0 : index
    %81 = vector.load %arg2[%c7, %c0_19, %c0_20] : memref<36x2x4xf32, #tpu.memory_space<vmem>>, vector<1x2x4xf32>
    %82 = vector.shape_cast %81 : vector<1x2x4xf32> to vector<2x4xf32>
    %83 = vector.shape_cast %82 : vector<2x4xf32> to vector<2x4x1xf32>
    %84 = vector.shape_cast %80 : vector<4x768xf32> to vector<1x4x768xf32>
    %85 = vector.broadcast %83 : vector<2x4x1xf32> to vector<2x4x768xf32>
    %86 = vector.broadcast %84 : vector<1x4x768xf32> to vector<2x4x768xf32>
    %87 = arith.mulf %85, %86 : vector<2x4x768xf32>
    %88 = arith.addf %77, %87 : vector<2x4x768xf32>
    %89 = vector.extract_strided_slice %1 {offsets = [0, 33], sizes = [4, 735], strides = [1, 1]} : vector<4x768xf32> to vector<4x735xf32>
    %90 = vector.extract_strided_slice %1 {offsets = [0, 0], sizes = [4, 33], strides = [1, 1]} : vector<4x768xf32> to vector<4x33xf32>
    %91 = tpu.concatenate %89, %90 in 1 : vector<4x735xf32>, vector<4x33xf32> -> vector<4x768xf32>
    %c8 = arith.constant 8 : index
    %c0_21 = arith.constant 0 : index
    %c0_22 = arith.constant 0 : index
    %92 = vector.load %arg2[%c8, %c0_21, %c0_22] : memref<36x2x4xf32, #tpu.memory_space<vmem>>, vector<1x2x4xf32>
    %93 = vector.shape_cast %92 : vector<1x2x4xf32> to vector<2x4xf32>
    %94 = vector.shape_cast %93 : vector<2x4xf32> to vector<2x4x1xf32>
    %95 = vector.shape_cast %91 : vector<4x768xf32> to vector<1x4x768xf32>
    %96 = vector.broadcast %94 : vector<2x4x1xf32> to vector<2x4x768xf32>
    %97 = vector.broadcast %95 : vector<1x4x768xf32> to vector<2x4x768xf32>
    %98 = arith.mulf %96, %97 : vector<2x4x768xf32>
    %99 = arith.addf %88, %98 : vector<2x4x768xf32>
    %cst_23 = arith.constant dense<0.000000e+00> : vector<2x768xf32>
    %100 = vector.multi_reduction <add>, %99, %cst_23 [1] : vector<2x4x768xf32> to vector<2x768xf32>
    %c0_24 = arith.constant 0 : index
    %c0_25 = arith.constant 0 : index
    %101 = vector.load %arg3[%c0_24, %c0_25] : memref<8x1xf32, #tpu.memory_space<vmem>>, vector<2x1xf32>
    %102 = vector.broadcast %101 : vector<2x1xf32> to vector<2x768xf32>
    %103 = arith.addf %100, %102 : vector<2x768xf32>
    %cst_26 = arith.constant 0.000000e+00 : f32
    %104 = vector.broadcast %cst_26 : f32 to vector<2x768xf32>
    %105 = arith.maximumf %103, %104 : vector<2x768xf32>
    %c0_27 = arith.constant 0 : index
    %c0_28 = arith.constant 0 : index
    %106 = vector.load %arg4[%c0_27, %c0_28] : memref<8x1xf32, #tpu.memory_space<vmem>>, vector<2x1xf32>
    %107 = vector.broadcast %106 : vector<2x1xf32> to vector<2x768xf32>
    %108 = arith.mulf %105, %107 : vector<2x768xf32>
    %c0_29 = arith.constant 0 : index
    %c0_30 = arith.constant 0 : index
    %109 = vector.load %arg5[%c0_29, %c0_30] : memref<8x1xf32, #tpu.memory_space<vmem>>, vector<2x1xf32>
    %110 = vector.broadcast %109 : vector<2x1xf32> to vector<2x768xf32>
    %111 = arith.addf %108, %110 : vector<2x768xf32>
    %cst_31 = arith.constant 0.000000e+00 : f32
    %112 = vector.broadcast %cst_31 : f32 to vector<2x768xf32>
    %113 = arith.maximumf %111, %112 : vector<2x768xf32>
    %114 = vector.broadcast %2 : vector<1x768xf32> to vector<2x768xf32>
    %115 = arith.mulf %113, %114 : vector<2x768xf32>
    %c0_32 = arith.constant 0 : index
    %c0_33 = arith.constant 0 : index
    %c0_34 = arith.constant 0 : index
    %116 = vector.load %arg7[%c0_32, %c0_33, %c0_34] : memref<1x8x768xf32, #tpu.memory_space<vmem>>, vector<1x2x768xf32>
    %117 = vector.shape_cast %116 : vector<1x2x768xf32> to vector<2x768xf32>
    %118 = vector.shape_cast %115 : vector<2x768xf32> to vector<1x2x768xf32>
    tpu.vector_store %arg7[%c0_32, %c0_33, %c0_34], %118 {strides = array<i32>} : memref<1x8x768xf32, #tpu.memory_space<vmem>>, vector<1x2x768xf32>,
    %cst_35 = arith.constant 0.000000e+00 : f32
    %119 = vector.broadcast %cst_35 : f32 to vector<2x4x768xf32>
    %120 = vector.extract_strided_slice %1 {offsets = [0, 702], sizes = [4, 66], strides = [1, 1]} : vector<4x768xf32> to vector<4x66xf32>
    %121 = vector.extract_strided_slice %1 {offsets = [0, 0], sizes = [4, 702], strides = [1, 1]} : vector<4x768xf32> to vector<4x702xf32>
    %122 = tpu.concatenate %120, %121 in 1 : vector<4x66xf32>, vector<4x702xf32> -> vector<4x768xf32>
    %c9 = arith.constant 9 : index
    %c0_36 = arith.constant 0 : index
    %c0_37 = arith.constant 0 : index
    %123 = vector.load %arg2[%c9, %c0_36, %c0_37] : memref<36x2x4xf32, #tpu.memory_space<vmem>>, vector<1x2x4xf32>
    %124 = vector.shape_cast %123 : vector<1x2x4xf32> to vector<2x4xf32>
    %125 = vector.shape_cast %124 : vector<2x4xf32> to vector<2x4x1xf32>
    %126 = vector.shape_cast %122 : vector<4x768xf32> to vector<1x4x768xf32>
    %127 = vector.broadcast %125 : vector<2x4x1xf32> to vector<2x4x768xf32>
    %128 = vector.broadcast %126 : vector<1x4x768xf32> to vector<2x4x768xf32>
    %129 = arith.mulf %127, %128 : vector<2x4x768xf32>
    %130 = arith.addf %119, %129 : vector<2x4x768xf32>
    %131 = vector.extract_strided_slice %1 {offsets = [0, 704], sizes = [4, 64], strides = [1, 1]} : vector<4x768xf32> to vector<4x64xf32>
    %132 = vector.extract_strided_slice %1 {offsets = [0, 0], sizes = [4, 704], strides = [1, 1]} : vector<4x768xf32> to vector<4x704xf32>
    %133 = tpu.concatenate %131, %132 in 1 : vector<4x64xf32>, vector<4x704xf32> -> vector<4x768xf32>
    %c10 = arith.constant 10 : index
    %c0_38 = arith.constant 0 : index
    %c0_39 = arith.constant 0 : index
    %134 = vector.load %arg2[%c10, %c0_38, %c0_39] : memref<36x2x4xf32, #tpu.memory_space<vmem>>, vector<1x2x4xf32>
    %135 = vector.shape_cast %134 : vector<1x2x4xf32> to vector<2x4xf32>
    %136 = vector.shape_cast %135 : vector<2x4xf32> to vector<2x4x1xf32>
    %137 = vector.shape_cast %133 : vector<4x768xf32> to vector<1x4x768xf32>
    %138 = vector.broadcast %136 : vector<2x4x1xf32> to vector<2x4x768xf32>
    %139 = vector.broadcast %137 : vector<1x4x768xf32> to vector<2x4x768xf32>
    %140 = arith.mulf %138, %139 : vector<2x4x768xf32>
    %141 = arith.addf %130, %140 : vector<2x4x768xf32>
    %142 = vector.extract_strided_slice %1 {offsets = [0, 706], sizes = [4, 62], strides = [1, 1]} : vector<4x768xf32> to vector<4x62xf32>
    %143 = vector.extract_strided_slice %1 {offsets = [0, 0], sizes = [4, 706], strides = [1, 1]} : vector<4x768xf32> to vector<4x706xf32>
    %144 = tpu.concatenate %142, %143 in 1 : vector<4x62xf32>, vector<4x706xf32> -> vector<4x768xf32>
    %c11 = arith.constant 11 : index
    %c0_40 = arith.constant 0 : index
    %c0_41 = arith.constant 0 : index
    %145 = vector.load %arg2[%c11, %c0_40, %c0_41] : memref<36x2x4xf32, #tpu.memory_space<vmem>>, vector<1x2x4xf32>
    %146 = vector.shape_cast %145 : vector<1x2x4xf32> to vector<2x4xf32>
    %147 = vector.shape_cast %146 : vector<2x4xf32> to vector<2x4x1xf32>
    %148 = vector.shape_cast %144 : vector<4x768xf32> to vector<1x4x768xf32>
    %149 = vector.broadcast %147 : vector<2x4x1xf32> to vector<2x4x768xf32>
    %150 = vector.broadcast %148 : vector<1x4x768xf32> to vector<2x4x768xf32>
    %151 = arith.mulf %149, %150 : vector<2x4x768xf32>
    %152 = arith.addf %141, %151 : vector<2x4x768xf32>
    %153 = vector.extract_strided_slice %1 {offsets = [0, 766], sizes = [4, 2], strides = [1, 1]} : vector<4x768xf32> to vector<4x2xf32>
    %154 = vector.extract_strided_slice %1 {offsets = [0, 0], sizes = [4, 766], strides = [1, 1]} : vector<4x768xf32> to vector<4x766xf32>
    %155 = tpu.concatenate %153, %154 in 1 : vector<4x2xf32>, vector<4x766xf32> -> vector<4x768xf32>
    %c12 = arith.constant 12 : index
    %c0_42 = arith.constant 0 : index
    %c0_43 = arith.constant 0 : index
    %156 = vector.load %arg2[%c12, %c0_42, %c0_43] : memref<36x2x4xf32, #tpu.memory_space<vmem>>, vector<1x2x4xf32>
    %157 = vector.shape_cast %156 : vector<1x2x4xf32> to vector<2x4xf32>
    %158 = vector.shape_cast %157 : vector<2x4xf32> to vector<2x4x1xf32>
    %159 = vector.shape_cast %155 : vector<4x768xf32> to vector<1x4x768xf32>
    %160 = vector.broadcast %158 : vector<2x4x1xf32> to vector<2x4x768xf32>
    %161 = vector.broadcast %159 : vector<1x4x768xf32> to vector<2x4x768xf32>
    %162 = arith.mulf %160, %161 : vector<2x4x768xf32>
    %163 = arith.addf %152, %162 : vector<2x4x768xf32>
    %c13 = arith.constant 13 : index
    %c0_44 = arith.constant 0 : index
    %c0_45 = arith.constant 0 : index
    %164 = vector.load %arg2[%c13, %c0_44, %c0_45] : memref<36x2x4xf32, #tpu.memory_space<vmem>>, vector<1x2x4xf32>
    %165 = vector.shape_cast %164 : vector<1x2x4xf32> to vector<2x4xf32>
    %166 = vector.shape_cast %165 : vector<2x4xf32> to vector<2x4x1xf32>
    %167 = vector.shape_cast %1 : vector<4x768xf32> to vector<1x4x768xf32>
    %168 = vector.broadcast %166 : vector<2x4x1xf32> to vector<2x4x768xf32>
    %169 = vector.broadcast %167 : vector<1x4x768xf32> to vector<2x4x768xf32>
    %170 = arith.mulf %168, %169 : vector<2x4x768xf32>
    %171 = arith.addf %163, %170 : vector<2x4x768xf32>
    %172 = vector.extract_strided_slice %1 {offsets = [0, 2], sizes = [4, 766], strides = [1, 1]} : vector<4x768xf32> to vector<4x766xf32>
    %173 = vector.extract_strided_slice %1 {offsets = [0, 0], sizes = [4, 2], strides = [1, 1]} : vector<4x768xf32> to vector<4x2xf32>
    %174 = tpu.concatenate %172, %173 in 1 : vector<4x766xf32>, vector<4x2xf32> -> vector<4x768xf32>
    %c14 = arith.constant 14 : index
    %c0_46 = arith.constant 0 : index
    %c0_47 = arith.constant 0 : index
    %175 = vector.load %arg2[%c14, %c0_46, %c0_47] : memref<36x2x4xf32, #tpu.memory_space<vmem>>, vector<1x2x4xf32>
    %176 = vector.shape_cast %175 : vector<1x2x4xf32> to vector<2x4xf32>
    %177 = vector.shape_cast %176 : vector<2x4xf32> to vector<2x4x1xf32>
    %178 = vector.shape_cast %174 : vector<4x768xf32> to vector<1x4x768xf32>
    %179 = vector.broadcast %177 : vector<2x4x1xf32> to vector<2x4x768xf32>
    %180 = vector.broadcast %178 : vector<1x4x768xf32> to vector<2x4x768xf32>
    %181 = arith.mulf %179, %180 : vector<2x4x768xf32>
    %182 = arith.addf %171, %181 : vector<2x4x768xf32>
    %183 = vector.extract_strided_slice %1 {offsets = [0, 62], sizes = [4, 706], strides = [1, 1]} : vector<4x768xf32> to vector<4x706xf32>
    %184 = vector.extract_strided_slice %1 {offsets = [0, 0], sizes = [4, 62], strides = [1, 1]} : vector<4x768xf32> to vector<4x62xf32>
    %185 = tpu.concatenate %183, %184 in 1 : vector<4x706xf32>, vector<4x62xf32> -> vector<4x768xf32>
    %c15 = arith.constant 15 : index
    %c0_48 = arith.constant 0 : index
    %c0_49 = arith.constant 0 : index
    %186 = vector.load %arg2[%c15, %c0_48, %c0_49] : memref<36x2x4xf32, #tpu.memory_space<vmem>>, vector<1x2x4xf32>
    %187 = vector.shape_cast %186 : vector<1x2x4xf32> to vector<2x4xf32>
    %188 = vector.shape_cast %187 : vector<2x4xf32> to vector<2x4x1xf32>
    %189 = vector.shape_cast %185 : vector<4x768xf32> to vector<1x4x768xf32>
    %190 = vector.broadcast %188 : vector<2x4x1xf32> to vector<2x4x768xf32>
    %191 = vector.broadcast %189 : vector<1x4x768xf32> to vector<2x4x768xf32>
    %192 = arith.mulf %190, %191 : vector<2x4x768xf32>
    %193 = arith.addf %182, %192 : vector<2x4x768xf32>
    %194 = vector.extract_strided_slice %1 {offsets = [0, 64], sizes = [4, 704], strides = [1, 1]} : vector<4x768xf32> to vector<4x704xf32>
    %195 = vector.extract_strided_slice %1 {offsets = [0, 0], sizes = [4, 64], strides = [1, 1]} : vector<4x768xf32> to vector<4x64xf32>
    %196 = tpu.concatenate %194, %195 in 1 : vector<4x704xf32>, vector<4x64xf32> -> vector<4x768xf32>
    %c16 = arith.constant 16 : index
    %c0_50 = arith.constant 0 : index
    %c0_51 = arith.constant 0 : index
    %197 = vector.load %arg2[%c16, %c0_50, %c0_51] : memref<36x2x4xf32, #tpu.memory_space<vmem>>, vector<1x2x4xf32>
    %198 = vector.shape_cast %197 : vector<1x2x4xf32> to vector<2x4xf32>
    %199 = vector.shape_cast %198 : vector<2x4xf32> to vector<2x4x1xf32>
    %200 = vector.shape_cast %196 : vector<4x768xf32> to vector<1x4x768xf32>
    %201 = vector.broadcast %199 : vector<2x4x1xf32> to vector<2x4x768xf32>
    %202 = vector.broadcast %200 : vector<1x4x768xf32> to vector<2x4x768xf32>
    %203 = arith.mulf %201, %202 : vector<2x4x768xf32>
    %204 = arith.addf %193, %203 : vector<2x4x768xf32>
    %205 = vector.extract_strided_slice %1 {offsets = [0, 66], sizes = [4, 702], strides = [1, 1]} : vector<4x768xf32> to vector<4x702xf32>
    %206 = vector.extract_strided_slice %1 {offsets = [0, 0], sizes = [4, 66], strides = [1, 1]} : vector<4x768xf32> to vector<4x66xf32>
    %207 = tpu.concatenate %205, %206 in 1 : vector<4x702xf32>, vector<4x66xf32> -> vector<4x768xf32>
    %c17 = arith.constant 17 : index
    %c0_52 = arith.constant 0 : index
    %c0_53 = arith.constant 0 : index
    %208 = vector.load %arg2[%c17, %c0_52, %c0_53] : memref<36x2x4xf32, #tpu.memory_space<vmem>>, vector<1x2x4xf32>
    %209 = vector.shape_cast %208 : vector<1x2x4xf32> to vector<2x4xf32>
    %210 = vector.shape_cast %209 : vector<2x4xf32> to vector<2x4x1xf32>
    %211 = vector.shape_cast %207 : vector<4x768xf32> to vector<1x4x768xf32>
    %212 = vector.broadcast %210 : vector<2x4x1xf32> to vector<2x4x768xf32>
    %213 = vector.broadcast %211 : vector<1x4x768xf32> to vector<2x4x768xf32>
    %214 = arith.mulf %212, %213 : vector<2x4x768xf32>
    %215 = arith.addf %204, %214 : vector<2x4x768xf32>
    %cst_54 = arith.constant dense<0.000000e+00> : vector<2x768xf32>
    %216 = vector.multi_reduction <add>, %215, %cst_54 [1] : vector<2x4x768xf32> to vector<2x768xf32>
    %c2_55 = arith.constant 2 : index
    %c0_56 = arith.constant 0 : index
    %217 = vector.load %arg3[%c2_55, %c0_56] : memref<8x1xf32, #tpu.memory_space<vmem>>, vector<2x1xf32>
    %218 = vector.broadcast %217 : vector<2x1xf32> to vector<2x768xf32>
    %219 = arith.addf %216, %218 : vector<2x768xf32>
    %cst_57 = arith.constant 0.000000e+00 : f32
    %220 = vector.broadcast %cst_57 : f32 to vector<2x768xf32>
    %221 = arith.maximumf %219, %220 : vector<2x768xf32>
    %c2_58 = arith.constant 2 : index
    %c0_59 = arith.constant 0 : index
    %222 = vector.load %arg4[%c2_58, %c0_59] : memref<8x1xf32, #tpu.memory_space<vmem>>, vector<2x1xf32>
    %223 = vector.broadcast %222 : vector<2x1xf32> to vector<2x768xf32>
    %224 = arith.mulf %221, %223 : vector<2x768xf32>
    %c2_60 = arith.constant 2 : index
    %c0_61 = arith.constant 0 : index
    %225 = vector.load %arg5[%c2_60, %c0_61] : memref<8x1xf32, #tpu.memory_space<vmem>>, vector<2x1xf32>
    %226 = vector.broadcast %225 : vector<2x1xf32> to vector<2x768xf32>
    %227 = arith.addf %224, %226 : vector<2x768xf32>
    %cst_62 = arith.constant 0.000000e+00 : f32
    %228 = vector.broadcast %cst_62 : f32 to vector<2x768xf32>
    %229 = arith.maximumf %227, %228 : vector<2x768xf32>
    %230 = vector.broadcast %2 : vector<1x768xf32> to vector<2x768xf32>
    %231 = arith.mulf %229, %230 : vector<2x768xf32>
    %c0_63 = arith.constant 0 : index
    %c2_64 = arith.constant 2 : index
    %c0_65 = arith.constant 0 : index
    %232 = vector.load %arg7[%c0_63, %c2_64, %c0_65] : memref<1x8x768xf32, #tpu.memory_space<vmem>>, vector<1x2x768xf32>
    %233 = vector.shape_cast %232 : vector<1x2x768xf32> to vector<2x768xf32>
    %234 = vector.shape_cast %231 : vector<2x768xf32> to vector<1x2x768xf32>
    tpu.vector_store %arg7[%c0_63, %c2_64, %c0_65], %234 {strides = array<i32>} : memref<1x8x768xf32, #tpu.memory_space<vmem>>, vector<1x2x768xf32>,
    %cst_66 = arith.constant 0.000000e+00 : f32
    %235 = vector.broadcast %cst_66 : f32 to vector<2x4x768xf32>
    %236 = vector.extract_strided_slice %1 {offsets = [0, 669], sizes = [4, 99], strides = [1, 1]} : vector<4x768xf32> to vector<4x99xf32>
    %237 = vector.extract_strided_slice %1 {offsets = [0, 0], sizes = [4, 669], strides = [1, 1]} : vector<4x768xf32> to vector<4x669xf32>
    %238 = tpu.concatenate %236, %237 in 1 : vector<4x99xf32>, vector<4x669xf32> -> vector<4x768xf32>
    %c18 = arith.constant 18 : index
    %c0_67 = arith.constant 0 : index
    %c0_68 = arith.constant 0 : index
    %239 = vector.load %arg2[%c18, %c0_67, %c0_68] : memref<36x2x4xf32, #tpu.memory_space<vmem>>, vector<1x2x4xf32>
    %240 = vector.shape_cast %239 : vector<1x2x4xf32> to vector<2x4xf32>
    %241 = vector.shape_cast %240 : vector<2x4xf32> to vector<2x4x1xf32>
    %242 = vector.shape_cast %238 : vector<4x768xf32> to vector<1x4x768xf32>
    %243 = vector.broadcast %241 : vector<2x4x1xf32> to vector<2x4x768xf32>
    %244 = vector.broadcast %242 : vector<1x4x768xf32> to vector<2x4x768xf32>
    %245 = arith.mulf %243, %244 : vector<2x4x768xf32>
    %246 = arith.addf %235, %245 : vector<2x4x768xf32>
    %247 = vector.extract_strided_slice %1 {offsets = [0, 672], sizes = [4, 96], strides = [1, 1]} : vector<4x768xf32> to vector<4x96xf32>
    %248 = vector.extract_strided_slice %1 {offsets = [0, 0], sizes = [4, 672], strides = [1, 1]} : vector<4x768xf32> to vector<4x672xf32>
    %249 = tpu.concatenate %247, %248 in 1 : vector<4x96xf32>, vector<4x672xf32> -> vector<4x768xf32>
    %c19 = arith.constant 19 : index
    %c0_69 = arith.constant 0 : index
    %c0_70 = arith.constant 0 : index
    %250 = vector.load %arg2[%c19, %c0_69, %c0_70] : memref<36x2x4xf32, #tpu.memory_space<vmem>>, vector<1x2x4xf32>
    %251 = vector.shape_cast %250 : vector<1x2x4xf32> to vector<2x4xf32>
    %252 = vector.shape_cast %251 : vector<2x4xf32> to vector<2x4x1xf32>
    %253 = vector.shape_cast %249 : vector<4x768xf32> to vector<1x4x768xf32>
    %254 = vector.broadcast %252 : vector<2x4x1xf32> to vector<2x4x768xf32>
    %255 = vector.broadcast %253 : vector<1x4x768xf32> to vector<2x4x768xf32>
    %256 = arith.mulf %254, %255 : vector<2x4x768xf32>
    %257 = arith.addf %246, %256 : vector<2x4x768xf32>
    %258 = vector.extract_strided_slice %1 {offsets = [0, 675], sizes = [4, 93], strides = [1, 1]} : vector<4x768xf32> to vector<4x93xf32>
    %259 = vector.extract_strided_slice %1 {offsets = [0, 0], sizes = [4, 675], strides = [1, 1]} : vector<4x768xf32> to vector<4x675xf32>
    %260 = tpu.concatenate %258, %259 in 1 : vector<4x93xf32>, vector<4x675xf32> -> vector<4x768xf32>
    %c20 = arith.constant 20 : index
    %c0_71 = arith.constant 0 : index
    %c0_72 = arith.constant 0 : index
    %261 = vector.load %arg2[%c20, %c0_71, %c0_72] : memref<36x2x4xf32, #tpu.memory_space<vmem>>, vector<1x2x4xf32>
    %262 = vector.shape_cast %261 : vector<1x2x4xf32> to vector<2x4xf32>
    %263 = vector.shape_cast %262 : vector<2x4xf32> to vector<2x4x1xf32>
    %264 = vector.shape_cast %260 : vector<4x768xf32> to vector<1x4x768xf32>
    %265 = vector.broadcast %263 : vector<2x4x1xf32> to vector<2x4x768xf32>
    %266 = vector.broadcast %264 : vector<1x4x768xf32> to vector<2x4x768xf32>
    %267 = arith.mulf %265, %266 : vector<2x4x768xf32>
    %268 = arith.addf %257, %267 : vector<2x4x768xf32>
    %269 = vector.extract_strided_slice %1 {offsets = [0, 765], sizes = [4, 3], strides = [1, 1]} : vector<4x768xf32> to vector<4x3xf32>
    %270 = vector.extract_strided_slice %1 {offsets = [0, 0], sizes = [4, 765], strides = [1, 1]} : vector<4x768xf32> to vector<4x765xf32>
    %271 = tpu.concatenate %269, %270 in 1 : vector<4x3xf32>, vector<4x765xf32> -> vector<4x768xf32>
    %c21 = arith.constant 21 : index
    %c0_73 = arith.constant 0 : index
    %c0_74 = arith.constant 0 : index
    %272 = vector.load %arg2[%c21, %c0_73, %c0_74] : memref<36x2x4xf32, #tpu.memory_space<vmem>>, vector<1x2x4xf32>
    %273 = vector.shape_cast %272 : vector<1x2x4xf32> to vector<2x4xf32>
    %274 = vector.shape_cast %273 : vector<2x4xf32> to vector<2x4x1xf32>
    %275 = vector.shape_cast %271 : vector<4x768xf32> to vector<1x4x768xf32>
    %276 = vector.broadcast %274 : vector<2x4x1xf32> to vector<2x4x768xf32>
    %277 = vector.broadcast %275 : vector<1x4x768xf32> to vector<2x4x768xf32>
    %278 = arith.mulf %276, %277 : vector<2x4x768xf32>
    %279 = arith.addf %268, %278 : vector<2x4x768xf32>
    %c22 = arith.constant 22 : index
    %c0_75 = arith.constant 0 : index
    %c0_76 = arith.constant 0 : index
    %280 = vector.load %arg2[%c22, %c0_75, %c0_76] : memref<36x2x4xf32, #tpu.memory_space<vmem>>, vector<1x2x4xf32>
    %281 = vector.shape_cast %280 : vector<1x2x4xf32> to vector<2x4xf32>
    %282 = vector.shape_cast %281 : vector<2x4xf32> to vector<2x4x1xf32>
    %283 = vector.shape_cast %1 : vector<4x768xf32> to vector<1x4x768xf32>
    %284 = vector.broadcast %282 : vector<2x4x1xf32> to vector<2x4x768xf32>
    %285 = vector.broadcast %283 : vector<1x4x768xf32> to vector<2x4x768xf32>
    %286 = arith.mulf %284, %285 : vector<2x4x768xf32>
    %287 = arith.addf %279, %286 : vector<2x4x768xf32>
    %288 = vector.extract_strided_slice %1 {offsets = [0, 3], sizes = [4, 765], strides = [1, 1]} : vector<4x768xf32> to vector<4x765xf32>
    %289 = vector.extract_strided_slice %1 {offsets = [0, 0], sizes = [4, 3], strides = [1, 1]} : vector<4x768xf32> to vector<4x3xf32>
    %290 = tpu.concatenate %288, %289 in 1 : vector<4x765xf32>, vector<4x3xf32> -> vector<4x768xf32>
    %c23 = arith.constant 23 : index
    %c0_77 = arith.constant 0 : index
    %c0_78 = arith.constant 0 : index
    %291 = vector.load %arg2[%c23, %c0_77, %c0_78] : memref<36x2x4xf32, #tpu.memory_space<vmem>>, vector<1x2x4xf32>
    %292 = vector.shape_cast %291 : vector<1x2x4xf32> to vector<2x4xf32>
    %293 = vector.shape_cast %292 : vector<2x4xf32> to vector<2x4x1xf32>
    %294 = vector.shape_cast %290 : vector<4x768xf32> to vector<1x4x768xf32>
    %295 = vector.broadcast %293 : vector<2x4x1xf32> to vector<2x4x768xf32>
    %296 = vector.broadcast %294 : vector<1x4x768xf32> to vector<2x4x768xf32>
    %297 = arith.mulf %295, %296 : vector<2x4x768xf32>
    %298 = arith.addf %287, %297 : vector<2x4x768xf32>
    %299 = vector.extract_strided_slice %1 {offsets = [0, 93], sizes = [4, 675], strides = [1, 1]} : vector<4x768xf32> to vector<4x675xf32>
    %300 = vector.extract_strided_slice %1 {offsets = [0, 0], sizes = [4, 93], strides = [1, 1]} : vector<4x768xf32> to vector<4x93xf32>
    %301 = tpu.concatenate %299, %300 in 1 : vector<4x675xf32>, vector<4x93xf32> -> vector<4x768xf32>
    %c24 = arith.constant 24 : index
    %c0_79 = arith.constant 0 : index
    %c0_80 = arith.constant 0 : index
    %302 = vector.load %arg2[%c24, %c0_79, %c0_80] : memref<36x2x4xf32, #tpu.memory_space<vmem>>, vector<1x2x4xf32>
    %303 = vector.shape_cast %302 : vector<1x2x4xf32> to vector<2x4xf32>
    %304 = vector.shape_cast %303 : vector<2x4xf32> to vector<2x4x1xf32>
    %305 = vector.shape_cast %301 : vector<4x768xf32> to vector<1x4x768xf32>
    %306 = vector.broadcast %304 : vector<2x4x1xf32> to vector<2x4x768xf32>
    %307 = vector.broadcast %305 : vector<1x4x768xf32> to vector<2x4x768xf32>
    %308 = arith.mulf %306, %307 : vector<2x4x768xf32>
    %309 = arith.addf %298, %308 : vector<2x4x768xf32>
    %310 = vector.extract_strided_slice %1 {offsets = [0, 96], sizes = [4, 672], strides = [1, 1]} : vector<4x768xf32> to vector<4x672xf32>
    %311 = vector.extract_strided_slice %1 {offsets = [0, 0], sizes = [4, 96], strides = [1, 1]} : vector<4x768xf32> to vector<4x96xf32>
    %312 = tpu.concatenate %310, %311 in 1 : vector<4x672xf32>, vector<4x96xf32> -> vector<4x768xf32>
    %c25 = arith.constant 25 : index
    %c0_81 = arith.constant 0 : index
    %c0_82 = arith.constant 0 : index
    %313 = vector.load %arg2[%c25, %c0_81, %c0_82] : memref<36x2x4xf32, #tpu.memory_space<vmem>>, vector<1x2x4xf32>
    %314 = vector.shape_cast %313 : vector<1x2x4xf32> to vector<2x4xf32>
    %315 = vector.shape_cast %314 : vector<2x4xf32> to vector<2x4x1xf32>
    %316 = vector.shape_cast %312 : vector<4x768xf32> to vector<1x4x768xf32>
    %317 = vector.broadcast %315 : vector<2x4x1xf32> to vector<2x4x768xf32>
    %318 = vector.broadcast %316 : vector<1x4x768xf32> to vector<2x4x768xf32>
    %319 = arith.mulf %317, %318 : vector<2x4x768xf32>
    %320 = arith.addf %309, %319 : vector<2x4x768xf32>
    %321 = vector.extract_strided_slice %1 {offsets = [0, 99], sizes = [4, 669], strides = [1, 1]} : vector<4x768xf32> to vector<4x669xf32>
    %322 = vector.extract_strided_slice %1 {offsets = [0, 0], sizes = [4, 99], strides = [1, 1]} : vector<4x768xf32> to vector<4x99xf32>
    %323 = tpu.concatenate %321, %322 in 1 : vector<4x669xf32>, vector<4x99xf32> -> vector<4x768xf32>
    %c26 = arith.constant 26 : index
    %c0_83 = arith.constant 0 : index
    %c0_84 = arith.constant 0 : index
    %324 = vector.load %arg2[%c26, %c0_83, %c0_84] : memref<36x2x4xf32, #tpu.memory_space<vmem>>, vector<1x2x4xf32>
    %325 = vector.shape_cast %324 : vector<1x2x4xf32> to vector<2x4xf32>
    %326 = vector.shape_cast %325 : vector<2x4xf32> to vector<2x4x1xf32>
    %327 = vector.shape_cast %323 : vector<4x768xf32> to vector<1x4x768xf32>
    %328 = vector.broadcast %326 : vector<2x4x1xf32> to vector<2x4x768xf32>
    %329 = vector.broadcast %327 : vector<1x4x768xf32> to vector<2x4x768xf32>
    %330 = arith.mulf %328, %329 : vector<2x4x768xf32>
    %331 = arith.addf %320, %330 : vector<2x4x768xf32>
    %cst_85 = arith.constant dense<0.000000e+00> : vector<2x768xf32>
    %332 = vector.multi_reduction <add>, %331, %cst_85 [1] : vector<2x4x768xf32> to vector<2x768xf32>
    %c4_86 = arith.constant 4 : index
    %c0_87 = arith.constant 0 : index
    %333 = vector.load %arg3[%c4_86, %c0_87] : memref<8x1xf32, #tpu.memory_space<vmem>>, vector<2x1xf32>
    %334 = vector.broadcast %333 : vector<2x1xf32> to vector<2x768xf32>
    %335 = arith.addf %332, %334 : vector<2x768xf32>
    %cst_88 = arith.constant 0.000000e+00 : f32
    %336 = vector.broadcast %cst_88 : f32 to vector<2x768xf32>
    %337 = arith.maximumf %335, %336 : vector<2x768xf32>
    %c4_89 = arith.constant 4 : index
    %c0_90 = arith.constant 0 : index
    %338 = vector.load %arg4[%c4_89, %c0_90] : memref<8x1xf32, #tpu.memory_space<vmem>>, vector<2x1xf32>
    %339 = vector.broadcast %338 : vector<2x1xf32> to vector<2x768xf32>
    %340 = arith.mulf %337, %339 : vector<2x768xf32>
    %c4_91 = arith.constant 4 : index
    %c0_92 = arith.constant 0 : index
    %341 = vector.load %arg5[%c4_91, %c0_92] : memref<8x1xf32, #tpu.memory_space<vmem>>, vector<2x1xf32>
    %342 = vector.broadcast %341 : vector<2x1xf32> to vector<2x768xf32>
    %343 = arith.addf %340, %342 : vector<2x768xf32>
    %cst_93 = arith.constant 0.000000e+00 : f32
    %344 = vector.broadcast %cst_93 : f32 to vector<2x768xf32>
    %345 = arith.maximumf %343, %344 : vector<2x768xf32>
    %346 = vector.broadcast %2 : vector<1x768xf32> to vector<2x768xf32>
    %347 = arith.mulf %345, %346 : vector<2x768xf32>
    %c0_94 = arith.constant 0 : index
    %c4_95 = arith.constant 4 : index
    %c0_96 = arith.constant 0 : index
    %348 = vector.load %arg7[%c0_94, %c4_95, %c0_96] : memref<1x8x768xf32, #tpu.memory_space<vmem>>, vector<1x2x768xf32>
    %349 = vector.shape_cast %348 : vector<1x2x768xf32> to vector<2x768xf32>
    %350 = vector.shape_cast %347 : vector<2x768xf32> to vector<1x2x768xf32>
    tpu.vector_store %arg7[%c0_94, %c4_95, %c0_96], %350 {strides = array<i32>} : memref<1x8x768xf32, #tpu.memory_space<vmem>>, vector<1x2x768xf32>,
    %cst_97 = arith.constant 0.000000e+00 : f32
    %351 = vector.broadcast %cst_97 : f32 to vector<2x4x768xf32>
    %352 = vector.extract_strided_slice %1 {offsets = [0, 636], sizes = [4, 132], strides = [1, 1]} : vector<4x768xf32> to vector<4x132xf32>
    %353 = vector.extract_strided_slice %1 {offsets = [0, 0], sizes = [4, 636], strides = [1, 1]} : vector<4x768xf32> to vector<4x636xf32>
    %354 = tpu.concatenate %352, %353 in 1 : vector<4x132xf32>, vector<4x636xf32> -> vector<4x768xf32>
    %c27 = arith.constant 27 : index
    %c0_98 = arith.constant 0 : index
    %c0_99 = arith.constant 0 : index
    %355 = vector.load %arg2[%c27, %c0_98, %c0_99] : memref<36x2x4xf32, #tpu.memory_space<vmem>>, vector<1x2x4xf32>
    %356 = vector.shape_cast %355 : vector<1x2x4xf32> to vector<2x4xf32>
    %357 = vector.shape_cast %356 : vector<2x4xf32> to vector<2x4x1xf32>
    %358 = vector.shape_cast %354 : vector<4x768xf32> to vector<1x4x768xf32>
    %359 = vector.broadcast %357 : vector<2x4x1xf32> to vector<2x4x768xf32>
    %360 = vector.broadcast %358 : vector<1x4x768xf32> to vector<2x4x768xf32>
    %361 = arith.mulf %359, %360 : vector<2x4x768xf32>
    %362 = arith.addf %351, %361 : vector<2x4x768xf32>
    %363 = vector.extract_strided_slice %1 {offsets = [0, 640], sizes = [4, 128], strides = [1, 1]} : vector<4x768xf32> to vector<4x128xf32>
    %364 = vector.extract_strided_slice %1 {offsets = [0, 0], sizes = [4, 640], strides = [1, 1]} : vector<4x768xf32> to vector<4x640xf32>
    %365 = tpu.concatenate %363, %364 in 1 : vector<4x128xf32>, vector<4x640xf32> -> vector<4x768xf32>
    %c28 = arith.constant 28 : index
    %c0_100 = arith.constant 0 : index
    %c0_101 = arith.constant 0 : index
    %366 = vector.load %arg2[%c28, %c0_100, %c0_101] : memref<36x2x4xf32, #tpu.memory_space<vmem>>, vector<1x2x4xf32>
    %367 = vector.shape_cast %366 : vector<1x2x4xf32> to vector<2x4xf32>
    %368 = vector.shape_cast %367 : vector<2x4xf32> to vector<2x4x1xf32>
    %369 = vector.shape_cast %365 : vector<4x768xf32> to vector<1x4x768xf32>
    %370 = vector.broadcast %368 : vector<2x4x1xf32> to vector<2x4x768xf32>
    %371 = vector.broadcast %369 : vector<1x4x768xf32> to vector<2x4x768xf32>
    %372 = arith.mulf %370, %371 : vector<2x4x768xf32>
    %373 = arith.addf %362, %372 : vector<2x4x768xf32>
    %374 = vector.extract_strided_slice %1 {offsets = [0, 644], sizes = [4, 124], strides = [1, 1]} : vector<4x768xf32> to vector<4x124xf32>
    %375 = vector.extract_strided_slice %1 {offsets = [0, 0], sizes = [4, 644], strides = [1, 1]} : vector<4x768xf32> to vector<4x644xf32>
    %376 = tpu.concatenate %374, %375 in 1 : vector<4x124xf32>, vector<4x644xf32> -> vector<4x768xf32>
    %c29 = arith.constant 29 : index
    %c0_102 = arith.constant 0 : index
    %c0_103 = arith.constant 0 : index
    %377 = vector.load %arg2[%c29, %c0_102, %c0_103] : memref<36x2x4xf32, #tpu.memory_space<vmem>>, vector<1x2x4xf32>
    %378 = vector.shape_cast %377 : vector<1x2x4xf32> to vector<2x4xf32>
    %379 = vector.shape_cast %378 : vector<2x4xf32> to vector<2x4x1xf32>
    %380 = vector.shape_cast %376 : vector<4x768xf32> to vector<1x4x768xf32>
    %381 = vector.broadcast %379 : vector<2x4x1xf32> to vector<2x4x768xf32>
    %382 = vector.broadcast %380 : vector<1x4x768xf32> to vector<2x4x768xf32>
    %383 = arith.mulf %381, %382 : vector<2x4x768xf32>
    %384 = arith.addf %373, %383 : vector<2x4x768xf32>
    %385 = vector.extract_strided_slice %1 {offsets = [0, 764], sizes = [4, 4], strides = [1, 1]} : vector<4x768xf32> to vector<4x4xf32>
    %386 = vector.extract_strided_slice %1 {offsets = [0, 0], sizes = [4, 764], strides = [1, 1]} : vector<4x768xf32> to vector<4x764xf32>
    %387 = tpu.concatenate %385, %386 in 1 : vector<4x4xf32>, vector<4x764xf32> -> vector<4x768xf32>
    %c30 = arith.constant 30 : index
    %c0_104 = arith.constant 0 : index
    %c0_105 = arith.constant 0 : index
    %388 = vector.load %arg2[%c30, %c0_104, %c0_105] : memref<36x2x4xf32, #tpu.memory_space<vmem>>, vector<1x2x4xf32>
    %389 = vector.shape_cast %388 : vector<1x2x4xf32> to vector<2x4xf32>
    %390 = vector.shape_cast %389 : vector<2x4xf32> to vector<2x4x1xf32>
    %391 = vector.shape_cast %387 : vector<4x768xf32> to vector<1x4x768xf32>
    %392 = vector.broadcast %390 : vector<2x4x1xf32> to vector<2x4x768xf32>
    %393 = vector.broadcast %391 : vector<1x4x768xf32> to vector<2x4x768xf32>
    %394 = arith.mulf %392, %393 : vector<2x4x768xf32>
    %395 = arith.addf %384, %394 : vector<2x4x768xf32>
    %c31 = arith.constant 31 : index
    %c0_106 = arith.constant 0 : index
    %c0_107 = arith.constant 0 : index
    %396 = vector.load %arg2[%c31, %c0_106, %c0_107] : memref<36x2x4xf32, #tpu.memory_space<vmem>>, vector<1x2x4xf32>
    %397 = vector.shape_cast %396 : vector<1x2x4xf32> to vector<2x4xf32>
    %398 = vector.shape_cast %397 : vector<2x4xf32> to vector<2x4x1xf32>
    %399 = vector.shape_cast %1 : vector<4x768xf32> to vector<1x4x768xf32>
    %400 = vector.broadcast %398 : vector<2x4x1xf32> to vector<2x4x768xf32>
    %401 = vector.broadcast %399 : vector<1x4x768xf32> to vector<2x4x768xf32>
    %402 = arith.mulf %400, %401 : vector<2x4x768xf32>
    %403 = arith.addf %395, %402 : vector<2x4x768xf32>
    %404 = vector.extract_strided_slice %1 {offsets = [0, 4], sizes = [4, 764], strides = [1, 1]} : vector<4x768xf32> to vector<4x764xf32>
    %405 = vector.extract_strided_slice %1 {offsets = [0, 0], sizes = [4, 4], strides = [1, 1]} : vector<4x768xf32> to vector<4x4xf32>
    %406 = tpu.concatenate %404, %405 in 1 : vector<4x764xf32>, vector<4x4xf32> -> vector<4x768xf32>
    %c32 = arith.constant 32 : index
    %c0_108 = arith.constant 0 : index
    %c0_109 = arith.constant 0 : index
    %407 = vector.load %arg2[%c32, %c0_108, %c0_109] : memref<36x2x4xf32, #tpu.memory_space<vmem>>, vector<1x2x4xf32>
    %408 = vector.shape_cast %407 : vector<1x2x4xf32> to vector<2x4xf32>
    %409 = vector.shape_cast %408 : vector<2x4xf32> to vector<2x4x1xf32>
    %410 = vector.shape_cast %406 : vector<4x768xf32> to vector<1x4x768xf32>
    %411 = vector.broadcast %409 : vector<2x4x1xf32> to vector<2x4x768xf32>
    %412 = vector.broadcast %410 : vector<1x4x768xf32> to vector<2x4x768xf32>
    %413 = arith.mulf %411, %412 : vector<2x4x768xf32>
    %414 = arith.addf %403, %413 : vector<2x4x768xf32>
    %415 = vector.extract_strided_slice %1 {offsets = [0, 124], sizes = [4, 644], strides = [1, 1]} : vector<4x768xf32> to vector<4x644xf32>
    %416 = vector.extract_strided_slice %1 {offsets = [0, 0], sizes = [4, 124], strides = [1, 1]} : vector<4x768xf32> to vector<4x124xf32>
    %417 = tpu.concatenate %415, %416 in 1 : vector<4x644xf32>, vector<4x124xf32> -> vector<4x768xf32>
    %c33 = arith.constant 33 : index
    %c0_110 = arith.constant 0 : index
    %c0_111 = arith.constant 0 : index
    %418 = vector.load %arg2[%c33, %c0_110, %c0_111] : memref<36x2x4xf32, #tpu.memory_space<vmem>>, vector<1x2x4xf32>
    %419 = vector.shape_cast %418 : vector<1x2x4xf32> to vector<2x4xf32>
    %420 = vector.shape_cast %419 : vector<2x4xf32> to vector<2x4x1xf32>
    %421 = vector.shape_cast %417 : vector<4x768xf32> to vector<1x4x768xf32>
    %422 = vector.broadcast %420 : vector<2x4x1xf32> to vector<2x4x768xf32>
    %423 = vector.broadcast %421 : vector<1x4x768xf32> to vector<2x4x768xf32>
    %424 = arith.mulf %422, %423 : vector<2x4x768xf32>
    %425 = arith.addf %414, %424 : vector<2x4x768xf32>
    %426 = vector.extract_strided_slice %1 {offsets = [0, 128], sizes = [4, 640], strides = [1, 1]} : vector<4x768xf32> to vector<4x640xf32>
    %427 = vector.extract_strided_slice %1 {offsets = [0, 0], sizes = [4, 128], strides = [1, 1]} : vector<4x768xf32> to vector<4x128xf32>
    %428 = tpu.concatenate %426, %427 in 1 : vector<4x640xf32>, vector<4x128xf32> -> vector<4x768xf32>
    %c34 = arith.constant 34 : index
    %c0_112 = arith.constant 0 : index
    %c0_113 = arith.constant 0 : index
    %429 = vector.load %arg2[%c34, %c0_112, %c0_113] : memref<36x2x4xf32, #tpu.memory_space<vmem>>, vector<1x2x4xf32>
    %430 = vector.shape_cast %429 : vector<1x2x4xf32> to vector<2x4xf32>
    %431 = vector.shape_cast %430 : vector<2x4xf32> to vector<2x4x1xf32>
    %432 = vector.shape_cast %428 : vector<4x768xf32> to vector<1x4x768xf32>
    %433 = vector.broadcast %431 : vector<2x4x1xf32> to vector<2x4x768xf32>
    %434 = vector.broadcast %432 : vector<1x4x768xf32> to vector<2x4x768xf32>
    %435 = arith.mulf %433, %434 : vector<2x4x768xf32>
    %436 = arith.addf %425, %435 : vector<2x4x768xf32>
    %437 = vector.extract_strided_slice %1 {offsets = [0, 132], sizes = [4, 636], strides = [1, 1]} : vector<4x768xf32> to vector<4x636xf32>
    %438 = vector.extract_strided_slice %1 {offsets = [0, 0], sizes = [4, 132], strides = [1, 1]} : vector<4x768xf32> to vector<4x132xf32>
    %439 = tpu.concatenate %437, %438 in 1 : vector<4x636xf32>, vector<4x132xf32> -> vector<4x768xf32>
    %c35 = arith.constant 35 : index
    %c0_114 = arith.constant 0 : index
    %c0_115 = arith.constant 0 : index
    %440 = vector.load %arg2[%c35, %c0_114, %c0_115] : memref<36x2x4xf32, #tpu.memory_space<vmem>>, vector<1x2x4xf32>
    %441 = vector.shape_cast %440 : vector<1x2x4xf32> to vector<2x4xf32>
    %442 = vector.shape_cast %441 : vector<2x4xf32> to vector<2x4x1xf32>
    %443 = vector.shape_cast %439 : vector<4x768xf32> to vector<1x4x768xf32>
    %444 = vector.broadcast %442 : vector<2x4x1xf32> to vector<2x4x768xf32>
    %445 = vector.broadcast %443 : vector<1x4x768xf32> to vector<2x4x768xf32>
    %446 = arith.mulf %444, %445 : vector<2x4x768xf32>
    %447 = arith.addf %436, %446 : vector<2x4x768xf32>
    %cst_116 = arith.constant dense<0.000000e+00> : vector<2x768xf32>
    %448 = vector.multi_reduction <add>, %447, %cst_116 [1] : vector<2x4x768xf32> to vector<2x768xf32>
    %c6_117 = arith.constant 6 : index
    %c0_118 = arith.constant 0 : index
    %449 = vector.load %arg3[%c6_117, %c0_118] : memref<8x1xf32, #tpu.memory_space<vmem>>, vector<2x1xf32>
    %450 = vector.broadcast %449 : vector<2x1xf32> to vector<2x768xf32>
    %451 = arith.addf %448, %450 : vector<2x768xf32>
    %cst_119 = arith.constant 0.000000e+00 : f32
    %452 = vector.broadcast %cst_119 : f32 to vector<2x768xf32>
    %453 = arith.maximumf %451, %452 : vector<2x768xf32>
    %c6_120 = arith.constant 6 : index
    %c0_121 = arith.constant 0 : index
    %454 = vector.load %arg4[%c6_120, %c0_121] : memref<8x1xf32, #tpu.memory_space<vmem>>, vector<2x1xf32>
    %455 = vector.broadcast %454 : vector<2x1xf32> to vector<2x768xf32>
    %456 = arith.mulf %453, %455 : vector<2x768xf32>
    %c6_122 = arith.constant 6 : index
    %c0_123 = arith.constant 0 : index
    %457 = vector.load %arg5[%c6_122, %c0_123] : memref<8x1xf32, #tpu.memory_space<vmem>>, vector<2x1xf32>
    %458 = vector.broadcast %457 : vector<2x1xf32> to vector<2x768xf32>
    %459 = arith.addf %456, %458 : vector<2x768xf32>
    %cst_124 = arith.constant 0.000000e+00 : f32
    %460 = vector.broadcast %cst_124 : f32 to vector<2x768xf32>
    %461 = arith.maximumf %459, %460 : vector<2x768xf32>
    %462 = vector.broadcast %2 : vector<1x768xf32> to vector<2x768xf32>
    %463 = arith.mulf %461, %462 : vector<2x768xf32>
    %c0_125 = arith.constant 0 : index
    %c6_126 = arith.constant 6 : index
    %c0_127 = arith.constant 0 : index
    %464 = vector.load %arg7[%c0_125, %c6_126, %c0_127] : memref<1x8x768xf32, #tpu.memory_space<vmem>>, vector<1x2x768xf32>
    %465 = vector.shape_cast %464 : vector<1x2x768xf32> to vector<2x768xf32>
    %466 = vector.shape_cast %463 : vector<2x768xf32> to vector<1x2x768xf32>
    tpu.vector_store %arg7[%c0_125, %c6_126, %c0_127], %466 {strides = array<i32>} : memref<1x8x768xf32, #tpu.memory_space<vmem>>, vector<1x2x768xf32>,
    return
  }
  func.func @transform_0(%arg0: i32) -> (i32, i32, i32) {
    %c0_i32 = arith.constant 0 : i32
    %c0_i32_0 = arith.constant 0 : i32
    %c0_i32_1 = arith.constant 0 : i32
    return %arg0, %c0_i32, %c0_i32_0 : i32, i32, i32
  }
  func.func @transform_1(%arg0: i32) -> (i32, i32, i32) {
    %c0_i32 = arith.constant 0 : i32
    %c0_i32_0 = arith.constant 0 : i32
    %c0_i32_1 = arith.constant 0 : i32
    %c0_i32_2 = arith.constant 0 : i32
    return %c0_i32, %c0_i32_0, %c0_i32_1 : i32, i32, i32
  }
  func.func @transform_2(%arg0: i32) -> (i32, i32) {
    %c0_i32 = arith.constant 0 : i32
    %c0_i32_0 = arith.constant 0 : i32
    %c0_i32_1 = arith.constant 0 : i32
    return %c0_i32, %c0_i32_0 : i32, i32
  }
  func.func @transform_3(%arg0: i32) -> (i32, i32) {
    %c0_i32 = arith.constant 0 : i32
    %c0_i32_0 = arith.constant 0 : i32
    %c0_i32_1 = arith.constant 0 : i32
    return %c0_i32, %c0_i32_0 : i32, i32
  }
  func.func @transform_4(%arg0: i32) -> (i32, i32) {
    %c0_i32 = arith.constant 0 : i32
    %c0_i32_0 = arith.constant 0 : i32
    %c0_i32_1 = arith.constant 0 : i32
    return %c0_i32, %c0_i32_0 : i32, i32
  }
  func.func @transform_5(%arg0: i32) -> (i32, i32) {
    %c0_i32 = arith.constant 0 : i32
    %c0_i32_0 = arith.constant 0 : i32
    %c0_i32_1 = arith.constant 0 : i32
    return %c0_i32, %c0_i32_0 : i32, i32
  }
  func.func @transform_6(%arg0: i32) -> (i32, i32, i32) {
    %c0_i32 = arith.constant 0 : i32
    %c0_i32_0 = arith.constant 0 : i32
    %c0_i32_1 = arith.constant 0 : i32
    return %arg0, %c0_i32, %c0_i32_0 : i32, i32, i32
  }
}

</mosaic_0001>

<llo_original>
// kernel: _lambda_.2
$region0: #{_lambda_.2}
  #allocation0 [shape = 'u32[]', space=smem, size = 0x4, offset = 0x4, fixed_abs, tag = 'smem constant byte address 0x4 - core index']
  #allocation1 [shape = 'u32[144,128]{1,0:T(1,128)}', space=vmem, size = 0x12000, scoped, tag = 'internal scratch']
  %s0 = inlined_call_operand.vmem [shape: f32[2,4,768], index: 0, kind: input, shape index: {}]
  %s1 = inlined_call_operand.vmem [shape: f32[36,2,4], index: 1, kind: input, shape index: {}]
  %s2 = inlined_call_operand.vmem [shape: f32[8,1], index: 2, kind: input, shape index: {}]
  %s3 = inlined_call_operand.vmem [shape: f32[8,1], index: 3, kind: input, shape index: {}]
  %s4 = inlined_call_operand.vmem [shape: f32[8,1], index: 4, kind: input, shape index: {}]
  %s5 = inlined_call_operand.vmem [shape: f32[1,768], index: 5, kind: input, shape index: {}]
  %s6 = inlined_call_operand.vmem [shape: f32[2,8,768], index: 6, kind: output, shape index: {}]
  %s7 = sld [smem:[#allocation0]]
  $region57: #{_lambda_.2} parent=0
    _
  %s9 = ssub.s32 1, %s7
  %s10 = scalar_select 0, %s9, %s7
  loop: start=0, step=1, limit=4
  $region2: #{_lambda_.2} parent=0 // loop_pre_header
    _
  $region3: #{_lambda_.2} parent=0 // loop_header
    %s12 = sphi 0, %s16
    %p13 = scmp.ge.s32.totalorder %s12, 4
    %s22 = sphi 0, %s24
    %s25 = sphi 0, %s22
    %s26 = sphi 0, %s25
    %s42 = sphi 0, %s26
    %s46 = sphi 0, %s46
    %s48 = sphi 0, %s46
    %s49 = sphi 0, %s48
    %s63 = sphi 0, %s49
    %s67 = sphi 0, %s67
    %s69 = sphi 0, %s67
    %s70 = sphi 0, %s69
    %s84 = sphi 0, %s70
    %s88 = sphi 0, %s88
    %s90 = sphi 0, %s88
    %s91 = sphi 0, %s90
    %s105 = sphi 0, %s91
    %s109 = sphi 0, %s109
    %s111 = sphi 0, %s109
    %s112 = sphi 0, %s111
    %s126 = sphi 0, %s112
    %s130 = sphi 0, %s130
    %s132 = sphi 0, %s130
    %s133 = sphi 0, %s132
    %s147 = sphi 0, %s133
    %s153 = sphi 0, %s155
    %s156 = sphi 0, %s153
    %s157 = sphi 0, %s156
    %s173 = sphi 0, %s157
  $region4: #{_lambda_.2} parent=0 // loop_header_branch
    %15 = sbr.rel (%p13) target = $region8
  $region5: #{_lambda_.2} parent=0 // loop_body
    %s17 = ssub.s32 %s12, 1
    %s18 = ssub.s32 %s12, 2
    %s19 = sadd.s32 %s12, 1
    %s20 = ssub.s32 %s12, %s19
    %p21 = scmp.eq.s32.totalorder %s20, 0
    %s23 = sadd.s32 %s22, 1
    %s24 = scalar_select %p21, %s22, %s23
    %p27 = pneg %p21
    %p28 = scmp.eq.s32.totalorder %s12, 1
    %p29 = por %p27, %p28
    %p30 = scmp.ne.s32.totalorder %s22, %s25
    %p31 = scmp.eq.s32.totalorder %s12, 0
    %p32 = por %p30, %p31
    %p33 = scmp.ne.s32.totalorder %s22, %s25
    %p34 = scmp.eq.s32.totalorder %s17, 1
    %p35 = por %p33, %p34
    %p36 = scmp.ne.s32.totalorder %s25, %s26
    %p37 = scmp.eq.s32.totalorder %s17, 0
    %p38 = por %p36, %p37
    %p39 = scmp.ne.s32.totalorder %s25, %s26
    %p40 = scmp.eq.s32.totalorder %s18, 1
    %p41 = por %p39, %p40
    %p43 = scmp.ne.s32.totalorder %s26, %s42
    %p44 = scmp.eq.s32.totalorder %s18, 0
    %p45 = por %p43, %p44
    %s47 = sadd.s32 %s46, 1
    %p50 = scmp.eq.s32.totalorder %s12, 1
    %p51 = scmp.ne.s32.totalorder %s46, %s48
    %p52 = scmp.eq.s32.totalorder %s12, 0
    %p53 = por %p51, %p52
    %p54 = scmp.ne.s32.totalorder %s46, %s48
    %p55 = scmp.eq.s32.totalorder %s17, 1
    %p56 = por %p54, %p55
    %p57 = scmp.ne.s32.totalorder %s48, %s49
    %p58 = scmp.eq.s32.totalorder %s17, 0
    %p59 = por %p57, %p58
    %p60 = scmp.ne.s32.totalorder %s48, %s49
    %p61 = scmp.eq.s32.totalorder %s18, 1
    %p62 = por %p60, %p61
    %p64 = scmp.ne.s32.totalorder %s49, %s63
    %p65 = scmp.eq.s32.totalorder %s18, 0
    %p66 = por %p64, %p65
    %s68 = sadd.s32 %s67, 1
    %p71 = scmp.eq.s32.totalorder %s12, 1
    %p72 = scmp.ne.s32.totalorder %s67, %s69
    %p73 = scmp.eq.s32.totalorder %s12, 0
    %p74 = por %p72, %p73
    %p75 = scmp.ne.s32.totalorder %s67, %s69
    %p76 = scmp.eq.s32.totalorder %s17, 1
    %p77 = por %p75, %p76
    %p78 = scmp.ne.s32.totalorder %s69, %s70
    %p79 = scmp.eq.s32.totalorder %s17, 0
    %p80 = por %p78, %p79
    %p81 = scmp.ne.s32.totalorder %s69, %s70
    %p82 = scmp.eq.s32.totalorder %s18, 1
    %p83 = por %p81, %p82
    %p85 = scmp.ne.s32.totalorder %s70, %s84
    %p86 = scmp.eq.s32.totalorder %s18, 0
    %p87 = por %p85, %p86
    %s89 = sadd.s32 %s88, 1
    %p92 = scmp.eq.s32.totalorder %s12, 1
    %p93 = scmp.ne.s32.totalorder %s88, %s90
    %p94 = scmp.eq.s32.totalorder %s12, 0
    %p95 = por %p93, %p94
    %p96 = scmp.ne.s32.totalorder %s88, %s90
    %p97 = scmp.eq.s32.totalorder %s17, 1
    %p98 = por %p96, %p97
    %p99 = scmp.ne.s32.totalorder %s90, %s91
    %p100 = scmp.eq.s32.totalorder %s17, 0
    %p101 = por %p99, %p100
    %p102 = scmp.ne.s32.totalorder %s90, %s91
    %p103 = scmp.eq.s32.totalorder %s18, 1
    %p104 = por %p102, %p103
    %p106 = scmp.ne.s32.totalorder %s91, %s105
    %p107 = scmp.eq.s32.totalorder %s18, 0
    %p108 = por %p106, %p107
    %s110 = sadd.s32 %s109, 1
    %p113 = scmp.eq.s32.totalorder %s12, 1
    %p114 = scmp.ne.s32.totalorder %s109, %s111
    %p115 = scmp.eq.s32.totalorder %s12, 0
    %p116 = por %p114, %p115
    %p117 = scmp.ne.s32.totalorder %s109, %s111
    %p118 = scmp.eq.s32.totalorder %s17, 1
    %p119 = por %p117, %p118
    %p120 = scmp.ne.s32.totalorder %s111, %s112
    %p121 = scmp.eq.s32.totalorder %s17, 0
    %p122 = por %p120, %p121
    %p123 = scmp.ne.s32.totalorder %s111, %s112
    %p124 = scmp.eq.s32.totalorder %s18, 1
    %p125 = por %p123, %p124
    %p127 = scmp.ne.s32.totalorder %s112, %s126
    %p128 = scmp.eq.s32.totalorder %s18, 0
    %p129 = por %p127, %p128
    %s131 = sadd.s32 %s130, 1
    %p134 = scmp.eq.s32.totalorder %s12, 1
    %p135 = scmp.ne.s32.totalorder %s130, %s132
    %p136 = scmp.eq.s32.totalorder %s12, 0
    %p137 = por %p135, %p136
    %p138 = scmp.ne.s32.totalorder %s130, %s132
    %p139 = scmp.eq.s32.totalorder %s17, 1
    %p140 = por %p138, %p139
    %p141 = scmp.ne.s32.totalorder %s132, %s133
    %p142 = scmp.eq.s32.totalorder %s17, 0
    %p143 = por %p141, %p142
    %p144 = scmp.ne.s32.totalorder %s132, %s133
    %p145 = scmp.eq.s32.totalorder %s18, 1
    %p146 = por %p144, %p145
    %p148 = scmp.ne.s32.totalorder %s133, %s147
    %p149 = scmp.eq.s32.totalorder %s18, 0
    %p150 = por %p148, %p149
    %s151 = ssub.s32 %s12, %s19
    %p152 = scmp.eq.s32.totalorder %s151, 0
    %s154 = sadd.s32 %s153, 1
    %s155 = scalar_select %p152, %s153, %s154
    %p158 = pneg %p152
    %p159 = scmp.eq.s32.totalorder %s12, 1
    %p160 = por %p158, %p159
    %p161 = scmp.ne.s32.totalorder %s153, %s156
    %p162 = scmp.eq.s32.totalorder %s12, 0
    %p163 = por %p161, %p162
    %p164 = scmp.ne.s32.totalorder %s153, %s156
    %p165 = scmp.eq.s32.totalorder %s17, 1
    %p166 = por %p164, %p165
    %p167 = scmp.ne.s32.totalorder %s156, %s157
    %p168 = scmp.eq.s32.totalorder %s17, 0
    %p169 = por %p167, %p168
    %p170 = scmp.ne.s32.totalorder %s156, %s157
    %p171 = scmp.eq.s32.totalorder %s18, 1
    %p172 = por %p170, %p171
    %p174 = scmp.ne.s32.totalorder %s157, %s173
    %p175 = scmp.eq.s32.totalorder %s18, 0
    %p176 = por %p174, %p175
    %p177 = scmp.le.s32.totalorder 1, %s12
    %p178 = scmp.lt.s32.totalorder %s12, 3
    %p179 = pnand %p177, %p178
    %p180 = pneg %p179
    // Predicated region
    $region9: #{_lambda_.2} parent=5 // pred_check
      _
    $region10: #{_lambda_.2} parent=5 // pred_check_branch
      %182 = sbr.rel (%p179) target = $region12
    $region11: #{_lambda_.2} parent=5 // pred_region
      %s183 = ssub.s32 %s12, 1
      // Predicated region
      $region13: #{_lambda_.2} parent=11 // pred_check
        %p184 = pneg %p59
      $region14: #{_lambda_.2} parent=11 // pred_check_branch
        %186 = sbr.rel (%p184) target = $region16
      $region15: #{_lambda_.2} parent=11 // pred_region
        _
      $region16: #{_lambda_.2} parent=11 // pred_fallthru
        _
      // Predicated region
      $region17: #{_lambda_.2} parent=11 // pred_check
        %p187 = pneg %p80
      $region18: #{_lambda_.2} parent=11 // pred_check_branch
        %189 = sbr.rel (%p187) target = $region20
      $region19: #{_lambda_.2} parent=11 // pred_region
        _
      $region20: #{_lambda_.2} parent=11 // pred_fallthru
        _
      // Predicated region
      $region21: #{_lambda_.2} parent=11 // pred_check
        %p190 = pneg %p101
      $region22: #{_lambda_.2} parent=11 // pred_check_branch
        %192 = sbr.rel (%p190) target = $region24
      $region23: #{_lambda_.2} parent=11 // pred_region
        _
      $region24: #{_lambda_.2} parent=11 // pred_fallthru
        _
      // Predicated region
      $region25: #{_lambda_.2} parent=11 // pred_check
        %p193 = pneg %p122
      $region26: #{_lambda_.2} parent=11 // pred_check_branch
        %195 = sbr.rel (%p193) target = $region28
      $region27: #{_lambda_.2} parent=11 // pred_region
        _
      $region28: #{_lambda_.2} parent=11 // pred_fallthru
        _
      // Predicated region
      $region29: #{_lambda_.2} parent=11 // pred_check
        %p196 = pneg %p143
      $region30: #{_lambda_.2} parent=11 // pred_check_branch
        %198 = sbr.rel (%p196) target = $region32
      $region31: #{_lambda_.2} parent=11 // pred_region
        _
      $region32: #{_lambda_.2} parent=11 // pred_fallthru
        _
    $region12: #{_lambda_.2} parent=5 // pred_fallthru
      _
    %p199 = scmp.lt.s32.totalorder %s12, 2
    // Predicated region
    $region33: #{_lambda_.2} parent=5 // pred_check
      %p200 = pneg %p199
    $region34: #{_lambda_.2} parent=5 // pred_check_branch
      %202 = sbr.rel (%p200) target = $region36
    $region35: #{_lambda_.2} parent=5 // pred_region
      // Predicated region
      $region37: #{_lambda_.2} parent=35 // pred_check
        %p203 = pneg %p32
      $region38: #{_lambda_.2} parent=35 // pred_check_branch
        %205 = sbr.rel (%p203) target = $region40
      $region39: #{_lambda_.2} parent=35 // pred_region
        %p206 = scmp.lt.s32.totalorder %s12, 1
        %s207 = scalar_select %p206, %s12, 1
        %s208 = smul.addr %s207, 6
        %s209 = smul.addr %s208, 4
        %s210 = scalar_lea.vmem %s0, %s209
      $region40: #{_lambda_.2} parent=35 // pred_fallthru
        _
    $region36: #{_lambda_.2} parent=5 // pred_fallthru
      _
    %p211 = scmp.le.s32.totalorder 1, %s12
    %p212 = scmp.lt.s32.totalorder %s12, 3
    %p213 = pnand %p211, %p212
    %p214 = pneg %p213
    // Predicated region
    $region41: #{_lambda_.2} parent=5 // pred_check
      _
    $region42: #{_lambda_.2} parent=5 // pred_check_branch
      %216 = sbr.rel (%p213) target = $region44
    $region43: #{_lambda_.2} parent=5 // pred_region
      %s217 = ssub.s32 %s12, 1
      %p218 = scmp.lt.s32.totalorder %s17, 1
      %s219 = scalar_select %p218, %s17, 1
      %s220 = smul.addr %s219, 6
      %s221 = smul.addr %s220, 4
      %s222 = scalar_lea.vmem %s0, %s221
      %p223 = pneg %p38
      %p224 = pneg %p35
      %p225 = pneg %p59
      %p226 = pneg %p56
      %p227 = pneg %p80
      %p228 = pneg %p77
      %p229 = pneg %p101
      %p230 = pneg %p98
      %p231 = pneg %p122
      %p232 = pneg %p119
      %p233 = pneg %p143
      %p234 = pneg %p140
      %p235 = pneg %p169
      %p236 = pneg %p166
      %p237 = scmp.lt.s32.totalorder %s17, 1
      %s238 = scalar_select %p237, %s17, 1
      %s239 = smul.addr %s238, 6
      %s240 = smul.addr %s239, 8
      %s241 = scalar_lea.vmem %s6, %s240
      %p242 = scmp.lt.s32.totalorder %s17, 1
      %s243 = scalar_select %p242, %s17, 1
      %s244 = smul.addr %s243, 6
      %s245 = smul.addr %s244, 4
      %s246 = scalar_lea.vmem %s0, %s245
      %p247 = scmp.lt.s32.totalorder %s17, 1
      %s248 = scalar_select %p247, %s17, 1
      %s249 = smul.addr %s248, 6
      %s250 = smul.addr %s249, 8
      %s251 = scalar_lea.vmem %s6, %s250
      %v252 = vld [vmem:[%s246] sm:$0xff]
      %v253 = vld [vmem:[%s246 + $0x8] sm:$0xff]
      %v254 = vld [vmem:[%s246 + $0x10] sm:$0xff]
      %v255 = vld [vmem:[%s5] sm:$0x3f]
      %v257 = vcombine.high %v254, %v254
      %258 = vrot.lane.b32.xlu0 %v257, 33
      %v259 = vpop.permute.xlu0 %258
      %v263 = vcombine.high %v252, %v252
      %v264 = vcombine.high %v253, %v253
      %265 = vrot.lane.b32.xlu0 %v252, 33
      %v266 = vpop.permute.xlu0 %265
      %267 = vrot.lane.b32.xlu0 %v263, 33
      %v268 = vpop.permute.xlu0 %267
      %269 = vrot.lane.b32.xlu0 %v253, 33
      %v270 = vpop.permute.xlu0 %269
      %271 = vrot.lane.b32.xlu0 %v264, 33
      %v272 = vpop.permute.xlu0 %271
      %273 = vrot.lane.b32.xlu0 %v254, 33
      %v274 = vpop.permute.xlu0 %273
      %vm275 = vcmask 269312
      %v276 = vsel %vm275, %v266, %v268
      %v277 = vsel %vm275, %v268, %v270
      %v278 = vsel %vm275, %v270, %v272
      %v279 = vsel %vm275, %v272, %v274
      %v280 = vsel %vm275, %v274, %v259
      %v287 = vsel %vm275, %v259, %v266
      %v288 = vld [vmem:[%s1] sm:$0x3]
      %v289 = vlaneseq
      %v290 = vshrl.u32 %v289, 7
      %v291 = vsub.s32 0, %v290
      %v292 = vrot.slane %v288, %v291
      %294 = vbcast.lane.b32.xlu0 %v292, 256
      %v295 = vpop.permute.xlu0 %294
      %v296 = vlaneseq
      %v297 = vshrl.u32 %v296, 7
      %v298 = vsub.s32 1, %v297
      %v299 = vrot.slane %v288, %v298
      %301 = vbcast.lane.b32.xlu0 %v299, 256
      %v302 = vpop.permute.xlu0 %301
      %v303 = vmul.f32 %v295, %v287
      %v304 = vmul.f32 %v295, %v276
      %v305 = vmul.f32 %v295, %v277
      %v306 = vmul.f32 %v295, %v278
      %v307 = vmul.f32 %v295, %v279
      %v308 = vmul.f32 %v295, %v280
      %v309 = vmul.f32 %v302, %v287
      %v310 = vmul.f32 %v302, %v276
      %v311 = vmul.f32 %v302, %v277
      %v312 = vmul.f32 %v302, %v278
      %v313 = vmul.f32 %v302, %v279
      %v314 = vmul.f32 %v302, %v280
      %v315 = vadd.f32 %v303, 0.0
      %v316 = vadd.f32 %v304, 0.0
      %v317 = vadd.f32 %v305, 0.0
      %v318 = vadd.f32 %v306, 0.0
      %v319 = vadd.f32 %v307, 0.0
      %v320 = vadd.f32 %v308, 0.0
      %v321 = vadd.f32 %v309, 0.0
      %v322 = vadd.f32 %v310, 0.0
      %v323 = vadd.f32 %v311, 0.0
      %v324 = vadd.f32 %v312, 0.0
      %v325 = vadd.f32 %v313, 0.0
      %v326 = vadd.f32 %v314, 0.0
      %327 = vrot.lane.b32.xlu0 %v257, 32
      %v328 = vpop.permute.xlu0 %327
      %330 = vrot.lane.b32.xlu0 %v252, 32
      %v331 = vpop.permute.xlu0 %330
      %332 = vrot.lane.b32.xlu0 %v263, 32
      %v333 = vpop.permute.xlu0 %332
      %334 = vrot.lane.b32.xlu0 %v253, 32
      %v335 = vpop.permute.xlu0 %334
      %336 = vrot.lane.b32.xlu0 %v264, 32
      %v337 = vpop.permute.xlu0 %336
      %338 = vrot.lane.b32.xlu0 %v254, 32
      %v339 = vpop.permute.xlu0 %338
      %vm340 = vcmask 261120
      %v341 = vsel %vm340, %v331, %v333
      %v342 = vsel %vm340, %v333, %v335
      %v343 = vsel %vm340, %v335, %v337
      %v344 = vsel %vm340, %v337, %v339
      %v345 = vsel %vm340, %v339, %v328
      %v352 = vsel %vm340, %v328, %v331
      %s353 = scalar_lea.vmem %s1, 2
      %v354 = vld [vmem:[%s353] sm:$0x3]
      %v355 = vlaneseq
      %v356 = vshrl.u32 %v355, 7
      %v357 = vsub.s32 0, %v356
      %v358 = vrot.slane %v354, %v357
      %360 = vbcast.lane.b32.xlu0 %v358, 256
      %v361 = vpop.permute.xlu0 %360
      %v362 = vlaneseq
      %v363 = vshrl.u32 %v362, 7
      %v364 = vsub.s32 1, %v363
      %v365 = vrot.slane %v354, %v364
      %367 = vbcast.lane.b32.xlu0 %v365, 256
      %v368 = vpop.permute.xlu0 %367
      %v369 = vmul.f32 %v361, %v352
      %v370 = vmul.f32 %v361, %v341
      %v371 = vmul.f32 %v361, %v342
      %v372 = vmul.f32 %v361, %v343
      %v373 = vmul.f32 %v361, %v344
      %v374 = vmul.f32 %v361, %v345
      %v375 = vmul.f32 %v368, %v352
      %v376 = vmul.f32 %v368, %v341
      %v377 = vmul.f32 %v368, %v342
      %v378 = vmul.f32 %v368, %v343
      %v379 = vmul.f32 %v368, %v344
      %v380 = vmul.f32 %v368, %v345
      %v381 = vadd.f32 %v315, %v369
      %v382 = vadd.f32 %v316, %v370
      %v383 = vadd.f32 %v317, %v371
      %v384 = vadd.f32 %v318, %v372
      %v385 = vadd.f32 %v319, %v373
      %v386 = vadd.f32 %v320, %v374
      %v387 = vadd.f32 %v321, %v375
      %v388 = vadd.f32 %v322, %v376
      %v389 = vadd.f32 %v323, %v377
      %v390 = vadd.f32 %v324, %v378
      %v391 = vadd.f32 %v325, %v379
      %v392 = vadd.f32 %v326, %v380
      %393 = vrot.lane.b32.xlu0 %v257, 31
      %v394 = vpop.permute.xlu0 %393
      %396 = vrot.lane.b32.xlu0 %v252, 31
      %v397 = vpop.permute.xlu0 %396
      %398 = vrot.lane.b32.xlu0 %v263, 31
      %v399 = vpop.permute.xlu0 %398
      %400 = vrot.lane.b32.xlu0 %v253, 31
      %v401 = vpop.permute.xlu0 %400
      %402 = vrot.lane.b32.xlu0 %v264, 31
      %v403 = vpop.permute.xlu0 %402
      %404 = vrot.lane.b32.xlu0 %v254, 31
      %v405 = vpop.permute.xlu0 %404
      %vm406 = vcmask 252928
      %v407 = vsel %vm406, %v397, %v399
      %v408 = vsel %vm406, %v399, %v401
      %v409 = vsel %vm406, %v401, %v403
      %v410 = vsel %vm406, %v403, %v405
      %v411 = vsel %vm406, %v405, %v394
      %v418 = vsel %vm406, %v394, %v397
      %s419 = scalar_lea.vmem %s1, 4
      %v420 = vld [vmem:[%s419] sm:$0x3]
      %v421 = vlaneseq
      %v422 = vshrl.u32 %v421, 7
      %v423 = vsub.s32 0, %v422
      %v424 = vrot.slane %v420, %v423
      %426 = vbcast.lane.b32.xlu0 %v424, 256
      %v427 = vpop.permute.xlu0 %426
      %v428 = vlaneseq
      %v429 = vshrl.u32 %v428, 7
      %v430 = vsub.s32 1, %v429
      %v431 = vrot.slane %v420, %v430
      %433 = vbcast.lane.b32.xlu0 %v431, 256
      %v434 = vpop.permute.xlu0 %433
      %v435 = vmul.f32 %v427, %v418
      %v436 = vmul.f32 %v427, %v407
      %v437 = vmul.f32 %v427, %v408
      %v438 = vmul.f32 %v427, %v409
      %v439 = vmul.f32 %v427, %v410
      %v440 = vmul.f32 %v427, %v411
      %v441 = vmul.f32 %v434, %v418
      %v442 = vmul.f32 %v434, %v407
      %v443 = vmul.f32 %v434, %v408
      %v444 = vmul.f32 %v434, %v409
      %v445 = vmul.f32 %v434, %v410
      %v446 = vmul.f32 %v434, %v411
      %v447 = vadd.f32 %v381, %v435
      %v448 = vadd.f32 %v382, %v436
      %v449 = vadd.f32 %v383, %v437
      %v450 = vadd.f32 %v384, %v438
      %v451 = vadd.f32 %v385, %v439
      %v452 = vadd.f32 %v386, %v440
      %v453 = vadd.f32 %v387, %v441
      %v454 = vadd.f32 %v388, %v442
      %v455 = vadd.f32 %v389, %v443
      %v456 = vadd.f32 %v390, %v444
      %v457 = vadd.f32 %v391, %v445
      %v458 = vadd.f32 %v392, %v446
      %459 = vrot.lane.b32.xlu0 %v257, 1
      %v460 = vpop.permute.xlu0 %459
      %462 = vrot.lane.b32.xlu0 %v252, 1
      %v463 = vpop.permute.xlu0 %462
      %464 = vrot.lane.b32.xlu0 %v263, 1
      %v465 = vpop.permute.xlu0 %464
      %466 = vrot.lane.b32.xlu0 %v253, 1
      %v467 = vpop.permute.xlu0 %466
      %468 = vrot.lane.b32.xlu0 %v264, 1
      %v469 = vpop.permute.xlu0 %468
      %470 = vrot.lane.b32.xlu0 %v254, 1
      %v471 = vpop.permute.xlu0 %470
      %vm472 = vcmask 7168
      %v473 = vsel %vm472, %v463, %v465
      %v474 = vsel %vm472, %v465, %v467
      %v475 = vsel %vm472, %v467, %v469
      %v476 = vsel %vm472, %v469, %v471
      %v477 = vsel %vm472, %v471, %v460
      %v484 = vsel %vm472, %v460, %v463
      %s485 = scalar_lea.vmem %s1, 6
      %v486 = vld [vmem:[%s485] sm:$0x3]
      %v487 = vlaneseq
      %v488 = vshrl.u32 %v487, 7
      %v489 = vsub.s32 0, %v488
      %v490 = vrot.slane %v486, %v489
      %492 = vbcast.lane.b32.xlu0 %v490, 256
      %v493 = vpop.permute.xlu0 %492
      %v494 = vlaneseq
      %v495 = vshrl.u32 %v494, 7
      %v496 = vsub.s32 1, %v495
      %v497 = vrot.slane %v486, %v496
      %499 = vbcast.lane.b32.xlu0 %v497, 256
      %v500 = vpop.permute.xlu0 %499
      %v501 = vmul.f32 %v493, %v484
      %v502 = vmul.f32 %v493, %v473
      %v503 = vmul.f32 %v493, %v474
      %v504 = vmul.f32 %v493, %v475
      %v505 = vmul.f32 %v493, %v476
      %v506 = vmul.f32 %v493, %v477
      %v507 = vmul.f32 %v500, %v484
      %v508 = vmul.f32 %v500, %v473
      %v509 = vmul.f32 %v500, %v474
      %v510 = vmul.f32 %v500, %v475
      %v511 = vmul.f32 %v500, %v476
      %v512 = vmul.f32 %v500, %v477
      %v513 = vadd.f32 %v447, %v501
      %v514 = vadd.f32 %v448, %v502
      %v515 = vadd.f32 %v449, %v503
      %v516 = vadd.f32 %v450, %v504
      %v517 = vadd.f32 %v451, %v505
      %v518 = vadd.f32 %v452, %v506
      %v519 = vadd.f32 %v453, %v507
      %v520 = vadd.f32 %v454, %v508
      %v521 = vadd.f32 %v455, %v509
      %v522 = vadd.f32 %v456, %v510
      %v523 = vadd.f32 %v457, %v511
      %v524 = vadd.f32 %v458, %v512
      %s525 = scalar_lea.vmem %s1, 8
      %v526 = vld [vmem:[%s525] sm:$0x3]
      %v527 = vlaneseq
      %v528 = vshrl.u32 %v527, 7
      %v529 = vsub.s32 0, %v528
      %v530 = vrot.slane %v526, %v529
      %532 = vbcast.lane.b32.xlu0 %v530, 256
      %v533 = vpop.permute.xlu0 %532
      %v534 = vlaneseq
      %v535 = vshrl.u32 %v534, 7
      %v536 = vsub.s32 1, %v535
      %v537 = vrot.slane %v526, %v536
      %539 = vbcast.lane.b32.xlu0 %v537, 256
      %v540 = vpop.permute.xlu0 %539
      %v544 = vmul.f32 %v533, %v252
      %v545 = vmul.f32 %v533, %v263
      %v546 = vmul.f32 %v533, %v253
      %v547 = vmul.f32 %v533, %v264
      %v548 = vmul.f32 %v533, %v254
      %v549 = vmul.f32 %v533, %v257
      %v550 = vmul.f32 %v540, %v252
      %v551 = vmul.f32 %v540, %v263
      %v552 = vmul.f32 %v540, %v253
      %v553 = vmul.f32 %v540, %v264
      %v554 = vmul.f32 %v540, %v254
      %v555 = vmul.f32 %v540, %v257
      %v556 = vadd.f32 %v513, %v544
      %v557 = vadd.f32 %v514, %v545
      %v558 = vadd.f32 %v515, %v546
      %v559 = vadd.f32 %v516, %v547
      %v560 = vadd.f32 %v517, %v548
      %v561 = vadd.f32 %v518, %v549
      %v562 = vadd.f32 %v519, %v550
      %v563 = vadd.f32 %v520, %v551
      %v564 = vadd.f32 %v521, %v552
      %v565 = vadd.f32 %v522, %v553
      %v566 = vadd.f32 %v523, %v554
      %v567 = vadd.f32 %v524, %v555
      %568 = vrot.lane.b32.xlu0 %v252, 127
      %v569 = vpop.permute.xlu0 %568
      %570 = vrot.lane.b32.xlu0 %v263, 127
      %v571 = vpop.permute.xlu0 %570
      %572 = vrot.lane.b32.xlu0 %v253, 127
      %v573 = vpop.permute.xlu0 %572
      %574 = vrot.lane.b32.xlu0 %v264, 127
      %v575 = vpop.permute.xlu0 %574
      %576 = vrot.lane.b32.xlu0 %v254, 127
      %v577 = vpop.permute.xlu0 %576
      %578 = vrot.lane.b32.xlu0 %v257, 127
      %v579 = vpop.permute.xlu0 %578
      %vm580 = vcmask 1039360
      %v581 = vsel %vm580, %v569, %v571
      %v582 = vsel %vm580, %v571, %v573
      %v583 = vsel %vm580, %v573, %v575
      %v584 = vsel %vm580, %v575, %v577
      %v585 = vsel %vm580, %v577, %v579
      %v593 = vsel %vm580, %v579, %v569
      %s594 = scalar_lea.vmem %s1, 10
      %v595 = vld [vmem:[%s594] sm:$0x3]
      %v596 = vlaneseq
      %v597 = vshrl.u32 %v596, 7
      %v598 = vsub.s32 0, %v597
      %v599 = vrot.slane %v595, %v598
      %601 = vbcast.lane.b32.xlu0 %v599, 256
      %v602 = vpop.permute.xlu0 %601
      %v603 = vlaneseq
      %v604 = vshrl.u32 %v603, 7
      %v605 = vsub.s32 1, %v604
      %v606 = vrot.slane %v595, %v605
      %608 = vbcast.lane.b32.xlu0 %v606, 256
      %v609 = vpop.permute.xlu0 %608
      %v610 = vmul.f32 %v602, %v581
      %v611 = vmul.f32 %v602, %v582
      %v612 = vmul.f32 %v602, %v583
      %v613 = vmul.f32 %v602, %v584
      %v614 = vmul.f32 %v602, %v585
      %v615 = vmul.f32 %v602, %v593
      %v616 = vmul.f32 %v609, %v581
      %v617 = vmul.f32 %v609, %v582
      %v618 = vmul.f32 %v609, %v583
      %v619 = vmul.f32 %v609, %v584
      %v620 = vmul.f32 %v609, %v585
      %v621 = vmul.f32 %v609, %v593
      %v622 = vadd.f32 %v556, %v610
      %v623 = vadd.f32 %v557, %v611
      %v624 = vadd.f32 %v558, %v612
      %v625 = vadd.f32 %v559, %v613
      %v626 = vadd.f32 %v560, %v614
      %v627 = vadd.f32 %v561, %v615
      %v628 = vadd.f32 %v562, %v616
      %v629 = vadd.f32 %v563, %v617
      %v630 = vadd.f32 %v564, %v618
      %v631 = vadd.f32 %v565, %v619
      %v632 = vadd.f32 %v566, %v620
      %v633 = vadd.f32 %v567, %v621
      %634 = vrot.lane.b32.xlu0 %v252, 97
      %v635 = vpop.permute.xlu0 %634
      %636 = vrot.lane.b32.xlu0 %v263, 97
      %v637 = vpop.permute.xlu0 %636
      %638 = vrot.lane.b32.xlu0 %v253, 97
      %v639 = vpop.permute.xlu0 %638
      %640 = vrot.lane.b32.xlu0 %v264, 97
      %v641 = vpop.permute.xlu0 %640
      %642 = vrot.lane.b32.xlu0 %v254, 97
      %v643 = vpop.permute.xlu0 %642
      %644 = vrot.lane.b32.xlu0 %v257, 97
      %v645 = vpop.permute.xlu0 %644
      %vm646 = vcmask 793600
      %v647 = vsel %vm646, %v635, %v637
      %v648 = vsel %vm646, %v637, %v639
      %v649 = vsel %vm646, %v639, %v641
      %v650 = vsel %vm646, %v641, %v643
      %v651 = vsel %vm646, %v643, %v645
      %v659 = vsel %vm646, %v645, %v635
      %s660 = scalar_lea.vmem %s1, 12
      %v661 = vld [vmem:[%s660] sm:$0x3]
      %v662 = vlaneseq
      %v663 = vshrl.u32 %v662, 7
      %v664 = vsub.s32 0, %v663
      %v665 = vrot.slane %v661, %v664
      %667 = vbcast.lane.b32.xlu0 %v665, 256
      %v668 = vpop.permute.xlu0 %667
      %v669 = vlaneseq
      %v670 = vshrl.u32 %v669, 7
      %v671 = vsub.s32 1, %v670
      %v672 = vrot.slane %v661, %v671
      %674 = vbcast.lane.b32.xlu0 %v672, 256
      %v675 = vpop.permute.xlu0 %674
      %v676 = vmul.f32 %v668, %v647
      %v677 = vmul.f32 %v668, %v648
      %v678 = vmul.f32 %v668, %v649
      %v679 = vmul.f32 %v668, %v650
      %v680 = vmul.f32 %v668, %v651
      %v681 = vmul.f32 %v668, %v659
      %v682 = vmul.f32 %v675, %v647
      %v683 = vmul.f32 %v675, %v648
      %v684 = vmul.f32 %v675, %v649
      %v685 = vmul.f32 %v675, %v650
      %v686 = vmul.f32 %v675, %v651
      %v687 = vmul.f32 %v675, %v659
      %v688 = vadd.f32 %v622, %v676
      %v689 = vadd.f32 %v623, %v677
      %v690 = vadd.f32 %v624, %v678
      %v691 = vadd.f32 %v625, %v679
      %v692 = vadd.f32 %v626, %v680
      %v693 = vadd.f32 %v627, %v681
      %v694 = vadd.f32 %v628, %v682
      %v695 = vadd.f32 %v629, %v683
      %v696 = vadd.f32 %v630, %v684
      %v697 = vadd.f32 %v631, %v685
      %v698 = vadd.f32 %v632, %v686
      %v699 = vadd.f32 %v633, %v687
      %700 = vrot.lane.b32.xlu0 %v252, 96
      %v701 = vpop.permute.xlu0 %700
      %702 = vrot.lane.b32.xlu0 %v263, 96
      %v703 = vpop.permute.xlu0 %702
      %704 = vrot.lane.b32.xlu0 %v253, 96
      %v705 = vpop.permute.xlu0 %704
      %706 = vrot.lane.b32.xlu0 %v264, 96
      %v707 = vpop.permute.xlu0 %706
      %708 = vrot.lane.b32.xlu0 %v254, 96
      %v709 = vpop.permute.xlu0 %708
      %710 = vrot.lane.b32.xlu0 %v257, 96
      %v711 = vpop.permute.xlu0 %710
      %vm712 = vcmask 785408
      %v713 = vsel %vm712, %v701, %v703
      %v714 = vsel %vm712, %v703, %v705
      %v715 = vsel %vm712, %v705, %v707
      %v716 = vsel %vm712, %v707, %v709
      %v717 = vsel %vm712, %v709, %v711
      %v725 = vsel %vm712, %v711, %v701
      %s726 = scalar_lea.vmem %s1, 14
      %v727 = vld [vmem:[%s726] sm:$0x3]
      %v728 = vlaneseq
      %v729 = vshrl.u32 %v728, 7
      %v730 = vsub.s32 0, %v729
      %v731 = vrot.slane %v727, %v730
      %733 = vbcast.lane.b32.xlu0 %v731, 256
      %v734 = vpop.permute.xlu0 %733
      %v735 = vlaneseq
      %v736 = vshrl.u32 %v735, 7
      %v737 = vsub.s32 1, %v736
      %v738 = vrot.slane %v727, %v737
      %740 = vbcast.lane.b32.xlu0 %v738, 256
      %v741 = vpop.permute.xlu0 %740
      %v742 = vmul.f32 %v734, %v713
      %v743 = vmul.f32 %v734, %v714
      %v744 = vmul.f32 %v734, %v715
      %v745 = vmul.f32 %v734, %v716
      %v746 = vmul.f32 %v734, %v717
      %v747 = vmul.f32 %v734, %v725
      %v748 = vmul.f32 %v741, %v713
      %v749 = vmul.f32 %v741, %v714
      %v750 = vmul.f32 %v741, %v715
      %v751 = vmul.f32 %v741, %v716
      %v752 = vmul.f32 %v741, %v717
      %v753 = vmul.f32 %v741, %v725
      %v754 = vadd.f32 %v688, %v742
      %v755 = vadd.f32 %v689, %v743
      %v756 = vadd.f32 %v690, %v744
      %v757 = vadd.f32 %v691, %v745
      %v758 = vadd.f32 %v692, %v746
      %v759 = vadd.f32 %v693, %v747
      %v760 = vadd.f32 %v694, %v748
      %v761 = vadd.f32 %v695, %v749
      %v762 = vadd.f32 %v696, %v750
      %v763 = vadd.f32 %v697, %v751
      %v764 = vadd.f32 %v698, %v752
      %v765 = vadd.f32 %v699, %v753
      %766 = vrot.lane.b32.xlu0 %v252, 95
      %v767 = vpop.permute.xlu0 %766
      %768 = vrot.lane.b32.xlu0 %v263, 95
      %v769 = vpop.permute.xlu0 %768
      %770 = vrot.lane.b32.xlu0 %v253, 95
      %v771 = vpop.permute.xlu0 %770
      %772 = vrot.lane.b32.xlu0 %v264, 95
      %v773 = vpop.permute.xlu0 %772
      %774 = vrot.lane.b32.xlu0 %v254, 95
      %v775 = vpop.permute.xlu0 %774
      %776 = vrot.lane.b32.xlu0 %v257, 95
      %v777 = vpop.permute.xlu0 %776
      %vm778 = vcmask 777216
      %v779 = vsel %vm778, %v767, %v769
      %v780 = vsel %vm778, %v769, %v771
      %v781 = vsel %vm778, %v771, %v773
      %v782 = vsel %vm778, %v773, %v775
      %v783 = vsel %vm778, %v775, %v777
      %v791 = vsel %vm778, %v777, %v767
      %s792 = scalar_lea.vmem %s1, 16
      %v793 = vld [vmem:[%s792] sm:$0x3]
      %v794 = vlaneseq
      %v795 = vshrl.u32 %v794, 7
      %v796 = vsub.s32 0, %v795
      %v797 = vrot.slane %v793, %v796
      %799 = vbcast.lane.b32.xlu0 %v797, 256
      %v800 = vpop.permute.xlu0 %799
      %v801 = vlaneseq
      %v802 = vshrl.u32 %v801, 7
      %v803 = vsub.s32 1, %v802
      %v804 = vrot.slane %v793, %v803
      %806 = vbcast.lane.b32.xlu0 %v804, 256
      %v807 = vpop.permute.xlu0 %806
      %v808 = vmul.f32 %v800, %v779
      %v809 = vmul.f32 %v800, %v780
      %v810 = vmul.f32 %v800, %v781
      %v811 = vmul.f32 %v800, %v782
      %v812 = vmul.f32 %v800, %v783
      %v813 = vmul.f32 %v800, %v791
      %v814 = vmul.f32 %v807, %v779
      %v815 = vmul.f32 %v807, %v780
      %v816 = vmul.f32 %v807, %v781
      %v817 = vmul.f32 %v807, %v782
      %v818 = vmul.f32 %v807, %v783
      %v819 = vmul.f32 %v807, %v791
      %v820 = vadd.f32 %v754, %v808
      %v821 = vadd.f32 %v755, %v809
      %v822 = vadd.f32 %v756, %v810
      %v823 = vadd.f32 %v757, %v811
      %v824 = vadd.f32 %v758, %v812
      %v825 = vadd.f32 %v759, %v813
      %v826 = vadd.f32 %v760, %v814
      %v827 = vadd.f32 %v761, %v815
      %v828 = vadd.f32 %v762, %v816
      %v829 = vadd.f32 %v763, %v817
      %v830 = vadd.f32 %v764, %v818
      %v831 = vadd.f32 %v765, %v819
      %vm832 = vcmask 1043456
      %v833 = vsel %vm832, %v820, 0.0
      %v834 = vrot.slane %v833, 4
      %v835 = vadd.f32 %v833, %v834
      %v836 = vrot.slane %v835, 2
      %v837 = vadd.f32 %v835, %v836
      %v838 = vrot.slane %v837, 1
      %v839 = vadd.f32 %v837, %v838
      %v840 = vsel %vm832, %v821, 0.0
      %v841 = vrot.slane %v840, 4
      %v842 = vadd.f32 %v840, %v841
      %v843 = vrot.slane %v842, 2
      %v844 = vadd.f32 %v842, %v843
      %v845 = vrot.slane %v844, 1
      %v846 = vadd.f32 %v844, %v845
      %v847 = vsel %vm832, %v822, 0.0
      %v848 = vrot.slane %v847, 4
      %v849 = vadd.f32 %v847, %v848
      %v850 = vrot.slane %v849, 2
      %v851 = vadd.f32 %v849, %v850
      %v852 = vrot.slane %v851, 1
      %v853 = vadd.f32 %v851, %v852
      %v854 = vsel %vm832, %v823, 0.0
      %v855 = vrot.slane %v854, 4
      %v856 = vadd.f32 %v854, %v855
      %v857 = vrot.slane %v856, 2
      %v858 = vadd.f32 %v856, %v857
      %v859 = vrot.slane %v858, 1
      %v860 = vadd.f32 %v858, %v859
      %v861 = vsel %vm832, %v824, 0.0
      %v862 = vrot.slane %v861, 4
      %v863 = vadd.f32 %v861, %v862
      %v864 = vrot.slane %v863, 2
      %v865 = vadd.f32 %v863, %v864
      %v866 = vrot.slane %v865, 1
      %v867 = vadd.f32 %v865, %v866
      %v868 = vsel %vm832, %v825, 0.0
      %v869 = vrot.slane %v868, 4
      %v870 = vadd.f32 %v868, %v869
      %v871 = vrot.slane %v870, 2
      %v872 = vadd.f32 %v870, %v871
      %v873 = vrot.slane %v872, 1
      %v874 = vadd.f32 %v872, %v873
      %v875 = vsel %vm832, %v826, 0.0
      %v876 = vrot.slane %v875, 4
      %v877 = vadd.f32 %v875, %v876
      %v878 = vrot.slane %v877, 2
      %v879 = vadd.f32 %v877, %v878
      %v880 = vrot.slane %v879, 1
      %v881 = vadd.f32 %v879, %v880
      %v882 = vsel %vm832, %v827, 0.0
      %v883 = vrot.slane %v882, 4
      %v884 = vadd.f32 %v882, %v883
      %v885 = vrot.slane %v884, 2
      %v886 = vadd.f32 %v884, %v885
      %v887 = vrot.slane %v886, 1
      %v888 = vadd.f32 %v886, %v887
      %v889 = vsel %vm832, %v828, 0.0
      %v890 = vrot.slane %v889, 4
      %v891 = vadd.f32 %v889, %v890
      %v892 = vrot.slane %v891, 2
      %v893 = vadd.f32 %v891, %v892
      %v894 = vrot.slane %v893, 1
      %v895 = vadd.f32 %v893, %v894
      %v896 = vsel %vm832, %v829, 0.0
      %v897 = vrot.slane %v896, 4
      %v898 = vadd.f32 %v896, %v897
      %v899 = vrot.slane %v898, 2
      %v900 = vadd.f32 %v898, %v899
      %v901 = vrot.slane %v900, 1
      %v902 = vadd.f32 %v900, %v901
      %v903 = vsel %vm832, %v830, 0.0
      %v904 = vrot.slane %v903, 4
      %v905 = vadd.f32 %v903, %v904
      %v906 = vrot.slane %v905, 2
      %v907 = vadd.f32 %v905, %v906
      %v908 = vrot.slane %v907, 1
      %v909 = vadd.f32 %v907, %v908
      %v910 = vsel %vm832, %v831, 0.0
      %v911 = vrot.slane %v910, 4
      %v912 = vadd.f32 %v910, %v911
      %v913 = vrot.slane %v912, 2
      %v914 = vadd.f32 %v912, %v913
      %v915 = vrot.slane %v914, 1
      %v916 = vadd.f32 %v914, %v915
      %v917 = vld [vmem:[%s2] sm:$0x3]
      %919 = vset.pattern.permute.xlu0 0
      %920 = vperm.xlu0 %919, %v917
      %v921 = vpop.permute.xlu0 %920
      %v922 = vrot.slane %v921, 1
      %v925 = vadd.f32 %v839, %v921
      %v926 = vadd.f32 %v846, %v921
      %v927 = vadd.f32 %v853, %v921
      %v928 = vadd.f32 %v860, %v921
      %v929 = vadd.f32 %v867, %v921
      %v930 = vadd.f32 %v874, %v921
      %v931 = vadd.f32 %v881, %v922
      %v932 = vadd.f32 %v888, %v922
      %v933 = vadd.f32 %v895, %v922
      %v934 = vadd.f32 %v902, %v922
      %v935 = vadd.f32 %v909, %v922
      %v936 = vadd.f32 %v916, %v922
      %v937 = vmax.f32 %v925, 0.0
      %v938 = vmax.f32 %v926, 0.0
      %v939 = vmax.f32 %v927, 0.0
      %v940 = vmax.f32 %v928, 0.0
      %v941 = vmax.f32 %v929, 0.0
      %v942 = vmax.f32 %v930, 0.0
      %v943 = vmax.f32 %v931, 0.0
      %v944 = vmax.f32 %v932, 0.0
      %v945 = vmax.f32 %v933, 0.0
      %v946 = vmax.f32 %v934, 0.0
      %v947 = vmax.f32 %v935, 0.0
      %v948 = vmax.f32 %v936, 0.0
      %v949 = vld [vmem:[%s3] sm:$0x3]
      %951 = vset.pattern.permute.xlu0 0
      %952 = vperm.xlu0 %951, %v949
      %v953 = vpop.permute.xlu0 %952
      %v954 = vrot.slane %v953, 1
      %v957 = vmul.f32 %v937, %v953
      %v958 = vmul.f32 %v938, %v953
      %v959 = vmul.f32 %v939, %v953
      %v960 = vmul.f32 %v940, %v953
      %v961 = vmul.f32 %v941, %v953
      %v962 = vmul.f32 %v942, %v953
      %v963 = vmul.f32 %v943, %v954
      %v964 = vmul.f32 %v944, %v954
      %v965 = vmul.f32 %v945, %v954
      %v966 = vmul.f32 %v946, %v954
      %v967 = vmul.f32 %v947, %v954
      %v968 = vmul.f32 %v948, %v954
      %v969 = vld [vmem:[%s4] sm:$0x3]
      %971 = vset.pattern.permute.xlu0 0
      %972 = vperm.xlu0 %971, %v969
      %v973 = vpop.permute.xlu0 %972
      %v974 = vrot.slane %v973, 1
      %v977 = vadd.f32 %v957, %v973
      %v978 = vadd.f32 %v958, %v973
      %v979 = vadd.f32 %v959, %v973
      %v980 = vadd.f32 %v960, %v973
      %v981 = vadd.f32 %v961, %v973
      %v982 = vadd.f32 %v962, %v973
      %v983 = vadd.f32 %v963, %v974
      %v984 = vadd.f32 %v964, %v974
      %v985 = vadd.f32 %v965, %v974
      %v986 = vadd.f32 %v966, %v974
      %v987 = vadd.f32 %v967, %v974
      %v988 = vadd.f32 %v968, %v974
      %v989 = vmax.f32 %v977, 0.0
      %v990 = vmax.f32 %v978, 0.0
      %v991 = vmax.f32 %v979, 0.0
      %v992 = vmax.f32 %v980, 0.0
      %v993 = vmax.f32 %v981, 0.0
      %v994 = vmax.f32 %v982, 0.0
      %v995 = vmax.f32 %v983, 0.0
      %v996 = vmax.f32 %v984, 0.0
      %v997 = vmax.f32 %v985, 0.0
      %v998 = vmax.f32 %v986, 0.0
      %v999 = vmax.f32 %v987, 0.0
      %v1000 = vmax.f32 %v988, 0.0
      %v1002 = vlaneseq
      %v1003 = vshrl.u32 %v1002, 7
      %v1004 = vsub.s32 0, %v1003
      %v1005 = vrot.slane %v255, %v1004
      %v1006 = vlaneseq
      %v1007 = vshrl.u32 %v1006, 7
      %v1008 = vsub.s32 1, %v1007
      %v1009 = vrot.slane %v255, %v1008
      %v1010 = vlaneseq
      %v1011 = vshrl.u32 %v1010, 7
      %v1012 = vsub.s32 2, %v1011
      %v1013 = vrot.slane %v255, %v1012
      %v1014 = vlaneseq
      %v1015 = vshrl.u32 %v1014, 7
      %v1016 = vsub.s32 3, %v1015
      %v1017 = vrot.slane %v255, %v1016
      %v1018 = vlaneseq
      %v1019 = vshrl.u32 %v1018, 7
      %v1020 = vsub.s32 4, %v1019
      %v1021 = vrot.slane %v255, %v1020
      %v1022 = vlaneseq
      %v1023 = vshrl.u32 %v1022, 7
      %v1024 = vsub.s32 5, %v1023
      %v1025 = vrot.slane %v255, %v1024
      %v1032 = vmul.f32 %v989, %v1005
      %v1033 = vmul.f32 %v990, %v1009
      %v1034 = vmul.f32 %v991, %v1013
      %v1035 = vmul.f32 %v992, %v1017
      %v1036 = vmul.f32 %v993, %v1021
      %v1037 = vmul.f32 %v994, %v1025
      %v1038 = vmul.f32 %v995, %v1005
      %v1039 = vmul.f32 %v996, %v1009
      %v1040 = vmul.f32 %v997, %v1013
      %v1041 = vmul.f32 %v998, %v1017
      %v1042 = vmul.f32 %v999, %v1021
      %v1043 = vmul.f32 %v1000, %v1025
      %v1056 = vrot.slane %v1038, 7
      %vm1057 = vcmask 1041409
      %v1058 = vsel %vm1057, %v1056, %v1032
      %v1059 = vrot.slane %v1039, 7
      %v1060 = vsel %vm1057, %v1059, %v1033
      %v1061 = vrot.slane %v1040, 7
      %v1062 = vsel %vm1057, %v1061, %v1034
      %v1063 = vrot.slane %v1041, 7
      %v1064 = vsel %vm1057, %v1063, %v1035
      %v1065 = vrot.slane %v1042, 7
      %v1066 = vsel %vm1057, %v1065, %v1036
      %v1067 = vrot.slane %v1043, 7
      %v1068 = vsel %vm1057, %v1067, %v1037
      %1075 = vst [vmem:[%s251] sm:$0x3] %v1058
      %1076 = vst [vmem:[%s251 + $0x8] sm:$0x3] %v1060
      %1077 = vst [vmem:[%s251 + $0x10] sm:$0x3] %v1062
      %1078 = vst [vmem:[%s251 + $0x18] sm:$0x3] %v1064
      %1079 = vst [vmem:[%s251 + $0x20] sm:$0x3] %v1066
      %1080 = vst [vmem:[%s251 + $0x28] sm:$0x3] %v1068
      %1081 = vrot.lane.b32.xlu0 %v257, 66
      %v1082 = vpop.permute.xlu0 %1081
      %1084 = vrot.lane.b32.xlu0 %v252, 66
      %v1085 = vpop.permute.xlu0 %1084
      %1086 = vrot.lane.b32.xlu0 %v263, 66
      %v1087 = vpop.permute.xlu0 %1086
      %1088 = vrot.lane.b32.xlu0 %v253, 66
      %v1089 = vpop.permute.xlu0 %1088
      %1090 = vrot.lane.b32.xlu0 %v264, 66
      %v1091 = vpop.permute.xlu0 %1090
      %1092 = vrot.lane.b32.xlu0 %v254, 66
      %v1093 = vpop.permute.xlu0 %1092
      %vm1094 = vcmask 539648
      %v1095 = vsel %vm1094, %v1085, %v1087
      %v1096 = vsel %vm1094, %v1087, %v1089
      %v1097 = vsel %vm1094, %v1089, %v1091
      %v1098 = vsel %vm1094, %v1091, %v1093
      %v1099 = vsel %vm1094, %v1093, %v1082
      %v1106 = vsel %vm1094, %v1082, %v1085
      %s1107 = scalar_lea.vmem %s1, 18
      %v1108 = vld [vmem:[%s1107] sm:$0x3]
      %v1109 = vlaneseq
      %v1110 = vshrl.u32 %v1109, 7
      %v1111 = vsub.s32 0, %v1110
      %v1112 = vrot.slane %v1108, %v1111
      %1114 = vbcast.lane.b32.xlu0 %v1112, 256
      %v1115 = vpop.permute.xlu0 %1114
      %v1116 = vlaneseq
      %v1117 = vshrl.u32 %v1116, 7
      %v1118 = vsub.s32 1, %v1117
      %v1119 = vrot.slane %v1108, %v1118
      %1121 = vbcast.lane.b32.xlu0 %v1119, 256
      %v1122 = vpop.permute.xlu0 %1121
      %v1123 = vmul.f32 %v1115, %v1106
      %v1124 = vmul.f32 %v1115, %v1095
      %v1125 = vmul.f32 %v1115, %v1096
      %v1126 = vmul.f32 %v1115, %v1097
      %v1127 = vmul.f32 %v1115, %v1098
      %v1128 = vmul.f32 %v1115, %v1099
      %v1129 = vmul.f32 %v1122, %v1106
      %v1130 = vmul.f32 %v1122, %v1095
      %v1131 = vmul.f32 %v1122, %v1096
      %v1132 = vmul.f32 %v1122, %v1097
      %v1133 = vmul.f32 %v1122, %v1098
      %v1134 = vmul.f32 %v1122, %v1099
      %v1135 = vadd.f32 %v1123, 0.0
      %v1136 = vadd.f32 %v1124, 0.0
      %v1137 = vadd.f32 %v1125, 0.0
      %v1138 = vadd.f32 %v1126, 0.0
      %v1139 = vadd.f32 %v1127, 0.0
      %v1140 = vadd.f32 %v1128, 0.0
      %v1141 = vadd.f32 %v1129, 0.0
      %v1142 = vadd.f32 %v1130, 0.0
      %v1143 = vadd.f32 %v1131, 0.0
      %v1144 = vadd.f32 %v1132, 0.0
      %v1145 = vadd.f32 %v1133, 0.0
      %v1146 = vadd.f32 %v1134, 0.0
      %1147 = vrot.lane.b32.xlu0 %v257, 64
      %v1148 = vpop.permute.xlu0 %1147
      %1150 = vrot.lane.b32.xlu0 %v252, 64
      %v1151 = vpop.permute.xlu0 %1150
      %1152 = vrot.lane.b32.xlu0 %v263, 64
      %v1153 = vpop.permute.xlu0 %1152
      %1154 = vrot.lane.b32.xlu0 %v253, 64
      %v1155 = vpop.permute.xlu0 %1154
      %1156 = vrot.lane.b32.xlu0 %v264, 64
      %v1157 = vpop.permute.xlu0 %1156
      %1158 = vrot.lane.b32.xlu0 %v254, 64
      %v1159 = vpop.permute.xlu0 %1158
      %vm1160 = vcmask 523264
      %v1161 = vsel %vm1160, %v1151, %v1153
      %v1162 = vsel %vm1160, %v1153, %v1155
      %v1163 = vsel %vm1160, %v1155, %v1157
      %v1164 = vsel %vm1160, %v1157, %v1159
      %v1165 = vsel %vm1160, %v1159, %v1148
      %v1172 = vsel %vm1160, %v1148, %v1151
      %s1173 = scalar_lea.vmem %s1, 20
      %v1174 = vld [vmem:[%s1173] sm:$0x3]
      %v1175 = vlaneseq
      %v1176 = vshrl.u32 %v1175, 7
      %v1177 = vsub.s32 0, %v1176
      %v1178 = vrot.slane %v1174, %v1177
      %1180 = vbcast.lane.b32.xlu0 %v1178, 256
      %v1181 = vpop.permute.xlu0 %1180
      %v1182 = vlaneseq
      %v1183 = vshrl.u32 %v1182, 7
      %v1184 = vsub.s32 1, %v1183
      %v1185 = vrot.slane %v1174, %v1184
      %1187 = vbcast.lane.b32.xlu0 %v1185, 256
      %v1188 = vpop.permute.xlu0 %1187
      %v1189 = vmul.f32 %v1181, %v1172
      %v1190 = vmul.f32 %v1181, %v1161
      %v1191 = vmul.f32 %v1181, %v1162
      %v1192 = vmul.f32 %v1181, %v1163
      %v1193 = vmul.f32 %v1181, %v1164
      %v1194 = vmul.f32 %v1181, %v1165
      %v1195 = vmul.f32 %v1188, %v1172
      %v1196 = vmul.f32 %v1188, %v1161
      %v1197 = vmul.f32 %v1188, %v1162
      %v1198 = vmul.f32 %v1188, %v1163
      %v1199 = vmul.f32 %v1188, %v1164
      %v1200 = vmul.f32 %v1188, %v1165
      %v1201 = vadd.f32 %v1135, %v1189
      %v1202 = vadd.f32 %v1136, %v1190
      %v1203 = vadd.f32 %v1137, %v1191
      %v1204 = vadd.f32 %v1138, %v1192
      %v1205 = vadd.f32 %v1139, %v1193
      %v1206 = vadd.f32 %v1140, %v1194
      %v1207 = vadd.f32 %v1141, %v1195
      %v1208 = vadd.f32 %v1142, %v1196
      %v1209 = vadd.f32 %v1143, %v1197
      %v1210 = vadd.f32 %v1144, %v1198
      %v1211 = vadd.f32 %v1145, %v1199
      %v1212 = vadd.f32 %v1146, %v1200
      %1213 = vrot.lane.b32.xlu0 %v257, 62
      %v1214 = vpop.permute.xlu0 %1213
      %1216 = vrot.lane.b32.xlu0 %v252, 62
      %v1217 = vpop.permute.xlu0 %1216
      %1218 = vrot.lane.b32.xlu0 %v263, 62
      %v1219 = vpop.permute.xlu0 %1218
      %1220 = vrot.lane.b32.xlu0 %v253, 62
      %v1221 = vpop.permute.xlu0 %1220
      %1222 = vrot.lane.b32.xlu0 %v264, 62
      %v1223 = vpop.permute.xlu0 %1222
      %1224 = vrot.lane.b32.xlu0 %v254, 62
      %v1225 = vpop.permute.xlu0 %1224
      %vm1226 = vcmask 506880
      %v1227 = vsel %vm1226, %v1217, %v1219
      %v1228 = vsel %vm1226, %v1219, %v1221
      %v1229 = vsel %vm1226, %v1221, %v1223
      %v1230 = vsel %vm1226, %v1223, %v1225
      %v1231 = vsel %vm1226, %v1225, %v1214
      %v1238 = vsel %vm1226, %v1214, %v1217
      %s1239 = scalar_lea.vmem %s1, 22
      %v1240 = vld [vmem:[%s1239] sm:$0x3]
      %v1241 = vlaneseq
      %v1242 = vshrl.u32 %v1241, 7
      %v1243 = vsub.s32 0, %v1242
      %v1244 = vrot.slane %v1240, %v1243
      %1246 = vbcast.lane.b32.xlu0 %v1244, 256
      %v1247 = vpop.permute.xlu0 %1246
      %v1248 = vlaneseq
      %v1249 = vshrl.u32 %v1248, 7
      %v1250 = vsub.s32 1, %v1249
      %v1251 = vrot.slane %v1240, %v1250
      %1253 = vbcast.lane.b32.xlu0 %v1251, 256
      %v1254 = vpop.permute.xlu0 %1253
      %v1255 = vmul.f32 %v1247, %v1238
      %v1256 = vmul.f32 %v1247, %v1227
      %v1257 = vmul.f32 %v1247, %v1228
      %v1258 = vmul.f32 %v1247, %v1229
      %v1259 = vmul.f32 %v1247, %v1230
      %v1260 = vmul.f32 %v1247, %v1231
      %v1261 = vmul.f32 %v1254, %v1238
      %v1262 = vmul.f32 %v1254, %v1227
      %v1263 = vmul.f32 %v1254, %v1228
      %v1264 = vmul.f32 %v1254, %v1229
      %v1265 = vmul.f32 %v1254, %v1230
      %v1266 = vmul.f32 %v1254, %v1231
      %v1267 = vadd.f32 %v1201, %v1255
      %v1268 = vadd.f32 %v1202, %v1256
      %v1269 = vadd.f32 %v1203, %v1257
      %v1270 = vadd.f32 %v1204, %v1258
      %v1271 = vadd.f32 %v1205, %v1259
      %v1272 = vadd.f32 %v1206, %v1260
      %v1273 = vadd.f32 %v1207, %v1261
      %v1274 = vadd.f32 %v1208, %v1262
      %v1275 = vadd.f32 %v1209, %v1263
      %v1276 = vadd.f32 %v1210, %v1264
      %v1277 = vadd.f32 %v1211, %v1265
      %v1278 = vadd.f32 %v1212, %v1266
      %1279 = vrot.lane.b32.xlu0 %v257, 2
      %v1280 = vpop.permute.xlu0 %1279
      %1282 = vrot.lane.b32.xlu0 %v252, 2
      %v1283 = vpop.permute.xlu0 %1282
      %1284 = vrot.lane.b32.xlu0 %v263, 2
      %v1285 = vpop.permute.xlu0 %1284
      %1286 = vrot.lane.b32.xlu0 %v253, 2
      %v1287 = vpop.permute.xlu0 %1286
      %1288 = vrot.lane.b32.xlu0 %v264, 2
      %v1289 = vpop.permute.xlu0 %1288
      %1290 = vrot.lane.b32.xlu0 %v254, 2
      %v1291 = vpop.permute.xlu0 %1290
      %vm1292 = vcmask 15360
      %v1293 = vsel %vm1292, %v1283, %v1285
      %v1294 = vsel %vm1292, %v1285, %v1287
      %v1295 = vsel %vm1292, %v1287, %v1289
      %v1296 = vsel %vm1292, %v1289, %v1291
      %v1297 = vsel %vm1292, %v1291, %v1280
      %v1304 = vsel %vm1292, %v1280, %v1283
      %s1305 = scalar_lea.vmem %s1, 24
      %v1306 = vld [vmem:[%s1305] sm:$0x3]
      %v1307 = vlaneseq
      %v1308 = vshrl.u32 %v1307, 7
      %v1309 = vsub.s32 0, %v1308
      %v1310 = vrot.slane %v1306, %v1309
      %1312 = vbcast.lane.b32.xlu0 %v1310, 256
      %v1313 = vpop.permute.xlu0 %1312
      %v1314 = vlaneseq
      %v1315 = vshrl.u32 %v1314, 7
      %v1316 = vsub.s32 1, %v1315
      %v1317 = vrot.slane %v1306, %v1316
      %1319 = vbcast.lane.b32.xlu0 %v1317, 256
      %v1320 = vpop.permute.xlu0 %1319
      %v1321 = vmul.f32 %v1313, %v1304
      %v1322 = vmul.f32 %v1313, %v1293
      %v1323 = vmul.f32 %v1313, %v1294
      %v1324 = vmul.f32 %v1313, %v1295
      %v1325 = vmul.f32 %v1313, %v1296
      %v1326 = vmul.f32 %v1313, %v1297
      %v1327 = vmul.f32 %v1320, %v1304
      %v1328 = vmul.f32 %v1320, %v1293
      %v1329 = vmul.f32 %v1320, %v1294
      %v1330 = vmul.f32 %v1320, %v1295
      %v1331 = vmul.f32 %v1320, %v1296
      %v1332 = vmul.f32 %v1320, %v1297
      %v1333 = vadd.f32 %v1267, %v1321
      %v1334 = vadd.f32 %v1268, %v1322
      %v1335 = vadd.f32 %v1269, %v1323
      %v1336 = vadd.f32 %v1270, %v1324
      %v1337 = vadd.f32 %v1271, %v1325
      %v1338 = vadd.f32 %v1272, %v1326
      %v1339 = vadd.f32 %v1273, %v1327
      %v1340 = vadd.f32 %v1274, %v1328
      %v1341 = vadd.f32 %v1275, %v1329
      %v1342 = vadd.f32 %v1276, %v1330
      %v1343 = vadd.f32 %v1277, %v1331
      %v1344 = vadd.f32 %v1278, %v1332
      %s1345 = scalar_lea.vmem %s1, 26
      %v1346 = vld [vmem:[%s1345] sm:$0x3]
      %v1347 = vlaneseq
      %v1348 = vshrl.u32 %v1347, 7
      %v1349 = vsub.s32 0, %v1348
      %v1350 = vrot.slane %v1346, %v1349
      %1352 = vbcast.lane.b32.xlu0 %v1350, 256
      %v1353 = vpop.permute.xlu0 %1352
      %v1354 = vlaneseq
      %v1355 = vshrl.u32 %v1354, 7
      %v1356 = vsub.s32 1, %v1355
      %v1357 = vrot.slane %v1346, %v1356
      %1359 = vbcast.lane.b32.xlu0 %v1357, 256
      %v1360 = vpop.permute.xlu0 %1359
      %v1361 = vmul.f32 %v1353, %v252
      %v1362 = vmul.f32 %v1353, %v263
      %v1363 = vmul.f32 %v1353, %v253
      %v1364 = vmul.f32 %v1353, %v264
      %v1365 = vmul.f32 %v1353, %v254
      %v1366 = vmul.f32 %v1353, %v257
      %v1367 = vmul.f32 %v1360, %v252
      %v1368 = vmul.f32 %v1360, %v263
      %v1369 = vmul.f32 %v1360, %v253
      %v1370 = vmul.f32 %v1360, %v264
      %v1371 = vmul.f32 %v1360, %v254
      %v1372 = vmul.f32 %v1360, %v257
      %v1373 = vadd.f32 %v1333, %v1361
      %v1374 = vadd.f32 %v1334, %v1362
      %v1375 = vadd.f32 %v1335, %v1363
      %v1376 = vadd.f32 %v1336, %v1364
      %v1377 = vadd.f32 %v1337, %v1365
      %v1378 = vadd.f32 %v1338, %v1366
      %v1379 = vadd.f32 %v1339, %v1367
      %v1380 = vadd.f32 %v1340, %v1368
      %v1381 = vadd.f32 %v1341, %v1369
      %v1382 = vadd.f32 %v1342, %v1370
      %v1383 = vadd.f32 %v1343, %v1371
      %v1384 = vadd.f32 %v1344, %v1372
      %1385 = vrot.lane.b32.xlu0 %v252, 126
      %v1386 = vpop.permute.xlu0 %1385
      %1387 = vrot.lane.b32.xlu0 %v263, 126
      %v1388 = vpop.permute.xlu0 %1387
      %1389 = vrot.lane.b32.xlu0 %v253, 126
      %v1390 = vpop.permute.xlu0 %1389
      %1391 = vrot.lane.b32.xlu0 %v264, 126
      %v1392 = vpop.permute.xlu0 %1391
      %1393 = vrot.lane.b32.xlu0 %v254, 126
      %v1394 = vpop.permute.xlu0 %1393
      %1395 = vrot.lane.b32.xlu0 %v257, 126
      %v1396 = vpop.permute.xlu0 %1395
      %vm1397 = vcmask 1031168
      %v1398 = vsel %vm1397, %v1386, %v1388
      %v1399 = vsel %vm1397, %v1388, %v1390
      %v1400 = vsel %vm1397, %v1390, %v1392
      %v1401 = vsel %vm1397, %v1392, %v1394
      %v1402 = vsel %vm1397, %v1394, %v1396
      %v1410 = vsel %vm1397, %v1396, %v1386
      %s1411 = scalar_lea.vmem %s1, 28
      %v1412 = vld [vmem:[%s1411] sm:$0x3]
      %v1413 = vlaneseq
      %v1414 = vshrl.u32 %v1413, 7
      %v1415 = vsub.s32 0, %v1414
      %v1416 = vrot.slane %v1412, %v1415
      %1418 = vbcast.lane.b32.xlu0 %v1416, 256
      %v1419 = vpop.permute.xlu0 %1418
      %v1420 = vlaneseq
      %v1421 = vshrl.u32 %v1420, 7
      %v1422 = vsub.s32 1, %v1421
      %v1423 = vrot.slane %v1412, %v1422
      %1425 = vbcast.lane.b32.xlu0 %v1423, 256
      %v1426 = vpop.permute.xlu0 %1425
      %v1427 = vmul.f32 %v1419, %v1398
      %v1428 = vmul.f32 %v1419, %v1399
      %v1429 = vmul.f32 %v1419, %v1400
      %v1430 = vmul.f32 %v1419, %v1401
      %v1431 = vmul.f32 %v1419, %v1402
      %v1432 = vmul.f32 %v1419, %v1410
      %v1433 = vmul.f32 %v1426, %v1398
      %v1434 = vmul.f32 %v1426, %v1399
      %v1435 = vmul.f32 %v1426, %v1400
      %v1436 = vmul.f32 %v1426, %v1401
      %v1437 = vmul.f32 %v1426, %v1402
      %v1438 = vmul.f32 %v1426, %v1410
      %v1439 = vadd.f32 %v1373, %v1427
      %v1440 = vadd.f32 %v1374, %v1428
      %v1441 = vadd.f32 %v1375, %v1429
      %v1442 = vadd.f32 %v1376, %v1430
      %v1443 = vadd.f32 %v1377, %v1431
      %v1444 = vadd.f32 %v1378, %v1432
      %v1445 = vadd.f32 %v1379, %v1433
      %v1446 = vadd.f32 %v1380, %v1434
      %v1447 = vadd.f32 %v1381, %v1435
      %v1448 = vadd.f32 %v1382, %v1436
      %v1449 = vadd.f32 %v1383, %v1437
      %v1450 = vadd.f32 %v1384, %v1438
      %s1451 = scalar_lea.vmem %s1, 30
      %v1452 = vld [vmem:[%s1451] sm:$0x3]
      %v1453 = vlaneseq
      %v1454 = vshrl.u32 %v1453, 7
      %v1455 = vsub.s32 0, %v1454
      %v1456 = vrot.slane %v1452, %v1455
      %1458 = vbcast.lane.b32.xlu0 %v1456, 256
      %v1459 = vpop.permute.xlu0 %1458
      %v1460 = vlaneseq
      %v1461 = vshrl.u32 %v1460, 7
      %v1462 = vsub.s32 1, %v1461
      %v1463 = vrot.slane %v1452, %v1462
      %1465 = vbcast.lane.b32.xlu0 %v1463, 256
      %v1466 = vpop.permute.xlu0 %1465
      %v1467 = vmul.f32 %v1459, %v1095
      %v1468 = vmul.f32 %v1459, %v1096
      %v1469 = vmul.f32 %v1459, %v1097
      %v1470 = vmul.f32 %v1459, %v1098
      %v1471 = vmul.f32 %v1459, %v1099
      %v1472 = vmul.f32 %v1459, %v1106
      %v1473 = vmul.f32 %v1466, %v1095
      %v1474 = vmul.f32 %v1466, %v1096
      %v1475 = vmul.f32 %v1466, %v1097
      %v1476 = vmul.f32 %v1466, %v1098
      %v1477 = vmul.f32 %v1466, %v1099
      %v1478 = vmul.f32 %v1466, %v1106
      %v1479 = vadd.f32 %v1439, %v1467
      %v1480 = vadd.f32 %v1440, %v1468
      %v1481 = vadd.f32 %v1441, %v1469
      %v1482 = vadd.f32 %v1442, %v1470
      %v1483 = vadd.f32 %v1443, %v1471
      %v1484 = vadd.f32 %v1444, %v1472
      %v1485 = vadd.f32 %v1445, %v1473
      %v1486 = vadd.f32 %v1446, %v1474
      %v1487 = vadd.f32 %v1447, %v1475
      %v1488 = vadd.f32 %v1448, %v1476
      %v1489 = vadd.f32 %v1449, %v1477
      %v1490 = vadd.f32 %v1450, %v1478
      %s1491 = scalar_lea.vmem %s1, 32
      %v1492 = vld [vmem:[%s1491] sm:$0x3]
      %v1493 = vlaneseq
      %v1494 = vshrl.u32 %v1493, 7
      %v1495 = vsub.s32 0, %v1494
      %v1496 = vrot.slane %v1492, %v1495
      %1498 = vbcast.lane.b32.xlu0 %v1496, 256
      %v1499 = vpop.permute.xlu0 %1498
      %v1500 = vlaneseq
      %v1501 = vshrl.u32 %v1500, 7
      %v1502 = vsub.s32 1, %v1501
      %v1503 = vrot.slane %v1492, %v1502
      %1505 = vbcast.lane.b32.xlu0 %v1503, 256
      %v1506 = vpop.permute.xlu0 %1505
      %v1507 = vmul.f32 %v1499, %v1161
      %v1508 = vmul.f32 %v1499, %v1162
      %v1509 = vmul.f32 %v1499, %v1163
      %v1510 = vmul.f32 %v1499, %v1164
      %v1511 = vmul.f32 %v1499, %v1165
      %v1512 = vmul.f32 %v1499, %v1172
      %v1513 = vmul.f32 %v1506, %v1161
      %v1514 = vmul.f32 %v1506, %v1162
      %v1515 = vmul.f32 %v1506, %v1163
      %v1516 = vmul.f32 %v1506, %v1164
      %v1517 = vmul.f32 %v1506, %v1165
      %v1518 = vmul.f32 %v1506, %v1172
      %v1519 = vadd.f32 %v1479, %v1507
      %v1520 = vadd.f32 %v1480, %v1508
      %v1521 = vadd.f32 %v1481, %v1509
      %v1522 = vadd.f32 %v1482, %v1510
      %v1523 = vadd.f32 %v1483, %v1511
      %v1524 = vadd.f32 %v1484, %v1512
      %v1525 = vadd.f32 %v1485, %v1513
      %v1526 = vadd.f32 %v1486, %v1514
      %v1527 = vadd.f32 %v1487, %v1515
      %v1528 = vadd.f32 %v1488, %v1516
      %v1529 = vadd.f32 %v1489, %v1517
      %v1530 = vadd.f32 %v1490, %v1518
      %s1531 = scalar_lea.vmem %s1, 34
      %v1532 = vld [vmem:[%s1531] sm:$0x3]
      %v1533 = vlaneseq
      %v1534 = vshrl.u32 %v1533, 7
      %v1535 = vsub.s32 0, %v1534
      %v1536 = vrot.slane %v1532, %v1535
      %1538 = vbcast.lane.b32.xlu0 %v1536, 256
      %v1539 = vpop.permute.xlu0 %1538
      %v1540 = vlaneseq
      %v1541 = vshrl.u32 %v1540, 7
      %v1542 = vsub.s32 1, %v1541
      %v1543 = vrot.slane %v1532, %v1542
      %1545 = vbcast.lane.b32.xlu0 %v1543, 256
      %v1546 = vpop.permute.xlu0 %1545
      %v1547 = vmul.f32 %v1539, %v1227
      %v1548 = vmul.f32 %v1539, %v1228
      %v1549 = vmul.f32 %v1539, %v1229
      %v1550 = vmul.f32 %v1539, %v1230
      %v1551 = vmul.f32 %v1539, %v1231
      %v1552 = vmul.f32 %v1539, %v1238
      %v1553 = vmul.f32 %v1546, %v1227
      %v1554 = vmul.f32 %v1546, %v1228
      %v1555 = vmul.f32 %v1546, %v1229
      %v1556 = vmul.f32 %v1546, %v1230
      %v1557 = vmul.f32 %v1546, %v1231
      %v1558 = vmul.f32 %v1546, %v1238
      %v1559 = vadd.f32 %v1519, %v1547
      %v1560 = vadd.f32 %v1520, %v1548
      %v1561 = vadd.f32 %v1521, %v1549
      %v1562 = vadd.f32 %v1522, %v1550
      %v1563 = vadd.f32 %v1523, %v1551
      %v1564 = vadd.f32 %v1524, %v1552
      %v1565 = vadd.f32 %v1525, %v1553
      %v1566 = vadd.f32 %v1526, %v1554
      %v1567 = vadd.f32 %v1527, %v1555
      %v1568 = vadd.f32 %v1528, %v1556
      %v1569 = vadd.f32 %v1529, %v1557
      %v1570 = vadd.f32 %v1530, %v1558
      %v1571 = vsel %vm832, %v1559, 0.0
      %v1572 = vrot.slane %v1571, 4
      %v1573 = vadd.f32 %v1571, %v1572
      %v1574 = vrot.slane %v1573, 2
      %v1575 = vadd.f32 %v1573, %v1574
      %v1576 = vrot.slane %v1575, 1
      %v1577 = vadd.f32 %v1575, %v1576
      %v1578 = vsel %vm832, %v1560, 0.0
      %v1579 = vrot.slane %v1578, 4
      %v1580 = vadd.f32 %v1578, %v1579
      %v1581 = vrot.slane %v1580, 2
      %v1582 = vadd.f32 %v1580, %v1581
      %v1583 = vrot.slane %v1582, 1
      %v1584 = vadd.f32 %v1582, %v1583
      %v1585 = vsel %vm832, %v1561, 0.0
      %v1586 = vrot.slane %v1585, 4
      %v1587 = vadd.f32 %v1585, %v1586
      %v1588 = vrot.slane %v1587, 2
      %v1589 = vadd.f32 %v1587, %v1588
      %v1590 = vrot.slane %v1589, 1
      %v1591 = vadd.f32 %v1589, %v1590
      %v1592 = vsel %vm832, %v1562, 0.0
      %v1593 = vrot.slane %v1592, 4
      %v1594 = vadd.f32 %v1592, %v1593
      %v1595 = vrot.slane %v1594, 2
      %v1596 = vadd.f32 %v1594, %v1595
      %v1597 = vrot.slane %v1596, 1
      %v1598 = vadd.f32 %v1596, %v1597
      %v1599 = vsel %vm832, %v1563, 0.0
      %v1600 = vrot.slane %v1599, 4
      %v1601 = vadd.f32 %v1599, %v1600
      %v1602 = vrot.slane %v1601, 2
      %v1603 = vadd.f32 %v1601, %v1602
      %v1604 = vrot.slane %v1603, 1
      %v1605 = vadd.f32 %v1603, %v1604
      %v1606 = vsel %vm832, %v1564, 0.0
      %v1607 = vrot.slane %v1606, 4
      %v1608 = vadd.f32 %v1606, %v1607
      %v1609 = vrot.slane %v1608, 2
      %v1610 = vadd.f32 %v1608, %v1609
      %v1611 = vrot.slane %v1610, 1
      %v1612 = vadd.f32 %v1610, %v1611
      %v1613 = vsel %vm832, %v1565, 0.0
      %v1614 = vrot.slane %v1613, 4
      %v1615 = vadd.f32 %v1613, %v1614
      %v1616 = vrot.slane %v1615, 2
      %v1617 = vadd.f32 %v1615, %v1616
      %v1618 = vrot.slane %v1617, 1
      %v1619 = vadd.f32 %v1617, %v1618
      %v1620 = vsel %vm832, %v1566, 0.0
      %v1621 = vrot.slane %v1620, 4
      %v1622 = vadd.f32 %v1620, %v1621
      %v1623 = vrot.slane %v1622, 2
      %v1624 = vadd.f32 %v1622, %v1623
      %v1625 = vrot.slane %v1624, 1
      %v1626 = vadd.f32 %v1624, %v1625
      %v1627 = vsel %vm832, %v1567, 0.0
      %v1628 = vrot.slane %v1627, 4
      %v1629 = vadd.f32 %v1627, %v1628
      %v1630 = vrot.slane %v1629, 2
      %v1631 = vadd.f32 %v1629, %v1630
      %v1632 = vrot.slane %v1631, 1
      %v1633 = vadd.f32 %v1631, %v1632
      %v1634 = vsel %vm832, %v1568, 0.0
      %v1635 = vrot.slane %v1634, 4
      %v1636 = vadd.f32 %v1634, %v1635
      %v1637 = vrot.slane %v1636, 2
      %v1638 = vadd.f32 %v1636, %v1637
      %v1639 = vrot.slane %v1638, 1
      %v1640 = vadd.f32 %v1638, %v1639
      %v1641 = vsel %vm832, %v1569, 0.0
      %v1642 = vrot.slane %v1641, 4
      %v1643 = vadd.f32 %v1641, %v1642
      %v1644 = vrot.slane %v1643, 2
      %v1645 = vadd.f32 %v1643, %v1644
      %v1646 = vrot.slane %v1645, 1
      %v1647 = vadd.f32 %v1645, %v1646
      %v1648 = vsel %vm832, %v1570, 0.0
      %v1649 = vrot.slane %v1648, 4
      %v1650 = vadd.f32 %v1648, %v1649
      %v1651 = vrot.slane %v1650, 2
      %v1652 = vadd.f32 %v1650, %v1651
      %v1653 = vrot.slane %v1652, 1
      %v1654 = vadd.f32 %v1652, %v1653
      %v1655 = vld [vmem:[%s2 + $0x2] sm:$0x3]
      %1657 = vset.pattern.permute.xlu0 0
      %1658 = vperm.xlu0 %1657, %v1655
      %v1659 = vpop.permute.xlu0 %1658
      %v1660 = vrot.slane %v1659, 1
      %v1663 = vadd.f32 %v1577, %v1659
      %v1664 = vadd.f32 %v1584, %v1659
      %v1665 = vadd.f32 %v1591, %v1659
      %v1666 = vadd.f32 %v1598, %v1659
      %v1667 = vadd.f32 %v1605, %v1659
      %v1668 = vadd.f32 %v1612, %v1659
      %v1669 = vadd.f32 %v1619, %v1660
      %v1670 = vadd.f32 %v1626, %v1660
      %v1671 = vadd.f32 %v1633, %v1660
      %v1672 = vadd.f32 %v1640, %v1660
      %v1673 = vadd.f32 %v1647, %v1660
      %v1674 = vadd.f32 %v1654, %v1660
      %v1675 = vmax.f32 %v1663, 0.0
      %v1676 = vmax.f32 %v1664, 0.0
      %v1677 = vmax.f32 %v1665, 0.0
      %v1678 = vmax.f32 %v1666, 0.0
      %v1679 = vmax.f32 %v1667, 0.0
      %v1680 = vmax.f32 %v1668, 0.0
      %v1681 = vmax.f32 %v1669, 0.0
      %v1682 = vmax.f32 %v1670, 0.0
      %v1683 = vmax.f32 %v1671, 0.0
      %v1684 = vmax.f32 %v1672, 0.0
      %v1685 = vmax.f32 %v1673, 0.0
      %v1686 = vmax.f32 %v1674, 0.0
      %v1687 = vld [vmem:[%s3 + $0x2] sm:$0x3]
      %1689 = vset.pattern.permute.xlu0 0
      %1690 = vperm.xlu0 %1689, %v1687
      %v1691 = vpop.permute.xlu0 %1690
      %v1692 = vrot.slane %v1691, 1
      %v1695 = vmul.f32 %v1675, %v1691
      %v1696 = vmul.f32 %v1676, %v1691
      %v1697 = vmul.f32 %v1677, %v1691
      %v1698 = vmul.f32 %v1678, %v1691
      %v1699 = vmul.f32 %v1679, %v1691
      %v1700 = vmul.f32 %v1680, %v1691
      %v1701 = vmul.f32 %v1681, %v1692
      %v1702 = vmul.f32 %v1682, %v1692
      %v1703 = vmul.f32 %v1683, %v1692
      %v1704 = vmul.f32 %v1684, %v1692
      %v1705 = vmul.f32 %v1685, %v1692
      %v1706 = vmul.f32 %v1686, %v1692
      %v1707 = vld [vmem:[%s4 + $0x2] sm:$0x3]
      %1709 = vset.pattern.permute.xlu0 0
      %1710 = vperm.xlu0 %1709, %v1707
      %v1711 = vpop.permute.xlu0 %1710
      %v1712 = vrot.slane %v1711, 1
      %v1715 = vadd.f32 %v1695, %v1711
      %v1716 = vadd.f32 %v1696, %v1711
      %v1717 = vadd.f32 %v1697, %v1711
      %v1718 = vadd.f32 %v1698, %v1711
      %v1719 = vadd.f32 %v1699, %v1711
      %v1720 = vadd.f32 %v1700, %v1711
      %v1721 = vadd.f32 %v1701, %v1712
      %v1722 = vadd.f32 %v1702, %v1712
      %v1723 = vadd.f32 %v1703, %v1712
      %v1724 = vadd.f32 %v1704, %v1712
      %v1725 = vadd.f32 %v1705, %v1712
      %v1726 = vadd.f32 %v1706, %v1712
      %v1727 = vmax.f32 %v1715, 0.0
      %v1728 = vmax.f32 %v1716, 0.0
      %v1729 = vmax.f32 %v1717, 0.0
      %v1730 = vmax.f32 %v1718, 0.0
      %v1731 = vmax.f32 %v1719, 0.0
      %v1732 = vmax.f32 %v1720, 0.0
      %v1733 = vmax.f32 %v1721, 0.0
      %v1734 = vmax.f32 %v1722, 0.0
      %v1735 = vmax.f32 %v1723, 0.0
      %v1736 = vmax.f32 %v1724, 0.0
      %v1737 = vmax.f32 %v1725, 0.0
      %v1738 = vmax.f32 %v1726, 0.0
      %v1739 = vmul.f32 %v1727, %v1005
      %v1740 = vmul.f32 %v1728, %v1009
      %v1741 = vmul.f32 %v1729, %v1013
      %v1742 = vmul.f32 %v1730, %v1017
      %v1743 = vmul.f32 %v1731, %v1021
      %v1744 = vmul.f32 %v1732, %v1025
      %v1745 = vmul.f32 %v1733, %v1005
      %v1746 = vmul.f32 %v1734, %v1009
      %v1747 = vmul.f32 %v1735, %v1013
      %v1748 = vmul.f32 %v1736, %v1017
      %v1749 = vmul.f32 %v1737, %v1021
      %v1750 = vmul.f32 %v1738, %v1025
      %v1763 = vrot.slane %v1739, 6
      %v1764 = vrot.slane %v1745, 5
      %vm1765 = vcmask 1043459
      %v1766 = vsel %vm1765, %v1764, %v1763
      %v1767 = vrot.slane %v1740, 6
      %v1768 = vrot.slane %v1746, 5
      %v1769 = vsel %vm1765, %v1768, %v1767
      %v1770 = vrot.slane %v1741, 6
      %v1771 = vrot.slane %v1747, 5
      %v1772 = vsel %vm1765, %v1771, %v1770
      %v1773 = vrot.slane %v1742, 6
      %v1774 = vrot.slane %v1748, 5
      %v1775 = vsel %vm1765, %v1774, %v1773
      %v1776 = vrot.slane %v1743, 6
      %v1777 = vrot.slane %v1749, 5
      %v1778 = vsel %vm1765, %v1777, %v1776
      %v1779 = vrot.slane %v1744, 6
      %v1780 = vrot.slane %v1750, 5
      %v1781 = vsel %vm1765, %v1780, %v1779
      %1788 = vst [vmem:[%s251] sm:$0xc] %v1766
      %1789 = vst [vmem:[%s251 + $0x8] sm:$0xc] %v1769
      %1790 = vst [vmem:[%s251 + $0x10] sm:$0xc] %v1772
      %1791 = vst [vmem:[%s251 + $0x18] sm:$0xc] %v1775
      %1792 = vst [vmem:[%s251 + $0x20] sm:$0xc] %v1778
      %1793 = vst [vmem:[%s251 + $0x28] sm:$0xc] %v1781
      %1794 = vrot.lane.b32.xlu0 %v257, 99
      %v1795 = vpop.permute.xlu0 %1794
      %1797 = vrot.lane.b32.xlu0 %v252, 99
      %v1798 = vpop.permute.xlu0 %1797
      %1799 = vrot.lane.b32.xlu0 %v263, 99
      %v1800 = vpop.permute.xlu0 %1799
      %1801 = vrot.lane.b32.xlu0 %v253, 99
      %v1802 = vpop.permute.xlu0 %1801
      %1803 = vrot.lane.b32.xlu0 %v264, 99
      %v1804 = vpop.permute.xlu0 %1803
      %1805 = vrot.lane.b32.xlu0 %v254, 99
      %v1806 = vpop.permute.xlu0 %1805
      %vm1807 = vcmask 809984
      %v1808 = vsel %vm1807, %v1798, %v1800
      %v1809 = vsel %vm1807, %v1800, %v1802
      %v1810 = vsel %vm1807, %v1802, %v1804
      %v1811 = vsel %vm1807, %v1804, %v1806
      %v1812 = vsel %vm1807, %v1806, %v1795
      %v1819 = vsel %vm1807, %v1795, %v1798
      %s1820 = scalar_lea.vmem %s1, 36
      %v1821 = vld [vmem:[%s1820] sm:$0x3]
      %v1822 = vlaneseq
      %v1823 = vshrl.u32 %v1822, 7
      %v1824 = vsub.s32 0, %v1823
      %v1825 = vrot.slane %v1821, %v1824
      %1827 = vbcast.lane.b32.xlu0 %v1825, 256
      %v1828 = vpop.permute.xlu0 %1827
      %v1829 = vlaneseq
      %v1830 = vshrl.u32 %v1829, 7
      %v1831 = vsub.s32 1, %v1830
      %v1832 = vrot.slane %v1821, %v1831
      %1834 = vbcast.lane.b32.xlu0 %v1832, 256
      %v1835 = vpop.permute.xlu0 %1834
      %v1836 = vmul.f32 %v1828, %v1819
      %v1837 = vmul.f32 %v1828, %v1808
      %v1838 = vmul.f32 %v1828, %v1809
      %v1839 = vmul.f32 %v1828, %v1810
      %v1840 = vmul.f32 %v1828, %v1811
      %v1841 = vmul.f32 %v1828, %v1812
      %v1842 = vmul.f32 %v1835, %v1819
      %v1843 = vmul.f32 %v1835, %v1808
      %v1844 = vmul.f32 %v1835, %v1809
      %v1845 = vmul.f32 %v1835, %v1810
      %v1846 = vmul.f32 %v1835, %v1811
      %v1847 = vmul.f32 %v1835, %v1812
      %v1848 = vadd.f32 %v1836, 0.0
      %v1849 = vadd.f32 %v1837, 0.0
      %v1850 = vadd.f32 %v1838, 0.0
      %v1851 = vadd.f32 %v1839, 0.0
      %v1852 = vadd.f32 %v1840, 0.0
      %v1853 = vadd.f32 %v1841, 0.0
      %v1854 = vadd.f32 %v1842, 0.0
      %v1855 = vadd.f32 %v1843, 0.0
      %v1856 = vadd.f32 %v1844, 0.0
      %v1857 = vadd.f32 %v1845, 0.0
      %v1858 = vadd.f32 %v1846, 0.0
      %v1859 = vadd.f32 %v1847, 0.0
      %s1860 = scalar_lea.vmem %s1, 38
      %v1861 = vld [vmem:[%s1860] sm:$0x3]
      %v1862 = vlaneseq
      %v1863 = vshrl.u32 %v1862, 7
      %v1864 = vsub.s32 0, %v1863
      %v1865 = vrot.slane %v1861, %v1864
      %1867 = vbcast.lane.b32.xlu0 %v1865, 256
      %v1868 = vpop.permute.xlu0 %1867
      %v1869 = vlaneseq
      %v1870 = vshrl.u32 %v1869, 7
      %v1871 = vsub.s32 1, %v1870
      %v1872 = vrot.slane %v1861, %v1871
      %1874 = vbcast.lane.b32.xlu0 %v1872, 256
      %v1875 = vpop.permute.xlu0 %1874
      %v1876 = vmul.f32 %v1868, %v725
      %v1877 = vmul.f32 %v1868, %v713
      %v1878 = vmul.f32 %v1868, %v714
      %v1879 = vmul.f32 %v1868, %v715
      %v1880 = vmul.f32 %v1868, %v716
      %v1881 = vmul.f32 %v1868, %v717
      %v1882 = vmul.f32 %v1875, %v725
      %v1883 = vmul.f32 %v1875, %v713
      %v1884 = vmul.f32 %v1875, %v714
      %v1885 = vmul.f32 %v1875, %v715
      %v1886 = vmul.f32 %v1875, %v716
      %v1887 = vmul.f32 %v1875, %v717
      %v1888 = vadd.f32 %v1848, %v1876
      %v1889 = vadd.f32 %v1849, %v1877
      %v1890 = vadd.f32 %v1850, %v1878
      %v1891 = vadd.f32 %v1851, %v1879
      %v1892 = vadd.f32 %v1852, %v1880
      %v1893 = vadd.f32 %v1853, %v1881
      %v1894 = vadd.f32 %v1854, %v1882
      %v1895 = vadd.f32 %v1855, %v1883
      %v1896 = vadd.f32 %v1856, %v1884
      %v1897 = vadd.f32 %v1857, %v1885
      %v1898 = vadd.f32 %v1858, %v1886
      %v1899 = vadd.f32 %v1859, %v1887
      %1900 = vrot.lane.b32.xlu0 %v257, 93
      %v1901 = vpop.permute.xlu0 %1900
      %1903 = vrot.lane.b32.xlu0 %v252, 93
      %v1904 = vpop.permute.xlu0 %1903
      %1905 = vrot.lane.b32.xlu0 %v263, 93
      %v1906 = vpop.permute.xlu0 %1905
      %1907 = vrot.lane.b32.xlu0 %v253, 93
      %v1908 = vpop.permute.xlu0 %1907
      %1909 = vrot.lane.b32.xlu0 %v264, 93
      %v1910 = vpop.permute.xlu0 %1909
      %1911 = vrot.lane.b32.xlu0 %v254, 93
      %v1912 = vpop.permute.xlu0 %1911
      %vm1913 = vcmask 760832
      %v1914 = vsel %vm1913, %v1904, %v1906
      %v1915 = vsel %vm1913, %v1906, %v1908
      %v1916 = vsel %vm1913, %v1908, %v1910
      %v1917 = vsel %vm1913, %v1910, %v1912
      %v1918 = vsel %vm1913, %v1912, %v1901
      %v1925 = vsel %vm1913, %v1901, %v1904
      %s1926 = scalar_lea.vmem %s1, 40
      %v1927 = vld [vmem:[%s1926] sm:$0x3]
      %v1928 = vlaneseq
      %v1929 = vshrl.u32 %v1928, 7
      %v1930 = vsub.s32 0, %v1929
      %v1931 = vrot.slane %v1927, %v1930
      %1933 = vbcast.lane.b32.xlu0 %v1931, 256
      %v1934 = vpop.permute.xlu0 %1933
      %v1935 = vlaneseq
      %v1936 = vshrl.u32 %v1935, 7
      %v1937 = vsub.s32 1, %v1936
      %v1938 = vrot.slane %v1927, %v1937
      %1940 = vbcast.lane.b32.xlu0 %v1938, 256
      %v1941 = vpop.permute.xlu0 %1940
      %v1942 = vmul.f32 %v1934, %v1925
      %v1943 = vmul.f32 %v1934, %v1914
      %v1944 = vmul.f32 %v1934, %v1915
      %v1945 = vmul.f32 %v1934, %v1916
      %v1946 = vmul.f32 %v1934, %v1917
      %v1947 = vmul.f32 %v1934, %v1918
      %v1948 = vmul.f32 %v1941, %v1925
      %v1949 = vmul.f32 %v1941, %v1914
      %v1950 = vmul.f32 %v1941, %v1915
      %v1951 = vmul.f32 %v1941, %v1916
      %v1952 = vmul.f32 %v1941, %v1917
      %v1953 = vmul.f32 %v1941, %v1918
      %v1954 = vadd.f32 %v1888, %v1942
      %v1955 = vadd.f32 %v1889, %v1943
      %v1956 = vadd.f32 %v1890, %v1944
      %v1957 = vadd.f32 %v1891, %v1945
      %v1958 = vadd.f32 %v1892, %v1946
      %v1959 = vadd.f32 %v1893, %v1947
      %v1960 = vadd.f32 %v1894, %v1948
      %v1961 = vadd.f32 %v1895, %v1949
      %v1962 = vadd.f32 %v1896, %v1950
      %v1963 = vadd.f32 %v1897, %v1951
      %v1964 = vadd.f32 %v1898, %v1952
      %v1965 = vadd.f32 %v1899, %v1953
      %1966 = vrot.lane.b32.xlu0 %v257, 3
      %v1967 = vpop.permute.xlu0 %1966
      %1969 = vrot.lane.b32.xlu0 %v252, 3
      %v1970 = vpop.permute.xlu0 %1969
      %1971 = vrot.lane.b32.xlu0 %v263, 3
      %v1972 = vpop.permute.xlu0 %1971
      %1973 = vrot.lane.b32.xlu0 %v253, 3
      %v1974 = vpop.permute.xlu0 %1973
      %1975 = vrot.lane.b32.xlu0 %v264, 3
      %v1976 = vpop.permute.xlu0 %1975
      %1977 = vrot.lane.b32.xlu0 %v254, 3
      %v1978 = vpop.permute.xlu0 %1977
      %vm1979 = vcmask 23552
      %v1980 = vsel %vm1979, %v1970, %v1972
      %v1981 = vsel %vm1979, %v1972, %v1974
      %v1982 = vsel %vm1979, %v1974, %v1976
      %v1983 = vsel %vm1979, %v1976, %v1978
      %v1984 = vsel %vm1979, %v1978, %v1967
      %v1991 = vsel %vm1979, %v1967, %v1970
      %s1992 = scalar_lea.vmem %s1, 42
      %v1993 = vld [vmem:[%s1992] sm:$0x3]
      %v1994 = vlaneseq
      %v1995 = vshrl.u32 %v1994, 7
      %v1996 = vsub.s32 0, %v1995
      %v1997 = vrot.slane %v1993, %v1996
      %1999 = vbcast.lane.b32.xlu0 %v1997, 256
      %v2000 = vpop.permute.xlu0 %1999
      %v2001 = vlaneseq
      %v2002 = vshrl.u32 %v2001, 7
      %v2003 = vsub.s32 1, %v2002
      %v2004 = vrot.slane %v1993, %v2003
      %2006 = vbcast.lane.b32.xlu0 %v2004, 256
      %v2007 = vpop.permute.xlu0 %2006
      %v2008 = vmul.f32 %v2000, %v1991
      %v2009 = vmul.f32 %v2000, %v1980
      %v2010 = vmul.f32 %v2000, %v1981
      %v2011 = vmul.f32 %v2000, %v1982
      %v2012 = vmul.f32 %v2000, %v1983
      %v2013 = vmul.f32 %v2000, %v1984
      %v2014 = vmul.f32 %v2007, %v1991
      %v2015 = vmul.f32 %v2007, %v1980
      %v2016 = vmul.f32 %v2007, %v1981
      %v2017 = vmul.f32 %v2007, %v1982
      %v2018 = vmul.f32 %v2007, %v1983
      %v2019 = vmul.f32 %v2007, %v1984
      %v2020 = vadd.f32 %v1954, %v2008
      %v2021 = vadd.f32 %v1955, %v2009
      %v2022 = vadd.f32 %v1956, %v2010
      %v2023 = vadd.f32 %v1957, %v2011
      %v2024 = vadd.f32 %v1958, %v2012
      %v2025 = vadd.f32 %v1959, %v2013
      %v2026 = vadd.f32 %v1960, %v2014
      %v2027 = vadd.f32 %v1961, %v2015
      %v2028 = vadd.f32 %v1962, %v2016
      %v2029 = vadd.f32 %v1963, %v2017
      %v2030 = vadd.f32 %v1964, %v2018
      %v2031 = vadd.f32 %v1965, %v2019
      %s2032 = scalar_lea.vmem %s1, 44
      %v2033 = vld [vmem:[%s2032] sm:$0x3]
      %v2034 = vlaneseq
      %v2035 = vshrl.u32 %v2034, 7
      %v2036 = vsub.s32 0, %v2035
      %v2037 = vrot.slane %v2033, %v2036
      %2039 = vbcast.lane.b32.xlu0 %v2037, 256
      %v2040 = vpop.permute.xlu0 %2039
      %v2041 = vlaneseq
      %v2042 = vshrl.u32 %v2041, 7
      %v2043 = vsub.s32 1, %v2042
      %v2044 = vrot.slane %v2033, %v2043
      %2046 = vbcast.lane.b32.xlu0 %v2044, 256
      %v2047 = vpop.permute.xlu0 %2046
      %v2048 = vmul.f32 %v2040, %v252
      %v2049 = vmul.f32 %v2040, %v263
      %v2050 = vmul.f32 %v2040, %v253
      %v2051 = vmul.f32 %v2040, %v264
      %v2052 = vmul.f32 %v2040, %v254
      %v2053 = vmul.f32 %v2040, %v257
      %v2054 = vmul.f32 %v2047, %v252
      %v2055 = vmul.f32 %v2047, %v263
      %v2056 = vmul.f32 %v2047, %v253
      %v2057 = vmul.f32 %v2047, %v264
      %v2058 = vmul.f32 %v2047, %v254
      %v2059 = vmul.f32 %v2047, %v257
      %v2060 = vadd.f32 %v2020, %v2048
      %v2061 = vadd.f32 %v2021, %v2049
      %v2062 = vadd.f32 %v2022, %v2050
      %v2063 = vadd.f32 %v2023, %v2051
      %v2064 = vadd.f32 %v2024, %v2052
      %v2065 = vadd.f32 %v2025, %v2053
      %v2066 = vadd.f32 %v2026, %v2054
      %v2067 = vadd.f32 %v2027, %v2055
      %v2068 = vadd.f32 %v2028, %v2056
      %v2069 = vadd.f32 %v2029, %v2057
      %v2070 = vadd.f32 %v2030, %v2058
      %v2071 = vadd.f32 %v2031, %v2059
      %2072 = vrot.lane.b32.xlu0 %v252, 125
      %v2073 = vpop.permute.xlu0 %2072
      %2074 = vrot.lane.b32.xlu0 %v263, 125
      %v2075 = vpop.permute.xlu0 %2074
      %2076 = vrot.lane.b32.xlu0 %v253, 125
      %v2077 = vpop.permute.xlu0 %2076
      %2078 = vrot.lane.b32.xlu0 %v264, 125
      %v2079 = vpop.permute.xlu0 %2078
      %2080 = vrot.lane.b32.xlu0 %v254, 125
      %v2081 = vpop.permute.xlu0 %2080
      %2082 = vrot.lane.b32.xlu0 %v257, 125
      %v2083 = vpop.permute.xlu0 %2082
      %vm2084 = vcmask 1022976
      %v2085 = vsel %vm2084, %v2073, %v2075
      %v2086 = vsel %vm2084, %v2075, %v2077
      %v2087 = vsel %vm2084, %v2077, %v2079
      %v2088 = vsel %vm2084, %v2079, %v2081
      %v2089 = vsel %vm2084, %v2081, %v2083
      %v2097 = vsel %vm2084, %v2083, %v2073
      %s2098 = scalar_lea.vmem %s1, 46
      %v2099 = vld [vmem:[%s2098] sm:$0x3]
      %v2100 = vlaneseq
      %v2101 = vshrl.u32 %v2100, 7
      %v2102 = vsub.s32 0, %v2101
      %v2103 = vrot.slane %v2099, %v2102
      %2105 = vbcast.lane.b32.xlu0 %v2103, 256
      %v2106 = vpop.permute.xlu0 %2105
      %v2107 = vlaneseq
      %v2108 = vshrl.u32 %v2107, 7
      %v2109 = vsub.s32 1, %v2108
      %v2110 = vrot.slane %v2099, %v2109
      %2112 = vbcast.lane.b32.xlu0 %v2110, 256
      %v2113 = vpop.permute.xlu0 %2112
      %v2114 = vmul.f32 %v2106, %v2085
      %v2115 = vmul.f32 %v2106, %v2086
      %v2116 = vmul.f32 %v2106, %v2087
      %v2117 = vmul.f32 %v2106, %v2088
      %v2118 = vmul.f32 %v2106, %v2089
      %v2119 = vmul.f32 %v2106, %v2097
      %v2120 = vmul.f32 %v2113, %v2085
      %v2121 = vmul.f32 %v2113, %v2086
      %v2122 = vmul.f32 %v2113, %v2087
      %v2123 = vmul.f32 %v2113, %v2088
      %v2124 = vmul.f32 %v2113, %v2089
      %v2125 = vmul.f32 %v2113, %v2097
      %v2126 = vadd.f32 %v2060, %v2114
      %v2127 = vadd.f32 %v2061, %v2115
      %v2128 = vadd.f32 %v2062, %v2116
      %v2129 = vadd.f32 %v2063, %v2117
      %v2130 = vadd.f32 %v2064, %v2118
      %v2131 = vadd.f32 %v2065, %v2119
      %v2132 = vadd.f32 %v2066, %v2120
      %v2133 = vadd.f32 %v2067, %v2121
      %v2134 = vadd.f32 %v2068, %v2122
      %v2135 = vadd.f32 %v2069, %v2123
      %v2136 = vadd.f32 %v2070, %v2124
      %v2137 = vadd.f32 %v2071, %v2125
      %2138 = vrot.lane.b32.xlu0 %v252, 35
      %v2139 = vpop.permute.xlu0 %2138
      %2140 = vrot.lane.b32.xlu0 %v263, 35
      %v2141 = vpop.permute.xlu0 %2140
      %2142 = vrot.lane.b32.xlu0 %v253, 35
      %v2143 = vpop.permute.xlu0 %2142
      %2144 = vrot.lane.b32.xlu0 %v264, 35
      %v2145 = vpop.permute.xlu0 %2144
      %2146 = vrot.lane.b32.xlu0 %v254, 35
      %v2147 = vpop.permute.xlu0 %2146
      %2148 = vrot.lane.b32.xlu0 %v257, 35
      %v2149 = vpop.permute.xlu0 %2148
      %vm2150 = vcmask 285696
      %v2151 = vsel %vm2150, %v2139, %v2141
      %v2152 = vsel %vm2150, %v2141, %v2143
      %v2153 = vsel %vm2150, %v2143, %v2145
      %v2154 = vsel %vm2150, %v2145, %v2147
      %v2155 = vsel %vm2150, %v2147, %v2149
      %v2163 = vsel %vm2150, %v2149, %v2139
      %s2164 = scalar_lea.vmem %s1, 48
      %v2165 = vld [vmem:[%s2164] sm:$0x3]
      %v2166 = vlaneseq
      %v2167 = vshrl.u32 %v2166, 7
      %v2168 = vsub.s32 0, %v2167
      %v2169 = vrot.slane %v2165, %v2168
      %2171 = vbcast.lane.b32.xlu0 %v2169, 256
      %v2172 = vpop.permute.xlu0 %2171
      %v2173 = vlaneseq
      %v2174 = vshrl.u32 %v2173, 7
      %v2175 = vsub.s32 1, %v2174
      %v2176 = vrot.slane %v2165, %v2175
      %2178 = vbcast.lane.b32.xlu0 %v2176, 256
      %v2179 = vpop.permute.xlu0 %2178
      %v2180 = vmul.f32 %v2172, %v2151
      %v2181 = vmul.f32 %v2172, %v2152
      %v2182 = vmul.f32 %v2172, %v2153
      %v2183 = vmul.f32 %v2172, %v2154
      %v2184 = vmul.f32 %v2172, %v2155
      %v2185 = vmul.f32 %v2172, %v2163
      %v2186 = vmul.f32 %v2179, %v2151
      %v2187 = vmul.f32 %v2179, %v2152
      %v2188 = vmul.f32 %v2179, %v2153
      %v2189 = vmul.f32 %v2179, %v2154
      %v2190 = vmul.f32 %v2179, %v2155
      %v2191 = vmul.f32 %v2179, %v2163
      %v2192 = vadd.f32 %v2126, %v2180
      %v2193 = vadd.f32 %v2127, %v2181
      %v2194 = vadd.f32 %v2128, %v2182
      %v2195 = vadd.f32 %v2129, %v2183
      %v2196 = vadd.f32 %v2130, %v2184
      %v2197 = vadd.f32 %v2131, %v2185
      %v2198 = vadd.f32 %v2132, %v2186
      %v2199 = vadd.f32 %v2133, %v2187
      %v2200 = vadd.f32 %v2134, %v2188
      %v2201 = vadd.f32 %v2135, %v2189
      %v2202 = vadd.f32 %v2136, %v2190
      %v2203 = vadd.f32 %v2137, %v2191
      %s2204 = scalar_lea.vmem %s1, 50
      %v2205 = vld [vmem:[%s2204] sm:$0x3]
      %v2206 = vlaneseq
      %v2207 = vshrl.u32 %v2206, 7
      %v2208 = vsub.s32 0, %v2207
      %v2209 = vrot.slane %v2205, %v2208
      %2211 = vbcast.lane.b32.xlu0 %v2209, 256
      %v2212 = vpop.permute.xlu0 %2211
      %v2213 = vlaneseq
      %v2214 = vshrl.u32 %v2213, 7
      %v2215 = vsub.s32 1, %v2214
      %v2216 = vrot.slane %v2205, %v2215
      %2218 = vbcast.lane.b32.xlu0 %v2216, 256
      %v2219 = vpop.permute.xlu0 %2218
      %v2220 = vmul.f32 %v2212, %v341
      %v2221 = vmul.f32 %v2212, %v342
      %v2222 = vmul.f32 %v2212, %v343
      %v2223 = vmul.f32 %v2212, %v344
      %v2224 = vmul.f32 %v2212, %v345
      %v2225 = vmul.f32 %v2212, %v352
      %v2226 = vmul.f32 %v2219, %v341
      %v2227 = vmul.f32 %v2219, %v342
      %v2228 = vmul.f32 %v2219, %v343
      %v2229 = vmul.f32 %v2219, %v344
      %v2230 = vmul.f32 %v2219, %v345
      %v2231 = vmul.f32 %v2219, %v352
      %v2232 = vadd.f32 %v2192, %v2220
      %v2233 = vadd.f32 %v2193, %v2221
      %v2234 = vadd.f32 %v2194, %v2222
      %v2235 = vadd.f32 %v2195, %v2223
      %v2236 = vadd.f32 %v2196, %v2224
      %v2237 = vadd.f32 %v2197, %v2225
      %v2238 = vadd.f32 %v2198, %v2226
      %v2239 = vadd.f32 %v2199, %v2227
      %v2240 = vadd.f32 %v2200, %v2228
      %v2241 = vadd.f32 %v2201, %v2229
      %v2242 = vadd.f32 %v2202, %v2230
      %v2243 = vadd.f32 %v2203, %v2231
      %2244 = vrot.lane.b32.xlu0 %v252, 29
      %v2245 = vpop.permute.xlu0 %2244
      %2246 = vrot.lane.b32.xlu0 %v263, 29
      %v2247 = vpop.permute.xlu0 %2246
      %2248 = vrot.lane.b32.xlu0 %v253, 29
      %v2249 = vpop.permute.xlu0 %2248
      %2250 = vrot.lane.b32.xlu0 %v264, 29
      %v2251 = vpop.permute.xlu0 %2250
      %2252 = vrot.lane.b32.xlu0 %v254, 29
      %v2253 = vpop.permute.xlu0 %2252
      %2254 = vrot.lane.b32.xlu0 %v257, 29
      %v2255 = vpop.permute.xlu0 %2254
      %vm2256 = vcmask 236544
      %v2257 = vsel %vm2256, %v2245, %v2247
      %v2258 = vsel %vm2256, %v2247, %v2249
      %v2259 = vsel %vm2256, %v2249, %v2251
      %v2260 = vsel %vm2256, %v2251, %v2253
      %v2261 = vsel %vm2256, %v2253, %v2255
      %v2269 = vsel %vm2256, %v2255, %v2245
      %s2270 = scalar_lea.vmem %s1, 52
      %v2271 = vld [vmem:[%s2270] sm:$0x3]
      %v2272 = vlaneseq
      %v2273 = vshrl.u32 %v2272, 7
      %v2274 = vsub.s32 0, %v2273
      %v2275 = vrot.slane %v2271, %v2274
      %2277 = vbcast.lane.b32.xlu0 %v2275, 256
      %v2278 = vpop.permute.xlu0 %2277
      %v2279 = vlaneseq
      %v2280 = vshrl.u32 %v2279, 7
      %v2281 = vsub.s32 1, %v2280
      %v2282 = vrot.slane %v2271, %v2281
      %2284 = vbcast.lane.b32.xlu0 %v2282, 256
      %v2285 = vpop.permute.xlu0 %2284
      %v2286 = vmul.f32 %v2278, %v2257
      %v2287 = vmul.f32 %v2278, %v2258
      %v2288 = vmul.f32 %v2278, %v2259
      %v2289 = vmul.f32 %v2278, %v2260
      %v2290 = vmul.f32 %v2278, %v2261
      %v2291 = vmul.f32 %v2278, %v2269
      %v2292 = vmul.f32 %v2285, %v2257
      %v2293 = vmul.f32 %v2285, %v2258
      %v2294 = vmul.f32 %v2285, %v2259
      %v2295 = vmul.f32 %v2285, %v2260
      %v2296 = vmul.f32 %v2285, %v2261
      %v2297 = vmul.f32 %v2285, %v2269
      %v2298 = vadd.f32 %v2232, %v2286
      %v2299 = vadd.f32 %v2233, %v2287
      %v2300 = vadd.f32 %v2234, %v2288
      %v2301 = vadd.f32 %v2235, %v2289
      %v2302 = vadd.f32 %v2236, %v2290
      %v2303 = vadd.f32 %v2237, %v2291
      %v2304 = vadd.f32 %v2238, %v2292
      %v2305 = vadd.f32 %v2239, %v2293
      %v2306 = vadd.f32 %v2240, %v2294
      %v2307 = vadd.f32 %v2241, %v2295
      %v2308 = vadd.f32 %v2242, %v2296
      %v2309 = vadd.f32 %v2243, %v2297
      %v2310 = vsel %vm832, %v2298, 0.0
      %v2311 = vrot.slane %v2310, 4
      %v2312 = vadd.f32 %v2310, %v2311
      %v2313 = vrot.slane %v2312, 2
      %v2314 = vadd.f32 %v2312, %v2313
      %v2315 = vrot.slane %v2314, 1
      %v2316 = vadd.f32 %v2314, %v2315
      %v2317 = vsel %vm832, %v2299, 0.0
      %v2318 = vrot.slane %v2317, 4
      %v2319 = vadd.f32 %v2317, %v2318
      %v2320 = vrot.slane %v2319, 2
      %v2321 = vadd.f32 %v2319, %v2320
      %v2322 = vrot.slane %v2321, 1
      %v2323 = vadd.f32 %v2321, %v2322
      %v2324 = vsel %vm832, %v2300, 0.0
      %v2325 = vrot.slane %v2324, 4
      %v2326 = vadd.f32 %v2324, %v2325
      %v2327 = vrot.slane %v2326, 2
      %v2328 = vadd.f32 %v2326, %v2327
      %v2329 = vrot.slane %v2328, 1
      %v2330 = vadd.f32 %v2328, %v2329
      %v2331 = vsel %vm832, %v2301, 0.0
      %v2332 = vrot.slane %v2331, 4
      %v2333 = vadd.f32 %v2331, %v2332
      %v2334 = vrot.slane %v2333, 2
      %v2335 = vadd.f32 %v2333, %v2334
      %v2336 = vrot.slane %v2335, 1
      %v2337 = vadd.f32 %v2335, %v2336
      %v2338 = vsel %vm832, %v2302, 0.0
      %v2339 = vrot.slane %v2338, 4
      %v2340 = vadd.f32 %v2338, %v2339
      %v2341 = vrot.slane %v2340, 2
      %v2342 = vadd.f32 %v2340, %v2341
      %v2343 = vrot.slane %v2342, 1
      %v2344 = vadd.f32 %v2342, %v2343
      %v2345 = vsel %vm832, %v2303, 0.0
      %v2346 = vrot.slane %v2345, 4
      %v2347 = vadd.f32 %v2345, %v2346
      %v2348 = vrot.slane %v2347, 2
      %v2349 = vadd.f32 %v2347, %v2348
      %v2350 = vrot.slane %v2349, 1
      %v2351 = vadd.f32 %v2349, %v2350
      %v2352 = vsel %vm832, %v2304, 0.0
      %v2353 = vrot.slane %v2352, 4
      %v2354 = vadd.f32 %v2352, %v2353
      %v2355 = vrot.slane %v2354, 2
      %v2356 = vadd.f32 %v2354, %v2355
      %v2357 = vrot.slane %v2356, 1
      %v2358 = vadd.f32 %v2356, %v2357
      %v2359 = vsel %vm832, %v2305, 0.0
      %v2360 = vrot.slane %v2359, 4
      %v2361 = vadd.f32 %v2359, %v2360
      %v2362 = vrot.slane %v2361, 2
      %v2363 = vadd.f32 %v2361, %v2362
      %v2364 = vrot.slane %v2363, 1
      %v2365 = vadd.f32 %v2363, %v2364
      %v2366 = vsel %vm832, %v2306, 0.0
      %v2367 = vrot.slane %v2366, 4
      %v2368 = vadd.f32 %v2366, %v2367
      %v2369 = vrot.slane %v2368, 2
      %v2370 = vadd.f32 %v2368, %v2369
      %v2371 = vrot.slane %v2370, 1
      %v2372 = vadd.f32 %v2370, %v2371
      %v2373 = vsel %vm832, %v2307, 0.0
      %v2374 = vrot.slane %v2373, 4
      %v2375 = vadd.f32 %v2373, %v2374
      %v2376 = vrot.slane %v2375, 2
      %v2377 = vadd.f32 %v2375, %v2376
      %v2378 = vrot.slane %v2377, 1
      %v2379 = vadd.f32 %v2377, %v2378
      %v2380 = vsel %vm832, %v2308, 0.0
      %v2381 = vrot.slane %v2380, 4
      %v2382 = vadd.f32 %v2380, %v2381
      %v2383 = vrot.slane %v2382, 2
      %v2384 = vadd.f32 %v2382, %v2383
      %v2385 = vrot.slane %v2384, 1
      %v2386 = vadd.f32 %v2384, %v2385
      %v2387 = vsel %vm832, %v2309, 0.0
      %v2388 = vrot.slane %v2387, 4
      %v2389 = vadd.f32 %v2387, %v2388
      %v2390 = vrot.slane %v2389, 2
      %v2391 = vadd.f32 %v2389, %v2390
      %v2392 = vrot.slane %v2391, 1
      %v2393 = vadd.f32 %v2391, %v2392
      %v2394 = vld [vmem:[%s2 + $0x4] sm:$0x3]
      %2396 = vset.pattern.permute.xlu0 0
      %2397 = vperm.xlu0 %2396, %v2394
      %v2398 = vpop.permute.xlu0 %2397
      %v2399 = vrot.slane %v2398, 1
      %v2402 = vadd.f32 %v2316, %v2398
      %v2403 = vadd.f32 %v2323, %v2398
      %v2404 = vadd.f32 %v2330, %v2398
      %v2405 = vadd.f32 %v2337, %v2398
      %v2406 = vadd.f32 %v2344, %v2398
      %v2407 = vadd.f32 %v2351, %v2398
      %v2408 = vadd.f32 %v2358, %v2399
      %v2409 = vadd.f32 %v2365, %v2399
      %v2410 = vadd.f32 %v2372, %v2399
      %v2411 = vadd.f32 %v2379, %v2399
      %v2412 = vadd.f32 %v2386, %v2399
      %v2413 = vadd.f32 %v2393, %v2399
      %v2414 = vmax.f32 %v2402, 0.0
      %v2415 = vmax.f32 %v2403, 0.0
      %v2416 = vmax.f32 %v2404, 0.0
      %v2417 = vmax.f32 %v2405, 0.0
      %v2418 = vmax.f32 %v2406, 0.0
      %v2419 = vmax.f32 %v2407, 0.0
      %v2420 = vmax.f32 %v2408, 0.0
      %v2421 = vmax.f32 %v2409, 0.0
      %v2422 = vmax.f32 %v2410, 0.0
      %v2423 = vmax.f32 %v2411, 0.0
      %v2424 = vmax.f32 %v2412, 0.0
      %v2425 = vmax.f32 %v2413, 0.0
      %v2426 = vld [vmem:[%s3 + $0x4] sm:$0x3]
      %2428 = vset.pattern.permute.xlu0 0
      %2429 = vperm.xlu0 %2428, %v2426
      %v2430 = vpop.permute.xlu0 %2429
      %v2431 = vrot.slane %v2430, 1
      %v2434 = vmul.f32 %v2414, %v2430
      %v2435 = vmul.f32 %v2415, %v2430
      %v2436 = vmul.f32 %v2416, %v2430
      %v2437 = vmul.f32 %v2417, %v2430
      %v2438 = vmul.f32 %v2418, %v2430
      %v2439 = vmul.f32 %v2419, %v2430
      %v2440 = vmul.f32 %v2420, %v2431
      %v2441 = vmul.f32 %v2421, %v2431
      %v2442 = vmul.f32 %v2422, %v2431
      %v2443 = vmul.f32 %v2423, %v2431
      %v2444 = vmul.f32 %v2424, %v2431
      %v2445 = vmul.f32 %v2425, %v2431
      %v2446 = vld [vmem:[%s4 + $0x4] sm:$0x3]
      %2448 = vset.pattern.permute.xlu0 0
      %2449 = vperm.xlu0 %2448, %v2446
      %v2450 = vpop.permute.xlu0 %2449
      %v2451 = vrot.slane %v2450, 1
      %v2454 = vadd.f32 %v2434, %v2450
      %v2455 = vadd.f32 %v2435, %v2450
      %v2456 = vadd.f32 %v2436, %v2450
      %v2457 = vadd.f32 %v2437, %v2450
      %v2458 = vadd.f32 %v2438, %v2450
      %v2459 = vadd.f32 %v2439, %v2450
      %v2460 = vadd.f32 %v2440, %v2451
      %v2461 = vadd.f32 %v2441, %v2451
      %v2462 = vadd.f32 %v2442, %v2451
      %v2463 = vadd.f32 %v2443, %v2451
      %v2464 = vadd.f32 %v2444, %v2451
      %v2465 = vadd.f32 %v2445, %v2451
      %v2466 = vmax.f32 %v2454, 0.0
      %v2467 = vmax.f32 %v2455, 0.0
      %v2468 = vmax.f32 %v2456, 0.0
      %v2469 = vmax.f32 %v2457, 0.0
      %v2470 = vmax.f32 %v2458, 0.0
      %v2471 = vmax.f32 %v2459, 0.0
      %v2472 = vmax.f32 %v2460, 0.0
      %v2473 = vmax.f32 %v2461, 0.0
      %v2474 = vmax.f32 %v2462, 0.0
      %v2475 = vmax.f32 %v2463, 0.0
      %v2476 = vmax.f32 %v2464, 0.0
      %v2477 = vmax.f32 %v2465, 0.0
      %v2478 = vmul.f32 %v2466, %v1005
      %v2479 = vmul.f32 %v2467, %v1009
      %v2480 = vmul.f32 %v2468, %v1013
      %v2481 = vmul.f32 %v2469, %v1017
      %v2482 = vmul.f32 %v2470, %v1021
      %v2483 = vmul.f32 %v2471, %v1025
      %v2484 = vmul.f32 %v2472, %v1005
      %v2485 = vmul.f32 %v2473, %v1009
      %v2486 = vmul.f32 %v2474, %v1013
      %v2487 = vmul.f32 %v2475, %v1017
      %v2488 = vmul.f32 %v2476, %v1021
      %v2489 = vmul.f32 %v2477, %v1025
      %v2502 = vrot.slane %v2478, 4
      %v2503 = vrot.slane %v2484, 3
      %vm2504 = vcmask 1045509
      %v2505 = vsel %vm2504, %v2503, %v2502
      %v2506 = vrot.slane %v2479, 4
      %v2507 = vrot.slane %v2485, 3
      %v2508 = vsel %vm2504, %v2507, %v2506
      %v2509 = vrot.slane %v2480, 4
      %v2510 = vrot.slane %v2486, 3
      %v2511 = vsel %vm2504, %v2510, %v2509
      %v2512 = vrot.slane %v2481, 4
      %v2513 = vrot.slane %v2487, 3
      %v2514 = vsel %vm2504, %v2513, %v2512
      %v2515 = vrot.slane %v2482, 4
      %v2516 = vrot.slane %v2488, 3
      %v2517 = vsel %vm2504, %v2516, %v2515
      %v2518 = vrot.slane %v2483, 4
      %v2519 = vrot.slane %v2489, 3
      %v2520 = vsel %vm2504, %v2519, %v2518
      %2527 = vst [vmem:[%s251] sm:$0x30] %v2505
      %2528 = vst [vmem:[%s251 + $0x8] sm:$0x30] %v2508
      %2529 = vst [vmem:[%s251 + $0x10] sm:$0x30] %v2511
      %2530 = vst [vmem:[%s251 + $0x18] sm:$0x30] %v2514
      %2531 = vst [vmem:[%s251 + $0x20] sm:$0x30] %v2517
      %2532 = vst [vmem:[%s251 + $0x28] sm:$0x30] %v2520
      %2533 = vrot.lane.b32.xlu0 %v254, 4
      %v2534 = vpop.permute.xlu0 %2533
      %2535 = vrot.lane.b32.xlu0 %v257, 4
      %v2536 = vpop.permute.xlu0 %2535
      %vm2537 = vcmask 31744
      %v2538 = vsel %vm2537, %v2534, %v2536
      %2541 = vrot.lane.b32.xlu0 %v252, 4
      %v2542 = vpop.permute.xlu0 %2541
      %2543 = vrot.lane.b32.xlu0 %v263, 4
      %v2544 = vpop.permute.xlu0 %2543
      %2545 = vrot.lane.b32.xlu0 %v253, 4
      %v2546 = vpop.permute.xlu0 %2545
      %2547 = vrot.lane.b32.xlu0 %v264, 4
      %v2548 = vpop.permute.xlu0 %2547
      %v2549 = vsel %vm2537, %v2542, %v2544
      %v2550 = vsel %vm2537, %v2544, %v2546
      %v2551 = vsel %vm2537, %v2546, %v2548
      %v2552 = vsel %vm2537, %v2548, %v2534
      %v2558 = vsel %vm2537, %v2536, %v2542
      %s2559 = scalar_lea.vmem %s1, 54
      %v2560 = vld [vmem:[%s2559] sm:$0x3]
      %v2561 = vlaneseq
      %v2562 = vshrl.u32 %v2561, 7
      %v2563 = vsub.s32 0, %v2562
      %v2564 = vrot.slane %v2560, %v2563
      %2566 = vbcast.lane.b32.xlu0 %v2564, 256
      %v2567 = vpop.permute.xlu0 %2566
      %v2568 = vlaneseq
      %v2569 = vshrl.u32 %v2568, 7
      %v2570 = vsub.s32 1, %v2569
      %v2571 = vrot.slane %v2560, %v2570
      %2573 = vbcast.lane.b32.xlu0 %v2571, 256
      %v2574 = vpop.permute.xlu0 %2573
      %v2575 = vmul.f32 %v2567, %v2538
      %v2576 = vmul.f32 %v2567, %v2558
      %v2577 = vmul.f32 %v2567, %v2549
      %v2578 = vmul.f32 %v2567, %v2550
      %v2579 = vmul.f32 %v2567, %v2551
      %v2580 = vmul.f32 %v2567, %v2552
      %v2581 = vmul.f32 %v2574, %v2538
      %v2582 = vmul.f32 %v2574, %v2558
      %v2583 = vmul.f32 %v2574, %v2549
      %v2584 = vmul.f32 %v2574, %v2550
      %v2585 = vmul.f32 %v2574, %v2551
      %v2586 = vmul.f32 %v2574, %v2552
      %v2587 = vadd.f32 %v2575, 0.0
      %v2588 = vadd.f32 %v2576, 0.0
      %v2589 = vadd.f32 %v2577, 0.0
      %v2590 = vadd.f32 %v2578, 0.0
      %v2591 = vadd.f32 %v2579, 0.0
      %v2592 = vadd.f32 %v2580, 0.0
      %v2593 = vadd.f32 %v2581, 0.0
      %v2594 = vadd.f32 %v2582, 0.0
      %v2595 = vadd.f32 %v2583, 0.0
      %v2596 = vadd.f32 %v2584, 0.0
      %v2597 = vadd.f32 %v2585, 0.0
      %v2598 = vadd.f32 %v2586, 0.0
      %s2599 = scalar_lea.vmem %s1, 56
      %v2600 = vld [vmem:[%s2599] sm:$0x3]
      %v2601 = vlaneseq
      %v2602 = vshrl.u32 %v2601, 7
      %v2603 = vsub.s32 0, %v2602
      %v2604 = vrot.slane %v2600, %v2603
      %2606 = vbcast.lane.b32.xlu0 %v2604, 256
      %v2607 = vpop.permute.xlu0 %2606
      %v2608 = vlaneseq
      %v2609 = vshrl.u32 %v2608, 7
      %v2610 = vsub.s32 1, %v2609
      %v2611 = vrot.slane %v2600, %v2610
      %2613 = vbcast.lane.b32.xlu0 %v2611, 256
      %v2614 = vpop.permute.xlu0 %2613
      %v2615 = vmul.f32 %v2607, %v257
      %v2616 = vmul.f32 %v2607, %v252
      %v2617 = vmul.f32 %v2607, %v263
      %v2618 = vmul.f32 %v2607, %v253
      %v2619 = vmul.f32 %v2607, %v264
      %v2620 = vmul.f32 %v2607, %v254
      %v2621 = vmul.f32 %v2614, %v257
      %v2622 = vmul.f32 %v2614, %v252
      %v2623 = vmul.f32 %v2614, %v263
      %v2624 = vmul.f32 %v2614, %v253
      %v2625 = vmul.f32 %v2614, %v264
      %v2626 = vmul.f32 %v2614, %v254
      %v2627 = vadd.f32 %v2587, %v2615
      %v2628 = vadd.f32 %v2588, %v2616
      %v2629 = vadd.f32 %v2589, %v2617
      %v2630 = vadd.f32 %v2590, %v2618
      %v2631 = vadd.f32 %v2591, %v2619
      %v2632 = vadd.f32 %v2592, %v2620
      %v2633 = vadd.f32 %v2593, %v2621
      %v2634 = vadd.f32 %v2594, %v2622
      %v2635 = vadd.f32 %v2595, %v2623
      %v2636 = vadd.f32 %v2596, %v2624
      %v2637 = vadd.f32 %v2597, %v2625
      %v2638 = vadd.f32 %v2598, %v2626
      %2639 = vrot.lane.b32.xlu0 %v257, 124
      %v2640 = vpop.permute.xlu0 %2639
      %2642 = vrot.lane.b32.xlu0 %v252, 124
      %v2643 = vpop.permute.xlu0 %2642
      %2644 = vrot.lane.b32.xlu0 %v263, 124
      %v2645 = vpop.permute.xlu0 %2644
      %2646 = vrot.lane.b32.xlu0 %v253, 124
      %v2647 = vpop.permute.xlu0 %2646
      %2648 = vrot.lane.b32.xlu0 %v264, 124
      %v2649 = vpop.permute.xlu0 %2648
      %2650 = vrot.lane.b32.xlu0 %v254, 124
      %v2651 = vpop.permute.xlu0 %2650
      %vm2652 = vcmask 1014784
      %v2653 = vsel %vm2652, %v2643, %v2645
      %v2654 = vsel %vm2652, %v2645, %v2647
      %v2655 = vsel %vm2652, %v2647, %v2649
      %v2656 = vsel %vm2652, %v2649, %v2651
      %v2657 = vsel %vm2652, %v2651, %v2640
      %v2664 = vsel %vm2652, %v2640, %v2643
      %s2665 = scalar_lea.vmem %s1, 58
      %v2666 = vld [vmem:[%s2665] sm:$0x3]
      %v2667 = vlaneseq
      %v2668 = vshrl.u32 %v2667, 7
      %v2669 = vsub.s32 0, %v2668
      %v2670 = vrot.slane %v2666, %v2669
      %2672 = vbcast.lane.b32.xlu0 %v2670, 256
      %v2673 = vpop.permute.xlu0 %2672
      %v2674 = vlaneseq
      %v2675 = vshrl.u32 %v2674, 7
      %v2676 = vsub.s32 1, %v2675
      %v2677 = vrot.slane %v2666, %v2676
      %2679 = vbcast.lane.b32.xlu0 %v2677, 256
      %v2680 = vpop.permute.xlu0 %2679
      %v2681 = vmul.f32 %v2673, %v2664
      %v2682 = vmul.f32 %v2673, %v2653
      %v2683 = vmul.f32 %v2673, %v2654
      %v2684 = vmul.f32 %v2673, %v2655
      %v2685 = vmul.f32 %v2673, %v2656
      %v2686 = vmul.f32 %v2673, %v2657
      %v2687 = vmul.f32 %v2680, %v2664
      %v2688 = vmul.f32 %v2680, %v2653
      %v2689 = vmul.f32 %v2680, %v2654
      %v2690 = vmul.f32 %v2680, %v2655
      %v2691 = vmul.f32 %v2680, %v2656
      %v2692 = vmul.f32 %v2680, %v2657
      %v2693 = vadd.f32 %v2627, %v2681
      %v2694 = vadd.f32 %v2628, %v2682
      %v2695 = vadd.f32 %v2629, %v2683
      %v2696 = vadd.f32 %v2630, %v2684
      %v2697 = vadd.f32 %v2631, %v2685
      %v2698 = vadd.f32 %v2632, %v2686
      %v2699 = vadd.f32 %v2633, %v2687
      %v2700 = vadd.f32 %v2634, %v2688
      %v2701 = vadd.f32 %v2635, %v2689
      %v2702 = vadd.f32 %v2636, %v2690
      %v2703 = vadd.f32 %v2637, %v2691
      %v2704 = vadd.f32 %v2638, %v2692
      %s2705 = scalar_lea.vmem %s1, 60
      %v2706 = vld [vmem:[%s2705] sm:$0x3]
      %v2707 = vlaneseq
      %v2708 = vshrl.u32 %v2707, 7
      %v2709 = vsub.s32 0, %v2708
      %v2710 = vrot.slane %v2706, %v2709
      %2712 = vbcast.lane.b32.xlu0 %v2710, 256
      %v2713 = vpop.permute.xlu0 %2712
      %v2714 = vlaneseq
      %v2715 = vshrl.u32 %v2714, 7
      %v2716 = vsub.s32 1, %v2715
      %v2717 = vrot.slane %v2706, %v2716
      %2719 = vbcast.lane.b32.xlu0 %v2717, 256
      %v2720 = vpop.permute.xlu0 %2719
      %v2721 = vmul.f32 %v2713, %v2558
      %v2722 = vmul.f32 %v2713, %v2549
      %v2723 = vmul.f32 %v2713, %v2550
      %v2724 = vmul.f32 %v2713, %v2551
      %v2725 = vmul.f32 %v2713, %v2552
      %v2726 = vmul.f32 %v2713, %v2538
      %v2727 = vmul.f32 %v2720, %v2558
      %v2728 = vmul.f32 %v2720, %v2549
      %v2729 = vmul.f32 %v2720, %v2550
      %v2730 = vmul.f32 %v2720, %v2551
      %v2731 = vmul.f32 %v2720, %v2552
      %v2732 = vmul.f32 %v2720, %v2538
      %v2733 = vadd.f32 %v2693, %v2721
      %v2734 = vadd.f32 %v2694, %v2722
      %v2735 = vadd.f32 %v2695, %v2723
      %v2736 = vadd.f32 %v2696, %v2724
      %v2737 = vadd.f32 %v2697, %v2725
      %v2738 = vadd.f32 %v2698, %v2726
      %v2739 = vadd.f32 %v2699, %v2727
      %v2740 = vadd.f32 %v2700, %v2728
      %v2741 = vadd.f32 %v2701, %v2729
      %v2742 = vadd.f32 %v2702, %v2730
      %v2743 = vadd.f32 %v2703, %v2731
      %v2744 = vadd.f32 %v2704, %v2732
      %s2745 = scalar_lea.vmem %s1, 62
      %v2746 = vld [vmem:[%s2745] sm:$0x3]
      %v2747 = vlaneseq
      %v2748 = vshrl.u32 %v2747, 7
      %v2749 = vsub.s32 0, %v2748
      %v2750 = vrot.slane %v2746, %v2749
      %2752 = vbcast.lane.b32.xlu0 %v2750, 256
      %v2753 = vpop.permute.xlu0 %2752
      %v2754 = vlaneseq
      %v2755 = vshrl.u32 %v2754, 7
      %v2756 = vsub.s32 1, %v2755
      %v2757 = vrot.slane %v2746, %v2756
      %2759 = vbcast.lane.b32.xlu0 %v2757, 256
      %v2760 = vpop.permute.xlu0 %2759
      %v2761 = vmul.f32 %v2753, %v252
      %v2762 = vmul.f32 %v2753, %v263
      %v2763 = vmul.f32 %v2753, %v253
      %v2764 = vmul.f32 %v2753, %v264
      %v2765 = vmul.f32 %v2753, %v254
      %v2766 = vmul.f32 %v2753, %v257
      %v2767 = vmul.f32 %v2760, %v252
      %v2768 = vmul.f32 %v2760, %v263
      %v2769 = vmul.f32 %v2760, %v253
      %v2770 = vmul.f32 %v2760, %v264
      %v2771 = vmul.f32 %v2760, %v254
      %v2772 = vmul.f32 %v2760, %v257
      %v2773 = vadd.f32 %v2733, %v2761
      %v2774 = vadd.f32 %v2734, %v2762
      %v2775 = vadd.f32 %v2735, %v2763
      %v2776 = vadd.f32 %v2736, %v2764
      %v2777 = vadd.f32 %v2737, %v2765
      %v2778 = vadd.f32 %v2738, %v2766
      %v2779 = vadd.f32 %v2739, %v2767
      %v2780 = vadd.f32 %v2740, %v2768
      %v2781 = vadd.f32 %v2741, %v2769
      %v2782 = vadd.f32 %v2742, %v2770
      %v2783 = vadd.f32 %v2743, %v2771
      %v2784 = vadd.f32 %v2744, %v2772
      %s2785 = scalar_lea.vmem %s1, 64
      %v2786 = vld [vmem:[%s2785] sm:$0x3]
      %v2787 = vlaneseq
      %v2788 = vshrl.u32 %v2787, 7
      %v2789 = vsub.s32 0, %v2788
      %v2790 = vrot.slane %v2786, %v2789
      %2792 = vbcast.lane.b32.xlu0 %v2790, 256
      %v2793 = vpop.permute.xlu0 %2792
      %v2794 = vlaneseq
      %v2795 = vshrl.u32 %v2794, 7
      %v2796 = vsub.s32 1, %v2795
      %v2797 = vrot.slane %v2786, %v2796
      %2799 = vbcast.lane.b32.xlu0 %v2797, 256
      %v2800 = vpop.permute.xlu0 %2799
      %v2801 = vmul.f32 %v2793, %v2653
      %v2802 = vmul.f32 %v2793, %v2654
      %v2803 = vmul.f32 %v2793, %v2655
      %v2804 = vmul.f32 %v2793, %v2656
      %v2805 = vmul.f32 %v2793, %v2657
      %v2806 = vmul.f32 %v2793, %v2664
      %v2807 = vmul.f32 %v2800, %v2653
      %v2808 = vmul.f32 %v2800, %v2654
      %v2809 = vmul.f32 %v2800, %v2655
      %v2810 = vmul.f32 %v2800, %v2656
      %v2811 = vmul.f32 %v2800, %v2657
      %v2812 = vmul.f32 %v2800, %v2664
      %v2813 = vadd.f32 %v2773, %v2801
      %v2814 = vadd.f32 %v2774, %v2802
      %v2815 = vadd.f32 %v2775, %v2803
      %v2816 = vadd.f32 %v2776, %v2804
      %v2817 = vadd.f32 %v2777, %v2805
      %v2818 = vadd.f32 %v2778, %v2806
      %v2819 = vadd.f32 %v2779, %v2807
      %v2820 = vadd.f32 %v2780, %v2808
      %v2821 = vadd.f32 %v2781, %v2809
      %v2822 = vadd.f32 %v2782, %v2810
      %v2823 = vadd.f32 %v2783, %v2811
      %v2824 = vadd.f32 %v2784, %v2812
      %s2825 = scalar_lea.vmem %s1, 66
      %v2826 = vld [vmem:[%s2825] sm:$0x3]
      %v2827 = vlaneseq
      %v2828 = vshrl.u32 %v2827, 7
      %v2829 = vsub.s32 0, %v2828
      %v2830 = vrot.slane %v2826, %v2829
      %2832 = vbcast.lane.b32.xlu0 %v2830, 256
      %v2833 = vpop.permute.xlu0 %2832
      %v2834 = vlaneseq
      %v2835 = vshrl.u32 %v2834, 7
      %v2836 = vsub.s32 1, %v2835
      %v2837 = vrot.slane %v2826, %v2836
      %2839 = vbcast.lane.b32.xlu0 %v2837, 256
      %v2840 = vpop.permute.xlu0 %2839
      %v2841 = vmul.f32 %v2833, %v2549
      %v2842 = vmul.f32 %v2833, %v2550
      %v2843 = vmul.f32 %v2833, %v2551
      %v2844 = vmul.f32 %v2833, %v2552
      %v2845 = vmul.f32 %v2833, %v2538
      %v2846 = vmul.f32 %v2833, %v2558
      %v2847 = vmul.f32 %v2840, %v2549
      %v2848 = vmul.f32 %v2840, %v2550
      %v2849 = vmul.f32 %v2840, %v2551
      %v2850 = vmul.f32 %v2840, %v2552
      %v2851 = vmul.f32 %v2840, %v2538
      %v2852 = vmul.f32 %v2840, %v2558
      %v2853 = vadd.f32 %v2813, %v2841
      %v2854 = vadd.f32 %v2814, %v2842
      %v2855 = vadd.f32 %v2815, %v2843
      %v2856 = vadd.f32 %v2816, %v2844
      %v2857 = vadd.f32 %v2817, %v2845
      %v2858 = vadd.f32 %v2818, %v2846
      %v2859 = vadd.f32 %v2819, %v2847
      %v2860 = vadd.f32 %v2820, %v2848
      %v2861 = vadd.f32 %v2821, %v2849
      %v2862 = vadd.f32 %v2822, %v2850
      %v2863 = vadd.f32 %v2823, %v2851
      %v2864 = vadd.f32 %v2824, %v2852
      %s2865 = scalar_lea.vmem %s1, 68
      %v2866 = vld [vmem:[%s2865] sm:$0x3]
      %v2867 = vlaneseq
      %v2868 = vshrl.u32 %v2867, 7
      %v2869 = vsub.s32 0, %v2868
      %v2870 = vrot.slane %v2866, %v2869
      %2872 = vbcast.lane.b32.xlu0 %v2870, 256
      %v2873 = vpop.permute.xlu0 %2872
      %v2874 = vlaneseq
      %v2875 = vshrl.u32 %v2874, 7
      %v2876 = vsub.s32 1, %v2875
      %v2877 = vrot.slane %v2866, %v2876
      %2879 = vbcast.lane.b32.xlu0 %v2877, 256
      %v2880 = vpop.permute.xlu0 %2879
      %v2881 = vmul.f32 %v2873, %v263
      %v2882 = vmul.f32 %v2873, %v253
      %v2883 = vmul.f32 %v2873, %v264
      %v2884 = vmul.f32 %v2873, %v254
      %v2885 = vmul.f32 %v2873, %v257
      %v2886 = vmul.f32 %v2873, %v252
      %v2887 = vmul.f32 %v2880, %v263
      %v2888 = vmul.f32 %v2880, %v253
      %v2889 = vmul.f32 %v2880, %v264
      %v2890 = vmul.f32 %v2880, %v254
      %v2891 = vmul.f32 %v2880, %v257
      %v2892 = vmul.f32 %v2880, %v252
      %v2893 = vadd.f32 %v2853, %v2881
      %v2894 = vadd.f32 %v2854, %v2882
      %v2895 = vadd.f32 %v2855, %v2883
      %v2896 = vadd.f32 %v2856, %v2884
      %v2897 = vadd.f32 %v2857, %v2885
      %v2898 = vadd.f32 %v2858, %v2886
      %v2899 = vadd.f32 %v2859, %v2887
      %v2900 = vadd.f32 %v2860, %v2888
      %v2901 = vadd.f32 %v2861, %v2889
      %v2902 = vadd.f32 %v2862, %v2890
      %v2903 = vadd.f32 %v2863, %v2891
      %v2904 = vadd.f32 %v2864, %v2892
      %s2905 = scalar_lea.vmem %s1, 70
      %v2906 = vld [vmem:[%s2905] sm:$0x3]
      %v2907 = vlaneseq
      %v2908 = vshrl.u32 %v2907, 7
      %v2909 = vsub.s32 0, %v2908
      %v2910 = vrot.slane %v2906, %v2909
      %2912 = vbcast.lane.b32.xlu0 %v2910, 256
      %v2913 = vpop.permute.xlu0 %2912
      %v2914 = vlaneseq
      %v2915 = vshrl.u32 %v2914, 7
      %v2916 = vsub.s32 1, %v2915
      %v2917 = vrot.slane %v2906, %v2916
      %2919 = vbcast.lane.b32.xlu0 %v2917, 256
      %v2920 = vpop.permute.xlu0 %2919
      %v2921 = vmul.f32 %v2913, %v2654
      %v2922 = vmul.f32 %v2913, %v2655
      %v2923 = vmul.f32 %v2913, %v2656
      %v2924 = vmul.f32 %v2913, %v2657
      %v2925 = vmul.f32 %v2913, %v2664
      %v2926 = vmul.f32 %v2913, %v2653
      %v2927 = vmul.f32 %v2920, %v2654
      %v2928 = vmul.f32 %v2920, %v2655
      %v2929 = vmul.f32 %v2920, %v2656
      %v2930 = vmul.f32 %v2920, %v2657
      %v2931 = vmul.f32 %v2920, %v2664
      %v2932 = vmul.f32 %v2920, %v2653
      %v2933 = vadd.f32 %v2893, %v2921
      %v2934 = vadd.f32 %v2894, %v2922
      %v2935 = vadd.f32 %v2895, %v2923
      %v2936 = vadd.f32 %v2896, %v2924
      %v2937 = vadd.f32 %v2897, %v2925
      %v2938 = vadd.f32 %v2898, %v2926
      %v2939 = vadd.f32 %v2899, %v2927
      %v2940 = vadd.f32 %v2900, %v2928
      %v2941 = vadd.f32 %v2901, %v2929
      %v2942 = vadd.f32 %v2902, %v2930
      %v2943 = vadd.f32 %v2903, %v2931
      %v2944 = vadd.f32 %v2904, %v2932
      %v2945 = vsel %vm832, %v2933, 0.0
      %v2946 = vrot.slane %v2945, 4
      %v2947 = vadd.f32 %v2945, %v2946
      %v2948 = vrot.slane %v2947, 2
      %v2949 = vadd.f32 %v2947, %v2948
      %v2950 = vrot.slane %v2949, 1
      %v2951 = vadd.f32 %v2949, %v2950
      %v2952 = vsel %vm832, %v2934, 0.0
      %v2953 = vrot.slane %v2952, 4
      %v2954 = vadd.f32 %v2952, %v2953
      %v2955 = vrot.slane %v2954, 2
      %v2956 = vadd.f32 %v2954, %v2955
      %v2957 = vrot.slane %v2956, 1
      %v2958 = vadd.f32 %v2956, %v2957
      %v2959 = vsel %vm832, %v2935, 0.0
      %v2960 = vrot.slane %v2959, 4
      %v2961 = vadd.f32 %v2959, %v2960
      %v2962 = vrot.slane %v2961, 2
      %v2963 = vadd.f32 %v2961, %v2962
      %v2964 = vrot.slane %v2963, 1
      %v2965 = vadd.f32 %v2963, %v2964
      %v2966 = vsel %vm832, %v2936, 0.0
      %v2967 = vrot.slane %v2966, 4
      %v2968 = vadd.f32 %v2966, %v2967
      %v2969 = vrot.slane %v2968, 2
      %v2970 = vadd.f32 %v2968, %v2969
      %v2971 = vrot.slane %v2970, 1
      %v2972 = vadd.f32 %v2970, %v2971
      %v2973 = vsel %vm832, %v2937, 0.0
      %v2974 = vrot.slane %v2973, 4
      %v2975 = vadd.f32 %v2973, %v2974
      %v2976 = vrot.slane %v2975, 2
      %v2977 = vadd.f32 %v2975, %v2976
      %v2978 = vrot.slane %v2977, 1
      %v2979 = vadd.f32 %v2977, %v2978
      %v2980 = vsel %vm832, %v2938, 0.0
      %v2981 = vrot.slane %v2980, 4
      %v2982 = vadd.f32 %v2980, %v2981
      %v2983 = vrot.slane %v2982, 2
      %v2984 = vadd.f32 %v2982, %v2983
      %v2985 = vrot.slane %v2984, 1
      %v2986 = vadd.f32 %v2984, %v2985
      %v2987 = vsel %vm832, %v2939, 0.0
      %v2988 = vrot.slane %v2987, 4
      %v2989 = vadd.f32 %v2987, %v2988
      %v2990 = vrot.slane %v2989, 2
      %v2991 = vadd.f32 %v2989, %v2990
      %v2992 = vrot.slane %v2991, 1
      %v2993 = vadd.f32 %v2991, %v2992
      %v2994 = vsel %vm832, %v2940, 0.0
      %v2995 = vrot.slane %v2994, 4
      %v2996 = vadd.f32 %v2994, %v2995
      %v2997 = vrot.slane %v2996, 2
      %v2998 = vadd.f32 %v2996, %v2997
      %v2999 = vrot.slane %v2998, 1
      %v3000 = vadd.f32 %v2998, %v2999
      %v3001 = vsel %vm832, %v2941, 0.0
      %v3002 = vrot.slane %v3001, 4
      %v3003 = vadd.f32 %v3001, %v3002
      %v3004 = vrot.slane %v3003, 2
      %v3005 = vadd.f32 %v3003, %v3004
      %v3006 = vrot.slane %v3005, 1
      %v3007 = vadd.f32 %v3005, %v3006
      %v3008 = vsel %vm832, %v2942, 0.0
      %v3009 = vrot.slane %v3008, 4
      %v3010 = vadd.f32 %v3008, %v3009
      %v3011 = vrot.slane %v3010, 2
      %v3012 = vadd.f32 %v3010, %v3011
      %v3013 = vrot.slane %v3012, 1
      %v3014 = vadd.f32 %v3012, %v3013
      %v3015 = vsel %vm832, %v2943, 0.0
      %v3016 = vrot.slane %v3015, 4
      %v3017 = vadd.f32 %v3015, %v3016
      %v3018 = vrot.slane %v3017, 2
      %v3019 = vadd.f32 %v3017, %v3018
      %v3020 = vrot.slane %v3019, 1
      %v3021 = vadd.f32 %v3019, %v3020
      %v3022 = vsel %vm832, %v2944, 0.0
      %v3023 = vrot.slane %v3022, 4
      %v3024 = vadd.f32 %v3022, %v3023
      %v3025 = vrot.slane %v3024, 2
      %v3026 = vadd.f32 %v3024, %v3025
      %v3027 = vrot.slane %v3026, 1
      %v3028 = vadd.f32 %v3026, %v3027
      %v3029 = vld [vmem:[%s2 + $0x6] sm:$0x3]
      %3031 = vset.pattern.permute.xlu0 0
      %3032 = vperm.xlu0 %3031, %v3029
      %v3033 = vpop.permute.xlu0 %3032
      %v3034 = vrot.slane %v3033, 1
      %v3037 = vadd.f32 %v2951, %v3033
      %v3038 = vadd.f32 %v2958, %v3033
      %v3039 = vadd.f32 %v2965, %v3033
      %v3040 = vadd.f32 %v2972, %v3033
      %v3041 = vadd.f32 %v2979, %v3033
      %v3042 = vadd.f32 %v2986, %v3033
      %v3043 = vadd.f32 %v2993, %v3034
      %v3044 = vadd.f32 %v3000, %v3034
      %v3045 = vadd.f32 %v3007, %v3034
      %v3046 = vadd.f32 %v3014, %v3034
      %v3047 = vadd.f32 %v3021, %v3034
      %v3048 = vadd.f32 %v3028, %v3034
      %v3049 = vmax.f32 %v3037, 0.0
      %v3050 = vmax.f32 %v3038, 0.0
      %v3051 = vmax.f32 %v3039, 0.0
      %v3052 = vmax.f32 %v3040, 0.0
      %v3053 = vmax.f32 %v3041, 0.0
      %v3054 = vmax.f32 %v3042, 0.0
      %v3055 = vmax.f32 %v3043, 0.0
      %v3056 = vmax.f32 %v3044, 0.0
      %v3057 = vmax.f32 %v3045, 0.0
      %v3058 = vmax.f32 %v3046, 0.0
      %v3059 = vmax.f32 %v3047, 0.0
      %v3060 = vmax.f32 %v3048, 0.0
      %v3061 = vld [vmem:[%s3 + $0x6] sm:$0x3]
      %3063 = vset.pattern.permute.xlu0 0
      %3064 = vperm.xlu0 %3063, %v3061
      %v3065 = vpop.permute.xlu0 %3064
      %v3066 = vrot.slane %v3065, 1
      %v3069 = vmul.f32 %v3049, %v3065
      %v3070 = vmul.f32 %v3050, %v3065
      %v3071 = vmul.f32 %v3051, %v3065
      %v3072 = vmul.f32 %v3052, %v3065
      %v3073 = vmul.f32 %v3053, %v3065
      %v3074 = vmul.f32 %v3054, %v3065
      %v3075 = vmul.f32 %v3055, %v3066
      %v3076 = vmul.f32 %v3056, %v3066
      %v3077 = vmul.f32 %v3057, %v3066
      %v3078 = vmul.f32 %v3058, %v3066
      %v3079 = vmul.f32 %v3059, %v3066
      %v3080 = vmul.f32 %v3060, %v3066
      %v3081 = vld [vmem:[%s4 + $0x6] sm:$0x3]
      %3083 = vset.pattern.permute.xlu0 0
      %3084 = vperm.xlu0 %3083, %v3081
      %v3085 = vpop.permute.xlu0 %3084
      %v3086 = vrot.slane %v3085, 1
      %v3089 = vadd.f32 %v3069, %v3085
      %v3090 = vadd.f32 %v3070, %v3085
      %v3091 = vadd.f32 %v3071, %v3085
      %v3092 = vadd.f32 %v3072, %v3085
      %v3093 = vadd.f32 %v3073, %v3085
      %v3094 = vadd.f32 %v3074, %v3085
      %v3095 = vadd.f32 %v3075, %v3086
      %v3096 = vadd.f32 %v3076, %v3086
      %v3097 = vadd.f32 %v3077, %v3086
      %v3098 = vadd.f32 %v3078, %v3086
      %v3099 = vadd.f32 %v3079, %v3086
      %v3100 = vadd.f32 %v3080, %v3086
      %v3101 = vmax.f32 %v3089, 0.0
      %v3102 = vmax.f32 %v3090, 0.0
      %v3103 = vmax.f32 %v3091, 0.0
      %v3104 = vmax.f32 %v3092, 0.0
      %v3105 = vmax.f32 %v3093, 0.0
      %v3106 = vmax.f32 %v3094, 0.0
      %v3107 = vmax.f32 %v3095, 0.0
      %v3108 = vmax.f32 %v3096, 0.0
      %v3109 = vmax.f32 %v3097, 0.0
      %v3110 = vmax.f32 %v3098, 0.0
      %v3111 = vmax.f32 %v3099, 0.0
      %v3112 = vmax.f32 %v3100, 0.0
      %v3113 = vmul.f32 %v3101, %v1005
      %v3114 = vmul.f32 %v3102, %v1009
      %v3115 = vmul.f32 %v3103, %v1013
      %v3116 = vmul.f32 %v3104, %v1017
      %v3117 = vmul.f32 %v3105, %v1021
      %v3118 = vmul.f32 %v3106, %v1025
      %v3119 = vmul.f32 %v3107, %v1005
      %v3120 = vmul.f32 %v3108, %v1009
      %v3121 = vmul.f32 %v3109, %v1013
      %v3122 = vmul.f32 %v3110, %v1017
      %v3123 = vmul.f32 %v3111, %v1021
      %v3124 = vmul.f32 %v3112, %v1025
      %v3137 = vrot.slane %v3113, 2
      %v3138 = vrot.slane %v3119, 1
      %vm3139 = vcmask 1047559
      %v3140 = vsel %vm3139, %v3138, %v3137
      %v3141 = vrot.slane %v3114, 2
      %v3142 = vrot.slane %v3120, 1
      %v3143 = vsel %vm3139, %v3142, %v3141
      %v3144 = vrot.slane %v3115, 2
      %v3145 = vrot.slane %v3121, 1
      %v3146 = vsel %vm3139, %v3145, %v3144
      %v3147 = vrot.slane %v3116, 2
      %v3148 = vrot.slane %v3122, 1
      %v3149 = vsel %vm3139, %v3148, %v3147
      %v3150 = vrot.slane %v3117, 2
      %v3151 = vrot.slane %v3123, 1
      %v3152 = vsel %vm3139, %v3151, %v3150
      %v3153 = vrot.slane %v3118, 2
      %v3154 = vrot.slane %v3124, 1
      %v3155 = vsel %vm3139, %v3154, %v3153
      %3162 = vst [vmem:[%s251] sm:$0xc0] %v3140
      %3163 = vst [vmem:[%s251 + $0x8] sm:$0xc0] %v3143
      %3164 = vst [vmem:[%s251 + $0x10] sm:$0xc0] %v3146
      %3165 = vst [vmem:[%s251 + $0x18] sm:$0xc0] %v3149
      %3166 = vst [vmem:[%s251 + $0x20] sm:$0xc0] %v3152
      %3167 = vst [vmem:[%s251 + $0x28] sm:$0xc0] %v3155
      %p3168 = scmp.lt.s32.totalorder %s17, 1
      %s3169 = scalar_select %p3168, %s17, 1
      %s3170 = smul.addr %s3169, 6
      %s3171 = smul.addr %s3170, 8
      %s3172 = scalar_lea.vmem %s6, %s3171
      // Predicated region
      $region45: #{_lambda_.2} parent=43 // pred_check
        %p3173 = pneg %p166
      $region46: #{_lambda_.2} parent=43 // pred_check_branch
        %3175 = sbr.rel (%p3173) target = $region48
      $region47: #{_lambda_.2} parent=43 // pred_region
        _
      $region48: #{_lambda_.2} parent=43 // pred_fallthru
        _
    $region44: #{_lambda_.2} parent=5 // pred_fallthru
      _
    %p3176 = scmp.le.s32.totalorder 2, %s12
    // Predicated region
    $region49: #{_lambda_.2} parent=5 // pred_check
      %p3177 = pneg %p3176
    $region50: #{_lambda_.2} parent=5 // pred_check_branch
      %3179 = sbr.rel (%p3177) target = $region52
    $region51: #{_lambda_.2} parent=5 // pred_region
      %s3180 = ssub.s32 %s12, 2
      // Predicated region
      $region53: #{_lambda_.2} parent=51 // pred_check
        %p3181 = pneg %p172
      $region54: #{_lambda_.2} parent=51 // pred_check_branch
        %3183 = sbr.rel (%p3181) target = $region56
      $region55: #{_lambda_.2} parent=51 // pred_region
        %p3184 = scmp.lt.s32.totalorder %s18, 1
        %s3185 = scalar_select %p3184, %s18, 1
        %s3186 = smul.addr %s3185, 6
        %s3187 = smul.addr %s3186, 8
        %s3188 = scalar_lea.vmem %s6, %s3187
      $region56: #{_lambda_.2} parent=51 // pred_fallthru
        _
    $region52: #{_lambda_.2} parent=5 // pred_fallthru
      _
  $region6: #{_lambda_.2} parent=0 // loop_footer
    %s16 = sadd.s32 1, %s12
  $region7: #{_lambda_.2} parent=0 // loop_footer_branch
    %11 = sbr.rel target = $region3
  $region8: #{_lambda_.2} parent=0 // loop_exit
    _

// kernel: _lambda_.3
$region0: #{_lambda_.3}
  #allocation0 [shape = 'u32[]', space=smem, size = 0x4, offset = 0x4, fixed_abs, tag = 'smem constant byte address 0x4 - core index']
  #allocation1 [shape = 'u32[144,128]{1,0:T(1,128)}', space=vmem, size = 0x12000, scoped, tag = 'internal scratch']
  %s0 = inlined_call_operand.vmem [shape: f32[2,8,768], index: 0, kind: input, shape index: {}]
  %s1 = inlined_call_operand.vmem [shape: f32[36,2,8], index: 1, kind: input, shape index: {}]
  %s2 = inlined_call_operand.vmem [shape: f32[8,1], index: 2, kind: input, shape index: {}]
  %s3 = inlined_call_operand.vmem [shape: f32[8,1], index: 3, kind: input, shape index: {}]
  %s4 = inlined_call_operand.vmem [shape: f32[8,1], index: 4, kind: input, shape index: {}]
  %s5 = inlined_call_operand.vmem [shape: f32[1,768], index: 5, kind: input, shape index: {}]
  %s6 = inlined_call_operand.vmem [shape: f32[2,8,768], index: 6, kind: output, shape index: {}]
  %s7 = sld [smem:[#allocation0]]
  $region57: #{_lambda_.3} parent=0
    _
  %s9 = ssub.s32 1, %s7
  %s10 = scalar_select 0, %s9, %s7
  loop: start=0, step=1, limit=4
  $region2: #{_lambda_.3} parent=0 // loop_pre_header
    _
  $region3: #{_lambda_.3} parent=0 // loop_header
    %s12 = sphi 0, %s16
    %p13 = scmp.ge.s32.totalorder %s12, 4
    %s22 = sphi 0, %s24
    %s25 = sphi 0, %s22
    %s26 = sphi 0, %s25
    %s42 = sphi 0, %s26
    %s46 = sphi 0, %s46
    %s48 = sphi 0, %s46
    %s49 = sphi 0, %s48
    %s63 = sphi 0, %s49
    %s67 = sphi 0, %s67
    %s69 = sphi 0, %s67
    %s70 = sphi 0, %s69
    %s84 = sphi 0, %s70
    %s88 = sphi 0, %s88
    %s90 = sphi 0, %s88
    %s91 = sphi 0, %s90
    %s105 = sphi 0, %s91
    %s109 = sphi 0, %s109
    %s111 = sphi 0, %s109
    %s112 = sphi 0, %s111
    %s126 = sphi 0, %s112
    %s130 = sphi 0, %s130
    %s132 = sphi 0, %s130
    %s133 = sphi 0, %s132
    %s147 = sphi 0, %s133
    %s153 = sphi 0, %s155
    %s156 = sphi 0, %s153
    %s157 = sphi 0, %s156
    %s173 = sphi 0, %s157
  $region4: #{_lambda_.3} parent=0 // loop_header_branch
    %15 = sbr.rel (%p13) target = $region8
  $region5: #{_lambda_.3} parent=0 // loop_body
    %s17 = ssub.s32 %s12, 1
    %s18 = ssub.s32 %s12, 2
    %s19 = sadd.s32 %s12, 1
    %s20 = ssub.s32 %s12, %s19
    %p21 = scmp.eq.s32.totalorder %s20, 0
    %s23 = sadd.s32 %s22, 1
    %s24 = scalar_select %p21, %s22, %s23
    %p27 = pneg %p21
    %p28 = scmp.eq.s32.totalorder %s12, 1
    %p29 = por %p27, %p28
    %p30 = scmp.ne.s32.totalorder %s22, %s25
    %p31 = scmp.eq.s32.totalorder %s12, 0
    %p32 = por %p30, %p31
    %p33 = scmp.ne.s32.totalorder %s22, %s25
    %p34 = scmp.eq.s32.totalorder %s17, 1
    %p35 = por %p33, %p34
    %p36 = scmp.ne.s32.totalorder %s25, %s26
    %p37 = scmp.eq.s32.totalorder %s17, 0
    %p38 = por %p36, %p37
    %p39 = scmp.ne.s32.totalorder %s25, %s26
    %p40 = scmp.eq.s32.totalorder %s18, 1
    %p41 = por %p39, %p40
    %p43 = scmp.ne.s32.totalorder %s26, %s42
    %p44 = scmp.eq.s32.totalorder %s18, 0
    %p45 = por %p43, %p44
    %s47 = sadd.s32 %s46, 1
    %p50 = scmp.eq.s32.totalorder %s12, 1
    %p51 = scmp.ne.s32.totalorder %s46, %s48
    %p52 = scmp.eq.s32.totalorder %s12, 0
    %p53 = por %p51, %p52
    %p54 = scmp.ne.s32.totalorder %s46, %s48
    %p55 = scmp.eq.s32.totalorder %s17, 1
    %p56 = por %p54, %p55
    %p57 = scmp.ne.s32.totalorder %s48, %s49
    %p58 = scmp.eq.s32.totalorder %s17, 0
    %p59 = por %p57, %p58
    %p60 = scmp.ne.s32.totalorder %s48, %s49
    %p61 = scmp.eq.s32.totalorder %s18, 1
    %p62 = por %p60, %p61
    %p64 = scmp.ne.s32.totalorder %s49, %s63
    %p65 = scmp.eq.s32.totalorder %s18, 0
    %p66 = por %p64, %p65
    %s68 = sadd.s32 %s67, 1
    %p71 = scmp.eq.s32.totalorder %s12, 1
    %p72 = scmp.ne.s32.totalorder %s67, %s69
    %p73 = scmp.eq.s32.totalorder %s12, 0
    %p74 = por %p72, %p73
    %p75 = scmp.ne.s32.totalorder %s67, %s69
    %p76 = scmp.eq.s32.totalorder %s17, 1
    %p77 = por %p75, %p76
    %p78 = scmp.ne.s32.totalorder %s69, %s70
    %p79 = scmp.eq.s32.totalorder %s17, 0
    %p80 = por %p78, %p79
    %p81 = scmp.ne.s32.totalorder %s69, %s70
    %p82 = scmp.eq.s32.totalorder %s18, 1
    %p83 = por %p81, %p82
    %p85 = scmp.ne.s32.totalorder %s70, %s84
    %p86 = scmp.eq.s32.totalorder %s18, 0
    %p87 = por %p85, %p86
    %s89 = sadd.s32 %s88, 1
    %p92 = scmp.eq.s32.totalorder %s12, 1
    %p93 = scmp.ne.s32.totalorder %s88, %s90
    %p94 = scmp.eq.s32.totalorder %s12, 0
    %p95 = por %p93, %p94
    %p96 = scmp.ne.s32.totalorder %s88, %s90
    %p97 = scmp.eq.s32.totalorder %s17, 1
    %p98 = por %p96, %p97
    %p99 = scmp.ne.s32.totalorder %s90, %s91
    %p100 = scmp.eq.s32.totalorder %s17, 0
    %p101 = por %p99, %p100
    %p102 = scmp.ne.s32.totalorder %s90, %s91
    %p103 = scmp.eq.s32.totalorder %s18, 1
    %p104 = por %p102, %p103
    %p106 = scmp.ne.s32.totalorder %s91, %s105
    %p107 = scmp.eq.s32.totalorder %s18, 0
    %p108 = por %p106, %p107
    %s110 = sadd.s32 %s109, 1
    %p113 = scmp.eq.s32.totalorder %s12, 1
    %p114 = scmp.ne.s32.totalorder %s109, %s111
    %p115 = scmp.eq.s32.totalorder %s12, 0
    %p116 = por %p114, %p115
    %p117 = scmp.ne.s32.totalorder %s109, %s111
    %p118 = scmp.eq.s32.totalorder %s17, 1
    %p119 = por %p117, %p118
    %p120 = scmp.ne.s32.totalorder %s111, %s112
    %p121 = scmp.eq.s32.totalorder %s17, 0
    %p122 = por %p120, %p121
    %p123 = scmp.ne.s32.totalorder %s111, %s112
    %p124 = scmp.eq.s32.totalorder %s18, 1
    %p125 = por %p123, %p124
    %p127 = scmp.ne.s32.totalorder %s112, %s126
    %p128 = scmp.eq.s32.totalorder %s18, 0
    %p129 = por %p127, %p128
    %s131 = sadd.s32 %s130, 1
    %p134 = scmp.eq.s32.totalorder %s12, 1
    %p135 = scmp.ne.s32.totalorder %s130, %s132
    %p136 = scmp.eq.s32.totalorder %s12, 0
    %p137 = por %p135, %p136
    %p138 = scmp.ne.s32.totalorder %s130, %s132
    %p139 = scmp.eq.s32.totalorder %s17, 1
    %p140 = por %p138, %p139
    %p141 = scmp.ne.s32.totalorder %s132, %s133
    %p142 = scmp.eq.s32.totalorder %s17, 0
    %p143 = por %p141, %p142
    %p144 = scmp.ne.s32.totalorder %s132, %s133
    %p145 = scmp.eq.s32.totalorder %s18, 1
    %p146 = por %p144, %p145
    %p148 = scmp.ne.s32.totalorder %s133, %s147
    %p149 = scmp.eq.s32.totalorder %s18, 0
    %p150 = por %p148, %p149
    %s151 = ssub.s32 %s12, %s19
    %p152 = scmp.eq.s32.totalorder %s151, 0
    %s154 = sadd.s32 %s153, 1
    %s155 = scalar_select %p152, %s153, %s154
    %p158 = pneg %p152
    %p159 = scmp.eq.s32.totalorder %s12, 1
    %p160 = por %p158, %p159
    %p161 = scmp.ne.s32.totalorder %s153, %s156
    %p162 = scmp.eq.s32.totalorder %s12, 0
    %p163 = por %p161, %p162
    %p164 = scmp.ne.s32.totalorder %s153, %s156
    %p165 = scmp.eq.s32.totalorder %s17, 1
    %p166 = por %p164, %p165
    %p167 = scmp.ne.s32.totalorder %s156, %s157
    %p168 = scmp.eq.s32.totalorder %s17, 0
    %p169 = por %p167, %p168
    %p170 = scmp.ne.s32.totalorder %s156, %s157
    %p171 = scmp.eq.s32.totalorder %s18, 1
    %p172 = por %p170, %p171
    %p174 = scmp.ne.s32.totalorder %s157, %s173
    %p175 = scmp.eq.s32.totalorder %s18, 0
    %p176 = por %p174, %p175
    %p177 = scmp.le.s32.totalorder 1, %s12
    %p178 = scmp.lt.s32.totalorder %s12, 3
    %p179 = pnand %p177, %p178
    %p180 = pneg %p179
    // Predicated region
    $region9: #{_lambda_.3} parent=5 // pred_check
      _
    $region10: #{_lambda_.3} parent=5 // pred_check_branch
      %182 = sbr.rel (%p179) target = $region12
    $region11: #{_lambda_.3} parent=5 // pred_region
      %s183 = ssub.s32 %s12, 1
      // Predicated region
      $region13: #{_lambda_.3} parent=11 // pred_check
        %p184 = pneg %p59
      $region14: #{_lambda_.3} parent=11 // pred_check_branch
        %186 = sbr.rel (%p184) target = $region16
      $region15: #{_lambda_.3} parent=11 // pred_region
        _
      $region16: #{_lambda_.3} parent=11 // pred_fallthru
        _
      // Predicated region
      $region17: #{_lambda_.3} parent=11 // pred_check
        %p187 = pneg %p80
      $region18: #{_lambda_.3} parent=11 // pred_check_branch
        %189 = sbr.rel (%p187) target = $region20
      $region19: #{_lambda_.3} parent=11 // pred_region
        _
      $region20: #{_lambda_.3} parent=11 // pred_fallthru
        _
      // Predicated region
      $region21: #{_lambda_.3} parent=11 // pred_check
        %p190 = pneg %p101
      $region22: #{_lambda_.3} parent=11 // pred_check_branch
        %192 = sbr.rel (%p190) target = $region24
      $region23: #{_lambda_.3} parent=11 // pred_region
        _
      $region24: #{_lambda_.3} parent=11 // pred_fallthru
        _
      // Predicated region
      $region25: #{_lambda_.3} parent=11 // pred_check
        %p193 = pneg %p122
      $region26: #{_lambda_.3} parent=11 // pred_check_branch
        %195 = sbr.rel (%p193) target = $region28
      $region27: #{_lambda_.3} parent=11 // pred_region
        _
      $region28: #{_lambda_.3} parent=11 // pred_fallthru
        _
      // Predicated region
      $region29: #{_lambda_.3} parent=11 // pred_check
        %p196 = pneg %p143
      $region30: #{_lambda_.3} parent=11 // pred_check_branch
        %198 = sbr.rel (%p196) target = $region32
      $region31: #{_lambda_.3} parent=11 // pred_region
        _
      $region32: #{_lambda_.3} parent=11 // pred_fallthru
        _
    $region12: #{_lambda_.3} parent=5 // pred_fallthru
      _
    %p199 = scmp.lt.s32.totalorder %s12, 2
    // Predicated region
    $region33: #{_lambda_.3} parent=5 // pred_check
      %p200 = pneg %p199
    $region34: #{_lambda_.3} parent=5 // pred_check_branch
      %202 = sbr.rel (%p200) target = $region36
    $region35: #{_lambda_.3} parent=5 // pred_region
      // Predicated region
      $region37: #{_lambda_.3} parent=35 // pred_check
        %p203 = pneg %p32
      $region38: #{_lambda_.3} parent=35 // pred_check_branch
        %205 = sbr.rel (%p203) target = $region40
      $region39: #{_lambda_.3} parent=35 // pred_region
        %p206 = scmp.lt.s32.totalorder %s12, 1
        %s207 = scalar_select %p206, %s12, 1
        %s208 = smul.addr %s207, 6
        %s209 = smul.addr %s208, 8
        %s210 = scalar_lea.vmem %s0, %s209
      $region40: #{_lambda_.3} parent=35 // pred_fallthru
        _
    $region36: #{_lambda_.3} parent=5 // pred_fallthru
      _
    %p211 = scmp.le.s32.totalorder 1, %s12
    %p212 = scmp.lt.s32.totalorder %s12, 3
    %p213 = pnand %p211, %p212
    %p214 = pneg %p213
    // Predicated region
    $region41: #{_lambda_.3} parent=5 // pred_check
      _
    $region42: #{_lambda_.3} parent=5 // pred_check_branch
      %216 = sbr.rel (%p213) target = $region44
    $region43: #{_lambda_.3} parent=5 // pred_region
      %s217 = ssub.s32 %s12, 1
      %p218 = scmp.lt.s32.totalorder %s17, 1
      %s219 = scalar_select %p218, %s17, 1
      %s220 = smul.addr %s219, 6
      %s221 = smul.addr %s220, 8
      %s222 = scalar_lea.vmem %s0, %s221
      %p223 = pneg %p38
      %p224 = pneg %p35
      %p225 = pneg %p59
      %p226 = pneg %p56
      %p227 = pneg %p80
      %p228 = pneg %p77
      %p229 = pneg %p101
      %p230 = pneg %p98
      %p231 = pneg %p122
      %p232 = pneg %p119
      %p233 = pneg %p143
      %p234 = pneg %p140
      %p235 = pneg %p169
      %p236 = pneg %p166
      %p237 = scmp.lt.s32.totalorder %s17, 1
      %s238 = scalar_select %p237, %s17, 1
      %s239 = smul.addr %s238, 6
      %s240 = smul.addr %s239, 8
      %s241 = scalar_lea.vmem %s6, %s240
      %p242 = scmp.lt.s32.totalorder %s17, 1
      %s243 = scalar_select %p242, %s17, 1
      %s244 = smul.addr %s243, 6
      %s245 = smul.addr %s244, 8
      %s246 = scalar_lea.vmem %s0, %s245
      %p247 = scmp.lt.s32.totalorder %s17, 1
      %s248 = scalar_select %p247, %s17, 1
      %s249 = smul.addr %s248, 6
      %s250 = smul.addr %s249, 8
      %s251 = scalar_lea.vmem %s6, %s250
      %v252 = vld [vmem:[%s246] sm:$0xff]
      %v253 = vld [vmem:[%s246 + $0x8] sm:$0xff]
      %v254 = vld [vmem:[%s246 + $0x10] sm:$0xff]
      %v255 = vld [vmem:[%s246 + $0x18] sm:$0xff]
      %v256 = vld [vmem:[%s246 + $0x20] sm:$0xff]
      %v257 = vld [vmem:[%s246 + $0x28] sm:$0xff]
      %v258 = vld [vmem:[%s5] sm:$0x3f]
      %260 = vrot.lane.b32.xlu0 %v257, 33
      %v261 = vpop.permute.xlu0 %260
      %268 = vrot.lane.b32.xlu0 %v252, 33
      %v269 = vpop.permute.xlu0 %268
      %270 = vrot.lane.b32.xlu0 %v253, 33
      %v271 = vpop.permute.xlu0 %270
      %272 = vrot.lane.b32.xlu0 %v254, 33
      %v273 = vpop.permute.xlu0 %272
      %274 = vrot.lane.b32.xlu0 %v255, 33
      %v275 = vpop.permute.xlu0 %274
      %276 = vrot.lane.b32.xlu0 %v256, 33
      %v277 = vpop.permute.xlu0 %276
      %vm278 = vcmask 269312
      %v279 = vsel %vm278, %v269, %v271
      %v280 = vsel %vm278, %v271, %v273
      %v281 = vsel %vm278, %v273, %v275
      %v282 = vsel %vm278, %v275, %v277
      %v283 = vsel %vm278, %v277, %v261
      %v290 = vsel %vm278, %v261, %v269
      %v291 = vld [vmem:[%s1] sm:$0x3]
      %v292 = vlaneseq
      %v293 = vshrl.u32 %v292, 7
      %v294 = vsub.s32 0, %v293
      %v295 = vrot.slane %v291, %v294
      %297 = vbcast.lane.b32.xlu0 %v295, 256
      %v298 = vpop.permute.xlu0 %297
      %v299 = vlaneseq
      %v300 = vshrl.u32 %v299, 7
      %v301 = vsub.s32 1, %v300
      %v302 = vrot.slane %v291, %v301
      %304 = vbcast.lane.b32.xlu0 %v302, 256
      %v305 = vpop.permute.xlu0 %304
      %v306 = vmul.f32 %v298, %v290
      %v307 = vmul.f32 %v298, %v279
      %v308 = vmul.f32 %v298, %v280
      %v309 = vmul.f32 %v298, %v281
      %v310 = vmul.f32 %v298, %v282
      %v311 = vmul.f32 %v298, %v283
      %v312 = vmul.f32 %v305, %v290
      %v313 = vmul.f32 %v305, %v279
      %v314 = vmul.f32 %v305, %v280
      %v315 = vmul.f32 %v305, %v281
      %v316 = vmul.f32 %v305, %v282
      %v317 = vmul.f32 %v305, %v283
      %v318 = vadd.f32 %v306, 0.0
      %v319 = vadd.f32 %v307, 0.0
      %v320 = vadd.f32 %v308, 0.0
      %v321 = vadd.f32 %v309, 0.0
      %v322 = vadd.f32 %v310, 0.0
      %v323 = vadd.f32 %v311, 0.0
      %v324 = vadd.f32 %v312, 0.0
      %v325 = vadd.f32 %v313, 0.0
      %v326 = vadd.f32 %v314, 0.0
      %v327 = vadd.f32 %v315, 0.0
      %v328 = vadd.f32 %v316, 0.0
      %v329 = vadd.f32 %v317, 0.0
      %330 = vrot.lane.b32.xlu0 %v257, 32
      %v331 = vpop.permute.xlu0 %330
      %333 = vrot.lane.b32.xlu0 %v252, 32
      %v334 = vpop.permute.xlu0 %333
      %335 = vrot.lane.b32.xlu0 %v253, 32
      %v336 = vpop.permute.xlu0 %335
      %337 = vrot.lane.b32.xlu0 %v254, 32
      %v338 = vpop.permute.xlu0 %337
      %339 = vrot.lane.b32.xlu0 %v255, 32
      %v340 = vpop.permute.xlu0 %339
      %341 = vrot.lane.b32.xlu0 %v256, 32
      %v342 = vpop.permute.xlu0 %341
      %vm343 = vcmask 261120
      %v344 = vsel %vm343, %v334, %v336
      %v345 = vsel %vm343, %v336, %v338
      %v346 = vsel %vm343, %v338, %v340
      %v347 = vsel %vm343, %v340, %v342
      %v348 = vsel %vm343, %v342, %v331
      %v355 = vsel %vm343, %v331, %v334
      %s356 = scalar_lea.vmem %s1, 2
      %v357 = vld [vmem:[%s356] sm:$0x3]
      %v358 = vlaneseq
      %v359 = vshrl.u32 %v358, 7
      %v360 = vsub.s32 0, %v359
      %v361 = vrot.slane %v357, %v360
      %363 = vbcast.lane.b32.xlu0 %v361, 256
      %v364 = vpop.permute.xlu0 %363
      %v365 = vlaneseq
      %v366 = vshrl.u32 %v365, 7
      %v367 = vsub.s32 1, %v366
      %v368 = vrot.slane %v357, %v367
      %370 = vbcast.lane.b32.xlu0 %v368, 256
      %v371 = vpop.permute.xlu0 %370
      %v372 = vmul.f32 %v364, %v355
      %v373 = vmul.f32 %v364, %v344
      %v374 = vmul.f32 %v364, %v345
      %v375 = vmul.f32 %v364, %v346
      %v376 = vmul.f32 %v364, %v347
      %v377 = vmul.f32 %v364, %v348
      %v378 = vmul.f32 %v371, %v355
      %v379 = vmul.f32 %v371, %v344
      %v380 = vmul.f32 %v371, %v345
      %v381 = vmul.f32 %v371, %v346
      %v382 = vmul.f32 %v371, %v347
      %v383 = vmul.f32 %v371, %v348
      %v384 = vadd.f32 %v318, %v372
      %v385 = vadd.f32 %v319, %v373
      %v386 = vadd.f32 %v320, %v374
      %v387 = vadd.f32 %v321, %v375
      %v388 = vadd.f32 %v322, %v376
      %v389 = vadd.f32 %v323, %v377
      %v390 = vadd.f32 %v324, %v378
      %v391 = vadd.f32 %v325, %v379
      %v392 = vadd.f32 %v326, %v380
      %v393 = vadd.f32 %v327, %v381
      %v394 = vadd.f32 %v328, %v382
      %v395 = vadd.f32 %v329, %v383
      %396 = vrot.lane.b32.xlu0 %v257, 31
      %v397 = vpop.permute.xlu0 %396
      %399 = vrot.lane.b32.xlu0 %v252, 31
      %v400 = vpop.permute.xlu0 %399
      %401 = vrot.lane.b32.xlu0 %v253, 31
      %v402 = vpop.permute.xlu0 %401
      %403 = vrot.lane.b32.xlu0 %v254, 31
      %v404 = vpop.permute.xlu0 %403
      %405 = vrot.lane.b32.xlu0 %v255, 31
      %v406 = vpop.permute.xlu0 %405
      %407 = vrot.lane.b32.xlu0 %v256, 31
      %v408 = vpop.permute.xlu0 %407
      %vm409 = vcmask 252928
      %v410 = vsel %vm409, %v400, %v402
      %v411 = vsel %vm409, %v402, %v404
      %v412 = vsel %vm409, %v404, %v406
      %v413 = vsel %vm409, %v406, %v408
      %v414 = vsel %vm409, %v408, %v397
      %v421 = vsel %vm409, %v397, %v400
      %s422 = scalar_lea.vmem %s1, 4
      %v423 = vld [vmem:[%s422] sm:$0x3]
      %v424 = vlaneseq
      %v425 = vshrl.u32 %v424, 7
      %v426 = vsub.s32 0, %v425
      %v427 = vrot.slane %v423, %v426
      %429 = vbcast.lane.b32.xlu0 %v427, 256
      %v430 = vpop.permute.xlu0 %429
      %v431 = vlaneseq
      %v432 = vshrl.u32 %v431, 7
      %v433 = vsub.s32 1, %v432
      %v434 = vrot.slane %v423, %v433
      %436 = vbcast.lane.b32.xlu0 %v434, 256
      %v437 = vpop.permute.xlu0 %436
      %v438 = vmul.f32 %v430, %v421
      %v439 = vmul.f32 %v430, %v410
      %v440 = vmul.f32 %v430, %v411
      %v441 = vmul.f32 %v430, %v412
      %v442 = vmul.f32 %v430, %v413
      %v443 = vmul.f32 %v430, %v414
      %v444 = vmul.f32 %v437, %v421
      %v445 = vmul.f32 %v437, %v410
      %v446 = vmul.f32 %v437, %v411
      %v447 = vmul.f32 %v437, %v412
      %v448 = vmul.f32 %v437, %v413
      %v449 = vmul.f32 %v437, %v414
      %v450 = vadd.f32 %v384, %v438
      %v451 = vadd.f32 %v385, %v439
      %v452 = vadd.f32 %v386, %v440
      %v453 = vadd.f32 %v387, %v441
      %v454 = vadd.f32 %v388, %v442
      %v455 = vadd.f32 %v389, %v443
      %v456 = vadd.f32 %v390, %v444
      %v457 = vadd.f32 %v391, %v445
      %v458 = vadd.f32 %v392, %v446
      %v459 = vadd.f32 %v393, %v447
      %v460 = vadd.f32 %v394, %v448
      %v461 = vadd.f32 %v395, %v449
      %462 = vrot.lane.b32.xlu0 %v257, 1
      %v463 = vpop.permute.xlu0 %462
      %465 = vrot.lane.b32.xlu0 %v252, 1
      %v466 = vpop.permute.xlu0 %465
      %467 = vrot.lane.b32.xlu0 %v253, 1
      %v468 = vpop.permute.xlu0 %467
      %469 = vrot.lane.b32.xlu0 %v254, 1
      %v470 = vpop.permute.xlu0 %469
      %471 = vrot.lane.b32.xlu0 %v255, 1
      %v472 = vpop.permute.xlu0 %471
      %473 = vrot.lane.b32.xlu0 %v256, 1
      %v474 = vpop.permute.xlu0 %473
      %vm475 = vcmask 7168
      %v476 = vsel %vm475, %v466, %v468
      %v477 = vsel %vm475, %v468, %v470
      %v478 = vsel %vm475, %v470, %v472
      %v479 = vsel %vm475, %v472, %v474
      %v480 = vsel %vm475, %v474, %v463
      %v487 = vsel %vm475, %v463, %v466
      %s488 = scalar_lea.vmem %s1, 6
      %v489 = vld [vmem:[%s488] sm:$0x3]
      %v490 = vlaneseq
      %v491 = vshrl.u32 %v490, 7
      %v492 = vsub.s32 0, %v491
      %v493 = vrot.slane %v489, %v492
      %495 = vbcast.lane.b32.xlu0 %v493, 256
      %v496 = vpop.permute.xlu0 %495
      %v497 = vlaneseq
      %v498 = vshrl.u32 %v497, 7
      %v499 = vsub.s32 1, %v498
      %v500 = vrot.slane %v489, %v499
      %502 = vbcast.lane.b32.xlu0 %v500, 256
      %v503 = vpop.permute.xlu0 %502
      %v504 = vmul.f32 %v496, %v487
      %v505 = vmul.f32 %v496, %v476
      %v506 = vmul.f32 %v496, %v477
      %v507 = vmul.f32 %v496, %v478
      %v508 = vmul.f32 %v496, %v479
      %v509 = vmul.f32 %v496, %v480
      %v510 = vmul.f32 %v503, %v487
      %v511 = vmul.f32 %v503, %v476
      %v512 = vmul.f32 %v503, %v477
      %v513 = vmul.f32 %v503, %v478
      %v514 = vmul.f32 %v503, %v479
      %v515 = vmul.f32 %v503, %v480
      %v516 = vadd.f32 %v450, %v504
      %v517 = vadd.f32 %v451, %v505
      %v518 = vadd.f32 %v452, %v506
      %v519 = vadd.f32 %v453, %v507
      %v520 = vadd.f32 %v454, %v508
      %v521 = vadd.f32 %v455, %v509
      %v522 = vadd.f32 %v456, %v510
      %v523 = vadd.f32 %v457, %v511
      %v524 = vadd.f32 %v458, %v512
      %v525 = vadd.f32 %v459, %v513
      %v526 = vadd.f32 %v460, %v514
      %v527 = vadd.f32 %v461, %v515
      %s528 = scalar_lea.vmem %s1, 8
      %v529 = vld [vmem:[%s528] sm:$0x3]
      %v530 = vlaneseq
      %v531 = vshrl.u32 %v530, 7
      %v532 = vsub.s32 0, %v531
      %v533 = vrot.slane %v529, %v532
      %535 = vbcast.lane.b32.xlu0 %v533, 256
      %v536 = vpop.permute.xlu0 %535
      %v537 = vlaneseq
      %v538 = vshrl.u32 %v537, 7
      %v539 = vsub.s32 1, %v538
      %v540 = vrot.slane %v529, %v539
      %542 = vbcast.lane.b32.xlu0 %v540, 256
      %v543 = vpop.permute.xlu0 %542
      %v544 = vmul.f32 %v536, %v252
      %v545 = vmul.f32 %v536, %v253
      %v546 = vmul.f32 %v536, %v254
      %v547 = vmul.f32 %v536, %v255
      %v548 = vmul.f32 %v536, %v256
      %v549 = vmul.f32 %v536, %v257
      %v550 = vmul.f32 %v543, %v252
      %v551 = vmul.f32 %v543, %v253
      %v552 = vmul.f32 %v543, %v254
      %v553 = vmul.f32 %v543, %v255
      %v554 = vmul.f32 %v543, %v256
      %v555 = vmul.f32 %v543, %v257
      %v556 = vadd.f32 %v516, %v544
      %v557 = vadd.f32 %v517, %v545
      %v558 = vadd.f32 %v518, %v546
      %v559 = vadd.f32 %v519, %v547
      %v560 = vadd.f32 %v520, %v548
      %v561 = vadd.f32 %v521, %v549
      %v562 = vadd.f32 %v522, %v550
      %v563 = vadd.f32 %v523, %v551
      %v564 = vadd.f32 %v524, %v552
      %v565 = vadd.f32 %v525, %v553
      %v566 = vadd.f32 %v526, %v554
      %v567 = vadd.f32 %v527, %v555
      %568 = vrot.lane.b32.xlu0 %v252, 127
      %v569 = vpop.permute.xlu0 %568
      %570 = vrot.lane.b32.xlu0 %v253, 127
      %v571 = vpop.permute.xlu0 %570
      %572 = vrot.lane.b32.xlu0 %v254, 127
      %v573 = vpop.permute.xlu0 %572
      %574 = vrot.lane.b32.xlu0 %v255, 127
      %v575 = vpop.permute.xlu0 %574
      %576 = vrot.lane.b32.xlu0 %v256, 127
      %v577 = vpop.permute.xlu0 %576
      %578 = vrot.lane.b32.xlu0 %v257, 127
      %v579 = vpop.permute.xlu0 %578
      %vm580 = vcmask 1039360
      %v581 = vsel %vm580, %v569, %v571
      %v582 = vsel %vm580, %v571, %v573
      %v583 = vsel %vm580, %v573, %v575
      %v584 = vsel %vm580, %v575, %v577
      %v585 = vsel %vm580, %v577, %v579
      %v593 = vsel %vm580, %v579, %v569
      %s594 = scalar_lea.vmem %s1, 10
      %v595 = vld [vmem:[%s594] sm:$0x3]
      %v596 = vlaneseq
      %v597 = vshrl.u32 %v596, 7
      %v598 = vsub.s32 0, %v597
      %v599 = vrot.slane %v595, %v598
      %601 = vbcast.lane.b32.xlu0 %v599, 256
      %v602 = vpop.permute.xlu0 %601
      %v603 = vlaneseq
      %v604 = vshrl.u32 %v603, 7
      %v605 = vsub.s32 1, %v604
      %v606 = vrot.slane %v595, %v605
      %608 = vbcast.lane.b32.xlu0 %v606, 256
      %v609 = vpop.permute.xlu0 %608
      %v610 = vmul.f32 %v602, %v581
      %v611 = vmul.f32 %v602, %v582
      %v612 = vmul.f32 %v602, %v583
      %v613 = vmul.f32 %v602, %v584
      %v614 = vmul.f32 %v602, %v585
      %v615 = vmul.f32 %v602, %v593
      %v616 = vmul.f32 %v609, %v581
      %v617 = vmul.f32 %v609, %v582
      %v618 = vmul.f32 %v609, %v583
      %v619 = vmul.f32 %v609, %v584
      %v620 = vmul.f32 %v609, %v585
      %v621 = vmul.f32 %v609, %v593
      %v622 = vadd.f32 %v556, %v610
      %v623 = vadd.f32 %v557, %v611
      %v624 = vadd.f32 %v558, %v612
      %v625 = vadd.f32 %v559, %v613
      %v626 = vadd.f32 %v560, %v614
      %v627 = vadd.f32 %v561, %v615
      %v628 = vadd.f32 %v562, %v616
      %v629 = vadd.f32 %v563, %v617
      %v630 = vadd.f32 %v564, %v618
      %v631 = vadd.f32 %v565, %v619
      %v632 = vadd.f32 %v566, %v620
      %v633 = vadd.f32 %v567, %v621
      %634 = vrot.lane.b32.xlu0 %v252, 97
      %v635 = vpop.permute.xlu0 %634
      %636 = vrot.lane.b32.xlu0 %v253, 97
      %v637 = vpop.permute.xlu0 %636
      %638 = vrot.lane.b32.xlu0 %v254, 97
      %v639 = vpop.permute.xlu0 %638
      %640 = vrot.lane.b32.xlu0 %v255, 97
      %v641 = vpop.permute.xlu0 %640
      %642 = vrot.lane.b32.xlu0 %v256, 97
      %v643 = vpop.permute.xlu0 %642
      %644 = vrot.lane.b32.xlu0 %v257, 97
      %v645 = vpop.permute.xlu0 %644
      %vm646 = vcmask 793600
      %v647 = vsel %vm646, %v635, %v637
      %v648 = vsel %vm646, %v637, %v639
      %v649 = vsel %vm646, %v639, %v641
      %v650 = vsel %vm646, %v641, %v643
      %v651 = vsel %vm646, %v643, %v645
      %v659 = vsel %vm646, %v645, %v635
      %s660 = scalar_lea.vmem %s1, 12
      %v661 = vld [vmem:[%s660] sm:$0x3]
      %v662 = vlaneseq
      %v663 = vshrl.u32 %v662, 7
      %v664 = vsub.s32 0, %v663
      %v665 = vrot.slane %v661, %v664
      %667 = vbcast.lane.b32.xlu0 %v665, 256
      %v668 = vpop.permute.xlu0 %667
      %v669 = vlaneseq
      %v670 = vshrl.u32 %v669, 7
      %v671 = vsub.s32 1, %v670
      %v672 = vrot.slane %v661, %v671
      %674 = vbcast.lane.b32.xlu0 %v672, 256
      %v675 = vpop.permute.xlu0 %674
      %v676 = vmul.f32 %v668, %v647
      %v677 = vmul.f32 %v668, %v648
      %v678 = vmul.f32 %v668, %v649
      %v679 = vmul.f32 %v668, %v650
      %v680 = vmul.f32 %v668, %v651
      %v681 = vmul.f32 %v668, %v659
      %v682 = vmul.f32 %v675, %v647
      %v683 = vmul.f32 %v675, %v648
      %v684 = vmul.f32 %v675, %v649
      %v685 = vmul.f32 %v675, %v650
      %v686 = vmul.f32 %v675, %v651
      %v687 = vmul.f32 %v675, %v659
      %v688 = vadd.f32 %v622, %v676
      %v689 = vadd.f32 %v623, %v677
      %v690 = vadd.f32 %v624, %v678
      %v691 = vadd.f32 %v625, %v679
      %v692 = vadd.f32 %v626, %v680
      %v693 = vadd.f32 %v627, %v681
      %v694 = vadd.f32 %v628, %v682
      %v695 = vadd.f32 %v629, %v683
      %v696 = vadd.f32 %v630, %v684
      %v697 = vadd.f32 %v631, %v685
      %v698 = vadd.f32 %v632, %v686
      %v699 = vadd.f32 %v633, %v687
      %700 = vrot.lane.b32.xlu0 %v252, 96
      %v701 = vpop.permute.xlu0 %700
      %702 = vrot.lane.b32.xlu0 %v253, 96
      %v703 = vpop.permute.xlu0 %702
      %704 = vrot.lane.b32.xlu0 %v254, 96
      %v705 = vpop.permute.xlu0 %704
      %706 = vrot.lane.b32.xlu0 %v255, 96
      %v707 = vpop.permute.xlu0 %706
      %708 = vrot.lane.b32.xlu0 %v256, 96
      %v709 = vpop.permute.xlu0 %708
      %710 = vrot.lane.b32.xlu0 %v257, 96
      %v711 = vpop.permute.xlu0 %710
      %vm712 = vcmask 785408
      %v713 = vsel %vm712, %v701, %v703
      %v714 = vsel %vm712, %v703, %v705
      %v715 = vsel %vm712, %v705, %v707
      %v716 = vsel %vm712, %v707, %v709
      %v717 = vsel %vm712, %v709, %v711
      %v725 = vsel %vm712, %v711, %v701
      %s726 = scalar_lea.vmem %s1, 14
      %v727 = vld [vmem:[%s726] sm:$0x3]
      %v728 = vlaneseq
      %v729 = vshrl.u32 %v728, 7
      %v730 = vsub.s32 0, %v729
      %v731 = vrot.slane %v727, %v730
      %733 = vbcast.lane.b32.xlu0 %v731, 256
      %v734 = vpop.permute.xlu0 %733
      %v735 = vlaneseq
      %v736 = vshrl.u32 %v735, 7
      %v737 = vsub.s32 1, %v736
      %v738 = vrot.slane %v727, %v737
      %740 = vbcast.lane.b32.xlu0 %v738, 256
      %v741 = vpop.permute.xlu0 %740
      %v742 = vmul.f32 %v734, %v713
      %v743 = vmul.f32 %v734, %v714
      %v744 = vmul.f32 %v734, %v715
      %v745 = vmul.f32 %v734, %v716
      %v746 = vmul.f32 %v734, %v717
      %v747 = vmul.f32 %v734, %v725
      %v748 = vmul.f32 %v741, %v713
      %v749 = vmul.f32 %v741, %v714
      %v750 = vmul.f32 %v741, %v715
      %v751 = vmul.f32 %v741, %v716
      %v752 = vmul.f32 %v741, %v717
      %v753 = vmul.f32 %v741, %v725
      %v754 = vadd.f32 %v688, %v742
      %v755 = vadd.f32 %v689, %v743
      %v756 = vadd.f32 %v690, %v744
      %v757 = vadd.f32 %v691, %v745
      %v758 = vadd.f32 %v692, %v746
      %v759 = vadd.f32 %v693, %v747
      %v760 = vadd.f32 %v694, %v748
      %v761 = vadd.f32 %v695, %v749
      %v762 = vadd.f32 %v696, %v750
      %v763 = vadd.f32 %v697, %v751
      %v764 = vadd.f32 %v698, %v752
      %v765 = vadd.f32 %v699, %v753
      %766 = vrot.lane.b32.xlu0 %v252, 95
      %v767 = vpop.permute.xlu0 %766
      %768 = vrot.lane.b32.xlu0 %v253, 95
      %v769 = vpop.permute.xlu0 %768
      %770 = vrot.lane.b32.xlu0 %v254, 95
      %v771 = vpop.permute.xlu0 %770
      %772 = vrot.lane.b32.xlu0 %v255, 95
      %v773 = vpop.permute.xlu0 %772
      %774 = vrot.lane.b32.xlu0 %v256, 95
      %v775 = vpop.permute.xlu0 %774
      %776 = vrot.lane.b32.xlu0 %v257, 95
      %v777 = vpop.permute.xlu0 %776
      %vm778 = vcmask 777216
      %v779 = vsel %vm778, %v767, %v769
      %v780 = vsel %vm778, %v769, %v771
      %v781 = vsel %vm778, %v771, %v773
      %v782 = vsel %vm778, %v773, %v775
      %v783 = vsel %vm778, %v775, %v777
      %v791 = vsel %vm778, %v777, %v767
      %s792 = scalar_lea.vmem %s1, 16
      %v793 = vld [vmem:[%s792] sm:$0x3]
      %v794 = vlaneseq
      %v795 = vshrl.u32 %v794, 7
      %v796 = vsub.s32 0, %v795
      %v797 = vrot.slane %v793, %v796
      %799 = vbcast.lane.b32.xlu0 %v797, 256
      %v800 = vpop.permute.xlu0 %799
      %v801 = vlaneseq
      %v802 = vshrl.u32 %v801, 7
      %v803 = vsub.s32 1, %v802
      %v804 = vrot.slane %v793, %v803
      %806 = vbcast.lane.b32.xlu0 %v804, 256
      %v807 = vpop.permute.xlu0 %806
      %v808 = vmul.f32 %v800, %v779
      %v809 = vmul.f32 %v800, %v780
      %v810 = vmul.f32 %v800, %v781
      %v811 = vmul.f32 %v800, %v782
      %v812 = vmul.f32 %v800, %v783
      %v813 = vmul.f32 %v800, %v791
      %v814 = vmul.f32 %v807, %v779
      %v815 = vmul.f32 %v807, %v780
      %v816 = vmul.f32 %v807, %v781
      %v817 = vmul.f32 %v807, %v782
      %v818 = vmul.f32 %v807, %v783
      %v819 = vmul.f32 %v807, %v791
      %v820 = vadd.f32 %v754, %v808
      %v821 = vadd.f32 %v755, %v809
      %v822 = vadd.f32 %v756, %v810
      %v823 = vadd.f32 %v757, %v811
      %v824 = vadd.f32 %v758, %v812
      %v825 = vadd.f32 %v759, %v813
      %v826 = vadd.f32 %v760, %v814
      %v827 = vadd.f32 %v761, %v815
      %v828 = vadd.f32 %v762, %v816
      %v829 = vadd.f32 %v763, %v817
      %v830 = vadd.f32 %v764, %v818
      %v831 = vadd.f32 %v765, %v819
      %v832 = vrot.slane %v820, 4
      %v833 = vadd.f32 %v820, %v832
      %v834 = vrot.slane %v833, 2
      %v835 = vadd.f32 %v833, %v834
      %v836 = vrot.slane %v835, 1
      %v837 = vadd.f32 %v835, %v836
      %v838 = vrot.slane %v821, 4
      %v839 = vadd.f32 %v821, %v838
      %v840 = vrot.slane %v839, 2
      %v841 = vadd.f32 %v839, %v840
      %v842 = vrot.slane %v841, 1
      %v843 = vadd.f32 %v841, %v842
      %v844 = vrot.slane %v822, 4
      %v845 = vadd.f32 %v822, %v844
      %v846 = vrot.slane %v845, 2
      %v847 = vadd.f32 %v845, %v846
      %v848 = vrot.slane %v847, 1
      %v849 = vadd.f32 %v847, %v848
      %v850 = vrot.slane %v823, 4
      %v851 = vadd.f32 %v823, %v850
      %v852 = vrot.slane %v851, 2
      %v853 = vadd.f32 %v851, %v852
      %v854 = vrot.slane %v853, 1
      %v855 = vadd.f32 %v853, %v854
      %v856 = vrot.slane %v824, 4
      %v857 = vadd.f32 %v824, %v856
      %v858 = vrot.slane %v857, 2
      %v859 = vadd.f32 %v857, %v858
      %v860 = vrot.slane %v859, 1
      %v861 = vadd.f32 %v859, %v860
      %v862 = vrot.slane %v825, 4
      %v863 = vadd.f32 %v825, %v862
      %v864 = vrot.slane %v863, 2
      %v865 = vadd.f32 %v863, %v864
      %v866 = vrot.slane %v865, 1
      %v867 = vadd.f32 %v865, %v866
      %v868 = vrot.slane %v826, 4
      %v869 = vadd.f32 %v826, %v868
      %v870 = vrot.slane %v869, 2
      %v871 = vadd.f32 %v869, %v870
      %v872 = vrot.slane %v871, 1
      %v873 = vadd.f32 %v871, %v872
      %v874 = vrot.slane %v827, 4
      %v875 = vadd.f32 %v827, %v874
      %v876 = vrot.slane %v875, 2
      %v877 = vadd.f32 %v875, %v876
      %v878 = vrot.slane %v877, 1
      %v879 = vadd.f32 %v877, %v878
      %v880 = vrot.slane %v828, 4
      %v881 = vadd.f32 %v828, %v880
      %v882 = vrot.slane %v881, 2
      %v883 = vadd.f32 %v881, %v882
      %v884 = vrot.slane %v883, 1
      %v885 = vadd.f32 %v883, %v884
      %v886 = vrot.slane %v829, 4
      %v887 = vadd.f32 %v829, %v886
      %v888 = vrot.slane %v887, 2
      %v889 = vadd.f32 %v887, %v888
      %v890 = vrot.slane %v889, 1
      %v891 = vadd.f32 %v889, %v890
      %v892 = vrot.slane %v830, 4
      %v893 = vadd.f32 %v830, %v892
      %v894 = vrot.slane %v893, 2
      %v895 = vadd.f32 %v893, %v894
      %v896 = vrot.slane %v895, 1
      %v897 = vadd.f32 %v895, %v896
      %v898 = vrot.slane %v831, 4
      %v899 = vadd.f32 %v831, %v898
      %v900 = vrot.slane %v899, 2
      %v901 = vadd.f32 %v899, %v900
      %v902 = vrot.slane %v901, 1
      %v903 = vadd.f32 %v901, %v902
      %v904 = vld [vmem:[%s2] sm:$0x3]
      %906 = vset.pattern.permute.xlu0 0
      %907 = vperm.xlu0 %906, %v904
      %v908 = vpop.permute.xlu0 %907
      %v909 = vrot.slane %v908, 1
      %v912 = vadd.f32 %v837, %v908
      %v913 = vadd.f32 %v843, %v908
      %v914 = vadd.f32 %v849, %v908
      %v915 = vadd.f32 %v855, %v908
      %v916 = vadd.f32 %v861, %v908
      %v917 = vadd.f32 %v867, %v908
      %v918 = vadd.f32 %v873, %v909
      %v919 = vadd.f32 %v879, %v909
      %v920 = vadd.f32 %v885, %v909
      %v921 = vadd.f32 %v891, %v909
      %v922 = vadd.f32 %v897, %v909
      %v923 = vadd.f32 %v903, %v909
      %v924 = vmax.f32 %v912, 0.0
      %v925 = vmax.f32 %v913, 0.0
      %v926 = vmax.f32 %v914, 0.0
      %v927 = vmax.f32 %v915, 0.0
      %v928 = vmax.f32 %v916, 0.0
      %v929 = vmax.f32 %v917, 0.0
      %v930 = vmax.f32 %v918, 0.0
      %v931 = vmax.f32 %v919, 0.0
      %v932 = vmax.f32 %v920, 0.0
      %v933 = vmax.f32 %v921, 0.0
      %v934 = vmax.f32 %v922, 0.0
      %v935 = vmax.f32 %v923, 0.0
      %v936 = vld [vmem:[%s3] sm:$0x3]
      %938 = vset.pattern.permute.xlu0 0
      %939 = vperm.xlu0 %938, %v936
      %v940 = vpop.permute.xlu0 %939
      %v941 = vrot.slane %v940, 1
      %v944 = vmul.f32 %v924, %v940
      %v945 = vmul.f32 %v925, %v940
      %v946 = vmul.f32 %v926, %v940
      %v947 = vmul.f32 %v927, %v940
      %v948 = vmul.f32 %v928, %v940
      %v949 = vmul.f32 %v929, %v940
      %v950 = vmul.f32 %v930, %v941
      %v951 = vmul.f32 %v931, %v941
      %v952 = vmul.f32 %v932, %v941
      %v953 = vmul.f32 %v933, %v941
      %v954 = vmul.f32 %v934, %v941
      %v955 = vmul.f32 %v935, %v941
      %v956 = vld [vmem:[%s4] sm:$0x3]
      %958 = vset.pattern.permute.xlu0 0
      %959 = vperm.xlu0 %958, %v956
      %v960 = vpop.permute.xlu0 %959
      %v961 = vrot.slane %v960, 1
      %v964 = vadd.f32 %v944, %v960
      %v965 = vadd.f32 %v945, %v960
      %v966 = vadd.f32 %v946, %v960
      %v967 = vadd.f32 %v947, %v960
      %v968 = vadd.f32 %v948, %v960
      %v969 = vadd.f32 %v949, %v960
      %v970 = vadd.f32 %v950, %v961
      %v971 = vadd.f32 %v951, %v961
      %v972 = vadd.f32 %v952, %v961
      %v973 = vadd.f32 %v953, %v961
      %v974 = vadd.f32 %v954, %v961
      %v975 = vadd.f32 %v955, %v961
      %v976 = vmax.f32 %v964, 0.0
      %v977 = vmax.f32 %v965, 0.0
      %v978 = vmax.f32 %v966, 0.0
      %v979 = vmax.f32 %v967, 0.0
      %v980 = vmax.f32 %v968, 0.0
      %v981 = vmax.f32 %v969, 0.0
      %v982 = vmax.f32 %v970, 0.0
      %v983 = vmax.f32 %v971, 0.0
      %v984 = vmax.f32 %v972, 0.0
      %v985 = vmax.f32 %v973, 0.0
      %v986 = vmax.f32 %v974, 0.0
      %v987 = vmax.f32 %v975, 0.0
      %v989 = vlaneseq
      %v990 = vshrl.u32 %v989, 7
      %v991 = vsub.s32 0, %v990
      %v992 = vrot.slane %v258, %v991
      %v993 = vlaneseq
      %v994 = vshrl.u32 %v993, 7
      %v995 = vsub.s32 1, %v994
      %v996 = vrot.slane %v258, %v995
      %v997 = vlaneseq
      %v998 = vshrl.u32 %v997, 7
      %v999 = vsub.s32 2, %v998
      %v1000 = vrot.slane %v258, %v999
      %v1001 = vlaneseq
      %v1002 = vshrl.u32 %v1001, 7
      %v1003 = vsub.s32 3, %v1002
      %v1004 = vrot.slane %v258, %v1003
      %v1005 = vlaneseq
      %v1006 = vshrl.u32 %v1005, 7
      %v1007 = vsub.s32 4, %v1006
      %v1008 = vrot.slane %v258, %v1007
      %v1009 = vlaneseq
      %v1010 = vshrl.u32 %v1009, 7
      %v1011 = vsub.s32 5, %v1010
      %v1012 = vrot.slane %v258, %v1011
      %v1019 = vmul.f32 %v976, %v992
      %v1020 = vmul.f32 %v977, %v996
      %v1021 = vmul.f32 %v978, %v1000
      %v1022 = vmul.f32 %v979, %v1004
      %v1023 = vmul.f32 %v980, %v1008
      %v1024 = vmul.f32 %v981, %v1012
      %v1025 = vmul.f32 %v982, %v992
      %v1026 = vmul.f32 %v983, %v996
      %v1027 = vmul.f32 %v984, %v1000
      %v1028 = vmul.f32 %v985, %v1004
      %v1029 = vmul.f32 %v986, %v1008
      %v1030 = vmul.f32 %v987, %v1012
      %v1043 = vrot.slane %v1025, 7
      %vm1044 = vcmask 1041409
      %v1045 = vsel %vm1044, %v1043, %v1019
      %v1046 = vrot.slane %v1026, 7
      %v1047 = vsel %vm1044, %v1046, %v1020
      %v1048 = vrot.slane %v1027, 7
      %v1049 = vsel %vm1044, %v1048, %v1021
      %v1050 = vrot.slane %v1028, 7
      %v1051 = vsel %vm1044, %v1050, %v1022
      %v1052 = vrot.slane %v1029, 7
      %v1053 = vsel %vm1044, %v1052, %v1023
      %v1054 = vrot.slane %v1030, 7
      %v1055 = vsel %vm1044, %v1054, %v1024
      %1062 = vst [vmem:[%s251] sm:$0x3] %v1045
      %1063 = vst [vmem:[%s251 + $0x8] sm:$0x3] %v1047
      %1064 = vst [vmem:[%s251 + $0x10] sm:$0x3] %v1049
      %1065 = vst [vmem:[%s251 + $0x18] sm:$0x3] %v1051
      %1066 = vst [vmem:[%s251 + $0x20] sm:$0x3] %v1053
      %1067 = vst [vmem:[%s251 + $0x28] sm:$0x3] %v1055
      %1068 = vrot.lane.b32.xlu0 %v257, 66
      %v1069 = vpop.permute.xlu0 %1068
      %1071 = vrot.lane.b32.xlu0 %v252, 66
      %v1072 = vpop.permute.xlu0 %1071
      %1073 = vrot.lane.b32.xlu0 %v253, 66
      %v1074 = vpop.permute.xlu0 %1073
      %1075 = vrot.lane.b32.xlu0 %v254, 66
      %v1076 = vpop.permute.xlu0 %1075
      %1077 = vrot.lane.b32.xlu0 %v255, 66
      %v1078 = vpop.permute.xlu0 %1077
      %1079 = vrot.lane.b32.xlu0 %v256, 66
      %v1080 = vpop.permute.xlu0 %1079
      %vm1081 = vcmask 539648
      %v1082 = vsel %vm1081, %v1072, %v1074
      %v1083 = vsel %vm1081, %v1074, %v1076
      %v1084 = vsel %vm1081, %v1076, %v1078
      %v1085 = vsel %vm1081, %v1078, %v1080
      %v1086 = vsel %vm1081, %v1080, %v1069
      %v1093 = vsel %vm1081, %v1069, %v1072
      %s1094 = scalar_lea.vmem %s1, 18
      %v1095 = vld [vmem:[%s1094] sm:$0x3]
      %v1096 = vlaneseq
      %v1097 = vshrl.u32 %v1096, 7
      %v1098 = vsub.s32 0, %v1097
      %v1099 = vrot.slane %v1095, %v1098
      %1101 = vbcast.lane.b32.xlu0 %v1099, 256
      %v1102 = vpop.permute.xlu0 %1101
      %v1103 = vlaneseq
      %v1104 = vshrl.u32 %v1103, 7
      %v1105 = vsub.s32 1, %v1104
      %v1106 = vrot.slane %v1095, %v1105
      %1108 = vbcast.lane.b32.xlu0 %v1106, 256
      %v1109 = vpop.permute.xlu0 %1108
      %v1110 = vmul.f32 %v1102, %v1093
      %v1111 = vmul.f32 %v1102, %v1082
      %v1112 = vmul.f32 %v1102, %v1083
      %v1113 = vmul.f32 %v1102, %v1084
      %v1114 = vmul.f32 %v1102, %v1085
      %v1115 = vmul.f32 %v1102, %v1086
      %v1116 = vmul.f32 %v1109, %v1093
      %v1117 = vmul.f32 %v1109, %v1082
      %v1118 = vmul.f32 %v1109, %v1083
      %v1119 = vmul.f32 %v1109, %v1084
      %v1120 = vmul.f32 %v1109, %v1085
      %v1121 = vmul.f32 %v1109, %v1086
      %v1122 = vadd.f32 %v1110, 0.0
      %v1123 = vadd.f32 %v1111, 0.0
      %v1124 = vadd.f32 %v1112, 0.0
      %v1125 = vadd.f32 %v1113, 0.0
      %v1126 = vadd.f32 %v1114, 0.0
      %v1127 = vadd.f32 %v1115, 0.0
      %v1128 = vadd.f32 %v1116, 0.0
      %v1129 = vadd.f32 %v1117, 0.0
      %v1130 = vadd.f32 %v1118, 0.0
      %v1131 = vadd.f32 %v1119, 0.0
      %v1132 = vadd.f32 %v1120, 0.0
      %v1133 = vadd.f32 %v1121, 0.0
      %1134 = vrot.lane.b32.xlu0 %v257, 64
      %v1135 = vpop.permute.xlu0 %1134
      %1137 = vrot.lane.b32.xlu0 %v252, 64
      %v1138 = vpop.permute.xlu0 %1137
      %1139 = vrot.lane.b32.xlu0 %v253, 64
      %v1140 = vpop.permute.xlu0 %1139
      %1141 = vrot.lane.b32.xlu0 %v254, 64
      %v1142 = vpop.permute.xlu0 %1141
      %1143 = vrot.lane.b32.xlu0 %v255, 64
      %v1144 = vpop.permute.xlu0 %1143
      %1145 = vrot.lane.b32.xlu0 %v256, 64
      %v1146 = vpop.permute.xlu0 %1145
      %vm1147 = vcmask 523264
      %v1148 = vsel %vm1147, %v1138, %v1140
      %v1149 = vsel %vm1147, %v1140, %v1142
      %v1150 = vsel %vm1147, %v1142, %v1144
      %v1151 = vsel %vm1147, %v1144, %v1146
      %v1152 = vsel %vm1147, %v1146, %v1135
      %v1159 = vsel %vm1147, %v1135, %v1138
      %s1160 = scalar_lea.vmem %s1, 20
      %v1161 = vld [vmem:[%s1160] sm:$0x3]
      %v1162 = vlaneseq
      %v1163 = vshrl.u32 %v1162, 7
      %v1164 = vsub.s32 0, %v1163
      %v1165 = vrot.slane %v1161, %v1164
      %1167 = vbcast.lane.b32.xlu0 %v1165, 256
      %v1168 = vpop.permute.xlu0 %1167
      %v1169 = vlaneseq
      %v1170 = vshrl.u32 %v1169, 7
      %v1171 = vsub.s32 1, %v1170
      %v1172 = vrot.slane %v1161, %v1171
      %1174 = vbcast.lane.b32.xlu0 %v1172, 256
      %v1175 = vpop.permute.xlu0 %1174
      %v1176 = vmul.f32 %v1168, %v1159
      %v1177 = vmul.f32 %v1168, %v1148
      %v1178 = vmul.f32 %v1168, %v1149
      %v1179 = vmul.f32 %v1168, %v1150
      %v1180 = vmul.f32 %v1168, %v1151
      %v1181 = vmul.f32 %v1168, %v1152
      %v1182 = vmul.f32 %v1175, %v1159
      %v1183 = vmul.f32 %v1175, %v1148
      %v1184 = vmul.f32 %v1175, %v1149
      %v1185 = vmul.f32 %v1175, %v1150
      %v1186 = vmul.f32 %v1175, %v1151
      %v1187 = vmul.f32 %v1175, %v1152
      %v1188 = vadd.f32 %v1122, %v1176
      %v1189 = vadd.f32 %v1123, %v1177
      %v1190 = vadd.f32 %v1124, %v1178
      %v1191 = vadd.f32 %v1125, %v1179
      %v1192 = vadd.f32 %v1126, %v1180
      %v1193 = vadd.f32 %v1127, %v1181
      %v1194 = vadd.f32 %v1128, %v1182
      %v1195 = vadd.f32 %v1129, %v1183
      %v1196 = vadd.f32 %v1130, %v1184
      %v1197 = vadd.f32 %v1131, %v1185
      %v1198 = vadd.f32 %v1132, %v1186
      %v1199 = vadd.f32 %v1133, %v1187
      %1200 = vrot.lane.b32.xlu0 %v257, 62
      %v1201 = vpop.permute.xlu0 %1200
      %1203 = vrot.lane.b32.xlu0 %v252, 62
      %v1204 = vpop.permute.xlu0 %1203
      %1205 = vrot.lane.b32.xlu0 %v253, 62
      %v1206 = vpop.permute.xlu0 %1205
      %1207 = vrot.lane.b32.xlu0 %v254, 62
      %v1208 = vpop.permute.xlu0 %1207
      %1209 = vrot.lane.b32.xlu0 %v255, 62
      %v1210 = vpop.permute.xlu0 %1209
      %1211 = vrot.lane.b32.xlu0 %v256, 62
      %v1212 = vpop.permute.xlu0 %1211
      %vm1213 = vcmask 506880
      %v1214 = vsel %vm1213, %v1204, %v1206
      %v1215 = vsel %vm1213, %v1206, %v1208
      %v1216 = vsel %vm1213, %v1208, %v1210
      %v1217 = vsel %vm1213, %v1210, %v1212
      %v1218 = vsel %vm1213, %v1212, %v1201
      %v1225 = vsel %vm1213, %v1201, %v1204
      %s1226 = scalar_lea.vmem %s1, 22
      %v1227 = vld [vmem:[%s1226] sm:$0x3]
      %v1228 = vlaneseq
      %v1229 = vshrl.u32 %v1228, 7
      %v1230 = vsub.s32 0, %v1229
      %v1231 = vrot.slane %v1227, %v1230
      %1233 = vbcast.lane.b32.xlu0 %v1231, 256
      %v1234 = vpop.permute.xlu0 %1233
      %v1235 = vlaneseq
      %v1236 = vshrl.u32 %v1235, 7
      %v1237 = vsub.s32 1, %v1236
      %v1238 = vrot.slane %v1227, %v1237
      %1240 = vbcast.lane.b32.xlu0 %v1238, 256
      %v1241 = vpop.permute.xlu0 %1240
      %v1242 = vmul.f32 %v1234, %v1225
      %v1243 = vmul.f32 %v1234, %v1214
      %v1244 = vmul.f32 %v1234, %v1215
      %v1245 = vmul.f32 %v1234, %v1216
      %v1246 = vmul.f32 %v1234, %v1217
      %v1247 = vmul.f32 %v1234, %v1218
      %v1248 = vmul.f32 %v1241, %v1225
      %v1249 = vmul.f32 %v1241, %v1214
      %v1250 = vmul.f32 %v1241, %v1215
      %v1251 = vmul.f32 %v1241, %v1216
      %v1252 = vmul.f32 %v1241, %v1217
      %v1253 = vmul.f32 %v1241, %v1218
      %v1254 = vadd.f32 %v1188, %v1242
      %v1255 = vadd.f32 %v1189, %v1243
      %v1256 = vadd.f32 %v1190, %v1244
      %v1257 = vadd.f32 %v1191, %v1245
      %v1258 = vadd.f32 %v1192, %v1246
      %v1259 = vadd.f32 %v1193, %v1247
      %v1260 = vadd.f32 %v1194, %v1248
      %v1261 = vadd.f32 %v1195, %v1249
      %v1262 = vadd.f32 %v1196, %v1250
      %v1263 = vadd.f32 %v1197, %v1251
      %v1264 = vadd.f32 %v1198, %v1252
      %v1265 = vadd.f32 %v1199, %v1253
      %1266 = vrot.lane.b32.xlu0 %v257, 2
      %v1267 = vpop.permute.xlu0 %1266
      %1269 = vrot.lane.b32.xlu0 %v252, 2
      %v1270 = vpop.permute.xlu0 %1269
      %1271 = vrot.lane.b32.xlu0 %v253, 2
      %v1272 = vpop.permute.xlu0 %1271
      %1273 = vrot.lane.b32.xlu0 %v254, 2
      %v1274 = vpop.permute.xlu0 %1273
      %1275 = vrot.lane.b32.xlu0 %v255, 2
      %v1276 = vpop.permute.xlu0 %1275
      %1277 = vrot.lane.b32.xlu0 %v256, 2
      %v1278 = vpop.permute.xlu0 %1277
      %vm1279 = vcmask 15360
      %v1280 = vsel %vm1279, %v1270, %v1272
      %v1281 = vsel %vm1279, %v1272, %v1274
      %v1282 = vsel %vm1279, %v1274, %v1276
      %v1283 = vsel %vm1279, %v1276, %v1278
      %v1284 = vsel %vm1279, %v1278, %v1267
      %v1291 = vsel %vm1279, %v1267, %v1270
      %s1292 = scalar_lea.vmem %s1, 24
      %v1293 = vld [vmem:[%s1292] sm:$0x3]
      %v1294 = vlaneseq
      %v1295 = vshrl.u32 %v1294, 7
      %v1296 = vsub.s32 0, %v1295
      %v1297 = vrot.slane %v1293, %v1296
      %1299 = vbcast.lane.b32.xlu0 %v1297, 256
      %v1300 = vpop.permute.xlu0 %1299
      %v1301 = vlaneseq
      %v1302 = vshrl.u32 %v1301, 7
      %v1303 = vsub.s32 1, %v1302
      %v1304 = vrot.slane %v1293, %v1303
      %1306 = vbcast.lane.b32.xlu0 %v1304, 256
      %v1307 = vpop.permute.xlu0 %1306
      %v1308 = vmul.f32 %v1300, %v1291
      %v1309 = vmul.f32 %v1300, %v1280
      %v1310 = vmul.f32 %v1300, %v1281
      %v1311 = vmul.f32 %v1300, %v1282
      %v1312 = vmul.f32 %v1300, %v1283
      %v1313 = vmul.f32 %v1300, %v1284
      %v1314 = vmul.f32 %v1307, %v1291
      %v1315 = vmul.f32 %v1307, %v1280
      %v1316 = vmul.f32 %v1307, %v1281
      %v1317 = vmul.f32 %v1307, %v1282
      %v1318 = vmul.f32 %v1307, %v1283
      %v1319 = vmul.f32 %v1307, %v1284
      %v1320 = vadd.f32 %v1254, %v1308
      %v1321 = vadd.f32 %v1255, %v1309
      %v1322 = vadd.f32 %v1256, %v1310
      %v1323 = vadd.f32 %v1257, %v1311
      %v1324 = vadd.f32 %v1258, %v1312
      %v1325 = vadd.f32 %v1259, %v1313
      %v1326 = vadd.f32 %v1260, %v1314
      %v1327 = vadd.f32 %v1261, %v1315
      %v1328 = vadd.f32 %v1262, %v1316
      %v1329 = vadd.f32 %v1263, %v1317
      %v1330 = vadd.f32 %v1264, %v1318
      %v1331 = vadd.f32 %v1265, %v1319
      %s1332 = scalar_lea.vmem %s1, 26
      %v1333 = vld [vmem:[%s1332] sm:$0x3]
      %v1334 = vlaneseq
      %v1335 = vshrl.u32 %v1334, 7
      %v1336 = vsub.s32 0, %v1335
      %v1337 = vrot.slane %v1333, %v1336
      %1339 = vbcast.lane.b32.xlu0 %v1337, 256
      %v1340 = vpop.permute.xlu0 %1339
      %v1341 = vlaneseq
      %v1342 = vshrl.u32 %v1341, 7
      %v1343 = vsub.s32 1, %v1342
      %v1344 = vrot.slane %v1333, %v1343
      %1346 = vbcast.lane.b32.xlu0 %v1344, 256
      %v1347 = vpop.permute.xlu0 %1346
      %v1348 = vmul.f32 %v1340, %v252
      %v1349 = vmul.f32 %v1340, %v253
      %v1350 = vmul.f32 %v1340, %v254
      %v1351 = vmul.f32 %v1340, %v255
      %v1352 = vmul.f32 %v1340, %v256
      %v1353 = vmul.f32 %v1340, %v257
      %v1354 = vmul.f32 %v1347, %v252
      %v1355 = vmul.f32 %v1347, %v253
      %v1356 = vmul.f32 %v1347, %v254
      %v1357 = vmul.f32 %v1347, %v255
      %v1358 = vmul.f32 %v1347, %v256
      %v1359 = vmul.f32 %v1347, %v257
      %v1360 = vadd.f32 %v1320, %v1348
      %v1361 = vadd.f32 %v1321, %v1349
      %v1362 = vadd.f32 %v1322, %v1350
      %v1363 = vadd.f32 %v1323, %v1351
      %v1364 = vadd.f32 %v1324, %v1352
      %v1365 = vadd.f32 %v1325, %v1353
      %v1366 = vadd.f32 %v1326, %v1354
      %v1367 = vadd.f32 %v1327, %v1355
      %v1368 = vadd.f32 %v1328, %v1356
      %v1369 = vadd.f32 %v1329, %v1357
      %v1370 = vadd.f32 %v1330, %v1358
      %v1371 = vadd.f32 %v1331, %v1359
      %1372 = vrot.lane.b32.xlu0 %v252, 126
      %v1373 = vpop.permute.xlu0 %1372
      %1374 = vrot.lane.b32.xlu0 %v253, 126
      %v1375 = vpop.permute.xlu0 %1374
      %1376 = vrot.lane.b32.xlu0 %v254, 126
      %v1377 = vpop.permute.xlu0 %1376
      %1378 = vrot.lane.b32.xlu0 %v255, 126
      %v1379 = vpop.permute.xlu0 %1378
      %1380 = vrot.lane.b32.xlu0 %v256, 126
      %v1381 = vpop.permute.xlu0 %1380
      %1382 = vrot.lane.b32.xlu0 %v257, 126
      %v1383 = vpop.permute.xlu0 %1382
      %vm1384 = vcmask 1031168
      %v1385 = vsel %vm1384, %v1373, %v1375
      %v1386 = vsel %vm1384, %v1375, %v1377
      %v1387 = vsel %vm1384, %v1377, %v1379
      %v1388 = vsel %vm1384, %v1379, %v1381
      %v1389 = vsel %vm1384, %v1381, %v1383
      %v1397 = vsel %vm1384, %v1383, %v1373
      %s1398 = scalar_lea.vmem %s1, 28
      %v1399 = vld [vmem:[%s1398] sm:$0x3]
      %v1400 = vlaneseq
      %v1401 = vshrl.u32 %v1400, 7
      %v1402 = vsub.s32 0, %v1401
      %v1403 = vrot.slane %v1399, %v1402
      %1405 = vbcast.lane.b32.xlu0 %v1403, 256
      %v1406 = vpop.permute.xlu0 %1405
      %v1407 = vlaneseq
      %v1408 = vshrl.u32 %v1407, 7
      %v1409 = vsub.s32 1, %v1408
      %v1410 = vrot.slane %v1399, %v1409
      %1412 = vbcast.lane.b32.xlu0 %v1410, 256
      %v1413 = vpop.permute.xlu0 %1412
      %v1414 = vmul.f32 %v1406, %v1385
      %v1415 = vmul.f32 %v1406, %v1386
      %v1416 = vmul.f32 %v1406, %v1387
      %v1417 = vmul.f32 %v1406, %v1388
      %v1418 = vmul.f32 %v1406, %v1389
      %v1419 = vmul.f32 %v1406, %v1397
      %v1420 = vmul.f32 %v1413, %v1385
      %v1421 = vmul.f32 %v1413, %v1386
      %v1422 = vmul.f32 %v1413, %v1387
      %v1423 = vmul.f32 %v1413, %v1388
      %v1424 = vmul.f32 %v1413, %v1389
      %v1425 = vmul.f32 %v1413, %v1397
      %v1426 = vadd.f32 %v1360, %v1414
      %v1427 = vadd.f32 %v1361, %v1415
      %v1428 = vadd.f32 %v1362, %v1416
      %v1429 = vadd.f32 %v1363, %v1417
      %v1430 = vadd.f32 %v1364, %v1418
      %v1431 = vadd.f32 %v1365, %v1419
      %v1432 = vadd.f32 %v1366, %v1420
      %v1433 = vadd.f32 %v1367, %v1421
      %v1434 = vadd.f32 %v1368, %v1422
      %v1435 = vadd.f32 %v1369, %v1423
      %v1436 = vadd.f32 %v1370, %v1424
      %v1437 = vadd.f32 %v1371, %v1425
      %s1438 = scalar_lea.vmem %s1, 30
      %v1439 = vld [vmem:[%s1438] sm:$0x3]
      %v1440 = vlaneseq
      %v1441 = vshrl.u32 %v1440, 7
      %v1442 = vsub.s32 0, %v1441
      %v1443 = vrot.slane %v1439, %v1442
      %1445 = vbcast.lane.b32.xlu0 %v1443, 256
      %v1446 = vpop.permute.xlu0 %1445
      %v1447 = vlaneseq
      %v1448 = vshrl.u32 %v1447, 7
      %v1449 = vsub.s32 1, %v1448
      %v1450 = vrot.slane %v1439, %v1449
      %1452 = vbcast.lane.b32.xlu0 %v1450, 256
      %v1453 = vpop.permute.xlu0 %1452
      %v1454 = vmul.f32 %v1446, %v1082
      %v1455 = vmul.f32 %v1446, %v1083
      %v1456 = vmul.f32 %v1446, %v1084
      %v1457 = vmul.f32 %v1446, %v1085
      %v1458 = vmul.f32 %v1446, %v1086
      %v1459 = vmul.f32 %v1446, %v1093
      %v1460 = vmul.f32 %v1453, %v1082
      %v1461 = vmul.f32 %v1453, %v1083
      %v1462 = vmul.f32 %v1453, %v1084
      %v1463 = vmul.f32 %v1453, %v1085
      %v1464 = vmul.f32 %v1453, %v1086
      %v1465 = vmul.f32 %v1453, %v1093
      %v1466 = vadd.f32 %v1426, %v1454
      %v1467 = vadd.f32 %v1427, %v1455
      %v1468 = vadd.f32 %v1428, %v1456
      %v1469 = vadd.f32 %v1429, %v1457
      %v1470 = vadd.f32 %v1430, %v1458
      %v1471 = vadd.f32 %v1431, %v1459
      %v1472 = vadd.f32 %v1432, %v1460
      %v1473 = vadd.f32 %v1433, %v1461
      %v1474 = vadd.f32 %v1434, %v1462
      %v1475 = vadd.f32 %v1435, %v1463
      %v1476 = vadd.f32 %v1436, %v1464
      %v1477 = vadd.f32 %v1437, %v1465
      %s1478 = scalar_lea.vmem %s1, 32
      %v1479 = vld [vmem:[%s1478] sm:$0x3]
      %v1480 = vlaneseq
      %v1481 = vshrl.u32 %v1480, 7
      %v1482 = vsub.s32 0, %v1481
      %v1483 = vrot.slane %v1479, %v1482
      %1485 = vbcast.lane.b32.xlu0 %v1483, 256
      %v1486 = vpop.permute.xlu0 %1485
      %v1487 = vlaneseq
      %v1488 = vshrl.u32 %v1487, 7
      %v1489 = vsub.s32 1, %v1488
      %v1490 = vrot.slane %v1479, %v1489
      %1492 = vbcast.lane.b32.xlu0 %v1490, 256
      %v1493 = vpop.permute.xlu0 %1492
      %v1494 = vmul.f32 %v1486, %v1148
      %v1495 = vmul.f32 %v1486, %v1149
      %v1496 = vmul.f32 %v1486, %v1150
      %v1497 = vmul.f32 %v1486, %v1151
      %v1498 = vmul.f32 %v1486, %v1152
      %v1499 = vmul.f32 %v1486, %v1159
      %v1500 = vmul.f32 %v1493, %v1148
      %v1501 = vmul.f32 %v1493, %v1149
      %v1502 = vmul.f32 %v1493, %v1150
      %v1503 = vmul.f32 %v1493, %v1151
      %v1504 = vmul.f32 %v1493, %v1152
      %v1505 = vmul.f32 %v1493, %v1159
      %v1506 = vadd.f32 %v1466, %v1494
      %v1507 = vadd.f32 %v1467, %v1495
      %v1508 = vadd.f32 %v1468, %v1496
      %v1509 = vadd.f32 %v1469, %v1497
      %v1510 = vadd.f32 %v1470, %v1498
      %v1511 = vadd.f32 %v1471, %v1499
      %v1512 = vadd.f32 %v1472, %v1500
      %v1513 = vadd.f32 %v1473, %v1501
      %v1514 = vadd.f32 %v1474, %v1502
      %v1515 = vadd.f32 %v1475, %v1503
      %v1516 = vadd.f32 %v1476, %v1504
      %v1517 = vadd.f32 %v1477, %v1505
      %s1518 = scalar_lea.vmem %s1, 34
      %v1519 = vld [vmem:[%s1518] sm:$0x3]
      %v1520 = vlaneseq
      %v1521 = vshrl.u32 %v1520, 7
      %v1522 = vsub.s32 0, %v1521
      %v1523 = vrot.slane %v1519, %v1522
      %1525 = vbcast.lane.b32.xlu0 %v1523, 256
      %v1526 = vpop.permute.xlu0 %1525
      %v1527 = vlaneseq
      %v1528 = vshrl.u32 %v1527, 7
      %v1529 = vsub.s32 1, %v1528
      %v1530 = vrot.slane %v1519, %v1529
      %1532 = vbcast.lane.b32.xlu0 %v1530, 256
      %v1533 = vpop.permute.xlu0 %1532
      %v1534 = vmul.f32 %v1526, %v1214
      %v1535 = vmul.f32 %v1526, %v1215
      %v1536 = vmul.f32 %v1526, %v1216
      %v1537 = vmul.f32 %v1526, %v1217
      %v1538 = vmul.f32 %v1526, %v1218
      %v1539 = vmul.f32 %v1526, %v1225
      %v1540 = vmul.f32 %v1533, %v1214
      %v1541 = vmul.f32 %v1533, %v1215
      %v1542 = vmul.f32 %v1533, %v1216
      %v1543 = vmul.f32 %v1533, %v1217
      %v1544 = vmul.f32 %v1533, %v1218
      %v1545 = vmul.f32 %v1533, %v1225
      %v1546 = vadd.f32 %v1506, %v1534
      %v1547 = vadd.f32 %v1507, %v1535
      %v1548 = vadd.f32 %v1508, %v1536
      %v1549 = vadd.f32 %v1509, %v1537
      %v1550 = vadd.f32 %v1510, %v1538
      %v1551 = vadd.f32 %v1511, %v1539
      %v1552 = vadd.f32 %v1512, %v1540
      %v1553 = vadd.f32 %v1513, %v1541
      %v1554 = vadd.f32 %v1514, %v1542
      %v1555 = vadd.f32 %v1515, %v1543
      %v1556 = vadd.f32 %v1516, %v1544
      %v1557 = vadd.f32 %v1517, %v1545
      %v1558 = vrot.slane %v1546, 4
      %v1559 = vadd.f32 %v1546, %v1558
      %v1560 = vrot.slane %v1559, 2
      %v1561 = vadd.f32 %v1559, %v1560
      %v1562 = vrot.slane %v1561, 1
      %v1563 = vadd.f32 %v1561, %v1562
      %v1564 = vrot.slane %v1547, 4
      %v1565 = vadd.f32 %v1547, %v1564
      %v1566 = vrot.slane %v1565, 2
      %v1567 = vadd.f32 %v1565, %v1566
      %v1568 = vrot.slane %v1567, 1
      %v1569 = vadd.f32 %v1567, %v1568
      %v1570 = vrot.slane %v1548, 4
      %v1571 = vadd.f32 %v1548, %v1570
      %v1572 = vrot.slane %v1571, 2
      %v1573 = vadd.f32 %v1571, %v1572
      %v1574 = vrot.slane %v1573, 1
      %v1575 = vadd.f32 %v1573, %v1574
      %v1576 = vrot.slane %v1549, 4
      %v1577 = vadd.f32 %v1549, %v1576
      %v1578 = vrot.slane %v1577, 2
      %v1579 = vadd.f32 %v1577, %v1578
      %v1580 = vrot.slane %v1579, 1
      %v1581 = vadd.f32 %v1579, %v1580
      %v1582 = vrot.slane %v1550, 4
      %v1583 = vadd.f32 %v1550, %v1582
      %v1584 = vrot.slane %v1583, 2
      %v1585 = vadd.f32 %v1583, %v1584
      %v1586 = vrot.slane %v1585, 1
      %v1587 = vadd.f32 %v1585, %v1586
      %v1588 = vrot.slane %v1551, 4
      %v1589 = vadd.f32 %v1551, %v1588
      %v1590 = vrot.slane %v1589, 2
      %v1591 = vadd.f32 %v1589, %v1590
      %v1592 = vrot.slane %v1591, 1
      %v1593 = vadd.f32 %v1591, %v1592
      %v1594 = vrot.slane %v1552, 4
      %v1595 = vadd.f32 %v1552, %v1594
      %v1596 = vrot.slane %v1595, 2
      %v1597 = vadd.f32 %v1595, %v1596
      %v1598 = vrot.slane %v1597, 1
      %v1599 = vadd.f32 %v1597, %v1598
      %v1600 = vrot.slane %v1553, 4
      %v1601 = vadd.f32 %v1553, %v1600
      %v1602 = vrot.slane %v1601, 2
      %v1603 = vadd.f32 %v1601, %v1602
      %v1604 = vrot.slane %v1603, 1
      %v1605 = vadd.f32 %v1603, %v1604
      %v1606 = vrot.slane %v1554, 4
      %v1607 = vadd.f32 %v1554, %v1606
      %v1608 = vrot.slane %v1607, 2
      %v1609 = vadd.f32 %v1607, %v1608
      %v1610 = vrot.slane %v1609, 1
      %v1611 = vadd.f32 %v1609, %v1610
      %v1612 = vrot.slane %v1555, 4
      %v1613 = vadd.f32 %v1555, %v1612
      %v1614 = vrot.slane %v1613, 2
      %v1615 = vadd.f32 %v1613, %v1614
      %v1616 = vrot.slane %v1615, 1
      %v1617 = vadd.f32 %v1615, %v1616
      %v1618 = vrot.slane %v1556, 4
      %v1619 = vadd.f32 %v1556, %v1618
      %v1620 = vrot.slane %v1619, 2
      %v1621 = vadd.f32 %v1619, %v1620
      %v1622 = vrot.slane %v1621, 1
      %v1623 = vadd.f32 %v1621, %v1622
      %v1624 = vrot.slane %v1557, 4
      %v1625 = vadd.f32 %v1557, %v1624
      %v1626 = vrot.slane %v1625, 2
      %v1627 = vadd.f32 %v1625, %v1626
      %v1628 = vrot.slane %v1627, 1
      %v1629 = vadd.f32 %v1627, %v1628
      %v1630 = vld [vmem:[%s2 + $0x2] sm:$0x3]
      %1632 = vset.pattern.permute.xlu0 0
      %1633 = vperm.xlu0 %1632, %v1630
      %v1634 = vpop.permute.xlu0 %1633
      %v1635 = vrot.slane %v1634, 1
      %v1638 = vadd.f32 %v1563, %v1634
      %v1639 = vadd.f32 %v1569, %v1634
      %v1640 = vadd.f32 %v1575, %v1634
      %v1641 = vadd.f32 %v1581, %v1634
      %v1642 = vadd.f32 %v1587, %v1634
      %v1643 = vadd.f32 %v1593, %v1634
      %v1644 = vadd.f32 %v1599, %v1635
      %v1645 = vadd.f32 %v1605, %v1635
      %v1646 = vadd.f32 %v1611, %v1635
      %v1647 = vadd.f32 %v1617, %v1635
      %v1648 = vadd.f32 %v1623, %v1635
      %v1649 = vadd.f32 %v1629, %v1635
      %v1650 = vmax.f32 %v1638, 0.0
      %v1651 = vmax.f32 %v1639, 0.0
      %v1652 = vmax.f32 %v1640, 0.0
      %v1653 = vmax.f32 %v1641, 0.0
      %v1654 = vmax.f32 %v1642, 0.0
      %v1655 = vmax.f32 %v1643, 0.0
      %v1656 = vmax.f32 %v1644, 0.0
      %v1657 = vmax.f32 %v1645, 0.0
      %v1658 = vmax.f32 %v1646, 0.0
      %v1659 = vmax.f32 %v1647, 0.0
      %v1660 = vmax.f32 %v1648, 0.0
      %v1661 = vmax.f32 %v1649, 0.0
      %v1662 = vld [vmem:[%s3 + $0x2] sm:$0x3]
      %1664 = vset.pattern.permute.xlu0 0
      %1665 = vperm.xlu0 %1664, %v1662
      %v1666 = vpop.permute.xlu0 %1665
      %v1667 = vrot.slane %v1666, 1
      %v1670 = vmul.f32 %v1650, %v1666
      %v1671 = vmul.f32 %v1651, %v1666
      %v1672 = vmul.f32 %v1652, %v1666
      %v1673 = vmul.f32 %v1653, %v1666
      %v1674 = vmul.f32 %v1654, %v1666
      %v1675 = vmul.f32 %v1655, %v1666
      %v1676 = vmul.f32 %v1656, %v1667
      %v1677 = vmul.f32 %v1657, %v1667
      %v1678 = vmul.f32 %v1658, %v1667
      %v1679 = vmul.f32 %v1659, %v1667
      %v1680 = vmul.f32 %v1660, %v1667
      %v1681 = vmul.f32 %v1661, %v1667
      %v1682 = vld [vmem:[%s4 + $0x2] sm:$0x3]
      %1684 = vset.pattern.permute.xlu0 0
      %1685 = vperm.xlu0 %1684, %v1682
      %v1686 = vpop.permute.xlu0 %1685
      %v1687 = vrot.slane %v1686, 1
      %v1690 = vadd.f32 %v1670, %v1686
      %v1691 = vadd.f32 %v1671, %v1686
      %v1692 = vadd.f32 %v1672, %v1686
      %v1693 = vadd.f32 %v1673, %v1686
      %v1694 = vadd.f32 %v1674, %v1686
      %v1695 = vadd.f32 %v1675, %v1686
      %v1696 = vadd.f32 %v1676, %v1687
      %v1697 = vadd.f32 %v1677, %v1687
      %v1698 = vadd.f32 %v1678, %v1687
      %v1699 = vadd.f32 %v1679, %v1687
      %v1700 = vadd.f32 %v1680, %v1687
      %v1701 = vadd.f32 %v1681, %v1687
      %v1702 = vmax.f32 %v1690, 0.0
      %v1703 = vmax.f32 %v1691, 0.0
      %v1704 = vmax.f32 %v1692, 0.0
      %v1705 = vmax.f32 %v1693, 0.0
      %v1706 = vmax.f32 %v1694, 0.0
      %v1707 = vmax.f32 %v1695, 0.0
      %v1708 = vmax.f32 %v1696, 0.0
      %v1709 = vmax.f32 %v1697, 0.0
      %v1710 = vmax.f32 %v1698, 0.0
      %v1711 = vmax.f32 %v1699, 0.0
      %v1712 = vmax.f32 %v1700, 0.0
      %v1713 = vmax.f32 %v1701, 0.0
      %v1714 = vmul.f32 %v1702, %v992
      %v1715 = vmul.f32 %v1703, %v996
      %v1716 = vmul.f32 %v1704, %v1000
      %v1717 = vmul.f32 %v1705, %v1004
      %v1718 = vmul.f32 %v1706, %v1008
      %v1719 = vmul.f32 %v1707, %v1012
      %v1720 = vmul.f32 %v1708, %v992
      %v1721 = vmul.f32 %v1709, %v996
      %v1722 = vmul.f32 %v1710, %v1000
      %v1723 = vmul.f32 %v1711, %v1004
      %v1724 = vmul.f32 %v1712, %v1008
      %v1725 = vmul.f32 %v1713, %v1012
      %v1738 = vrot.slane %v1714, 6
      %v1739 = vrot.slane %v1720, 5
      %vm1740 = vcmask 1043459
      %v1741 = vsel %vm1740, %v1739, %v1738
      %v1742 = vrot.slane %v1715, 6
      %v1743 = vrot.slane %v1721, 5
      %v1744 = vsel %vm1740, %v1743, %v1742
      %v1745 = vrot.slane %v1716, 6
      %v1746 = vrot.slane %v1722, 5
      %v1747 = vsel %vm1740, %v1746, %v1745
      %v1748 = vrot.slane %v1717, 6
      %v1749 = vrot.slane %v1723, 5
      %v1750 = vsel %vm1740, %v1749, %v1748
      %v1751 = vrot.slane %v1718, 6
      %v1752 = vrot.slane %v1724, 5
      %v1753 = vsel %vm1740, %v1752, %v1751
      %v1754 = vrot.slane %v1719, 6
      %v1755 = vrot.slane %v1725, 5
      %v1756 = vsel %vm1740, %v1755, %v1754
      %1763 = vst [vmem:[%s251] sm:$0xc] %v1741
      %1764 = vst [vmem:[%s251 + $0x8] sm:$0xc] %v1744
      %1765 = vst [vmem:[%s251 + $0x10] sm:$0xc] %v1747
      %1766 = vst [vmem:[%s251 + $0x18] sm:$0xc] %v1750
      %1767 = vst [vmem:[%s251 + $0x20] sm:$0xc] %v1753
      %1768 = vst [vmem:[%s251 + $0x28] sm:$0xc] %v1756
      %1769 = vrot.lane.b32.xlu0 %v257, 99
      %v1770 = vpop.permute.xlu0 %1769
      %1772 = vrot.lane.b32.xlu0 %v252, 99
      %v1773 = vpop.permute.xlu0 %1772
      %1774 = vrot.lane.b32.xlu0 %v253, 99
      %v1775 = vpop.permute.xlu0 %1774
      %1776 = vrot.lane.b32.xlu0 %v254, 99
      %v1777 = vpop.permute.xlu0 %1776
      %1778 = vrot.lane.b32.xlu0 %v255, 99
      %v1779 = vpop.permute.xlu0 %1778
      %1780 = vrot.lane.b32.xlu0 %v256, 99
      %v1781 = vpop.permute.xlu0 %1780
      %vm1782 = vcmask 809984
      %v1783 = vsel %vm1782, %v1773, %v1775
      %v1784 = vsel %vm1782, %v1775, %v1777
      %v1785 = vsel %vm1782, %v1777, %v1779
      %v1786 = vsel %vm1782, %v1779, %v1781
      %v1787 = vsel %vm1782, %v1781, %v1770
      %v1794 = vsel %vm1782, %v1770, %v1773
      %s1795 = scalar_lea.vmem %s1, 36
      %v1796 = vld [vmem:[%s1795] sm:$0x3]
      %v1797 = vlaneseq
      %v1798 = vshrl.u32 %v1797, 7
      %v1799 = vsub.s32 0, %v1798
      %v1800 = vrot.slane %v1796, %v1799
      %1802 = vbcast.lane.b32.xlu0 %v1800, 256
      %v1803 = vpop.permute.xlu0 %1802
      %v1804 = vlaneseq
      %v1805 = vshrl.u32 %v1804, 7
      %v1806 = vsub.s32 1, %v1805
      %v1807 = vrot.slane %v1796, %v1806
      %1809 = vbcast.lane.b32.xlu0 %v1807, 256
      %v1810 = vpop.permute.xlu0 %1809
      %v1811 = vmul.f32 %v1803, %v1794
      %v1812 = vmul.f32 %v1803, %v1783
      %v1813 = vmul.f32 %v1803, %v1784
      %v1814 = vmul.f32 %v1803, %v1785
      %v1815 = vmul.f32 %v1803, %v1786
      %v1816 = vmul.f32 %v1803, %v1787
      %v1817 = vmul.f32 %v1810, %v1794
      %v1818 = vmul.f32 %v1810, %v1783
      %v1819 = vmul.f32 %v1810, %v1784
      %v1820 = vmul.f32 %v1810, %v1785
      %v1821 = vmul.f32 %v1810, %v1786
      %v1822 = vmul.f32 %v1810, %v1787
      %v1823 = vadd.f32 %v1811, 0.0
      %v1824 = vadd.f32 %v1812, 0.0
      %v1825 = vadd.f32 %v1813, 0.0
      %v1826 = vadd.f32 %v1814, 0.0
      %v1827 = vadd.f32 %v1815, 0.0
      %v1828 = vadd.f32 %v1816, 0.0
      %v1829 = vadd.f32 %v1817, 0.0
      %v1830 = vadd.f32 %v1818, 0.0
      %v1831 = vadd.f32 %v1819, 0.0
      %v1832 = vadd.f32 %v1820, 0.0
      %v1833 = vadd.f32 %v1821, 0.0
      %v1834 = vadd.f32 %v1822, 0.0
      %s1835 = scalar_lea.vmem %s1, 38
      %v1836 = vld [vmem:[%s1835] sm:$0x3]
      %v1837 = vlaneseq
      %v1838 = vshrl.u32 %v1837, 7
      %v1839 = vsub.s32 0, %v1838
      %v1840 = vrot.slane %v1836, %v1839
      %1842 = vbcast.lane.b32.xlu0 %v1840, 256
      %v1843 = vpop.permute.xlu0 %1842
      %v1844 = vlaneseq
      %v1845 = vshrl.u32 %v1844, 7
      %v1846 = vsub.s32 1, %v1845
      %v1847 = vrot.slane %v1836, %v1846
      %1849 = vbcast.lane.b32.xlu0 %v1847, 256
      %v1850 = vpop.permute.xlu0 %1849
      %v1851 = vmul.f32 %v1843, %v725
      %v1852 = vmul.f32 %v1843, %v713
      %v1853 = vmul.f32 %v1843, %v714
      %v1854 = vmul.f32 %v1843, %v715
      %v1855 = vmul.f32 %v1843, %v716
      %v1856 = vmul.f32 %v1843, %v717
      %v1857 = vmul.f32 %v1850, %v725
      %v1858 = vmul.f32 %v1850, %v713
      %v1859 = vmul.f32 %v1850, %v714
      %v1860 = vmul.f32 %v1850, %v715
      %v1861 = vmul.f32 %v1850, %v716
      %v1862 = vmul.f32 %v1850, %v717
      %v1863 = vadd.f32 %v1823, %v1851
      %v1864 = vadd.f32 %v1824, %v1852
      %v1865 = vadd.f32 %v1825, %v1853
      %v1866 = vadd.f32 %v1826, %v1854
      %v1867 = vadd.f32 %v1827, %v1855
      %v1868 = vadd.f32 %v1828, %v1856
      %v1869 = vadd.f32 %v1829, %v1857
      %v1870 = vadd.f32 %v1830, %v1858
      %v1871 = vadd.f32 %v1831, %v1859
      %v1872 = vadd.f32 %v1832, %v1860
      %v1873 = vadd.f32 %v1833, %v1861
      %v1874 = vadd.f32 %v1834, %v1862
      %1875 = vrot.lane.b32.xlu0 %v257, 93
      %v1876 = vpop.permute.xlu0 %1875
      %1878 = vrot.lane.b32.xlu0 %v252, 93
      %v1879 = vpop.permute.xlu0 %1878
      %1880 = vrot.lane.b32.xlu0 %v253, 93
      %v1881 = vpop.permute.xlu0 %1880
      %1882 = vrot.lane.b32.xlu0 %v254, 93
      %v1883 = vpop.permute.xlu0 %1882
      %1884 = vrot.lane.b32.xlu0 %v255, 93
      %v1885 = vpop.permute.xlu0 %1884
      %1886 = vrot.lane.b32.xlu0 %v256, 93
      %v1887 = vpop.permute.xlu0 %1886
      %vm1888 = vcmask 760832
      %v1889 = vsel %vm1888, %v1879, %v1881
      %v1890 = vsel %vm1888, %v1881, %v1883
      %v1891 = vsel %vm1888, %v1883, %v1885
      %v1892 = vsel %vm1888, %v1885, %v1887
      %v1893 = vsel %vm1888, %v1887, %v1876
      %v1900 = vsel %vm1888, %v1876, %v1879
      %s1901 = scalar_lea.vmem %s1, 40
      %v1902 = vld [vmem:[%s1901] sm:$0x3]
      %v1903 = vlaneseq
      %v1904 = vshrl.u32 %v1903, 7
      %v1905 = vsub.s32 0, %v1904
      %v1906 = vrot.slane %v1902, %v1905
      %1908 = vbcast.lane.b32.xlu0 %v1906, 256
      %v1909 = vpop.permute.xlu0 %1908
      %v1910 = vlaneseq
      %v1911 = vshrl.u32 %v1910, 7
      %v1912 = vsub.s32 1, %v1911
      %v1913 = vrot.slane %v1902, %v1912
      %1915 = vbcast.lane.b32.xlu0 %v1913, 256
      %v1916 = vpop.permute.xlu0 %1915
      %v1917 = vmul.f32 %v1909, %v1900
      %v1918 = vmul.f32 %v1909, %v1889
      %v1919 = vmul.f32 %v1909, %v1890
      %v1920 = vmul.f32 %v1909, %v1891
      %v1921 = vmul.f32 %v1909, %v1892
      %v1922 = vmul.f32 %v1909, %v1893
      %v1923 = vmul.f32 %v1916, %v1900
      %v1924 = vmul.f32 %v1916, %v1889
      %v1925 = vmul.f32 %v1916, %v1890
      %v1926 = vmul.f32 %v1916, %v1891
      %v1927 = vmul.f32 %v1916, %v1892
      %v1928 = vmul.f32 %v1916, %v1893
      %v1929 = vadd.f32 %v1863, %v1917
      %v1930 = vadd.f32 %v1864, %v1918
      %v1931 = vadd.f32 %v1865, %v1919
      %v1932 = vadd.f32 %v1866, %v1920
      %v1933 = vadd.f32 %v1867, %v1921
      %v1934 = vadd.f32 %v1868, %v1922
      %v1935 = vadd.f32 %v1869, %v1923
      %v1936 = vadd.f32 %v1870, %v1924
      %v1937 = vadd.f32 %v1871, %v1925
      %v1938 = vadd.f32 %v1872, %v1926
      %v1939 = vadd.f32 %v1873, %v1927
      %v1940 = vadd.f32 %v1874, %v1928
      %1941 = vrot.lane.b32.xlu0 %v257, 3
      %v1942 = vpop.permute.xlu0 %1941
      %1944 = vrot.lane.b32.xlu0 %v252, 3
      %v1945 = vpop.permute.xlu0 %1944
      %1946 = vrot.lane.b32.xlu0 %v253, 3
      %v1947 = vpop.permute.xlu0 %1946
      %1948 = vrot.lane.b32.xlu0 %v254, 3
      %v1949 = vpop.permute.xlu0 %1948
      %1950 = vrot.lane.b32.xlu0 %v255, 3
      %v1951 = vpop.permute.xlu0 %1950
      %1952 = vrot.lane.b32.xlu0 %v256, 3
      %v1953 = vpop.permute.xlu0 %1952
      %vm1954 = vcmask 23552
      %v1955 = vsel %vm1954, %v1945, %v1947
      %v1956 = vsel %vm1954, %v1947, %v1949
      %v1957 = vsel %vm1954, %v1949, %v1951
      %v1958 = vsel %vm1954, %v1951, %v1953
      %v1959 = vsel %vm1954, %v1953, %v1942
      %v1966 = vsel %vm1954, %v1942, %v1945
      %s1967 = scalar_lea.vmem %s1, 42
      %v1968 = vld [vmem:[%s1967] sm:$0x3]
      %v1969 = vlaneseq
      %v1970 = vshrl.u32 %v1969, 7
      %v1971 = vsub.s32 0, %v1970
      %v1972 = vrot.slane %v1968, %v1971
      %1974 = vbcast.lane.b32.xlu0 %v1972, 256
      %v1975 = vpop.permute.xlu0 %1974
      %v1976 = vlaneseq
      %v1977 = vshrl.u32 %v1976, 7
      %v1978 = vsub.s32 1, %v1977
      %v1979 = vrot.slane %v1968, %v1978
      %1981 = vbcast.lane.b32.xlu0 %v1979, 256
      %v1982 = vpop.permute.xlu0 %1981
      %v1983 = vmul.f32 %v1975, %v1966
      %v1984 = vmul.f32 %v1975, %v1955
      %v1985 = vmul.f32 %v1975, %v1956
      %v1986 = vmul.f32 %v1975, %v1957
      %v1987 = vmul.f32 %v1975, %v1958
      %v1988 = vmul.f32 %v1975, %v1959
      %v1989 = vmul.f32 %v1982, %v1966
      %v1990 = vmul.f32 %v1982, %v1955
      %v1991 = vmul.f32 %v1982, %v1956
      %v1992 = vmul.f32 %v1982, %v1957
      %v1993 = vmul.f32 %v1982, %v1958
      %v1994 = vmul.f32 %v1982, %v1959
      %v1995 = vadd.f32 %v1929, %v1983
      %v1996 = vadd.f32 %v1930, %v1984
      %v1997 = vadd.f32 %v1931, %v1985
      %v1998 = vadd.f32 %v1932, %v1986
      %v1999 = vadd.f32 %v1933, %v1987
      %v2000 = vadd.f32 %v1934, %v1988
      %v2001 = vadd.f32 %v1935, %v1989
      %v2002 = vadd.f32 %v1936, %v1990
      %v2003 = vadd.f32 %v1937, %v1991
      %v2004 = vadd.f32 %v1938, %v1992
      %v2005 = vadd.f32 %v1939, %v1993
      %v2006 = vadd.f32 %v1940, %v1994
      %s2007 = scalar_lea.vmem %s1, 44
      %v2008 = vld [vmem:[%s2007] sm:$0x3]
      %v2009 = vlaneseq
      %v2010 = vshrl.u32 %v2009, 7
      %v2011 = vsub.s32 0, %v2010
      %v2012 = vrot.slane %v2008, %v2011
      %2014 = vbcast.lane.b32.xlu0 %v2012, 256
      %v2015 = vpop.permute.xlu0 %2014
      %v2016 = vlaneseq
      %v2017 = vshrl.u32 %v2016, 7
      %v2018 = vsub.s32 1, %v2017
      %v2019 = vrot.slane %v2008, %v2018
      %2021 = vbcast.lane.b32.xlu0 %v2019, 256
      %v2022 = vpop.permute.xlu0 %2021
      %v2023 = vmul.f32 %v2015, %v252
      %v2024 = vmul.f32 %v2015, %v253
      %v2025 = vmul.f32 %v2015, %v254
      %v2026 = vmul.f32 %v2015, %v255
      %v2027 = vmul.f32 %v2015, %v256
      %v2028 = vmul.f32 %v2015, %v257
      %v2029 = vmul.f32 %v2022, %v252
      %v2030 = vmul.f32 %v2022, %v253
      %v2031 = vmul.f32 %v2022, %v254
      %v2032 = vmul.f32 %v2022, %v255
      %v2033 = vmul.f32 %v2022, %v256
      %v2034 = vmul.f32 %v2022, %v257
      %v2035 = vadd.f32 %v1995, %v2023
      %v2036 = vadd.f32 %v1996, %v2024
      %v2037 = vadd.f32 %v1997, %v2025
      %v2038 = vadd.f32 %v1998, %v2026
      %v2039 = vadd.f32 %v1999, %v2027
      %v2040 = vadd.f32 %v2000, %v2028
      %v2041 = vadd.f32 %v2001, %v2029
      %v2042 = vadd.f32 %v2002, %v2030
      %v2043 = vadd.f32 %v2003, %v2031
      %v2044 = vadd.f32 %v2004, %v2032
      %v2045 = vadd.f32 %v2005, %v2033
      %v2046 = vadd.f32 %v2006, %v2034
      %2047 = vrot.lane.b32.xlu0 %v252, 125
      %v2048 = vpop.permute.xlu0 %2047
      %2049 = vrot.lane.b32.xlu0 %v253, 125
      %v2050 = vpop.permute.xlu0 %2049
      %2051 = vrot.lane.b32.xlu0 %v254, 125
      %v2052 = vpop.permute.xlu0 %2051
      %2053 = vrot.lane.b32.xlu0 %v255, 125
      %v2054 = vpop.permute.xlu0 %2053
      %2055 = vrot.lane.b32.xlu0 %v256, 125
      %v2056 = vpop.permute.xlu0 %2055
      %2057 = vrot.lane.b32.xlu0 %v257, 125
      %v2058 = vpop.permute.xlu0 %2057
      %vm2059 = vcmask 1022976
      %v2060 = vsel %vm2059, %v2048, %v2050
      %v2061 = vsel %vm2059, %v2050, %v2052
      %v2062 = vsel %vm2059, %v2052, %v2054
      %v2063 = vsel %vm2059, %v2054, %v2056
      %v2064 = vsel %vm2059, %v2056, %v2058
      %v2072 = vsel %vm2059, %v2058, %v2048
      %s2073 = scalar_lea.vmem %s1, 46
      %v2074 = vld [vmem:[%s2073] sm:$0x3]
      %v2075 = vlaneseq
      %v2076 = vshrl.u32 %v2075, 7
      %v2077 = vsub.s32 0, %v2076
      %v2078 = vrot.slane %v2074, %v2077
      %2080 = vbcast.lane.b32.xlu0 %v2078, 256
      %v2081 = vpop.permute.xlu0 %2080
      %v2082 = vlaneseq
      %v2083 = vshrl.u32 %v2082, 7
      %v2084 = vsub.s32 1, %v2083
      %v2085 = vrot.slane %v2074, %v2084
      %2087 = vbcast.lane.b32.xlu0 %v2085, 256
      %v2088 = vpop.permute.xlu0 %2087
      %v2089 = vmul.f32 %v2081, %v2060
      %v2090 = vmul.f32 %v2081, %v2061
      %v2091 = vmul.f32 %v2081, %v2062
      %v2092 = vmul.f32 %v2081, %v2063
      %v2093 = vmul.f32 %v2081, %v2064
      %v2094 = vmul.f32 %v2081, %v2072
      %v2095 = vmul.f32 %v2088, %v2060
      %v2096 = vmul.f32 %v2088, %v2061
      %v2097 = vmul.f32 %v2088, %v2062
      %v2098 = vmul.f32 %v2088, %v2063
      %v2099 = vmul.f32 %v2088, %v2064
      %v2100 = vmul.f32 %v2088, %v2072
      %v2101 = vadd.f32 %v2035, %v2089
      %v2102 = vadd.f32 %v2036, %v2090
      %v2103 = vadd.f32 %v2037, %v2091
      %v2104 = vadd.f32 %v2038, %v2092
      %v2105 = vadd.f32 %v2039, %v2093
      %v2106 = vadd.f32 %v2040, %v2094
      %v2107 = vadd.f32 %v2041, %v2095
      %v2108 = vadd.f32 %v2042, %v2096
      %v2109 = vadd.f32 %v2043, %v2097
      %v2110 = vadd.f32 %v2044, %v2098
      %v2111 = vadd.f32 %v2045, %v2099
      %v2112 = vadd.f32 %v2046, %v2100
      %2113 = vrot.lane.b32.xlu0 %v252, 35
      %v2114 = vpop.permute.xlu0 %2113
      %2115 = vrot.lane.b32.xlu0 %v253, 35
      %v2116 = vpop.permute.xlu0 %2115
      %2117 = vrot.lane.b32.xlu0 %v254, 35
      %v2118 = vpop.permute.xlu0 %2117
      %2119 = vrot.lane.b32.xlu0 %v255, 35
      %v2120 = vpop.permute.xlu0 %2119
      %2121 = vrot.lane.b32.xlu0 %v256, 35
      %v2122 = vpop.permute.xlu0 %2121
      %2123 = vrot.lane.b32.xlu0 %v257, 35
      %v2124 = vpop.permute.xlu0 %2123
      %vm2125 = vcmask 285696
      %v2126 = vsel %vm2125, %v2114, %v2116
      %v2127 = vsel %vm2125, %v2116, %v2118
      %v2128 = vsel %vm2125, %v2118, %v2120
      %v2129 = vsel %vm2125, %v2120, %v2122
      %v2130 = vsel %vm2125, %v2122, %v2124
      %v2138 = vsel %vm2125, %v2124, %v2114
      %s2139 = scalar_lea.vmem %s1, 48
      %v2140 = vld [vmem:[%s2139] sm:$0x3]
      %v2141 = vlaneseq
      %v2142 = vshrl.u32 %v2141, 7
      %v2143 = vsub.s32 0, %v2142
      %v2144 = vrot.slane %v2140, %v2143
      %2146 = vbcast.lane.b32.xlu0 %v2144, 256
      %v2147 = vpop.permute.xlu0 %2146
      %v2148 = vlaneseq
      %v2149 = vshrl.u32 %v2148, 7
      %v2150 = vsub.s32 1, %v2149
      %v2151 = vrot.slane %v2140, %v2150
      %2153 = vbcast.lane.b32.xlu0 %v2151, 256
      %v2154 = vpop.permute.xlu0 %2153
      %v2155 = vmul.f32 %v2147, %v2126
      %v2156 = vmul.f32 %v2147, %v2127
      %v2157 = vmul.f32 %v2147, %v2128
      %v2158 = vmul.f32 %v2147, %v2129
      %v2159 = vmul.f32 %v2147, %v2130
      %v2160 = vmul.f32 %v2147, %v2138
      %v2161 = vmul.f32 %v2154, %v2126
      %v2162 = vmul.f32 %v2154, %v2127
      %v2163 = vmul.f32 %v2154, %v2128
      %v2164 = vmul.f32 %v2154, %v2129
      %v2165 = vmul.f32 %v2154, %v2130
      %v2166 = vmul.f32 %v2154, %v2138
      %v2167 = vadd.f32 %v2101, %v2155
      %v2168 = vadd.f32 %v2102, %v2156
      %v2169 = vadd.f32 %v2103, %v2157
      %v2170 = vadd.f32 %v2104, %v2158
      %v2171 = vadd.f32 %v2105, %v2159
      %v2172 = vadd.f32 %v2106, %v2160
      %v2173 = vadd.f32 %v2107, %v2161
      %v2174 = vadd.f32 %v2108, %v2162
      %v2175 = vadd.f32 %v2109, %v2163
      %v2176 = vadd.f32 %v2110, %v2164
      %v2177 = vadd.f32 %v2111, %v2165
      %v2178 = vadd.f32 %v2112, %v2166
      %s2179 = scalar_lea.vmem %s1, 50
      %v2180 = vld [vmem:[%s2179] sm:$0x3]
      %v2181 = vlaneseq
      %v2182 = vshrl.u32 %v2181, 7
      %v2183 = vsub.s32 0, %v2182
      %v2184 = vrot.slane %v2180, %v2183
      %2186 = vbcast.lane.b32.xlu0 %v2184, 256
      %v2187 = vpop.permute.xlu0 %2186
      %v2188 = vlaneseq
      %v2189 = vshrl.u32 %v2188, 7
      %v2190 = vsub.s32 1, %v2189
      %v2191 = vrot.slane %v2180, %v2190
      %2193 = vbcast.lane.b32.xlu0 %v2191, 256
      %v2194 = vpop.permute.xlu0 %2193
      %v2195 = vmul.f32 %v2187, %v344
      %v2196 = vmul.f32 %v2187, %v345
      %v2197 = vmul.f32 %v2187, %v346
      %v2198 = vmul.f32 %v2187, %v347
      %v2199 = vmul.f32 %v2187, %v348
      %v2200 = vmul.f32 %v2187, %v355
      %v2201 = vmul.f32 %v2194, %v344
      %v2202 = vmul.f32 %v2194, %v345
      %v2203 = vmul.f32 %v2194, %v346
      %v2204 = vmul.f32 %v2194, %v347
      %v2205 = vmul.f32 %v2194, %v348
      %v2206 = vmul.f32 %v2194, %v355
      %v2207 = vadd.f32 %v2167, %v2195
      %v2208 = vadd.f32 %v2168, %v2196
      %v2209 = vadd.f32 %v2169, %v2197
      %v2210 = vadd.f32 %v2170, %v2198
      %v2211 = vadd.f32 %v2171, %v2199
      %v2212 = vadd.f32 %v2172, %v2200
      %v2213 = vadd.f32 %v2173, %v2201
      %v2214 = vadd.f32 %v2174, %v2202
      %v2215 = vadd.f32 %v2175, %v2203
      %v2216 = vadd.f32 %v2176, %v2204
      %v2217 = vadd.f32 %v2177, %v2205
      %v2218 = vadd.f32 %v2178, %v2206
      %2219 = vrot.lane.b32.xlu0 %v252, 29
      %v2220 = vpop.permute.xlu0 %2219
      %2221 = vrot.lane.b32.xlu0 %v253, 29
      %v2222 = vpop.permute.xlu0 %2221
      %2223 = vrot.lane.b32.xlu0 %v254, 29
      %v2224 = vpop.permute.xlu0 %2223
      %2225 = vrot.lane.b32.xlu0 %v255, 29
      %v2226 = vpop.permute.xlu0 %2225
      %2227 = vrot.lane.b32.xlu0 %v256, 29
      %v2228 = vpop.permute.xlu0 %2227
      %2229 = vrot.lane.b32.xlu0 %v257, 29
      %v2230 = vpop.permute.xlu0 %2229
      %vm2231 = vcmask 236544
      %v2232 = vsel %vm2231, %v2220, %v2222
      %v2233 = vsel %vm2231, %v2222, %v2224
      %v2234 = vsel %vm2231, %v2224, %v2226
      %v2235 = vsel %vm2231, %v2226, %v2228
      %v2236 = vsel %vm2231, %v2228, %v2230
      %v2244 = vsel %vm2231, %v2230, %v2220
      %s2245 = scalar_lea.vmem %s1, 52
      %v2246 = vld [vmem:[%s2245] sm:$0x3]
      %v2247 = vlaneseq
      %v2248 = vshrl.u32 %v2247, 7
      %v2249 = vsub.s32 0, %v2248
      %v2250 = vrot.slane %v2246, %v2249
      %2252 = vbcast.lane.b32.xlu0 %v2250, 256
      %v2253 = vpop.permute.xlu0 %2252
      %v2254 = vlaneseq
      %v2255 = vshrl.u32 %v2254, 7
      %v2256 = vsub.s32 1, %v2255
      %v2257 = vrot.slane %v2246, %v2256
      %2259 = vbcast.lane.b32.xlu0 %v2257, 256
      %v2260 = vpop.permute.xlu0 %2259
      %v2261 = vmul.f32 %v2253, %v2232
      %v2262 = vmul.f32 %v2253, %v2233
      %v2263 = vmul.f32 %v2253, %v2234
      %v2264 = vmul.f32 %v2253, %v2235
      %v2265 = vmul.f32 %v2253, %v2236
      %v2266 = vmul.f32 %v2253, %v2244
      %v2267 = vmul.f32 %v2260, %v2232
      %v2268 = vmul.f32 %v2260, %v2233
      %v2269 = vmul.f32 %v2260, %v2234
      %v2270 = vmul.f32 %v2260, %v2235
      %v2271 = vmul.f32 %v2260, %v2236
      %v2272 = vmul.f32 %v2260, %v2244
      %v2273 = vadd.f32 %v2207, %v2261
      %v2274 = vadd.f32 %v2208, %v2262
      %v2275 = vadd.f32 %v2209, %v2263
      %v2276 = vadd.f32 %v2210, %v2264
      %v2277 = vadd.f32 %v2211, %v2265
      %v2278 = vadd.f32 %v2212, %v2266
      %v2279 = vadd.f32 %v2213, %v2267
      %v2280 = vadd.f32 %v2214, %v2268
      %v2281 = vadd.f32 %v2215, %v2269
      %v2282 = vadd.f32 %v2216, %v2270
      %v2283 = vadd.f32 %v2217, %v2271
      %v2284 = vadd.f32 %v2218, %v2272
      %v2285 = vrot.slane %v2273, 4
      %v2286 = vadd.f32 %v2273, %v2285
      %v2287 = vrot.slane %v2286, 2
      %v2288 = vadd.f32 %v2286, %v2287
      %v2289 = vrot.slane %v2288, 1
      %v2290 = vadd.f32 %v2288, %v2289
      %v2291 = vrot.slane %v2274, 4
      %v2292 = vadd.f32 %v2274, %v2291
      %v2293 = vrot.slane %v2292, 2
      %v2294 = vadd.f32 %v2292, %v2293
      %v2295 = vrot.slane %v2294, 1
      %v2296 = vadd.f32 %v2294, %v2295
      %v2297 = vrot.slane %v2275, 4
      %v2298 = vadd.f32 %v2275, %v2297
      %v2299 = vrot.slane %v2298, 2
      %v2300 = vadd.f32 %v2298, %v2299
      %v2301 = vrot.slane %v2300, 1
      %v2302 = vadd.f32 %v2300, %v2301
      %v2303 = vrot.slane %v2276, 4
      %v2304 = vadd.f32 %v2276, %v2303
      %v2305 = vrot.slane %v2304, 2
      %v2306 = vadd.f32 %v2304, %v2305
      %v2307 = vrot.slane %v2306, 1
      %v2308 = vadd.f32 %v2306, %v2307
      %v2309 = vrot.slane %v2277, 4
      %v2310 = vadd.f32 %v2277, %v2309
      %v2311 = vrot.slane %v2310, 2
      %v2312 = vadd.f32 %v2310, %v2311
      %v2313 = vrot.slane %v2312, 1
      %v2314 = vadd.f32 %v2312, %v2313
      %v2315 = vrot.slane %v2278, 4
      %v2316 = vadd.f32 %v2278, %v2315
      %v2317 = vrot.slane %v2316, 2
      %v2318 = vadd.f32 %v2316, %v2317
      %v2319 = vrot.slane %v2318, 1
      %v2320 = vadd.f32 %v2318, %v2319
      %v2321 = vrot.slane %v2279, 4
      %v2322 = vadd.f32 %v2279, %v2321
      %v2323 = vrot.slane %v2322, 2
      %v2324 = vadd.f32 %v2322, %v2323
      %v2325 = vrot.slane %v2324, 1
      %v2326 = vadd.f32 %v2324, %v2325
      %v2327 = vrot.slane %v2280, 4
      %v2328 = vadd.f32 %v2280, %v2327
      %v2329 = vrot.slane %v2328, 2
      %v2330 = vadd.f32 %v2328, %v2329
      %v2331 = vrot.slane %v2330, 1
      %v2332 = vadd.f32 %v2330, %v2331
      %v2333 = vrot.slane %v2281, 4
      %v2334 = vadd.f32 %v2281, %v2333
      %v2335 = vrot.slane %v2334, 2
      %v2336 = vadd.f32 %v2334, %v2335
      %v2337 = vrot.slane %v2336, 1
      %v2338 = vadd.f32 %v2336, %v2337
      %v2339 = vrot.slane %v2282, 4
      %v2340 = vadd.f32 %v2282, %v2339
      %v2341 = vrot.slane %v2340, 2
      %v2342 = vadd.f32 %v2340, %v2341
      %v2343 = vrot.slane %v2342, 1
      %v2344 = vadd.f32 %v2342, %v2343
      %v2345 = vrot.slane %v2283, 4
      %v2346 = vadd.f32 %v2283, %v2345
      %v2347 = vrot.slane %v2346, 2
      %v2348 = vadd.f32 %v2346, %v2347
      %v2349 = vrot.slane %v2348, 1
      %v2350 = vadd.f32 %v2348, %v2349
      %v2351 = vrot.slane %v2284, 4
      %v2352 = vadd.f32 %v2284, %v2351
      %v2353 = vrot.slane %v2352, 2
      %v2354 = vadd.f32 %v2352, %v2353
      %v2355 = vrot.slane %v2354, 1
      %v2356 = vadd.f32 %v2354, %v2355
      %v2357 = vld [vmem:[%s2 + $0x4] sm:$0x3]
      %2359 = vset.pattern.permute.xlu0 0
      %2360 = vperm.xlu0 %2359, %v2357
      %v2361 = vpop.permute.xlu0 %2360
      %v2362 = vrot.slane %v2361, 1
      %v2365 = vadd.f32 %v2290, %v2361
      %v2366 = vadd.f32 %v2296, %v2361
      %v2367 = vadd.f32 %v2302, %v2361
      %v2368 = vadd.f32 %v2308, %v2361
      %v2369 = vadd.f32 %v2314, %v2361
      %v2370 = vadd.f32 %v2320, %v2361
      %v2371 = vadd.f32 %v2326, %v2362
      %v2372 = vadd.f32 %v2332, %v2362
      %v2373 = vadd.f32 %v2338, %v2362
      %v2374 = vadd.f32 %v2344, %v2362
      %v2375 = vadd.f32 %v2350, %v2362
      %v2376 = vadd.f32 %v2356, %v2362
      %v2377 = vmax.f32 %v2365, 0.0
      %v2378 = vmax.f32 %v2366, 0.0
      %v2379 = vmax.f32 %v2367, 0.0
      %v2380 = vmax.f32 %v2368, 0.0
      %v2381 = vmax.f32 %v2369, 0.0
      %v2382 = vmax.f32 %v2370, 0.0
      %v2383 = vmax.f32 %v2371, 0.0
      %v2384 = vmax.f32 %v2372, 0.0
      %v2385 = vmax.f32 %v2373, 0.0
      %v2386 = vmax.f32 %v2374, 0.0
      %v2387 = vmax.f32 %v2375, 0.0
      %v2388 = vmax.f32 %v2376, 0.0
      %v2389 = vld [vmem:[%s3 + $0x4] sm:$0x3]
      %2391 = vset.pattern.permute.xlu0 0
      %2392 = vperm.xlu0 %2391, %v2389
      %v2393 = vpop.permute.xlu0 %2392
      %v2394 = vrot.slane %v2393, 1
      %v2397 = vmul.f32 %v2377, %v2393
      %v2398 = vmul.f32 %v2378, %v2393
      %v2399 = vmul.f32 %v2379, %v2393
      %v2400 = vmul.f32 %v2380, %v2393
      %v2401 = vmul.f32 %v2381, %v2393
      %v2402 = vmul.f32 %v2382, %v2393
      %v2403 = vmul.f32 %v2383, %v2394
      %v2404 = vmul.f32 %v2384, %v2394
      %v2405 = vmul.f32 %v2385, %v2394
      %v2406 = vmul.f32 %v2386, %v2394
      %v2407 = vmul.f32 %v2387, %v2394
      %v2408 = vmul.f32 %v2388, %v2394
      %v2409 = vld [vmem:[%s4 + $0x4] sm:$0x3]
      %2411 = vset.pattern.permute.xlu0 0
      %2412 = vperm.xlu0 %2411, %v2409
      %v2413 = vpop.permute.xlu0 %2412
      %v2414 = vrot.slane %v2413, 1
      %v2417 = vadd.f32 %v2397, %v2413
      %v2418 = vadd.f32 %v2398, %v2413
      %v2419 = vadd.f32 %v2399, %v2413
      %v2420 = vadd.f32 %v2400, %v2413
      %v2421 = vadd.f32 %v2401, %v2413
      %v2422 = vadd.f32 %v2402, %v2413
      %v2423 = vadd.f32 %v2403, %v2414
      %v2424 = vadd.f32 %v2404, %v2414
      %v2425 = vadd.f32 %v2405, %v2414
      %v2426 = vadd.f32 %v2406, %v2414
      %v2427 = vadd.f32 %v2407, %v2414
      %v2428 = vadd.f32 %v2408, %v2414
      %v2429 = vmax.f32 %v2417, 0.0
      %v2430 = vmax.f32 %v2418, 0.0
      %v2431 = vmax.f32 %v2419, 0.0
      %v2432 = vmax.f32 %v2420, 0.0
      %v2433 = vmax.f32 %v2421, 0.0
      %v2434 = vmax.f32 %v2422, 0.0
      %v2435 = vmax.f32 %v2423, 0.0
      %v2436 = vmax.f32 %v2424, 0.0
      %v2437 = vmax.f32 %v2425, 0.0
      %v2438 = vmax.f32 %v2426, 0.0
      %v2439 = vmax.f32 %v2427, 0.0
      %v2440 = vmax.f32 %v2428, 0.0
      %v2441 = vmul.f32 %v2429, %v992
      %v2442 = vmul.f32 %v2430, %v996
      %v2443 = vmul.f32 %v2431, %v1000
      %v2444 = vmul.f32 %v2432, %v1004
      %v2445 = vmul.f32 %v2433, %v1008
      %v2446 = vmul.f32 %v2434, %v1012
      %v2447 = vmul.f32 %v2435, %v992
      %v2448 = vmul.f32 %v2436, %v996
      %v2449 = vmul.f32 %v2437, %v1000
      %v2450 = vmul.f32 %v2438, %v1004
      %v2451 = vmul.f32 %v2439, %v1008
      %v2452 = vmul.f32 %v2440, %v1012
      %v2465 = vrot.slane %v2441, 4
      %v2466 = vrot.slane %v2447, 3
      %vm2467 = vcmask 1045509
      %v2468 = vsel %vm2467, %v2466, %v2465
      %v2469 = vrot.slane %v2442, 4
      %v2470 = vrot.slane %v2448, 3
      %v2471 = vsel %vm2467, %v2470, %v2469
      %v2472 = vrot.slane %v2443, 4
      %v2473 = vrot.slane %v2449, 3
      %v2474 = vsel %vm2467, %v2473, %v2472
      %v2475 = vrot.slane %v2444, 4
      %v2476 = vrot.slane %v2450, 3
      %v2477 = vsel %vm2467, %v2476, %v2475
      %v2478 = vrot.slane %v2445, 4
      %v2479 = vrot.slane %v2451, 3
      %v2480 = vsel %vm2467, %v2479, %v2478
      %v2481 = vrot.slane %v2446, 4
      %v2482 = vrot.slane %v2452, 3
      %v2483 = vsel %vm2467, %v2482, %v2481
      %2490 = vst [vmem:[%s251] sm:$0x30] %v2468
      %2491 = vst [vmem:[%s251 + $0x8] sm:$0x30] %v2471
      %2492 = vst [vmem:[%s251 + $0x10] sm:$0x30] %v2474
      %2493 = vst [vmem:[%s251 + $0x18] sm:$0x30] %v2477
      %2494 = vst [vmem:[%s251 + $0x20] sm:$0x30] %v2480
      %2495 = vst [vmem:[%s251 + $0x28] sm:$0x30] %v2483
      %2496 = vrot.lane.b32.xlu0 %v256, 4
      %v2497 = vpop.permute.xlu0 %2496
      %2498 = vrot.lane.b32.xlu0 %v257, 4
      %v2499 = vpop.permute.xlu0 %2498
      %vm2500 = vcmask 31744
      %v2501 = vsel %vm2500, %v2497, %v2499
      %2504 = vrot.lane.b32.xlu0 %v252, 4
      %v2505 = vpop.permute.xlu0 %2504
      %2506 = vrot.lane.b32.xlu0 %v253, 4
      %v2507 = vpop.permute.xlu0 %2506
      %2508 = vrot.lane.b32.xlu0 %v254, 4
      %v2509 = vpop.permute.xlu0 %2508
      %2510 = vrot.lane.b32.xlu0 %v255, 4
      %v2511 = vpop.permute.xlu0 %2510
      %v2512 = vsel %vm2500, %v2505, %v2507
      %v2513 = vsel %vm2500, %v2507, %v2509
      %v2514 = vsel %vm2500, %v2509, %v2511
      %v2515 = vsel %vm2500, %v2511, %v2497
      %v2521 = vsel %vm2500, %v2499, %v2505
      %s2522 = scalar_lea.vmem %s1, 54
      %v2523 = vld [vmem:[%s2522] sm:$0x3]
      %v2524 = vlaneseq
      %v2525 = vshrl.u32 %v2524, 7
      %v2526 = vsub.s32 0, %v2525
      %v2527 = vrot.slane %v2523, %v2526
      %2529 = vbcast.lane.b32.xlu0 %v2527, 256
      %v2530 = vpop.permute.xlu0 %2529
      %v2531 = vlaneseq
      %v2532 = vshrl.u32 %v2531, 7
      %v2533 = vsub.s32 1, %v2532
      %v2534 = vrot.slane %v2523, %v2533
      %2536 = vbcast.lane.b32.xlu0 %v2534, 256
      %v2537 = vpop.permute.xlu0 %2536
      %v2538 = vmul.f32 %v2530, %v2501
      %v2539 = vmul.f32 %v2530, %v2521
      %v2540 = vmul.f32 %v2530, %v2512
      %v2541 = vmul.f32 %v2530, %v2513
      %v2542 = vmul.f32 %v2530, %v2514
      %v2543 = vmul.f32 %v2530, %v2515
      %v2544 = vmul.f32 %v2537, %v2501
      %v2545 = vmul.f32 %v2537, %v2521
      %v2546 = vmul.f32 %v2537, %v2512
      %v2547 = vmul.f32 %v2537, %v2513
      %v2548 = vmul.f32 %v2537, %v2514
      %v2549 = vmul.f32 %v2537, %v2515
      %v2550 = vadd.f32 %v2538, 0.0
      %v2551 = vadd.f32 %v2539, 0.0
      %v2552 = vadd.f32 %v2540, 0.0
      %v2553 = vadd.f32 %v2541, 0.0
      %v2554 = vadd.f32 %v2542, 0.0
      %v2555 = vadd.f32 %v2543, 0.0
      %v2556 = vadd.f32 %v2544, 0.0
      %v2557 = vadd.f32 %v2545, 0.0
      %v2558 = vadd.f32 %v2546, 0.0
      %v2559 = vadd.f32 %v2547, 0.0
      %v2560 = vadd.f32 %v2548, 0.0
      %v2561 = vadd.f32 %v2549, 0.0
      %s2562 = scalar_lea.vmem %s1, 56
      %v2563 = vld [vmem:[%s2562] sm:$0x3]
      %v2564 = vlaneseq
      %v2565 = vshrl.u32 %v2564, 7
      %v2566 = vsub.s32 0, %v2565
      %v2567 = vrot.slane %v2563, %v2566
      %2569 = vbcast.lane.b32.xlu0 %v2567, 256
      %v2570 = vpop.permute.xlu0 %2569
      %v2571 = vlaneseq
      %v2572 = vshrl.u32 %v2571, 7
      %v2573 = vsub.s32 1, %v2572
      %v2574 = vrot.slane %v2563, %v2573
      %2576 = vbcast.lane.b32.xlu0 %v2574, 256
      %v2577 = vpop.permute.xlu0 %2576
      %v2578 = vmul.f32 %v2570, %v257
      %v2579 = vmul.f32 %v2570, %v252
      %v2580 = vmul.f32 %v2570, %v253
      %v2581 = vmul.f32 %v2570, %v254
      %v2582 = vmul.f32 %v2570, %v255
      %v2583 = vmul.f32 %v2570, %v256
      %v2584 = vmul.f32 %v2577, %v257
      %v2585 = vmul.f32 %v2577, %v252
      %v2586 = vmul.f32 %v2577, %v253
      %v2587 = vmul.f32 %v2577, %v254
      %v2588 = vmul.f32 %v2577, %v255
      %v2589 = vmul.f32 %v2577, %v256
      %v2590 = vadd.f32 %v2550, %v2578
      %v2591 = vadd.f32 %v2551, %v2579
      %v2592 = vadd.f32 %v2552, %v2580
      %v2593 = vadd.f32 %v2553, %v2581
      %v2594 = vadd.f32 %v2554, %v2582
      %v2595 = vadd.f32 %v2555, %v2583
      %v2596 = vadd.f32 %v2556, %v2584
      %v2597 = vadd.f32 %v2557, %v2585
      %v2598 = vadd.f32 %v2558, %v2586
      %v2599 = vadd.f32 %v2559, %v2587
      %v2600 = vadd.f32 %v2560, %v2588
      %v2601 = vadd.f32 %v2561, %v2589
      %2602 = vrot.lane.b32.xlu0 %v257, 124
      %v2603 = vpop.permute.xlu0 %2602
      %2605 = vrot.lane.b32.xlu0 %v252, 124
      %v2606 = vpop.permute.xlu0 %2605
      %2607 = vrot.lane.b32.xlu0 %v253, 124
      %v2608 = vpop.permute.xlu0 %2607
      %2609 = vrot.lane.b32.xlu0 %v254, 124
      %v2610 = vpop.permute.xlu0 %2609
      %2611 = vrot.lane.b32.xlu0 %v255, 124
      %v2612 = vpop.permute.xlu0 %2611
      %2613 = vrot.lane.b32.xlu0 %v256, 124
      %v2614 = vpop.permute.xlu0 %2613
      %vm2615 = vcmask 1014784
      %v2616 = vsel %vm2615, %v2606, %v2608
      %v2617 = vsel %vm2615, %v2608, %v2610
      %v2618 = vsel %vm2615, %v2610, %v2612
      %v2619 = vsel %vm2615, %v2612, %v2614
      %v2620 = vsel %vm2615, %v2614, %v2603
      %v2627 = vsel %vm2615, %v2603, %v2606
      %s2628 = scalar_lea.vmem %s1, 58
      %v2629 = vld [vmem:[%s2628] sm:$0x3]
      %v2630 = vlaneseq
      %v2631 = vshrl.u32 %v2630, 7
      %v2632 = vsub.s32 0, %v2631
      %v2633 = vrot.slane %v2629, %v2632
      %2635 = vbcast.lane.b32.xlu0 %v2633, 256
      %v2636 = vpop.permute.xlu0 %2635
      %v2637 = vlaneseq
      %v2638 = vshrl.u32 %v2637, 7
      %v2639 = vsub.s32 1, %v2638
      %v2640 = vrot.slane %v2629, %v2639
      %2642 = vbcast.lane.b32.xlu0 %v2640, 256
      %v2643 = vpop.permute.xlu0 %2642
      %v2644 = vmul.f32 %v2636, %v2627
      %v2645 = vmul.f32 %v2636, %v2616
      %v2646 = vmul.f32 %v2636, %v2617
      %v2647 = vmul.f32 %v2636, %v2618
      %v2648 = vmul.f32 %v2636, %v2619
      %v2649 = vmul.f32 %v2636, %v2620
      %v2650 = vmul.f32 %v2643, %v2627
      %v2651 = vmul.f32 %v2643, %v2616
      %v2652 = vmul.f32 %v2643, %v2617
      %v2653 = vmul.f32 %v2643, %v2618
      %v2654 = vmul.f32 %v2643, %v2619
      %v2655 = vmul.f32 %v2643, %v2620
      %v2656 = vadd.f32 %v2590, %v2644
      %v2657 = vadd.f32 %v2591, %v2645
      %v2658 = vadd.f32 %v2592, %v2646
      %v2659 = vadd.f32 %v2593, %v2647
      %v2660 = vadd.f32 %v2594, %v2648
      %v2661 = vadd.f32 %v2595, %v2649
      %v2662 = vadd.f32 %v2596, %v2650
      %v2663 = vadd.f32 %v2597, %v2651
      %v2664 = vadd.f32 %v2598, %v2652
      %v2665 = vadd.f32 %v2599, %v2653
      %v2666 = vadd.f32 %v2600, %v2654
      %v2667 = vadd.f32 %v2601, %v2655
      %s2668 = scalar_lea.vmem %s1, 60
      %v2669 = vld [vmem:[%s2668] sm:$0x3]
      %v2670 = vlaneseq
      %v2671 = vshrl.u32 %v2670, 7
      %v2672 = vsub.s32 0, %v2671
      %v2673 = vrot.slane %v2669, %v2672
      %2675 = vbcast.lane.b32.xlu0 %v2673, 256
      %v2676 = vpop.permute.xlu0 %2675
      %v2677 = vlaneseq
      %v2678 = vshrl.u32 %v2677, 7
      %v2679 = vsub.s32 1, %v2678
      %v2680 = vrot.slane %v2669, %v2679
      %2682 = vbcast.lane.b32.xlu0 %v2680, 256
      %v2683 = vpop.permute.xlu0 %2682
      %v2684 = vmul.f32 %v2676, %v2521
      %v2685 = vmul.f32 %v2676, %v2512
      %v2686 = vmul.f32 %v2676, %v2513
      %v2687 = vmul.f32 %v2676, %v2514
      %v2688 = vmul.f32 %v2676, %v2515
      %v2689 = vmul.f32 %v2676, %v2501
      %v2690 = vmul.f32 %v2683, %v2521
      %v2691 = vmul.f32 %v2683, %v2512
      %v2692 = vmul.f32 %v2683, %v2513
      %v2693 = vmul.f32 %v2683, %v2514
      %v2694 = vmul.f32 %v2683, %v2515
      %v2695 = vmul.f32 %v2683, %v2501
      %v2696 = vadd.f32 %v2656, %v2684
      %v2697 = vadd.f32 %v2657, %v2685
      %v2698 = vadd.f32 %v2658, %v2686
      %v2699 = vadd.f32 %v2659, %v2687
      %v2700 = vadd.f32 %v2660, %v2688
      %v2701 = vadd.f32 %v2661, %v2689
      %v2702 = vadd.f32 %v2662, %v2690
      %v2703 = vadd.f32 %v2663, %v2691
      %v2704 = vadd.f32 %v2664, %v2692
      %v2705 = vadd.f32 %v2665, %v2693
      %v2706 = vadd.f32 %v2666, %v2694
      %v2707 = vadd.f32 %v2667, %v2695
      %s2708 = scalar_lea.vmem %s1, 62
      %v2709 = vld [vmem:[%s2708] sm:$0x3]
      %v2710 = vlaneseq
      %v2711 = vshrl.u32 %v2710, 7
      %v2712 = vsub.s32 0, %v2711
      %v2713 = vrot.slane %v2709, %v2712
      %2715 = vbcast.lane.b32.xlu0 %v2713, 256
      %v2716 = vpop.permute.xlu0 %2715
      %v2717 = vlaneseq
      %v2718 = vshrl.u32 %v2717, 7
      %v2719 = vsub.s32 1, %v2718
      %v2720 = vrot.slane %v2709, %v2719
      %2722 = vbcast.lane.b32.xlu0 %v2720, 256
      %v2723 = vpop.permute.xlu0 %2722
      %v2724 = vmul.f32 %v2716, %v252
      %v2725 = vmul.f32 %v2716, %v253
      %v2726 = vmul.f32 %v2716, %v254
      %v2727 = vmul.f32 %v2716, %v255
      %v2728 = vmul.f32 %v2716, %v256
      %v2729 = vmul.f32 %v2716, %v257
      %v2730 = vmul.f32 %v2723, %v252
      %v2731 = vmul.f32 %v2723, %v253
      %v2732 = vmul.f32 %v2723, %v254
      %v2733 = vmul.f32 %v2723, %v255
      %v2734 = vmul.f32 %v2723, %v256
      %v2735 = vmul.f32 %v2723, %v257
      %v2736 = vadd.f32 %v2696, %v2724
      %v2737 = vadd.f32 %v2697, %v2725
      %v2738 = vadd.f32 %v2698, %v2726
      %v2739 = vadd.f32 %v2699, %v2727
      %v2740 = vadd.f32 %v2700, %v2728
      %v2741 = vadd.f32 %v2701, %v2729
      %v2742 = vadd.f32 %v2702, %v2730
      %v2743 = vadd.f32 %v2703, %v2731
      %v2744 = vadd.f32 %v2704, %v2732
      %v2745 = vadd.f32 %v2705, %v2733
      %v2746 = vadd.f32 %v2706, %v2734
      %v2747 = vadd.f32 %v2707, %v2735
      %s2748 = scalar_lea.vmem %s1, 64
      %v2749 = vld [vmem:[%s2748] sm:$0x3]
      %v2750 = vlaneseq
      %v2751 = vshrl.u32 %v2750, 7
      %v2752 = vsub.s32 0, %v2751
      %v2753 = vrot.slane %v2749, %v2752
      %2755 = vbcast.lane.b32.xlu0 %v2753, 256
      %v2756 = vpop.permute.xlu0 %2755
      %v2757 = vlaneseq
      %v2758 = vshrl.u32 %v2757, 7
      %v2759 = vsub.s32 1, %v2758
      %v2760 = vrot.slane %v2749, %v2759
      %2762 = vbcast.lane.b32.xlu0 %v2760, 256
      %v2763 = vpop.permute.xlu0 %2762
      %v2764 = vmul.f32 %v2756, %v2616
      %v2765 = vmul.f32 %v2756, %v2617
      %v2766 = vmul.f32 %v2756, %v2618
      %v2767 = vmul.f32 %v2756, %v2619
      %v2768 = vmul.f32 %v2756, %v2620
      %v2769 = vmul.f32 %v2756, %v2627
      %v2770 = vmul.f32 %v2763, %v2616
      %v2771 = vmul.f32 %v2763, %v2617
      %v2772 = vmul.f32 %v2763, %v2618
      %v2773 = vmul.f32 %v2763, %v2619
      %v2774 = vmul.f32 %v2763, %v2620
      %v2775 = vmul.f32 %v2763, %v2627
      %v2776 = vadd.f32 %v2736, %v2764
      %v2777 = vadd.f32 %v2737, %v2765
      %v2778 = vadd.f32 %v2738, %v2766
      %v2779 = vadd.f32 %v2739, %v2767
      %v2780 = vadd.f32 %v2740, %v2768
      %v2781 = vadd.f32 %v2741, %v2769
      %v2782 = vadd.f32 %v2742, %v2770
      %v2783 = vadd.f32 %v2743, %v2771
      %v2784 = vadd.f32 %v2744, %v2772
      %v2785 = vadd.f32 %v2745, %v2773
      %v2786 = vadd.f32 %v2746, %v2774
      %v2787 = vadd.f32 %v2747, %v2775
      %s2788 = scalar_lea.vmem %s1, 66
      %v2789 = vld [vmem:[%s2788] sm:$0x3]
      %v2790 = vlaneseq
      %v2791 = vshrl.u32 %v2790, 7
      %v2792 = vsub.s32 0, %v2791
      %v2793 = vrot.slane %v2789, %v2792
      %2795 = vbcast.lane.b32.xlu0 %v2793, 256
      %v2796 = vpop.permute.xlu0 %2795
      %v2797 = vlaneseq
      %v2798 = vshrl.u32 %v2797, 7
      %v2799 = vsub.s32 1, %v2798
      %v2800 = vrot.slane %v2789, %v2799
      %2802 = vbcast.lane.b32.xlu0 %v2800, 256
      %v2803 = vpop.permute.xlu0 %2802
      %v2804 = vmul.f32 %v2796, %v2512
      %v2805 = vmul.f32 %v2796, %v2513
      %v2806 = vmul.f32 %v2796, %v2514
      %v2807 = vmul.f32 %v2796, %v2515
      %v2808 = vmul.f32 %v2796, %v2501
      %v2809 = vmul.f32 %v2796, %v2521
      %v2810 = vmul.f32 %v2803, %v2512
      %v2811 = vmul.f32 %v2803, %v2513
      %v2812 = vmul.f32 %v2803, %v2514
      %v2813 = vmul.f32 %v2803, %v2515
      %v2814 = vmul.f32 %v2803, %v2501
      %v2815 = vmul.f32 %v2803, %v2521
      %v2816 = vadd.f32 %v2776, %v2804
      %v2817 = vadd.f32 %v2777, %v2805
      %v2818 = vadd.f32 %v2778, %v2806
      %v2819 = vadd.f32 %v2779, %v2807
      %v2820 = vadd.f32 %v2780, %v2808
      %v2821 = vadd.f32 %v2781, %v2809
      %v2822 = vadd.f32 %v2782, %v2810
      %v2823 = vadd.f32 %v2783, %v2811
      %v2824 = vadd.f32 %v2784, %v2812
      %v2825 = vadd.f32 %v2785, %v2813
      %v2826 = vadd.f32 %v2786, %v2814
      %v2827 = vadd.f32 %v2787, %v2815
      %s2828 = scalar_lea.vmem %s1, 68
      %v2829 = vld [vmem:[%s2828] sm:$0x3]
      %v2830 = vlaneseq
      %v2831 = vshrl.u32 %v2830, 7
      %v2832 = vsub.s32 0, %v2831
      %v2833 = vrot.slane %v2829, %v2832
      %2835 = vbcast.lane.b32.xlu0 %v2833, 256
      %v2836 = vpop.permute.xlu0 %2835
      %v2837 = vlaneseq
      %v2838 = vshrl.u32 %v2837, 7
      %v2839 = vsub.s32 1, %v2838
      %v2840 = vrot.slane %v2829, %v2839
      %2842 = vbcast.lane.b32.xlu0 %v2840, 256
      %v2843 = vpop.permute.xlu0 %2842
      %v2844 = vmul.f32 %v2836, %v253
      %v2845 = vmul.f32 %v2836, %v254
      %v2846 = vmul.f32 %v2836, %v255
      %v2847 = vmul.f32 %v2836, %v256
      %v2848 = vmul.f32 %v2836, %v257
      %v2849 = vmul.f32 %v2836, %v252
      %v2850 = vmul.f32 %v2843, %v253
      %v2851 = vmul.f32 %v2843, %v254
      %v2852 = vmul.f32 %v2843, %v255
      %v2853 = vmul.f32 %v2843, %v256
      %v2854 = vmul.f32 %v2843, %v257
      %v2855 = vmul.f32 %v2843, %v252
      %v2856 = vadd.f32 %v2816, %v2844
      %v2857 = vadd.f32 %v2817, %v2845
      %v2858 = vadd.f32 %v2818, %v2846
      %v2859 = vadd.f32 %v2819, %v2847
      %v2860 = vadd.f32 %v2820, %v2848
      %v2861 = vadd.f32 %v2821, %v2849
      %v2862 = vadd.f32 %v2822, %v2850
      %v2863 = vadd.f32 %v2823, %v2851
      %v2864 = vadd.f32 %v2824, %v2852
      %v2865 = vadd.f32 %v2825, %v2853
      %v2866 = vadd.f32 %v2826, %v2854
      %v2867 = vadd.f32 %v2827, %v2855
      %s2868 = scalar_lea.vmem %s1, 70
      %v2869 = vld [vmem:[%s2868] sm:$0x3]
      %v2870 = vlaneseq
      %v2871 = vshrl.u32 %v2870, 7
      %v2872 = vsub.s32 0, %v2871
      %v2873 = vrot.slane %v2869, %v2872
      %2875 = vbcast.lane.b32.xlu0 %v2873, 256
      %v2876 = vpop.permute.xlu0 %2875
      %v2877 = vlaneseq
      %v2878 = vshrl.u32 %v2877, 7
      %v2879 = vsub.s32 1, %v2878
      %v2880 = vrot.slane %v2869, %v2879
      %2882 = vbcast.lane.b32.xlu0 %v2880, 256
      %v2883 = vpop.permute.xlu0 %2882
      %v2884 = vmul.f32 %v2876, %v2617
      %v2885 = vmul.f32 %v2876, %v2618
      %v2886 = vmul.f32 %v2876, %v2619
      %v2887 = vmul.f32 %v2876, %v2620
      %v2888 = vmul.f32 %v2876, %v2627
      %v2889 = vmul.f32 %v2876, %v2616
      %v2890 = vmul.f32 %v2883, %v2617
      %v2891 = vmul.f32 %v2883, %v2618
      %v2892 = vmul.f32 %v2883, %v2619
      %v2893 = vmul.f32 %v2883, %v2620
      %v2894 = vmul.f32 %v2883, %v2627
      %v2895 = vmul.f32 %v2883, %v2616
      %v2896 = vadd.f32 %v2856, %v2884
      %v2897 = vadd.f32 %v2857, %v2885
      %v2898 = vadd.f32 %v2858, %v2886
      %v2899 = vadd.f32 %v2859, %v2887
      %v2900 = vadd.f32 %v2860, %v2888
      %v2901 = vadd.f32 %v2861, %v2889
      %v2902 = vadd.f32 %v2862, %v2890
      %v2903 = vadd.f32 %v2863, %v2891
      %v2904 = vadd.f32 %v2864, %v2892
      %v2905 = vadd.f32 %v2865, %v2893
      %v2906 = vadd.f32 %v2866, %v2894
      %v2907 = vadd.f32 %v2867, %v2895
      %v2908 = vrot.slane %v2896, 4
      %v2909 = vadd.f32 %v2896, %v2908
      %v2910 = vrot.slane %v2909, 2
      %v2911 = vadd.f32 %v2909, %v2910
      %v2912 = vrot.slane %v2911, 1
      %v2913 = vadd.f32 %v2911, %v2912
      %v2914 = vrot.slane %v2897, 4
      %v2915 = vadd.f32 %v2897, %v2914
      %v2916 = vrot.slane %v2915, 2
      %v2917 = vadd.f32 %v2915, %v2916
      %v2918 = vrot.slane %v2917, 1
      %v2919 = vadd.f32 %v2917, %v2918
      %v2920 = vrot.slane %v2898, 4
      %v2921 = vadd.f32 %v2898, %v2920
      %v2922 = vrot.slane %v2921, 2
      %v2923 = vadd.f32 %v2921, %v2922
      %v2924 = vrot.slane %v2923, 1
      %v2925 = vadd.f32 %v2923, %v2924
      %v2926 = vrot.slane %v2899, 4
      %v2927 = vadd.f32 %v2899, %v2926
      %v2928 = vrot.slane %v2927, 2
      %v2929 = vadd.f32 %v2927, %v2928
      %v2930 = vrot.slane %v2929, 1
      %v2931 = vadd.f32 %v2929, %v2930
      %v2932 = vrot.slane %v2900, 4
      %v2933 = vadd.f32 %v2900, %v2932
      %v2934 = vrot.slane %v2933, 2
      %v2935 = vadd.f32 %v2933, %v2934
      %v2936 = vrot.slane %v2935, 1
      %v2937 = vadd.f32 %v2935, %v2936
      %v2938 = vrot.slane %v2901, 4
      %v2939 = vadd.f32 %v2901, %v2938
      %v2940 = vrot.slane %v2939, 2
      %v2941 = vadd.f32 %v2939, %v2940
      %v2942 = vrot.slane %v2941, 1
      %v2943 = vadd.f32 %v2941, %v2942
      %v2944 = vrot.slane %v2902, 4
      %v2945 = vadd.f32 %v2902, %v2944
      %v2946 = vrot.slane %v2945, 2
      %v2947 = vadd.f32 %v2945, %v2946
      %v2948 = vrot.slane %v2947, 1
      %v2949 = vadd.f32 %v2947, %v2948
      %v2950 = vrot.slane %v2903, 4
      %v2951 = vadd.f32 %v2903, %v2950
      %v2952 = vrot.slane %v2951, 2
      %v2953 = vadd.f32 %v2951, %v2952
      %v2954 = vrot.slane %v2953, 1
      %v2955 = vadd.f32 %v2953, %v2954
      %v2956 = vrot.slane %v2904, 4
      %v2957 = vadd.f32 %v2904, %v2956
      %v2958 = vrot.slane %v2957, 2
      %v2959 = vadd.f32 %v2957, %v2958
      %v2960 = vrot.slane %v2959, 1
      %v2961 = vadd.f32 %v2959, %v2960
      %v2962 = vrot.slane %v2905, 4
      %v2963 = vadd.f32 %v2905, %v2962
      %v2964 = vrot.slane %v2963, 2
      %v2965 = vadd.f32 %v2963, %v2964
      %v2966 = vrot.slane %v2965, 1
      %v2967 = vadd.f32 %v2965, %v2966
      %v2968 = vrot.slane %v2906, 4
      %v2969 = vadd.f32 %v2906, %v2968
      %v2970 = vrot.slane %v2969, 2
      %v2971 = vadd.f32 %v2969, %v2970
      %v2972 = vrot.slane %v2971, 1
      %v2973 = vadd.f32 %v2971, %v2972
      %v2974 = vrot.slane %v2907, 4
      %v2975 = vadd.f32 %v2907, %v2974
      %v2976 = vrot.slane %v2975, 2
      %v2977 = vadd.f32 %v2975, %v2976
      %v2978 = vrot.slane %v2977, 1
      %v2979 = vadd.f32 %v2977, %v2978
      %v2980 = vld [vmem:[%s2 + $0x6] sm:$0x3]
      %2982 = vset.pattern.permute.xlu0 0
      %2983 = vperm.xlu0 %2982, %v2980
      %v2984 = vpop.permute.xlu0 %2983
      %v2985 = vrot.slane %v2984, 1
      %v2988 = vadd.f32 %v2913, %v2984
      %v2989 = vadd.f32 %v2919, %v2984
      %v2990 = vadd.f32 %v2925, %v2984
      %v2991 = vadd.f32 %v2931, %v2984
      %v2992 = vadd.f32 %v2937, %v2984
      %v2993 = vadd.f32 %v2943, %v2984
      %v2994 = vadd.f32 %v2949, %v2985
      %v2995 = vadd.f32 %v2955, %v2985
      %v2996 = vadd.f32 %v2961, %v2985
      %v2997 = vadd.f32 %v2967, %v2985
      %v2998 = vadd.f32 %v2973, %v2985
      %v2999 = vadd.f32 %v2979, %v2985
      %v3000 = vmax.f32 %v2988, 0.0
      %v3001 = vmax.f32 %v2989, 0.0
      %v3002 = vmax.f32 %v2990, 0.0
      %v3003 = vmax.f32 %v2991, 0.0
      %v3004 = vmax.f32 %v2992, 0.0
      %v3005 = vmax.f32 %v2993, 0.0
      %v3006 = vmax.f32 %v2994, 0.0
      %v3007 = vmax.f32 %v2995, 0.0
      %v3008 = vmax.f32 %v2996, 0.0
      %v3009 = vmax.f32 %v2997, 0.0
      %v3010 = vmax.f32 %v2998, 0.0
      %v3011 = vmax.f32 %v2999, 0.0
      %v3012 = vld [vmem:[%s3 + $0x6] sm:$0x3]
      %3014 = vset.pattern.permute.xlu0 0
      %3015 = vperm.xlu0 %3014, %v3012
      %v3016 = vpop.permute.xlu0 %3015
      %v3017 = vrot.slane %v3016, 1
      %v3020 = vmul.f32 %v3000, %v3016
      %v3021 = vmul.f32 %v3001, %v3016
      %v3022 = vmul.f32 %v3002, %v3016
      %v3023 = vmul.f32 %v3003, %v3016
      %v3024 = vmul.f32 %v3004, %v3016
      %v3025 = vmul.f32 %v3005, %v3016
      %v3026 = vmul.f32 %v3006, %v3017
      %v3027 = vmul.f32 %v3007, %v3017
      %v3028 = vmul.f32 %v3008, %v3017
      %v3029 = vmul.f32 %v3009, %v3017
      %v3030 = vmul.f32 %v3010, %v3017
      %v3031 = vmul.f32 %v3011, %v3017
      %v3032 = vld [vmem:[%s4 + $0x6] sm:$0x3]
      %3034 = vset.pattern.permute.xlu0 0
      %3035 = vperm.xlu0 %3034, %v3032
      %v3036 = vpop.permute.xlu0 %3035
      %v3037 = vrot.slane %v3036, 1
      %v3040 = vadd.f32 %v3020, %v3036
      %v3041 = vadd.f32 %v3021, %v3036
      %v3042 = vadd.f32 %v3022, %v3036
      %v3043 = vadd.f32 %v3023, %v3036
      %v3044 = vadd.f32 %v3024, %v3036
      %v3045 = vadd.f32 %v3025, %v3036
      %v3046 = vadd.f32 %v3026, %v3037
      %v3047 = vadd.f32 %v3027, %v3037
      %v3048 = vadd.f32 %v3028, %v3037
      %v3049 = vadd.f32 %v3029, %v3037
      %v3050 = vadd.f32 %v3030, %v3037
      %v3051 = vadd.f32 %v3031, %v3037
      %v3052 = vmax.f32 %v3040, 0.0
      %v3053 = vmax.f32 %v3041, 0.0
      %v3054 = vmax.f32 %v3042, 0.0
      %v3055 = vmax.f32 %v3043, 0.0
      %v3056 = vmax.f32 %v3044, 0.0
      %v3057 = vmax.f32 %v3045, 0.0
      %v3058 = vmax.f32 %v3046, 0.0
      %v3059 = vmax.f32 %v3047, 0.0
      %v3060 = vmax.f32 %v3048, 0.0
      %v3061 = vmax.f32 %v3049, 0.0
      %v3062 = vmax.f32 %v3050, 0.0
      %v3063 = vmax.f32 %v3051, 0.0
      %v3064 = vmul.f32 %v3052, %v992
      %v3065 = vmul.f32 %v3053, %v996
      %v3066 = vmul.f32 %v3054, %v1000
      %v3067 = vmul.f32 %v3055, %v1004
      %v3068 = vmul.f32 %v3056, %v1008
      %v3069 = vmul.f32 %v3057, %v1012
      %v3070 = vmul.f32 %v3058, %v992
      %v3071 = vmul.f32 %v3059, %v996
      %v3072 = vmul.f32 %v3060, %v1000
      %v3073 = vmul.f32 %v3061, %v1004
      %v3074 = vmul.f32 %v3062, %v1008
      %v3075 = vmul.f32 %v3063, %v1012
      %v3088 = vrot.slane %v3064, 2
      %v3089 = vrot.slane %v3070, 1
      %vm3090 = vcmask 1047559
      %v3091 = vsel %vm3090, %v3089, %v3088
      %v3092 = vrot.slane %v3065, 2
      %v3093 = vrot.slane %v3071, 1
      %v3094 = vsel %vm3090, %v3093, %v3092
      %v3095 = vrot.slane %v3066, 2
      %v3096 = vrot.slane %v3072, 1
      %v3097 = vsel %vm3090, %v3096, %v3095
      %v3098 = vrot.slane %v3067, 2
      %v3099 = vrot.slane %v3073, 1
      %v3100 = vsel %vm3090, %v3099, %v3098
      %v3101 = vrot.slane %v3068, 2
      %v3102 = vrot.slane %v3074, 1
      %v3103 = vsel %vm3090, %v3102, %v3101
      %v3104 = vrot.slane %v3069, 2
      %v3105 = vrot.slane %v3075, 1
      %v3106 = vsel %vm3090, %v3105, %v3104
      %3113 = vst [vmem:[%s251] sm:$0xc0] %v3091
      %3114 = vst [vmem:[%s251 + $0x8] sm:$0xc0] %v3094
      %3115 = vst [vmem:[%s251 + $0x10] sm:$0xc0] %v3097
      %3116 = vst [vmem:[%s251 + $0x18] sm:$0xc0] %v3100
      %3117 = vst [vmem:[%s251 + $0x20] sm:$0xc0] %v3103
      %3118 = vst [vmem:[%s251 + $0x28] sm:$0xc0] %v3106
      %p3119 = scmp.lt.s32.totalorder %s17, 1
      %s3120 = scalar_select %p3119, %s17, 1
      %s3121 = smul.addr %s3120, 6
      %s3122 = smul.addr %s3121, 8
      %s3123 = scalar_lea.vmem %s6, %s3122
      // Predicated region
      $region45: #{_lambda_.3} parent=43 // pred_check
        %p3124 = pneg %p166
      $region46: #{_lambda_.3} parent=43 // pred_check_branch
        %3126 = sbr.rel (%p3124) target = $region48
      $region47: #{_lambda_.3} parent=43 // pred_region
        _
      $region48: #{_lambda_.3} parent=43 // pred_fallthru
        _
    $region44: #{_lambda_.3} parent=5 // pred_fallthru
      _
    %p3127 = scmp.le.s32.totalorder 2, %s12
    // Predicated region
    $region49: #{_lambda_.3} parent=5 // pred_check
      %p3128 = pneg %p3127
    $region50: #{_lambda_.3} parent=5 // pred_check_branch
      %3130 = sbr.rel (%p3128) target = $region52
    $region51: #{_lambda_.3} parent=5 // pred_region
      %s3131 = ssub.s32 %s12, 2
      // Predicated region
      $region53: #{_lambda_.3} parent=51 // pred_check
        %p3132 = pneg %p172
      $region54: #{_lambda_.3} parent=51 // pred_check_branch
        %3134 = sbr.rel (%p3132) target = $region56
      $region55: #{_lambda_.3} parent=51 // pred_region
        %p3135 = scmp.lt.s32.totalorder %s18, 1
        %s3136 = scalar_select %p3135, %s18, 1
        %s3137 = smul.addr %s3136, 6
        %s3138 = smul.addr %s3137, 8
        %s3139 = scalar_lea.vmem %s6, %s3138
      $region56: #{_lambda_.3} parent=51 // pred_fallthru
        _
    $region52: #{_lambda_.3} parent=5 // pred_fallthru
      _
  $region6: #{_lambda_.3} parent=0 // loop_footer
    %s16 = sadd.s32 1, %s12
  $region7: #{_lambda_.3} parent=0 // loop_footer_branch
    %11 = sbr.rel target = $region3
  $region8: #{_lambda_.3} parent=0 // loop_exit
    _

</llo_original>
